<compile_context>
chip_gen: v7x
topology: tpu7x:2x2x1
jax: 0.10.0
libtpu: 0.0.40
codegen_flags: <defaults>
</compile_context>

<pallas_src>
import functools

import jax
import jax.numpy as jnp
import numpy as np
from jax import lax
from jax.experimental import pallas as pl
from jax.experimental.pallas import tpu as pltpu

LANE = 128


def _round_up(x, m):
    return (x + m - 1) // m * m


def _est_vmem(tr, wo, cp0, cmp_):
    """Rough VMEM bytes for one grid step at row tile `tr`."""
    rwin = tr + 6
    cpmax = max(cp0, cmp_)
    b = 2 * rwin * (wo + 16) * cp0 * 2          # double-buffered input window
    b += (tr + 4) * (wo + 16) * cmp_ * 2        # conv1 output stage (s1)
    b += (tr + 2) * (wo + 16) * cmp_ * 2        # conv2 output stage (s2)
    b += (tr + 4) * wo * 9 * cpmax * 2          # im2col patch
    b += 2 * tr * wo * cmp_ * 4                 # double-buffered f32 out block
    b += 2 * 9 * (cp0 + 2 * cmp_) * cmp_ * 2    # resident (double-buffered) weights
    return b


def _pick_row_tile(ho, wo, cp0, cmp_, budget):
    """Largest row tile fitting the VMEM budget; tiles are balanced and need
    not divide `ho` (the last tile is masked)."""
    tr = 1
    for cand in (64, 48, 32, 24, 16, 12, 8, 6, 4, 2, 1):
        if cand <= ho and _est_vmem(cand, wo, cp0, cmp_) <= budget:
            tr = cand
            break
    nt = -(-ho // tr)
    # keep >=2 row tiles per image when it is big enough, so the input-DMA
    # prefetch / output double buffering has compute to hide behind
    if ho >= 16 and nt < 2:
        nt = 2
    return -(-ho // nt)


# ---------------------------------------------------------------------------
# Fused ConvD kernel: one grid step = one (image, row-tile) of the output.
# ---------------------------------------------------------------------------
def _convd_kernel(x_hbm, w1_ref, w2_ref, w3_ref, sc_ref, sh_ref, out_ref,
                  xbuf, s1_ref, s2_ref, patch_ref, dma_sem,
                  *, tr, ho, wo, cp0, cmp_, n_tiles):
    n = pl.program_id(0)
    t = pl.program_id(1)
    rwin = tr + 6
    r0 = t * tr                      # first output row of this tile

    def start_dma(tile, slot):
        pltpu.make_async_copy(x_hbm.at[n, pl.ds(tile * tr, rwin)],
                              xbuf.at[slot], dma_sem.at[slot]).start()

    # --- per-image warm-up: fetch tile 0; zero the persistent padding columns
    @pl.when(t == 0)
    def _():
        start_dma(0, 0)
        z1 = jnp.zeros((tr + 4, 8, cmp_), jnp.bfloat16)
        s1_ref[:, 0:8, :] = z1
        s1_ref[:, 8 + wo:16 + wo, :] = z1
        z2 = jnp.zeros((tr + 2, 8, cmp_), jnp.bfloat16)
        s2_ref[:, 0:8, :] = z2
        s2_ref[:, 8 + wo:16 + wo, :] = z2

    slot = lax.rem(t, 2)
    # wait for this tile's input row window
    pltpu.make_async_copy(x_hbm.at[n, pl.ds(r0, rwin)],
                          xbuf.at[slot], dma_sem.at[slot]).wait()
    # prefetch the next row tile of the same image (hidden behind this compute)
    @pl.when(t + 1 < n_tiles)
    def _():
        start_dma(t + 1, 1 - slot)

    # --- one 3x3 conv + folded BN (+ReLU) as a single MXU matmul -------------
    def conv_stage(get, r_out, cp_in, w_ref, idx, relu):
        m = r_out * wo
        for dy in range(3):
            for dx in range(3):
                k = dy * 3 + dx
                patch_ref[0:m, k * cp_in:(k + 1) * cp_in] = get(dy, dx, r_out)
        acc = jnp.dot(patch_ref[0:m, 0:9 * cp_in], w_ref[...],
                      preferred_element_type=jnp.float32)      # (m, cmp_) f32
        y = acc.reshape(r_out, wo, cmp_)
        y = y * sc_ref[idx] + sh_ref[idx]                       # folded BN, f32
        if relu:
            y = jnp.maximum(y, 0.0)
        return y

    def get_x(dy, dx, r_out):                 # conv1 reads the DMA'd window
        return xbuf[pl.ds(slot, 1), dy:dy + r_out,
                    7 + dx:7 + dx + wo, :].reshape(r_out * wo, cp0)

    def make_get(src_ref):                    # conv2/conv3 read stage buffers
        def get(dy, dx, r_out):
            return src_ref[dy:dy + r_out,
                           7 + dx:7 + dx + wo, :].reshape(r_out * wo, cmp_)
        return get

    def store_stage(dst_ref, y, row_offset):
        # Rows outside the image are the *next* conv's zero padding -> zero them.
        r_out = y.shape[0]
        row = lax.broadcasted_iota(jnp.int32, (r_out, 1, 1), 0) + (r0 + row_offset)
        y = jnp.where((row >= 0) & (row < ho), y, 0.0)
        dst_ref[:, 8:8 + wo, :] = y.astype(jnp.bfloat16)

    y1 = conv_stage(get_x, tr + 4, cp0, w1_ref, 0, relu=False)
    store_stage(s1_ref, y1, -2)
    y2 = conv_stage(make_get(s1_ref), tr + 2, cmp_, w2_ref, 1, relu=True)
    store_stage(s2_ref, y2, -1)
    y3 = conv_stage(make_get(s2_ref), tr, cmp_, w3_ref, 2, relu=True)
    out_ref[0] = y3


# ---------------------------------------------------------------------------
# Wrapper: layout plumbing + pallas_call.
# ---------------------------------------------------------------------------
def convd_forward(x_nchw, params, first=False, vmem_budget_bytes=40 * 2**20):
    N, Cin, H, W = x_nchw.shape
    planes = int(params["planes"])
    cp0 = params["w1m"].shape[0] // 9
    cmp_ = params["w1m"].shape[1]

    # NCHW -> NHWC; maxpool (if not first) fused into this single pre-pass so
    # the kernel's DMA source is already the lane-dense conv1 input.
    x = jnp.transpose(x_nchw, (0, 2, 3, 1))
    if first:
        ho, wo = H, W
    else:
        assert H % 2 == 0 and W % 2 == 0, "maxpool(2) needs even H, W"
        ho, wo = H // 2, W // 2
        x = lax.reduce_window(x, -jnp.inf, lax.max,
                              (1, 2, 2, 1), (1, 2, 2, 1), "VALID")
    assert wo % 8 == 0, "width after pooling must be a multiple of 8"
    x = x.astype(jnp.bfloat16)

    tr = _pick_row_tile(ho, wo, cp0, cmp_, vmem_budget_bytes)
    n_tiles = -(-ho // tr)
    rp = n_tiles * tr + 6                     # padded rows (3-row halo + last-tile pad)
    rwin = tr + 6

    # halo pad: 3 rows / 8 cols each side, channels zero-padded to a 128 multiple
    xk = jnp.pad(x, ((0, 0), (3, rp - ho - 3), (8, 8), (0, cp0 - Cin)))

    kern = functools.partial(_convd_kernel, tr=tr, ho=ho, wo=wo,
                             cp0=cp0, cmp_=cmp_, n_tiles=n_tiles)

    est = _est_vmem(tr, wo, cp0, cmp_)
    vmem_limit = min(max(48 * 2**20, est + (8 << 20)), 120 * 2**20)

    out = pl.pallas_call(
        kern,
        out_shape=jax.ShapeDtypeStruct((N, n_tiles * tr, wo, cmp_), jnp.float32),
        grid=(N, n_tiles),
        in_specs=[
            pl.BlockSpec(memory_space=pl.ANY),                       # raw input, manual DMA
            pl.BlockSpec(params["w1m"].shape, lambda n, t: (0, 0)),  # resident weights
            pl.BlockSpec(params["w2m"].shape, lambda n, t: (0, 0)),
            pl.BlockSpec(params["w3m"].shape, lambda n, t: (0, 0)),
            pl.BlockSpec(params["scales"].shape, lambda n, t: (0, 0)),
            pl.BlockSpec(params["shifts"].shape, lambda n, t: (0, 0)),
        ],
        out_specs=pl.BlockSpec((1, tr, wo, cmp_), lambda n, t: (n, t, 0, 0)),
        scratch_shapes=[
            pltpu.VMEM((2, rwin, wo + 16, cp0), jnp.bfloat16),       # dbl-buffered input win
            pltpu.VMEM((tr + 4, wo + 16, cmp_), jnp.bfloat16),       # conv1+bn output
            pltpu.VMEM((tr + 2, wo + 16, cmp_), jnp.bfloat16),       # conv2+bn+relu output
            pltpu.VMEM(((tr + 4) * wo, 9 * max(cp0, cmp_)), jnp.bfloat16),  # im2col patch
            pltpu.SemaphoreType.DMA((2,)),
        ],
        compiler_params=pltpu.CompilerParams(
            # batch axis parallel (v7x megacore); row-tile axis must stay
            # sequential per core for the manual DMA prefetch ordering.
            dimension_semantics=("parallel", "arbitrary"),
            vmem_limit_bytes=vmem_limit),
    )(xk, params["w1m"], params["w2m"], params["w3m"],
      params["scales"], params["shifts"])

    out = out[:, :ho, :, :planes]             # drop row / lane padding
    return jnp.transpose(out, (0, 3, 1, 2))   # NHWC -> NCHW


# ---------------------------------------------------------------------------
# Parameter setup (deterministic, PyTorch-like shapes) + BN folding.
# ---------------------------------------------------------------------------
def _init_conv(key, cin, cout):
    kw, kb = jax.random.split(key)
    bound = 1.0 / np.sqrt(cin * 9)
    w = jax.random.uniform(kw, (3, 3, cin, cout), jnp.float32, -bound, bound)
    b = jax.random.uniform(kb, (cout,), jnp.float32, -bound, bound)
    return w, b


def _init_bn(key, c):
    kg, kb, km, kv = jax.random.split(key, 4)
    gamma = jax.random.uniform(kg, (c,), jnp.float32, 0.5, 1.5)
    beta = 0.1 * jax.random.normal(kb, (c,), jnp.float32)
    mean = 0.1 * jax.random.normal(km, (c,), jnp.float32)
    var = jax.random.uniform(kv, (c,), jnp.float32, 0.5, 1.5)
    return gamma, beta, mean, var


def _fold_bn(conv_b, gamma, beta, mean, var, eps=1e-5):
    s = gamma / jnp.sqrt(var + eps)
    return s, beta + (conv_b - mean) * s


def init_convd_params(key, inplanes, planes):
    ks = jax.random.split(key, 6)
    cp0 = _round_up(inplanes, LANE)
    cmp_ = _round_up(planes, LANE)
    cins = [inplanes, planes, planes]
    cps = [cp0, cmp_, cmp_]
    params = {"planes": planes}
    scales = jnp.zeros((3, cmp_), jnp.float32)
    shifts = jnp.zeros((3, cmp_), jnp.float32)
    for i in range(3):
        w, b = _init_conv(ks[2 * i], cins[i], planes)
        g, bt, mu, var = _init_bn(ks[2 * i + 1], planes)
        s, sh = _fold_bn(b, g, bt, mu, var)
        params[f"w{i + 1}"] = w                 # HWIO f32 (reference)
        params[f"scale{i + 1}"] = s
        params[f"shift{i + 1}"] = sh
        # Kernel weight: (9 * Cin_pad, Cout_pad) bf16, zero in padded rows/cols.
        wp = jnp.zeros((9, cps[i], cmp_), jnp.float32)
        wp = wp.at[:, :cins[i], :planes].set(w.reshape(9, cins[i], planes))
        params[f"w{i + 1}m"] = wp.reshape(9 * cps[i], cmp_).astype(jnp.bfloat16)
        scales = scales.at[i, :planes].set(s)
        shifts = shifts.at[i, :planes].set(sh)
    params["scales"] = scales
    params["shifts"] = shifts
    return params


# ---------------------------------------------------------------------------
# Pure-JAX reference with the same bf16 matmul-operand casting as the kernel
# (BN/ReLU in f32, f32 accumulation).
# ---------------------------------------------------------------------------
def convd_reference(x_nchw, params, first=False):
    x = jnp.transpose(x_nchw, (0, 2, 3, 1)).astype(jnp.float32)
    if not first:
        x = lax.reduce_window(x, -jnp.inf, lax.max,
                              (1, 2, 2, 1), (1, 2, 2, 1), "VALID")

    def conv_bn(x, w, scale, shift, act):
        y = lax.conv_general_dilated(
            x.astype(jnp.bfloat16), w.astype(jnp.bfloat16),
            window_strides=(1, 1), padding="SAME",
            dimension_numbers=("NHWC", "HWIO", "NHWC"),
            preferred_element_type=jnp.float32)
        y = y * scale + shift
        return jnp.maximum(y, 0.0) if act else y

    x = conv_bn(x, params["w1"], params["scale1"], params["shift1"], False)
    y = conv_bn(x, params["w2"], params["scale2"], params["shift2"], True)
    z = conv_bn(y, params["w3"], params["scale3"], params["shift3"], True)
    return jnp.transpose(z, (0, 3, 1, 2))


if __name__ == "__main__":
    root = jax.random.PRNGKey(0)

    cases = [
        # (N, Cin, H, W, planes, first)
        (2, 4, 16, 16, 8, False),    # pooled path, single row tile per image
        (2, 4, 16, 16, 8, True),     # 'first' path, 2 row tiles (DMA prefetch)
        (2, 10, 64, 64, 24, False),  # pooled path, multi-tile halo + masking
        (1, 3, 21, 16, 16, True),    # odd height: non-dividing, masked last tile
    ]
    for i, (n, cin, h, w, planes, first) in enumerate(cases):
        kx, kp = jax.random.split(jax.random.fold_in(root, i))
        x = jax.random.normal(kx, (n, cin, h, w), jnp.float32)
        params = init_convd_params(kp, cin, planes)

        out = jax.block_until_ready(convd_forward(x, params, first=first))
        ref = convd_reference(x, params, first=first)

        ho = h if first else h // 2
        wo = w if first else w // 2
        assert out.shape == (n, planes, ho, wo), out.shape
        np.testing.assert_allclose(np.asarray(out), np.asarray(ref),
                                   rtol=2e-3, atol=2e-3)

    print("KERNEL_OK")
</pallas_src>

<mosaic_0001>
module attributes {stable_mosaic.version = 11 : i64} {
  func.func @_convd_kernel(%arg0: i32, %arg1: i32, %arg2: memref<2x14x24x128xbf16, #tpu.memory_space<any>>, %arg3: memref<1152x128xbf16, #tpu.memory_space<vmem>>, %arg4: memref<1152x128xbf16, #tpu.memory_space<vmem>>, %arg5: memref<1152x128xbf16, #tpu.memory_space<vmem>>, %arg6: memref<3x128xf32, #tpu.memory_space<vmem>>, %arg7: memref<3x128xf32, #tpu.memory_space<vmem>>, %arg8: memref<1x8x8x128xf32, #tpu.memory_space<vmem>>, %arg9: memref<2x14x24x128xbf16, #tpu.memory_space<vmem>>, %arg10: memref<12x24x128xbf16, #tpu.memory_space<vmem>>, %arg11: memref<10x24x128xbf16, #tpu.memory_space<vmem>>, %arg12: memref<96x1152xbf16, #tpu.memory_space<vmem>>, %arg13: memref<2x!tpu.dma_semaphore, #tpu.memory_space<semaphore_mem>>) attributes {dimension_semantics = [#tpu.dimension_semantics<parallel>, #tpu.dimension_semantics<arbitrary>], iteration_bounds = array<i64: 2, 1>, scalar_prefetch = 0 : i64, scratch_operands = 5 : i64, tpu.core_type = #tpu.core_type<tc>, window_params = [{}, {pipeline_mode = #tpu.pipeline_mode<synchronous>, transform_indices = @transform_1, window_bounds = array<i64: 1152, 128>}, {pipeline_mode = #tpu.pipeline_mode<synchronous>, transform_indices = @transform_2, window_bounds = array<i64: 1152, 128>}, {pipeline_mode = #tpu.pipeline_mode<synchronous>, transform_indices = @transform_3, window_bounds = array<i64: 1152, 128>}, {pipeline_mode = #tpu.pipeline_mode<synchronous>, transform_indices = @transform_4, window_bounds = array<i64: 3, 128>}, {pipeline_mode = #tpu.pipeline_mode<synchronous>, transform_indices = @transform_5, window_bounds = array<i64: 3, 128>}, {transform_indices = @transform_6, window_bounds = array<i64: 1, 8, 8, 128>}]} {
    %c8_i32 = arith.constant 8 : i32
    %0 = arith.muli %arg1, %c8_i32 : i32
    %c0_i32 = arith.constant 0 : i32
    %1 = arith.cmpi eq, %arg1, %c0_i32 : i32
    %2 = arith.extui %1 : i1 to i32
    %c0_i32_0 = arith.constant 0 : i32
    %3 = arith.cmpi ne, %2, %c0_i32_0 : i32
    scf.if %3 {
      %c0_i32_173 = arith.constant 0 : i32
      %c0_i32_174 = arith.constant 0 : i32
      %c0_i32_175 = arith.constant 0 : i32
      %c0_i32_176 = arith.constant 0 : i32
      %c0_i32_177 = arith.constant 0 : i32
      %184 = tpu.memref_slice %arg2[%arg0, %c0_i32_175, %c0_i32_176, %c0_i32_177] : memref<2x14x24x128xbf16, #tpu.memory_space<any>> -> memref<1x14x24x128xbf16, #tpu.memory_space<any>>
      %185 = tpu.memref_squeeze %184 : memref<1x14x24x128xbf16, #tpu.memory_space<any>> -> memref<14x24x128xbf16, #tpu.memory_space<any>>
      %c0_i32_178 = arith.constant 0 : i32
      %c0_i32_179 = arith.constant 0 : i32
      %c0_i32_180 = arith.constant 0 : i32
      %186 = tpu.memref_slice %arg9[%c0_i32_173, %c0_i32_178, %c0_i32_179, %c0_i32_180] : memref<2x14x24x128xbf16, #tpu.memory_space<vmem>> -> memref<1x14x24x128xbf16, #tpu.memory_space<vmem>>
      %187 = tpu.memref_squeeze %186 : memref<1x14x24x128xbf16, #tpu.memory_space<vmem>> -> memref<14x24x128xbf16, #tpu.memory_space<vmem>>
      %188 = tpu.memref_slice %arg13[%c0_i32_174] : memref<2x!tpu.dma_semaphore, #tpu.memory_space<semaphore_mem>> -> memref<1x!tpu.dma_semaphore, #tpu.memory_space<semaphore_mem>>
      %189 = tpu.memref_squeeze %188 : memref<1x!tpu.dma_semaphore, #tpu.memory_space<semaphore_mem>> -> memref<!tpu.dma_semaphore, #tpu.memory_space<semaphore_mem>>
      tpu.enqueue_dma source(%185 : memref<14x24x128xbf16, #tpu.memory_space<any>>) target(%187 : memref<14x24x128xbf16, #tpu.memory_space<vmem>>) target_semaphore(%189 : memref<!tpu.dma_semaphore, #tpu.memory_space<semaphore_mem>>)
      %cst_181 = arith.constant 0.000000e+00 : bf16
      %190 = vector.broadcast %cst_181 : bf16 to vector<12x8x128xbf16>
      %c0_182 = arith.constant 0 : index
      %c0_183 = arith.constant 0 : index
      %c0_184 = arith.constant 0 : index
      %191 = vector.load %arg10[%c0_182, %c0_183, %c0_184] : memref<12x24x128xbf16, #tpu.memory_space<vmem>>, vector<12x8x128xbf16>
      tpu.vector_store %arg10[%c0_182, %c0_183, %c0_184], %190 {strides = array<i32>} : memref<12x24x128xbf16, #tpu.memory_space<vmem>>, vector<12x8x128xbf16>,
      %c0_185 = arith.constant 0 : index
      %c16 = arith.constant 16 : index
      %c0_186 = arith.constant 0 : index
      %192 = vector.load %arg10[%c0_185, %c16, %c0_186] : memref<12x24x128xbf16, #tpu.memory_space<vmem>>, vector<12x8x128xbf16>
      tpu.vector_store %arg10[%c0_185, %c16, %c0_186], %190 {strides = array<i32>} : memref<12x24x128xbf16, #tpu.memory_space<vmem>>, vector<12x8x128xbf16>,
      %cst_187 = arith.constant 0.000000e+00 : bf16
      %193 = vector.broadcast %cst_187 : bf16 to vector<10x8x128xbf16>
      %c0_188 = arith.constant 0 : index
      %c0_189 = arith.constant 0 : index
      %c0_190 = arith.constant 0 : index
      %194 = vector.load %arg11[%c0_188, %c0_189, %c0_190] : memref<10x24x128xbf16, #tpu.memory_space<vmem>>, vector<10x8x128xbf16>
      tpu.vector_store %arg11[%c0_188, %c0_189, %c0_190], %193 {strides = array<i32>} : memref<10x24x128xbf16, #tpu.memory_space<vmem>>, vector<10x8x128xbf16>,
      %c0_191 = arith.constant 0 : index
      %c16_192 = arith.constant 16 : index
      %c0_193 = arith.constant 0 : index
      %195 = vector.load %arg11[%c0_191, %c16_192, %c0_193] : memref<10x24x128xbf16, #tpu.memory_space<vmem>>, vector<10x8x128xbf16>
      tpu.vector_store %arg11[%c0_191, %c16_192, %c0_193], %193 {strides = array<i32>} : memref<10x24x128xbf16, #tpu.memory_space<vmem>>, vector<10x8x128xbf16>,
    } else {
    }
    %c2_i32 = arith.constant 2 : i32
    %4 = arith.remsi %arg1, %c2_i32 : i32
    %c0_i32_1 = arith.constant 0 : i32
    %c0_i32_2 = arith.constant 0 : i32
    %5 = tpu.memref_slice %arg2[%arg0, %0, %c0_i32_1, %c0_i32_2] : memref<2x14x24x128xbf16, #tpu.memory_space<any>> -> memref<1x14x24x128xbf16, #tpu.memory_space<any>>
    %6 = tpu.memref_squeeze %5 : memref<1x14x24x128xbf16, #tpu.memory_space<any>> -> memref<14x24x128xbf16, #tpu.memory_space<any>>
    %c0_i32_3 = arith.constant 0 : i32
    %c0_i32_4 = arith.constant 0 : i32
    %c0_i32_5 = arith.constant 0 : i32
    %7 = tpu.memref_slice %arg9[%4, %c0_i32_3, %c0_i32_4, %c0_i32_5] : memref<2x14x24x128xbf16, #tpu.memory_space<vmem>> -> memref<1x14x24x128xbf16, #tpu.memory_space<vmem>>
    %8 = tpu.memref_squeeze %7 : memref<1x14x24x128xbf16, #tpu.memory_space<vmem>> -> memref<14x24x128xbf16, #tpu.memory_space<vmem>>
    %9 = tpu.memref_slice %arg13[%4] : memref<2x!tpu.dma_semaphore, #tpu.memory_space<semaphore_mem>> -> memref<1x!tpu.dma_semaphore, #tpu.memory_space<semaphore_mem>>
    %10 = tpu.memref_squeeze %9 : memref<1x!tpu.dma_semaphore, #tpu.memory_space<semaphore_mem>> -> memref<!tpu.dma_semaphore, #tpu.memory_space<semaphore_mem>>
    tpu.wait_dma2 semaphore(%10 : memref<!tpu.dma_semaphore, #tpu.memory_space<semaphore_mem>>) src(%6 : memref<14x24x128xbf16, #tpu.memory_space<any>>) dst(%8 : memref<14x24x128xbf16, #tpu.memory_space<vmem>>)
    %c1_i32 = arith.constant 1 : i32
    %11 = arith.addi %arg1, %c1_i32 : i32
    %c1_i32_6 = arith.constant 1 : i32
    %12 = arith.cmpi slt, %11, %c1_i32_6 : i32
    %13 = arith.extui %12 : i1 to i32
    %c0_i32_7 = arith.constant 0 : i32
    %14 = arith.cmpi ne, %13, %c0_i32_7 : i32
    scf.if %14 {
      %c1_i32_173 = arith.constant 1 : i32
      %184 = arith.addi %arg1, %c1_i32_173 : i32
      %c1_i32_174 = arith.constant 1 : i32
      %185 = arith.subi %c1_i32_174, %4 : i32
      %c8_i32_175 = arith.constant 8 : i32
      %186 = arith.muli %184, %c8_i32_175 : i32
      %c0_i32_176 = arith.constant 0 : i32
      %c0_i32_177 = arith.constant 0 : i32
      %187 = tpu.memref_slice %arg2[%arg0, %186, %c0_i32_176, %c0_i32_177] : memref<2x14x24x128xbf16, #tpu.memory_space<any>> -> memref<1x14x24x128xbf16, #tpu.memory_space<any>>
      %188 = tpu.memref_squeeze %187 : memref<1x14x24x128xbf16, #tpu.memory_space<any>> -> memref<14x24x128xbf16, #tpu.memory_space<any>>
      %c0_i32_178 = arith.constant 0 : i32
      %c0_i32_179 = arith.constant 0 : i32
      %c0_i32_180 = arith.constant 0 : i32
      %189 = tpu.memref_slice %arg9[%185, %c0_i32_178, %c0_i32_179, %c0_i32_180] : memref<2x14x24x128xbf16, #tpu.memory_space<vmem>> -> memref<1x14x24x128xbf16, #tpu.memory_space<vmem>>
      %190 = tpu.memref_squeeze %189 : memref<1x14x24x128xbf16, #tpu.memory_space<vmem>> -> memref<14x24x128xbf16, #tpu.memory_space<vmem>>
      %191 = tpu.memref_slice %arg13[%185] : memref<2x!tpu.dma_semaphore, #tpu.memory_space<semaphore_mem>> -> memref<1x!tpu.dma_semaphore, #tpu.memory_space<semaphore_mem>>
      %192 = tpu.memref_squeeze %191 : memref<1x!tpu.dma_semaphore, #tpu.memory_space<semaphore_mem>> -> memref<!tpu.dma_semaphore, #tpu.memory_space<semaphore_mem>>
      tpu.enqueue_dma source(%188 : memref<14x24x128xbf16, #tpu.memory_space<any>>) target(%190 : memref<14x24x128xbf16, #tpu.memory_space<vmem>>) target_semaphore(%192 : memref<!tpu.dma_semaphore, #tpu.memory_space<semaphore_mem>>)
    } else {
    }
    %15 = arith.index_cast %4 : i32 to index
    %c0 = arith.constant 0 : index
    %c7 = arith.constant 7 : index
    %c0_8 = arith.constant 0 : index
    %16 = vector.load %arg9[%15, %c0, %c7, %c0_8] : memref<2x14x24x128xbf16, #tpu.memory_space<vmem>>, vector<1x12x8x128xbf16>
    %17 = vector.shape_cast %16 : vector<1x12x8x128xbf16> to vector<96x128xbf16>
    %c0_9 = arith.constant 0 : index
    %c0_10 = arith.constant 0 : index
    %18 = vector.load %arg12[%c0_9, %c0_10] : memref<96x1152xbf16, #tpu.memory_space<vmem>>, vector<96x128xbf16>
    tpu.vector_store %arg12[%c0_9, %c0_10], %17 {strides = array<i32>} : memref<96x1152xbf16, #tpu.memory_space<vmem>>, vector<96x128xbf16>,
    %19 = arith.index_cast %4 : i32 to index
    %c0_11 = arith.constant 0 : index
    %c8 = arith.constant 8 : index
    %c0_12 = arith.constant 0 : index
    %20 = vector.load %arg9[%19, %c0_11, %c8, %c0_12] : memref<2x14x24x128xbf16, #tpu.memory_space<vmem>>, vector<1x12x8x128xbf16>
    %21 = vector.shape_cast %20 : vector<1x12x8x128xbf16> to vector<96x128xbf16>
    %c0_13 = arith.constant 0 : index
    %c128 = arith.constant 128 : index
    %22 = vector.load %arg12[%c0_13, %c128] : memref<96x1152xbf16, #tpu.memory_space<vmem>>, vector<96x128xbf16>
    tpu.vector_store %arg12[%c0_13, %c128], %21 {strides = array<i32>} : memref<96x1152xbf16, #tpu.memory_space<vmem>>, vector<96x128xbf16>,
    %23 = arith.index_cast %4 : i32 to index
    %c0_14 = arith.constant 0 : index
    %c9 = arith.constant 9 : index
    %c0_15 = arith.constant 0 : index
    %24 = vector.load %arg9[%23, %c0_14, %c9, %c0_15] : memref<2x14x24x128xbf16, #tpu.memory_space<vmem>>, vector<1x12x8x128xbf16>
    %25 = vector.shape_cast %24 : vector<1x12x8x128xbf16> to vector<96x128xbf16>
    %c0_16 = arith.constant 0 : index
    %c256 = arith.constant 256 : index
    %26 = vector.load %arg12[%c0_16, %c256] : memref<96x1152xbf16, #tpu.memory_space<vmem>>, vector<96x128xbf16>
    tpu.vector_store %arg12[%c0_16, %c256], %25 {strides = array<i32>} : memref<96x1152xbf16, #tpu.memory_space<vmem>>, vector<96x128xbf16>,
    %27 = arith.index_cast %4 : i32 to index
    %c1 = arith.constant 1 : index
    %c7_17 = arith.constant 7 : index
    %c0_18 = arith.constant 0 : index
    %28 = vector.load %arg9[%27, %c1, %c7_17, %c0_18] : memref<2x14x24x128xbf16, #tpu.memory_space<vmem>>, vector<1x12x8x128xbf16>
    %29 = vector.shape_cast %28 : vector<1x12x8x128xbf16> to vector<96x128xbf16>
    %c0_19 = arith.constant 0 : index
    %c384 = arith.constant 384 : index
    %30 = vector.load %arg12[%c0_19, %c384] : memref<96x1152xbf16, #tpu.memory_space<vmem>>, vector<96x128xbf16>
    tpu.vector_store %arg12[%c0_19, %c384], %29 {strides = array<i32>} : memref<96x1152xbf16, #tpu.memory_space<vmem>>, vector<96x128xbf16>,
    %31 = arith.index_cast %4 : i32 to index
    %c1_20 = arith.constant 1 : index
    %c8_21 = arith.constant 8 : index
    %c0_22 = arith.constant 0 : index
    %32 = vector.load %arg9[%31, %c1_20, %c8_21, %c0_22] : memref<2x14x24x128xbf16, #tpu.memory_space<vmem>>, vector<1x12x8x128xbf16>
    %33 = vector.shape_cast %32 : vector<1x12x8x128xbf16> to vector<96x128xbf16>
    %c0_23 = arith.constant 0 : index
    %c512 = arith.constant 512 : index
    %34 = vector.load %arg12[%c0_23, %c512] : memref<96x1152xbf16, #tpu.memory_space<vmem>>, vector<96x128xbf16>
    tpu.vector_store %arg12[%c0_23, %c512], %33 {strides = array<i32>} : memref<96x1152xbf16, #tpu.memory_space<vmem>>, vector<96x128xbf16>,
    %35 = arith.index_cast %4 : i32 to index
    %c1_24 = arith.constant 1 : index
    %c9_25 = arith.constant 9 : index
    %c0_26 = arith.constant 0 : index
    %36 = vector.load %arg9[%35, %c1_24, %c9_25, %c0_26] : memref<2x14x24x128xbf16, #tpu.memory_space<vmem>>, vector<1x12x8x128xbf16>
    %37 = vector.shape_cast %36 : vector<1x12x8x128xbf16> to vector<96x128xbf16>
    %c0_27 = arith.constant 0 : index
    %c640 = arith.constant 640 : index
    %38 = vector.load %arg12[%c0_27, %c640] : memref<96x1152xbf16, #tpu.memory_space<vmem>>, vector<96x128xbf16>
    tpu.vector_store %arg12[%c0_27, %c640], %37 {strides = array<i32>} : memref<96x1152xbf16, #tpu.memory_space<vmem>>, vector<96x128xbf16>,
    %39 = arith.index_cast %4 : i32 to index
    %c2 = arith.constant 2 : index
    %c7_28 = arith.constant 7 : index
    %c0_29 = arith.constant 0 : index
    %40 = vector.load %arg9[%39, %c2, %c7_28, %c0_29] : memref<2x14x24x128xbf16, #tpu.memory_space<vmem>>, vector<1x12x8x128xbf16>
    %41 = vector.shape_cast %40 : vector<1x12x8x128xbf16> to vector<96x128xbf16>
    %c0_30 = arith.constant 0 : index
    %c768 = arith.constant 768 : index
    %42 = vector.load %arg12[%c0_30, %c768] : memref<96x1152xbf16, #tpu.memory_space<vmem>>, vector<96x128xbf16>
    tpu.vector_store %arg12[%c0_30, %c768], %41 {strides = array<i32>} : memref<96x1152xbf16, #tpu.memory_space<vmem>>, vector<96x128xbf16>,
    %43 = arith.index_cast %4 : i32 to index
    %c2_31 = arith.constant 2 : index
    %c8_32 = arith.constant 8 : index
    %c0_33 = arith.constant 0 : index
    %44 = vector.load %arg9[%43, %c2_31, %c8_32, %c0_33] : memref<2x14x24x128xbf16, #tpu.memory_space<vmem>>, vector<1x12x8x128xbf16>
    %45 = vector.shape_cast %44 : vector<1x12x8x128xbf16> to vector<96x128xbf16>
    %c0_34 = arith.constant 0 : index
    %c896 = arith.constant 896 : index
    %46 = vector.load %arg12[%c0_34, %c896] : memref<96x1152xbf16, #tpu.memory_space<vmem>>, vector<96x128xbf16>
    tpu.vector_store %arg12[%c0_34, %c896], %45 {strides = array<i32>} : memref<96x1152xbf16, #tpu.memory_space<vmem>>, vector<96x128xbf16>,
    %47 = arith.index_cast %4 : i32 to index
    %c2_35 = arith.constant 2 : index
    %c9_36 = arith.constant 9 : index
    %c0_37 = arith.constant 0 : index
    %48 = vector.load %arg9[%47, %c2_35, %c9_36, %c0_37] : memref<2x14x24x128xbf16, #tpu.memory_space<vmem>>, vector<1x12x8x128xbf16>
    %49 = vector.shape_cast %48 : vector<1x12x8x128xbf16> to vector<96x128xbf16>
    %c0_38 = arith.constant 0 : index
    %c1024 = arith.constant 1024 : index
    %50 = vector.load %arg12[%c0_38, %c1024] : memref<96x1152xbf16, #tpu.memory_space<vmem>>, vector<96x128xbf16>
    tpu.vector_store %arg12[%c0_38, %c1024], %49 {strides = array<i32>} : memref<96x1152xbf16, #tpu.memory_space<vmem>>, vector<96x128xbf16>,
    %c0_39 = arith.constant 0 : index
    %c0_40 = arith.constant 0 : index
    %51 = vector.load %arg12[%c0_39, %c0_40] : memref<96x1152xbf16, #tpu.memory_space<vmem>>, vector<96x1152xbf16>
    %c0_41 = arith.constant 0 : index
    %c0_42 = arith.constant 0 : index
    %52 = vector.load %arg3[%c0_41, %c0_42] : memref<1152x128xbf16, #tpu.memory_space<vmem>>, vector<1152x128xbf16>
    %cst = arith.constant dense<0.000000e+00> : vector<96x128xf32>
    %53 = tpu.matmul %51, %52, %cst {dimension_numbers = #tpu.dot_dimension_numbers<[1], [0], [0], [1], [0, 0, 1, 1], [], []>} : vector<96x1152xbf16>, vector<1152x128xbf16>, vector<96x128xf32> -> vector<96x128xf32>
    %54 = vector.shape_cast %53 : vector<96x128xf32> to vector<12x8x128xf32>
    %c0_43 = arith.constant 0 : index
    %c0_44 = arith.constant 0 : index
    %55 = vector.load %arg6[%c0_43, %c0_44] : memref<3x128xf32, #tpu.memory_space<vmem>>, vector<1x128xf32>
    %56 = vector.shape_cast %55 : vector<1x128xf32> to vector<128xf32>
    %57 = vector.shape_cast %56 : vector<128xf32> to vector<1x1x128xf32>
    %58 = vector.broadcast %57 : vector<1x1x128xf32> to vector<12x8x128xf32>
    %59 = arith.mulf %54, %58 : vector<12x8x128xf32>
    %c0_45 = arith.constant 0 : index
    %c0_46 = arith.constant 0 : index
    %60 = vector.load %arg7[%c0_45, %c0_46] : memref<3x128xf32, #tpu.memory_space<vmem>>, vector<1x128xf32>
    %61 = vector.shape_cast %60 : vector<1x128xf32> to vector<128xf32>
    %62 = vector.shape_cast %61 : vector<128xf32> to vector<1x1x128xf32>
    %63 = vector.broadcast %62 : vector<1x1x128xf32> to vector<12x8x128xf32>
    %64 = arith.addf %59, %63 : vector<12x8x128xf32>
    %65 = tpu.iota {dimensions = array<i32: 0>} : vector<12x1x1xi32>
    %c-2_i32 = arith.constant -2 : i32
    %66 = arith.addi %0, %c-2_i32 : i32
    %67 = vector.broadcast %66 : i32 to vector<12x1x1xi32>
    %68 = arith.addi %65, %67 : vector<12x1x1xi32>
    %c0_i32_47 = arith.constant 0 : i32
    %69 = vector.broadcast %c0_i32_47 : i32 to vector<12x1x1xi32>
    %70 = arith.cmpi sge, %68, %69 : vector<12x1x1xi32>
    %c8_i32_48 = arith.constant 8 : i32
    %71 = vector.broadcast %c8_i32_48 : i32 to vector<12x1x1xi32>
    %72 = arith.cmpi slt, %68, %71 : vector<12x1x1xi32>
    %73 = arith.andi %70, %72 : vector<12x1x1xi1>
    %cst_49 = arith.constant 0.000000e+00 : f32
    %74 = vector.shape_cast %73 : vector<12x1x1xi1> to vector<12x1x1xi1>
    %75 = vector.broadcast %74 : vector<12x1x1xi1> to vector<12x8x128xi1>
    %76 = vector.broadcast %cst_49 : f32 to vector<12x8x128xf32>
    %77 = arith.select %75, %64, %76 : vector<12x8x128xi1>, vector<12x8x128xf32>
    %78 = arith.truncf %77 : vector<12x8x128xf32> to vector<12x8x128xbf16>
    %c0_50 = arith.constant 0 : index
    %c8_51 = arith.constant 8 : index
    %c0_52 = arith.constant 0 : index
    %79 = vector.load %arg10[%c0_50, %c8_51, %c0_52] : memref<12x24x128xbf16, #tpu.memory_space<vmem>>, vector<12x8x128xbf16>
    tpu.vector_store %arg10[%c0_50, %c8_51, %c0_52], %78 {strides = array<i32>} : memref<12x24x128xbf16, #tpu.memory_space<vmem>>, vector<12x8x128xbf16>,
    %c0_53 = arith.constant 0 : index
    %c7_54 = arith.constant 7 : index
    %c0_55 = arith.constant 0 : index
    %80 = vector.load %arg10[%c0_53, %c7_54, %c0_55] : memref<12x24x128xbf16, #tpu.memory_space<vmem>>, vector<10x8x128xbf16>
    %81 = vector.shape_cast %80 : vector<10x8x128xbf16> to vector<80x128xbf16>
    %c0_56 = arith.constant 0 : index
    %c0_57 = arith.constant 0 : index
    %82 = vector.load %arg12[%c0_56, %c0_57] : memref<96x1152xbf16, #tpu.memory_space<vmem>>, vector<80x128xbf16>
    tpu.vector_store %arg12[%c0_56, %c0_57], %81 {strides = array<i32>} : memref<96x1152xbf16, #tpu.memory_space<vmem>>, vector<80x128xbf16>,
    %c0_58 = arith.constant 0 : index
    %c8_59 = arith.constant 8 : index
    %c0_60 = arith.constant 0 : index
    %83 = vector.load %arg10[%c0_58, %c8_59, %c0_60] : memref<12x24x128xbf16, #tpu.memory_space<vmem>>, vector<10x8x128xbf16>
    %84 = vector.shape_cast %83 : vector<10x8x128xbf16> to vector<80x128xbf16>
    %c0_61 = arith.constant 0 : index
    %c128_62 = arith.constant 128 : index
    %85 = vector.load %arg12[%c0_61, %c128_62] : memref<96x1152xbf16, #tpu.memory_space<vmem>>, vector<80x128xbf16>
    tpu.vector_store %arg12[%c0_61, %c128_62], %84 {strides = array<i32>} : memref<96x1152xbf16, #tpu.memory_space<vmem>>, vector<80x128xbf16>,
    %c0_63 = arith.constant 0 : index
    %c9_64 = arith.constant 9 : index
    %c0_65 = arith.constant 0 : index
    %86 = vector.load %arg10[%c0_63, %c9_64, %c0_65] : memref<12x24x128xbf16, #tpu.memory_space<vmem>>, vector<10x8x128xbf16>
    %87 = vector.shape_cast %86 : vector<10x8x128xbf16> to vector<80x128xbf16>
    %c0_66 = arith.constant 0 : index
    %c256_67 = arith.constant 256 : index
    %88 = vector.load %arg12[%c0_66, %c256_67] : memref<96x1152xbf16, #tpu.memory_space<vmem>>, vector<80x128xbf16>
    tpu.vector_store %arg12[%c0_66, %c256_67], %87 {strides = array<i32>} : memref<96x1152xbf16, #tpu.memory_space<vmem>>, vector<80x128xbf16>,
    %c1_68 = arith.constant 1 : index
    %c7_69 = arith.constant 7 : index
    %c0_70 = arith.constant 0 : index
    %89 = vector.load %arg10[%c1_68, %c7_69, %c0_70] : memref<12x24x128xbf16, #tpu.memory_space<vmem>>, vector<10x8x128xbf16>
    %90 = vector.shape_cast %89 : vector<10x8x128xbf16> to vector<80x128xbf16>
    %c0_71 = arith.constant 0 : index
    %c384_72 = arith.constant 384 : index
    %91 = vector.load %arg12[%c0_71, %c384_72] : memref<96x1152xbf16, #tpu.memory_space<vmem>>, vector<80x128xbf16>
    tpu.vector_store %arg12[%c0_71, %c384_72], %90 {strides = array<i32>} : memref<96x1152xbf16, #tpu.memory_space<vmem>>, vector<80x128xbf16>,
    %c1_73 = arith.constant 1 : index
    %c8_74 = arith.constant 8 : index
    %c0_75 = arith.constant 0 : index
    %92 = vector.load %arg10[%c1_73, %c8_74, %c0_75] : memref<12x24x128xbf16, #tpu.memory_space<vmem>>, vector<10x8x128xbf16>
    %93 = vector.shape_cast %92 : vector<10x8x128xbf16> to vector<80x128xbf16>
    %c0_76 = arith.constant 0 : index
    %c512_77 = arith.constant 512 : index
    %94 = vector.load %arg12[%c0_76, %c512_77] : memref<96x1152xbf16, #tpu.memory_space<vmem>>, vector<80x128xbf16>
    tpu.vector_store %arg12[%c0_76, %c512_77], %93 {strides = array<i32>} : memref<96x1152xbf16, #tpu.memory_space<vmem>>, vector<80x128xbf16>,
    %c1_78 = arith.constant 1 : index
    %c9_79 = arith.constant 9 : index
    %c0_80 = arith.constant 0 : index
    %95 = vector.load %arg10[%c1_78, %c9_79, %c0_80] : memref<12x24x128xbf16, #tpu.memory_space<vmem>>, vector<10x8x128xbf16>
    %96 = vector.shape_cast %95 : vector<10x8x128xbf16> to vector<80x128xbf16>
    %c0_81 = arith.constant 0 : index
    %c640_82 = arith.constant 640 : index
    %97 = vector.load %arg12[%c0_81, %c640_82] : memref<96x1152xbf16, #tpu.memory_space<vmem>>, vector<80x128xbf16>
    tpu.vector_store %arg12[%c0_81, %c640_82], %96 {strides = array<i32>} : memref<96x1152xbf16, #tpu.memory_space<vmem>>, vector<80x128xbf16>,
    %c2_83 = arith.constant 2 : index
    %c7_84 = arith.constant 7 : index
    %c0_85 = arith.constant 0 : index
    %98 = vector.load %arg10[%c2_83, %c7_84, %c0_85] : memref<12x24x128xbf16, #tpu.memory_space<vmem>>, vector<10x8x128xbf16>
    %99 = vector.shape_cast %98 : vector<10x8x128xbf16> to vector<80x128xbf16>
    %c0_86 = arith.constant 0 : index
    %c768_87 = arith.constant 768 : index
    %100 = vector.load %arg12[%c0_86, %c768_87] : memref<96x1152xbf16, #tpu.memory_space<vmem>>, vector<80x128xbf16>
    tpu.vector_store %arg12[%c0_86, %c768_87], %99 {strides = array<i32>} : memref<96x1152xbf16, #tpu.memory_space<vmem>>, vector<80x128xbf16>,
    %c2_88 = arith.constant 2 : index
    %c8_89 = arith.constant 8 : index
    %c0_90 = arith.constant 0 : index
    %101 = vector.load %arg10[%c2_88, %c8_89, %c0_90] : memref<12x24x128xbf16, #tpu.memory_space<vmem>>, vector<10x8x128xbf16>
    %102 = vector.shape_cast %101 : vector<10x8x128xbf16> to vector<80x128xbf16>
    %c0_91 = arith.constant 0 : index
    %c896_92 = arith.constant 896 : index
    %103 = vector.load %arg12[%c0_91, %c896_92] : memref<96x1152xbf16, #tpu.memory_space<vmem>>, vector<80x128xbf16>
    tpu.vector_store %arg12[%c0_91, %c896_92], %102 {strides = array<i32>} : memref<96x1152xbf16, #tpu.memory_space<vmem>>, vector<80x128xbf16>,
    %c2_93 = arith.constant 2 : index
    %c9_94 = arith.constant 9 : index
    %c0_95 = arith.constant 0 : index
    %104 = vector.load %arg10[%c2_93, %c9_94, %c0_95] : memref<12x24x128xbf16, #tpu.memory_space<vmem>>, vector<10x8x128xbf16>
    %105 = vector.shape_cast %104 : vector<10x8x128xbf16> to vector<80x128xbf16>
    %c0_96 = arith.constant 0 : index
    %c1024_97 = arith.constant 1024 : index
    %106 = vector.load %arg12[%c0_96, %c1024_97] : memref<96x1152xbf16, #tpu.memory_space<vmem>>, vector<80x128xbf16>
    tpu.vector_store %arg12[%c0_96, %c1024_97], %105 {strides = array<i32>} : memref<96x1152xbf16, #tpu.memory_space<vmem>>, vector<80x128xbf16>,
    %c0_98 = arith.constant 0 : index
    %c0_99 = arith.constant 0 : index
    %107 = vector.load %arg12[%c0_98, %c0_99] : memref<96x1152xbf16, #tpu.memory_space<vmem>>, vector<80x1152xbf16>
    %c0_100 = arith.constant 0 : index
    %c0_101 = arith.constant 0 : index
    %108 = vector.load %arg4[%c0_100, %c0_101] : memref<1152x128xbf16, #tpu.memory_space<vmem>>, vector<1152x128xbf16>
    %cst_102 = arith.constant dense<0.000000e+00> : vector<80x128xf32>
    %109 = tpu.matmul %107, %108, %cst_102 {dimension_numbers = #tpu.dot_dimension_numbers<[1], [0], [0], [1], [0, 0, 1, 1], [], []>} : vector<80x1152xbf16>, vector<1152x128xbf16>, vector<80x128xf32> -> vector<80x128xf32>
    %110 = vector.shape_cast %109 : vector<80x128xf32> to vector<10x8x128xf32>
    %c1_103 = arith.constant 1 : index
    %c0_104 = arith.constant 0 : index
    %111 = vector.load %arg6[%c1_103, %c0_104] : memref<3x128xf32, #tpu.memory_space<vmem>>, vector<1x128xf32>
    %112 = vector.shape_cast %111 : vector<1x128xf32> to vector<128xf32>
    %113 = vector.shape_cast %112 : vector<128xf32> to vector<1x1x128xf32>
    %114 = vector.broadcast %113 : vector<1x1x128xf32> to vector<10x8x128xf32>
    %115 = arith.mulf %110, %114 : vector<10x8x128xf32>
    %c1_105 = arith.constant 1 : index
    %c0_106 = arith.constant 0 : index
    %116 = vector.load %arg7[%c1_105, %c0_106] : memref<3x128xf32, #tpu.memory_space<vmem>>, vector<1x128xf32>
    %117 = vector.shape_cast %116 : vector<1x128xf32> to vector<128xf32>
    %118 = vector.shape_cast %117 : vector<128xf32> to vector<1x1x128xf32>
    %119 = vector.broadcast %118 : vector<1x1x128xf32> to vector<10x8x128xf32>
    %120 = arith.addf %115, %119 : vector<10x8x128xf32>
    %cst_107 = arith.constant 0.000000e+00 : f32
    %121 = vector.broadcast %cst_107 : f32 to vector<10x8x128xf32>
    %122 = arith.maximumf %120, %121 : vector<10x8x128xf32>
    %123 = tpu.iota {dimensions = array<i32: 0>} : vector<10x1x1xi32>
    %c-1_i32 = arith.constant -1 : i32
    %124 = arith.addi %0, %c-1_i32 : i32
    %125 = vector.broadcast %124 : i32 to vector<10x1x1xi32>
    %126 = arith.addi %123, %125 : vector<10x1x1xi32>
    %c0_i32_108 = arith.constant 0 : i32
    %127 = vector.broadcast %c0_i32_108 : i32 to vector<10x1x1xi32>
    %128 = arith.cmpi sge, %126, %127 : vector<10x1x1xi32>
    %c8_i32_109 = arith.constant 8 : i32
    %129 = vector.broadcast %c8_i32_109 : i32 to vector<10x1x1xi32>
    %130 = arith.cmpi slt, %126, %129 : vector<10x1x1xi32>
    %131 = arith.andi %128, %130 : vector<10x1x1xi1>
    %cst_110 = arith.constant 0.000000e+00 : f32
    %132 = vector.shape_cast %131 : vector<10x1x1xi1> to vector<10x1x1xi1>
    %133 = vector.broadcast %132 : vector<10x1x1xi1> to vector<10x8x128xi1>
    %134 = vector.broadcast %cst_110 : f32 to vector<10x8x128xf32>
    %135 = arith.select %133, %122, %134 : vector<10x8x128xi1>, vector<10x8x128xf32>
    %136 = arith.truncf %135 : vector<10x8x128xf32> to vector<10x8x128xbf16>
    %c0_111 = arith.constant 0 : index
    %c8_112 = arith.constant 8 : index
    %c0_113 = arith.constant 0 : index
    %137 = vector.load %arg11[%c0_111, %c8_112, %c0_113] : memref<10x24x128xbf16, #tpu.memory_space<vmem>>, vector<10x8x128xbf16>
    tpu.vector_store %arg11[%c0_111, %c8_112, %c0_113], %136 {strides = array<i32>} : memref<10x24x128xbf16, #tpu.memory_space<vmem>>, vector<10x8x128xbf16>,
    %c0_114 = arith.constant 0 : index
    %c7_115 = arith.constant 7 : index
    %c0_116 = arith.constant 0 : index
    %138 = vector.load %arg11[%c0_114, %c7_115, %c0_116] : memref<10x24x128xbf16, #tpu.memory_space<vmem>>, vector<8x8x128xbf16>
    %139 = vector.shape_cast %138 : vector<8x8x128xbf16> to vector<64x128xbf16>
    %c0_117 = arith.constant 0 : index
    %c0_118 = arith.constant 0 : index
    %140 = vector.load %arg12[%c0_117, %c0_118] : memref<96x1152xbf16, #tpu.memory_space<vmem>>, vector<64x128xbf16>
    tpu.vector_store %arg12[%c0_117, %c0_118], %139 {strides = array<i32>} : memref<96x1152xbf16, #tpu.memory_space<vmem>>, vector<64x128xbf16>,
    %c0_119 = arith.constant 0 : index
    %c8_120 = arith.constant 8 : index
    %c0_121 = arith.constant 0 : index
    %141 = vector.load %arg11[%c0_119, %c8_120, %c0_121] : memref<10x24x128xbf16, #tpu.memory_space<vmem>>, vector<8x8x128xbf16>
    %142 = vector.shape_cast %141 : vector<8x8x128xbf16> to vector<64x128xbf16>
    %c0_122 = arith.constant 0 : index
    %c128_123 = arith.constant 128 : index
    %143 = vector.load %arg12[%c0_122, %c128_123] : memref<96x1152xbf16, #tpu.memory_space<vmem>>, vector<64x128xbf16>
    tpu.vector_store %arg12[%c0_122, %c128_123], %142 {strides = array<i32>} : memref<96x1152xbf16, #tpu.memory_space<vmem>>, vector<64x128xbf16>,
    %c0_124 = arith.constant 0 : index
    %c9_125 = arith.constant 9 : index
    %c0_126 = arith.constant 0 : index
    %144 = vector.load %arg11[%c0_124, %c9_125, %c0_126] : memref<10x24x128xbf16, #tpu.memory_space<vmem>>, vector<8x8x128xbf16>
    %145 = vector.shape_cast %144 : vector<8x8x128xbf16> to vector<64x128xbf16>
    %c0_127 = arith.constant 0 : index
    %c256_128 = arith.constant 256 : index
    %146 = vector.load %arg12[%c0_127, %c256_128] : memref<96x1152xbf16, #tpu.memory_space<vmem>>, vector<64x128xbf16>
    tpu.vector_store %arg12[%c0_127, %c256_128], %145 {strides = array<i32>} : memref<96x1152xbf16, #tpu.memory_space<vmem>>, vector<64x128xbf16>,
    %c1_129 = arith.constant 1 : index
    %c7_130 = arith.constant 7 : index
    %c0_131 = arith.constant 0 : index
    %147 = vector.load %arg11[%c1_129, %c7_130, %c0_131] : memref<10x24x128xbf16, #tpu.memory_space<vmem>>, vector<8x8x128xbf16>
    %148 = vector.shape_cast %147 : vector<8x8x128xbf16> to vector<64x128xbf16>
    %c0_132 = arith.constant 0 : index
    %c384_133 = arith.constant 384 : index
    %149 = vector.load %arg12[%c0_132, %c384_133] : memref<96x1152xbf16, #tpu.memory_space<vmem>>, vector<64x128xbf16>
    tpu.vector_store %arg12[%c0_132, %c384_133], %148 {strides = array<i32>} : memref<96x1152xbf16, #tpu.memory_space<vmem>>, vector<64x128xbf16>,
    %c1_134 = arith.constant 1 : index
    %c8_135 = arith.constant 8 : index
    %c0_136 = arith.constant 0 : index
    %150 = vector.load %arg11[%c1_134, %c8_135, %c0_136] : memref<10x24x128xbf16, #tpu.memory_space<vmem>>, vector<8x8x128xbf16>
    %151 = vector.shape_cast %150 : vector<8x8x128xbf16> to vector<64x128xbf16>
    %c0_137 = arith.constant 0 : index
    %c512_138 = arith.constant 512 : index
    %152 = vector.load %arg12[%c0_137, %c512_138] : memref<96x1152xbf16, #tpu.memory_space<vmem>>, vector<64x128xbf16>
    tpu.vector_store %arg12[%c0_137, %c512_138], %151 {strides = array<i32>} : memref<96x1152xbf16, #tpu.memory_space<vmem>>, vector<64x128xbf16>,
    %c1_139 = arith.constant 1 : index
    %c9_140 = arith.constant 9 : index
    %c0_141 = arith.constant 0 : index
    %153 = vector.load %arg11[%c1_139, %c9_140, %c0_141] : memref<10x24x128xbf16, #tpu.memory_space<vmem>>, vector<8x8x128xbf16>
    %154 = vector.shape_cast %153 : vector<8x8x128xbf16> to vector<64x128xbf16>
    %c0_142 = arith.constant 0 : index
    %c640_143 = arith.constant 640 : index
    %155 = vector.load %arg12[%c0_142, %c640_143] : memref<96x1152xbf16, #tpu.memory_space<vmem>>, vector<64x128xbf16>
    tpu.vector_store %arg12[%c0_142, %c640_143], %154 {strides = array<i32>} : memref<96x1152xbf16, #tpu.memory_space<vmem>>, vector<64x128xbf16>,
    %c2_144 = arith.constant 2 : index
    %c7_145 = arith.constant 7 : index
    %c0_146 = arith.constant 0 : index
    %156 = vector.load %arg11[%c2_144, %c7_145, %c0_146] : memref<10x24x128xbf16, #tpu.memory_space<vmem>>, vector<8x8x128xbf16>
    %157 = vector.shape_cast %156 : vector<8x8x128xbf16> to vector<64x128xbf16>
    %c0_147 = arith.constant 0 : index
    %c768_148 = arith.constant 768 : index
    %158 = vector.load %arg12[%c0_147, %c768_148] : memref<96x1152xbf16, #tpu.memory_space<vmem>>, vector<64x128xbf16>
    tpu.vector_store %arg12[%c0_147, %c768_148], %157 {strides = array<i32>} : memref<96x1152xbf16, #tpu.memory_space<vmem>>, vector<64x128xbf16>,
    %c2_149 = arith.constant 2 : index
    %c8_150 = arith.constant 8 : index
    %c0_151 = arith.constant 0 : index
    %159 = vector.load %arg11[%c2_149, %c8_150, %c0_151] : memref<10x24x128xbf16, #tpu.memory_space<vmem>>, vector<8x8x128xbf16>
    %160 = vector.shape_cast %159 : vector<8x8x128xbf16> to vector<64x128xbf16>
    %c0_152 = arith.constant 0 : index
    %c896_153 = arith.constant 896 : index
    %161 = vector.load %arg12[%c0_152, %c896_153] : memref<96x1152xbf16, #tpu.memory_space<vmem>>, vector<64x128xbf16>
    tpu.vector_store %arg12[%c0_152, %c896_153], %160 {strides = array<i32>} : memref<96x1152xbf16, #tpu.memory_space<vmem>>, vector<64x128xbf16>,
    %c2_154 = arith.constant 2 : index
    %c9_155 = arith.constant 9 : index
    %c0_156 = arith.constant 0 : index
    %162 = vector.load %arg11[%c2_154, %c9_155, %c0_156] : memref<10x24x128xbf16, #tpu.memory_space<vmem>>, vector<8x8x128xbf16>
    %163 = vector.shape_cast %162 : vector<8x8x128xbf16> to vector<64x128xbf16>
    %c0_157 = arith.constant 0 : index
    %c1024_158 = arith.constant 1024 : index
    %164 = vector.load %arg12[%c0_157, %c1024_158] : memref<96x1152xbf16, #tpu.memory_space<vmem>>, vector<64x128xbf16>
    tpu.vector_store %arg12[%c0_157, %c1024_158], %163 {strides = array<i32>} : memref<96x1152xbf16, #tpu.memory_space<vmem>>, vector<64x128xbf16>,
    %c0_159 = arith.constant 0 : index
    %c0_160 = arith.constant 0 : index
    %165 = vector.load %arg12[%c0_159, %c0_160] : memref<96x1152xbf16, #tpu.memory_space<vmem>>, vector<64x1152xbf16>
    %c0_161 = arith.constant 0 : index
    %c0_162 = arith.constant 0 : index
    %166 = vector.load %arg5[%c0_161, %c0_162] : memref<1152x128xbf16, #tpu.memory_space<vmem>>, vector<1152x128xbf16>
    %cst_163 = arith.constant dense<0.000000e+00> : vector<64x128xf32>
    %167 = tpu.matmul %165, %166, %cst_163 {dimension_numbers = #tpu.dot_dimension_numbers<[1], [0], [0], [1], [0, 0, 1, 1], [], []>} : vector<64x1152xbf16>, vector<1152x128xbf16>, vector<64x128xf32> -> vector<64x128xf32>
    %168 = vector.shape_cast %167 : vector<64x128xf32> to vector<8x8x128xf32>
    %c2_164 = arith.constant 2 : index
    %c0_165 = arith.constant 0 : index
    %169 = vector.load %arg6[%c2_164, %c0_165] : memref<3x128xf32, #tpu.memory_space<vmem>>, vector<1x128xf32>
    %170 = vector.shape_cast %169 : vector<1x128xf32> to vector<128xf32>
    %171 = vector.shape_cast %170 : vector<128xf32> to vector<1x1x128xf32>
    %172 = vector.broadcast %171 : vector<1x1x128xf32> to vector<8x8x128xf32>
    %173 = arith.mulf %168, %172 : vector<8x8x128xf32>
    %c2_166 = arith.constant 2 : index
    %c0_167 = arith.constant 0 : index
    %174 = vector.load %arg7[%c2_166, %c0_167] : memref<3x128xf32, #tpu.memory_space<vmem>>, vector<1x128xf32>
    %175 = vector.shape_cast %174 : vector<1x128xf32> to vector<128xf32>
    %176 = vector.shape_cast %175 : vector<128xf32> to vector<1x1x128xf32>
    %177 = vector.broadcast %176 : vector<1x1x128xf32> to vector<8x8x128xf32>
    %178 = arith.addf %173, %177 : vector<8x8x128xf32>
    %cst_168 = arith.constant 0.000000e+00 : f32
    %179 = vector.broadcast %cst_168 : f32 to vector<8x8x128xf32>
    %180 = arith.maximumf %178, %179 : vector<8x8x128xf32>
    %c0_169 = arith.constant 0 : index
    %c0_170 = arith.constant 0 : index
    %c0_171 = arith.constant 0 : index
    %c0_172 = arith.constant 0 : index
    %181 = vector.load %arg8[%c0_169, %c0_170, %c0_171, %c0_172] : memref<1x8x8x128xf32, #tpu.memory_space<vmem>>, vector<1x8x8x128xf32>
    %182 = vector.shape_cast %181 : vector<1x8x8x128xf32> to vector<8x8x128xf32>
    %183 = vector.shape_cast %180 : vector<8x8x128xf32> to vector<1x8x8x128xf32>
    tpu.vector_store %arg8[%c0_169, %c0_170, %c0_171, %c0_172], %183 {strides = array<i32>} : memref<1x8x8x128xf32, #tpu.memory_space<vmem>>, vector<1x8x8x128xf32>,
    return
  }
  func.func @transform_1(%arg0: i32, %arg1: i32) -> (i32, i32) {
    %c0_i32 = arith.constant 0 : i32
    %c0_i32_0 = arith.constant 0 : i32
    %c0_i32_1 = arith.constant 0 : i32
    return %c0_i32, %c0_i32_0 : i32, i32
  }
  func.func @transform_2(%arg0: i32, %arg1: i32) -> (i32, i32) {
    %c0_i32 = arith.constant 0 : i32
    %c0_i32_0 = arith.constant 0 : i32
    %c0_i32_1 = arith.constant 0 : i32
    return %c0_i32, %c0_i32_0 : i32, i32
  }
  func.func @transform_3(%arg0: i32, %arg1: i32) -> (i32, i32) {
    %c0_i32 = arith.constant 0 : i32
    %c0_i32_0 = arith.constant 0 : i32
    %c0_i32_1 = arith.constant 0 : i32
    return %c0_i32, %c0_i32_0 : i32, i32
  }
  func.func @transform_4(%arg0: i32, %arg1: i32) -> (i32, i32) {
    %c0_i32 = arith.constant 0 : i32
    %c0_i32_0 = arith.constant 0 : i32
    %c0_i32_1 = arith.constant 0 : i32
    return %c0_i32, %c0_i32_0 : i32, i32
  }
  func.func @transform_5(%arg0: i32, %arg1: i32) -> (i32, i32) {
    %c0_i32 = arith.constant 0 : i32
    %c0_i32_0 = arith.constant 0 : i32
    %c0_i32_1 = arith.constant 0 : i32
    return %c0_i32, %c0_i32_0 : i32, i32
  }
  func.func @transform_6(%arg0: i32, %arg1: i32) -> (i32, i32, i32, i32) {
    %c0_i32 = arith.constant 0 : i32
    %c0_i32_0 = arith.constant 0 : i32
    %c0_i32_1 = arith.constant 0 : i32
    return %arg0, %arg1, %c0_i32, %c0_i32_0 : i32, i32, i32, i32
  }
}

</mosaic_0001>

<llo_original>
// kernel: tpu_custom_call.1
$region0: #{tpu_custom_call.1}
  #allocation0 [shape = 'u32[]', space=smem, size = 0x4, offset = 0x4, fixed_abs, tag = 'smem constant byte address 0x4 - core index']
  #allocation1 [shape = 'u32[144,128]{1,0:T(1,128)}', space=vmem, size = 0x12000, scoped, tag = 'internal scratch']
  #allocation2 [shape = 'bf16[2,14,24,128]{3,2,1,0:T(8,128)(2,1)}', space=vmem, size = 0x2a000, scoped, tag = 'scratch operand']
  #allocation3 [shape = 'bf16[12,24,128]{2,1,0:T(8,128)(2,1)}', space=vmem, size = 0x12000, scoped, tag = 'scratch operand']
  #allocation4 [shape = 'bf16[10,24,128]{2,1,0:T(8,128)(2,1)}', space=vmem, size = 0xf000, scoped, tag = 'scratch operand']
  #allocation5 [shape = 'bf16[96,1152]{1,0:T(16,128)(2,1)}', space=vmem, size = 0x36000, scoped, tag = 'scratch operand']
  #allocation6 [shape = 's32[2]{0}', space=sflag, size = 0x8, scoped, tag = 'scratch operand']
  #allocation14 [shape = 's32[]', space=sflag, size = 0x4, offset = 0, fixed_abs, tag = 'sflag constant byte address 0x0 - dummy sync flag']
  #allocation15 [shape = 's32[]', space=sflag, size = 0x4, offset = 0, fixed_abs, tag = 'sflag constant byte address 0x0 - dummy sync flag']
  #allocation16 [shape = 'u32[]', space=smem, size = 0x4, offset = 0x44, fixed_abs, tag = 'smem constant byte address 0x44 - assertion arg 0']
  #allocation17 [shape = 'u32[]', space=smem, size = 0x4, offset = 0x48, fixed_abs, tag = 'smem constant byte address 0x48 - assertion arg 1']
  #allocation18 [shape = 's32[]', space=sflag, size = 0x4, offset = 0, fixed_abs, tag = 'sflag constant byte address 0x0 - dummy sync flag']
  #allocation19 [shape = 's32[]', space=sflag, size = 0x4, offset = 0, fixed_abs, tag = 'sflag constant byte address 0x0 - dummy sync flag']
  %s0 = inlined_call_operand.hbm [shape: bf16[2,14,24,128], index: 0, kind: input, shape index: {}]
  %s1 = inlined_call_operand.hbm [shape: bf16[1152,128], index: 1, kind: input, shape index: {}]
  %s2 = inlined_call_operand.hbm [shape: bf16[1152,128], index: 2, kind: input, shape index: {}]
  %s3 = inlined_call_operand.hbm [shape: bf16[1152,128], index: 3, kind: input, shape index: {}]
  %s4 = inlined_call_operand.vmem [shape: f32[3,128], index: 4, kind: input, shape index: {}]
  %s5 = inlined_call_operand.vmem [shape: f32[3,128], index: 5, kind: input, shape index: {}]
  %s6 = inlined_call_operand.hbm [shape: f32[2,8,8,128], index: 6, kind: output, shape index: {}]
  %s7 = sld [smem:[#allocation0]]
  $region81: #{tpu_custom_call.1} parent=0
    _
  %s9 = ssub.s32 1, %s7
  %s10 = scalar_select 0, %s9, %s7
  $region1: #{tpu_custom_call.1} parent=0
    #allocation7 [shape = 'u8[294912]{0}', space=vmem, size = 0x48000, scoped, tag = 'input window, operand 1, single buffered']
    #allocation8 [shape = 's32[2]{0}', space=sflag, size = 0x8, scoped, tag = 'scoped memory for tpu_custom_call.1']
    #allocation9 [shape = 's32[2]{0}', space=sflag, size = 0x8, scoped, tag = 'scoped memory for tpu_custom_call.1']
    #allocation10 [shape = 'u8[294912]{0}', space=vmem, size = 0x48000, scoped, tag = 'input window, operand 2, single buffered']
    #allocation11 [shape = 's32[1]{0}', space=sflag, size = 0x4, scoped, tag = 'scoped memory for tpu_custom_call.1']
    #allocation12 [shape = 'u8[294912]{0}', space=vmem, size = 0x48000, scoped, tag = 'input window, operand 3, single buffered']
    #allocation13 [shape = 'u8[65536]{0}', space=vmem, size = 0x10000, scoped, tag = 'output window, operand 0']
    %11 = vsyncpa [#allocation8], 0
    %12 = vsyncpa [#allocation11], 0
    %13 = vsyncpa [#allocation9], 0
    %s14 = scalar_lea.sflag [#allocation9], 1
    %15 = vsyncpa %s14, 0
    loop: start=0, step=1, limit=4
    $region2: #{tpu_custom_call.1} parent=1 // loop_pre_header
      _
    $region3: #{tpu_custom_call.1} parent=1 // loop_header
      %s17 = sphi 0, %s21
      %p18 = scmp.ge.s32.totalorder %s17, 4
      %s24 = sphi 0, %s36
      %s25 = sphi 0, %s32
      %s26 = sphi 0, %s24
      %s27 = sphi 0, %s25
      %s28 = sphi 0, %s26
      %s29 = sphi 0, %s27
      %s37 = sphi 0, %s37
      %s39 = sphi 0, %s37
      %s40 = sphi 0, %s39
      %s54 = sphi 0, %s40
      %s58 = sphi 0, %s58
      %s60 = sphi 0, %s58
      %s61 = sphi 0, %s60
      %s75 = sphi 0, %s61
      %s79 = sphi 0, %s79
      %s81 = sphi 0, %s79
      %s82 = sphi 0, %s81
      %s96 = sphi 0, %s82
      %s100 = sphi 0, %s100
      %s102 = sphi 0, %s100
      %s103 = sphi 0, %s102
      %s117 = sphi 0, %s103
      %s121 = sphi 0, %s121
      %s123 = sphi 0, %s121
      %s124 = sphi 0, %s123
      %s138 = sphi 0, %s124
      %s146 = sphi 0, %s148
      %s149 = sphi 0, %s146
      %s150 = sphi 0, %s149
      %s166 = sphi 0, %s150
    $region4: #{tpu_custom_call.1} parent=1 // loop_header_branch
      %20 = sbr.rel (%p18) target = $region8
    $region5: #{tpu_custom_call.1} parent=1 // loop_body
      %s22 = ssub.s32 %s17, 1
      %s23 = ssub.s32 %s17, 2
      %s30 = sadd.s32 1, %s25
      %p31 = scmp.ge.s32.totalorder %s30, 1
      %s32 = scalar_select %p31, 0, %s30
      %s33 = sadd.s32 1, %s24
      %s34 = scalar_select %p31, %s33, %s24
      %p35 = scmp.ge.s32.totalorder %s34, 2
      %s36 = scalar_select %p35, 0, %s34
      %s38 = sadd.s32 %s37, 1
      %p41 = scmp.eq.s32.totalorder %s17, 1
      %p42 = scmp.ne.s32.totalorder %s37, %s39
      %p43 = scmp.eq.s32.totalorder %s17, 0
      %p44 = por %p42, %p43
      %p45 = scmp.ne.s32.totalorder %s37, %s39
      %p46 = scmp.eq.s32.totalorder %s22, 1
      %p47 = por %p45, %p46
      %p48 = scmp.ne.s32.totalorder %s39, %s40
      %p49 = scmp.eq.s32.totalorder %s22, 0
      %p50 = por %p48, %p49
      %p51 = scmp.ne.s32.totalorder %s39, %s40
      %p52 = scmp.eq.s32.totalorder %s23, 1
      %p53 = por %p51, %p52
      %p55 = scmp.ne.s32.totalorder %s40, %s54
      %p56 = scmp.eq.s32.totalorder %s23, 0
      %p57 = por %p55, %p56
      %s59 = sadd.s32 %s58, 1
      %p62 = scmp.eq.s32.totalorder %s17, 1
      %p63 = scmp.ne.s32.totalorder %s58, %s60
      %p64 = scmp.eq.s32.totalorder %s17, 0
      %p65 = por %p63, %p64
      %p66 = scmp.ne.s32.totalorder %s58, %s60
      %p67 = scmp.eq.s32.totalorder %s22, 1
      %p68 = por %p66, %p67
      %p69 = scmp.ne.s32.totalorder %s60, %s61
      %p70 = scmp.eq.s32.totalorder %s22, 0
      %p71 = por %p69, %p70
      %p72 = scmp.ne.s32.totalorder %s60, %s61
      %p73 = scmp.eq.s32.totalorder %s23, 1
      %p74 = por %p72, %p73
      %p76 = scmp.ne.s32.totalorder %s61, %s75
      %p77 = scmp.eq.s32.totalorder %s23, 0
      %p78 = por %p76, %p77
      %s80 = sadd.s32 %s79, 1
      %p83 = scmp.eq.s32.totalorder %s17, 1
      %p84 = scmp.ne.s32.totalorder %s79, %s81
      %p85 = scmp.eq.s32.totalorder %s17, 0
      %p86 = por %p84, %p85
      %p87 = scmp.ne.s32.totalorder %s79, %s81
      %p88 = scmp.eq.s32.totalorder %s22, 1
      %p89 = por %p87, %p88
      %p90 = scmp.ne.s32.totalorder %s81, %s82
      %p91 = scmp.eq.s32.totalorder %s22, 0
      %p92 = por %p90, %p91
      %p93 = scmp.ne.s32.totalorder %s81, %s82
      %p94 = scmp.eq.s32.totalorder %s23, 1
      %p95 = por %p93, %p94
      %p97 = scmp.ne.s32.totalorder %s82, %s96
      %p98 = scmp.eq.s32.totalorder %s23, 0
      %p99 = por %p97, %p98
      %s101 = sadd.s32 %s100, 1
      %p104 = scmp.eq.s32.totalorder %s17, 1
      %p105 = scmp.ne.s32.totalorder %s100, %s102
      %p106 = scmp.eq.s32.totalorder %s17, 0
      %p107 = por %p105, %p106
      %p108 = scmp.ne.s32.totalorder %s100, %s102
      %p109 = scmp.eq.s32.totalorder %s22, 1
      %p110 = por %p108, %p109
      %p111 = scmp.ne.s32.totalorder %s102, %s103
      %p112 = scmp.eq.s32.totalorder %s22, 0
      %p113 = por %p111, %p112
      %p114 = scmp.ne.s32.totalorder %s102, %s103
      %p115 = scmp.eq.s32.totalorder %s23, 1
      %p116 = por %p114, %p115
      %p118 = scmp.ne.s32.totalorder %s103, %s117
      %p119 = scmp.eq.s32.totalorder %s23, 0
      %p120 = por %p118, %p119
      %s122 = sadd.s32 %s121, 1
      %p125 = scmp.eq.s32.totalorder %s17, 1
      %p126 = scmp.ne.s32.totalorder %s121, %s123
      %p127 = scmp.eq.s32.totalorder %s17, 0
      %p128 = por %p126, %p127
      %p129 = scmp.ne.s32.totalorder %s121, %s123
      %p130 = scmp.eq.s32.totalorder %s22, 1
      %p131 = por %p129, %p130
      %p132 = scmp.ne.s32.totalorder %s123, %s124
      %p133 = scmp.eq.s32.totalorder %s22, 0
      %p134 = por %p132, %p133
      %p135 = scmp.ne.s32.totalorder %s123, %s124
      %p136 = scmp.eq.s32.totalorder %s23, 1
      %p137 = por %p135, %p136
      %p139 = scmp.ne.s32.totalorder %s124, %s138
      %p140 = scmp.eq.s32.totalorder %s23, 0
      %p141 = por %p139, %p140
      %s142 = ssub.s32 %s24, %s36
      %s143 = ssub.s32 %s25, %s32
      %s144 = sor.u32 %s142, %s143
      %p145 = scmp.eq.s32.totalorder %s144, 0
      %s147 = sadd.s32 %s146, 1
      %s148 = scalar_select %p145, %s146, %s147
      %p151 = pneg %p145
      %p152 = scmp.eq.s32.totalorder %s17, 1
      %p153 = por %p151, %p152
      %p154 = scmp.ne.s32.totalorder %s146, %s149
      %p155 = scmp.eq.s32.totalorder %s17, 0
      %p156 = por %p154, %p155
      %p157 = scmp.ne.s32.totalorder %s146, %s149
      %p158 = scmp.eq.s32.totalorder %s22, 1
      %p159 = por %p157, %p158
      %p160 = scmp.ne.s32.totalorder %s149, %s150
      %p161 = scmp.eq.s32.totalorder %s22, 0
      %p162 = por %p160, %p161
      %p163 = scmp.ne.s32.totalorder %s149, %s150
      %p164 = scmp.eq.s32.totalorder %s23, 1
      %p165 = por %p163, %p164
      %p167 = scmp.ne.s32.totalorder %s150, %s166
      %p168 = scmp.eq.s32.totalorder %s23, 0
      %p169 = por %p167, %p168
      %p170 = scmp.le.s32.totalorder 1, %s17
      %p171 = scmp.lt.s32.totalorder %s17, 3
      %p172 = pnand %p170, %p171
      %p173 = pneg %p172
      // Predicated region
      $region9: #{tpu_custom_call.1} parent=5 // pred_check
        _
      $region10: #{tpu_custom_call.1} parent=5 // pred_check_branch
        %175 = sbr.rel (%p172) target = $region12
      $region11: #{tpu_custom_call.1} parent=5 // pred_region
        %s176 = ssub.s32 %s17, 1
        // Predicated region
        $region13: #{tpu_custom_call.1} parent=11 // pred_check
          %p177 = pneg %p50
        $region14: #{tpu_custom_call.1} parent=11 // pred_check_branch
          %179 = sbr.rel (%p177) target = $region16
        $region15: #{tpu_custom_call.1} parent=11 // pred_region
          %s181 = ssub.s32 9216, 9216
          %182 = vsyncadd [#allocation8], %s181
          %s183 = sshll.u32 [#allocation7], 4
          %s184 = int_to_ptr.vmem [resolvable:$true] %s183
          %189 = dma.hbm_to_vmem [thread:$0]  %s1, 9216, %s184, [#allocation8], 64, 64, 4
        $region16: #{tpu_custom_call.1} parent=11 // pred_fallthru
          _
        // Predicated region
        $region17: #{tpu_custom_call.1} parent=11 // pred_check
          %p190 = pneg %p71
        $region18: #{tpu_custom_call.1} parent=11 // pred_check_branch
          %192 = sbr.rel (%p190) target = $region20
        $region19: #{tpu_custom_call.1} parent=11 // pred_region
          %s194 = ssub.s32 9216, 9216
          %195 = vsyncadd [#allocation11], %s194
          %s196 = sshll.u32 [#allocation10], 4
          %s197 = int_to_ptr.vmem [resolvable:$true] %s196
          %202 = dma.hbm_to_vmem [thread:$0]  %s2, 9216, %s197, [#allocation11], 64, 64, 4
        $region20: #{tpu_custom_call.1} parent=11 // pred_fallthru
          _
        // Predicated region
        $region21: #{tpu_custom_call.1} parent=11 // pred_check
          %p203 = pneg %p92
        $region22: #{tpu_custom_call.1} parent=11 // pred_check_branch
          %205 = sbr.rel (%p203) target = $region24
        $region23: #{tpu_custom_call.1} parent=11 // pred_region
          %s207 = ssub.s32 9216, 9216
          %208 = vsyncadd [#allocation11], %s207
          %s209 = sshll.u32 [#allocation12], 4
          %s210 = int_to_ptr.vmem [resolvable:$true] %s209
          %215 = dma.hbm_to_vmem [thread:$0]  %s3, 9216, %s210, [#allocation11], 64, 64, 4
        $region24: #{tpu_custom_call.1} parent=11 // pred_fallthru
          _
        // Predicated region
        $region25: #{tpu_custom_call.1} parent=11 // pred_check
          %p216 = pneg %p113
        $region26: #{tpu_custom_call.1} parent=11 // pred_check_branch
          %218 = sbr.rel (%p216) target = $region28
        $region27: #{tpu_custom_call.1} parent=11 // pred_region
          _
        $region28: #{tpu_custom_call.1} parent=11 // pred_fallthru
          _
        // Predicated region
        $region29: #{tpu_custom_call.1} parent=11 // pred_check
          %p219 = pneg %p134
        $region30: #{tpu_custom_call.1} parent=11 // pred_check_branch
          %221 = sbr.rel (%p219) target = $region32
        $region31: #{tpu_custom_call.1} parent=11 // pred_region
          _
        $region32: #{tpu_custom_call.1} parent=11 // pred_fallthru
          _
      $region12: #{tpu_custom_call.1} parent=5 // pred_fallthru
        _
      %p222 = scmp.lt.s32.totalorder %s17, 2
      // Predicated region
      $region33: #{tpu_custom_call.1} parent=5 // pred_check
        %p223 = pneg %p222
      $region34: #{tpu_custom_call.1} parent=5 // pred_check_branch
        %225 = sbr.rel (%p223) target = $region36
      $region35: #{tpu_custom_call.1} parent=5 // pred_region
        _
      $region36: #{tpu_custom_call.1} parent=5 // pred_fallthru
        _
      %p226 = scmp.le.s32.totalorder 1, %s17
      %p227 = scmp.lt.s32.totalorder %s17, 3
      %p228 = pnand %p226, %p227
      %p229 = pneg %p228
      // Predicated region
      $region37: #{tpu_custom_call.1} parent=5 // pred_check
        _
      $region38: #{tpu_custom_call.1} parent=5 // pred_check_branch
        %231 = sbr.rel (%p228) target = $region40
      $region39: #{tpu_custom_call.1} parent=5 // pred_region
        %s232 = ssub.s32 %s17, 1
        // Predicated region
        $region41: #{tpu_custom_call.1} parent=39 // pred_check
          %p233 = pneg %p50
        $region42: #{tpu_custom_call.1} parent=39 // pred_check_branch
          %235 = sbr.rel (%p233) target = $region44
        $region43: #{tpu_custom_call.1} parent=39 // pred_region
          %236 = dma.done [#allocation8], 9216
        $region44: #{tpu_custom_call.1} parent=39 // pred_fallthru
          _
        // Predicated region
        $region45: #{tpu_custom_call.1} parent=39 // pred_check
          %p237 = pneg %p71
        $region46: #{tpu_custom_call.1} parent=39 // pred_check_branch
          %239 = sbr.rel (%p237) target = $region48
        $region47: #{tpu_custom_call.1} parent=39 // pred_region
          %240 = dma.done [#allocation11], 9216
        $region48: #{tpu_custom_call.1} parent=39 // pred_fallthru
          _
        // Predicated region
        $region49: #{tpu_custom_call.1} parent=39 // pred_check
          %p241 = pneg %p92
        $region50: #{tpu_custom_call.1} parent=39 // pred_check_branch
          %243 = sbr.rel (%p241) target = $region52
        $region51: #{tpu_custom_call.1} parent=39 // pred_region
          %244 = dma.done [#allocation11], 9216
        $region52: #{tpu_custom_call.1} parent=39 // pred_fallthru
          _
        %p245 = pneg %p50
        %p246 = pneg %p47
        %p247 = pneg %p71
        %p248 = pneg %p68
        %p249 = pneg %p92
        %p250 = pneg %p89
        %p251 = pneg %p113
        %p252 = pneg %p110
        %p253 = pneg %p134
        %p254 = pneg %p131
        %p255 = pneg %p162
        %p256 = pneg %p159
        %s257 = sand.u32 %s149, 1
        %s258 = scalar_lea.sflag [#allocation9], %s257
        %s259 = sand.u32 %s149, 1
        %s260 = smul.addr %s259, 64
        %s261 = scalar_lea.vmem [#allocation13], %s260
        %s262 = smul.u32 8, %s27
        %s264 = smul.u32 %s27, 8
        %p265 = scmp.eq.s32.totalorder %s27, 0
        // Predicated region
        $region53: #{tpu_custom_call.1} parent=39 // pred_check
          %p266 = pneg %p265
        $region54: #{tpu_custom_call.1} parent=39 // pred_check_branch
          %268 = sbr.rel (%p266) target = $region56
        $region55: #{tpu_custom_call.1} parent=39 // pred_region
          %s269 = smul.u32 %s26, 42
          %s270 = smul.addr %s269, 64
          %s271 = scalar_lea.hbm %s0, %s270
          // Predicated region
          $region57: #{tpu_custom_call.1} parent=55 // pred_check
            _
          $region58: #{tpu_custom_call.1} parent=55 // pred_check_branch
            %273 = sbr.rel target = $region60
          $region59: #{tpu_custom_call.1} parent=55 // pred_region
            %274 = sst [smem:[#allocation16]] [#allocation15]
            %275 = sst [smem:[#allocation17]] [#allocation14]
          $region60: #{tpu_custom_call.1} parent=55 // pred_fallthru
            _
          %277 = shalt.err (0)
          %s279 = sshll.u32 [#allocation2], 4
          %s280 = int_to_ptr.vmem [resolvable:$true] %s279
          %282 = dma.hbm_to_vmem [thread:$0]  %s271, 2688, %s280, [#allocation6]
          %283 = vst [vmem:[#allocation3] sm:$0xf] 0
          %284 = vst [vmem:[#allocation3 + $0xc] sm:$0xf] 0
          %285 = vst [vmem:[#allocation3 + $0x18] sm:$0xf] 0
          %286 = vst [vmem:[#allocation3 + $0x24] sm:$0xf] 0
          %287 = vst [vmem:[#allocation3 + $0x30] sm:$0xf] 0
          %288 = vst [vmem:[#allocation3 + $0x3c] sm:$0xf] 0
          %289 = vst [vmem:[#allocation3 + $0x48] sm:$0xf] 0
          %290 = vst [vmem:[#allocation3 + $0x54] sm:$0xf] 0
          %291 = vst [vmem:[#allocation3 + $0x60] sm:$0xf] 0
          %292 = vst [vmem:[#allocation3 + $0x6c] sm:$0xf] 0
          %293 = vst [vmem:[#allocation3 + $0x78] sm:$0xf] 0
          %294 = vst [vmem:[#allocation3 + $0x84] sm:$0xf] 0
          %295 = vst [vmem:[#allocation3 + $0x8] sm:$0xf] 0
          %296 = vst [vmem:[#allocation3 + $0x14] sm:$0xf] 0
          %297 = vst [vmem:[#allocation3 + $0x20] sm:$0xf] 0
          %298 = vst [vmem:[#allocation3 + $0x2c] sm:$0xf] 0
          %299 = vst [vmem:[#allocation3 + $0x38] sm:$0xf] 0
          %300 = vst [vmem:[#allocation3 + $0x44] sm:$0xf] 0
          %301 = vst [vmem:[#allocation3 + $0x50] sm:$0xf] 0
          %302 = vst [vmem:[#allocation3 + $0x5c] sm:$0xf] 0
          %303 = vst [vmem:[#allocation3 + $0x68] sm:$0xf] 0
          %304 = vst [vmem:[#allocation3 + $0x74] sm:$0xf] 0
          %305 = vst [vmem:[#allocation3 + $0x80] sm:$0xf] 0
          %306 = vst [vmem:[#allocation3 + $0x8c] sm:$0xf] 0
          %307 = vst [vmem:[#allocation4] sm:$0xf] 0
          %308 = vst [vmem:[#allocation4 + $0xc] sm:$0xf] 0
          %309 = vst [vmem:[#allocation4 + $0x18] sm:$0xf] 0
          %310 = vst [vmem:[#allocation4 + $0x24] sm:$0xf] 0
          %311 = vst [vmem:[#allocation4 + $0x30] sm:$0xf] 0
          %312 = vst [vmem:[#allocation4 + $0x3c] sm:$0xf] 0
          %313 = vst [vmem:[#allocation4 + $0x48] sm:$0xf] 0
          %314 = vst [vmem:[#allocation4 + $0x54] sm:$0xf] 0
          %315 = vst [vmem:[#allocation4 + $0x60] sm:$0xf] 0
          %316 = vst [vmem:[#allocation4 + $0x6c] sm:$0xf] 0
          %317 = vst [vmem:[#allocation4 + $0x8] sm:$0xf] 0
          %318 = vst [vmem:[#allocation4 + $0x14] sm:$0xf] 0
          %319 = vst [vmem:[#allocation4 + $0x20] sm:$0xf] 0
          %320 = vst [vmem:[#allocation4 + $0x2c] sm:$0xf] 0
          %321 = vst [vmem:[#allocation4 + $0x38] sm:$0xf] 0
          %322 = vst [vmem:[#allocation4 + $0x44] sm:$0xf] 0
          %323 = vst [vmem:[#allocation4 + $0x50] sm:$0xf] 0
          %324 = vst [vmem:[#allocation4 + $0x5c] sm:$0xf] 0
          %325 = vst [vmem:[#allocation4 + $0x68] sm:$0xf] 0
          %326 = vst [vmem:[#allocation4 + $0x74] sm:$0xf] 0
        $region56: #{tpu_custom_call.1} parent=39 // pred_fallthru
          _
        %p327 = scmp.lt.s32.totalorder %s27, 0
        %s328 = ssub.s32 0, %s27
        %s329 = scalar_select %p327, %s328, %s27
        %s330 = sand.u32 %s329, 1
        %s331 = ssub.s32 0, %s330
        %s332 = scalar_select %p327, %s331, %s330
        %s333 = scalar_lea.sflag [#allocation6], %s332
        %s334 = smul.u32 4, 14
        %s335 = smul.u32 %s334, 3
        %s336 = smul.u32 %s335, 1
        %s337 = sshll.u32 %s336, 4
        %338 = dma.done %s333, %s337
        %s339 = sadd.s32 %s27, 1
        %p340 = scmp.lt.s32.totalorder %s339, 1
        // Predicated region
        $region61: #{tpu_custom_call.1} parent=39 // pred_check
          %p341 = pneg %p340
        $region62: #{tpu_custom_call.1} parent=39 // pred_check_branch
          %343 = sbr.rel (%p341) target = $region64
        $region63: #{tpu_custom_call.1} parent=39 // pred_region
          %s344 = ssub.s32 1, %s332
          %s345 = smul.u32 %s339, 8
          %s346 = smul.u32 %s345, 3
          %s347 = smul.u32 %s26, 42
          %s348 = sadd.s32 %s346, %s347
          %s349 = smul.addr %s348, 64
          %s350 = scalar_lea.hbm %s0, %s349
          %s351 = smul.u32 %s344, 42
          %s352 = smul.addr %s351, 4
          %s353 = scalar_lea.vmem [#allocation2], %s352
          %s354 = scalar_lea.sflag [#allocation6], %s344
          // Predicated region
          $region65: #{tpu_custom_call.1} parent=63 // pred_check
            _
          $region66: #{tpu_custom_call.1} parent=63 // pred_check_branch
            %356 = sbr.rel target = $region68
          $region67: #{tpu_custom_call.1} parent=63 // pred_region
            %357 = sst [smem:[#allocation16]] [#allocation19]
            %358 = sst [smem:[#allocation17]] [#allocation18]
          $region68: #{tpu_custom_call.1} parent=63 // pred_fallthru
            _
          %360 = shalt.err (0)
          %s362 = sshll.u32 %s353, 4
          %s363 = int_to_ptr.vmem [resolvable:$true] %s362
          %365 = dma.hbm_to_vmem [thread:$0]  %s350, 2688, %s363, %s354
        $region64: #{tpu_custom_call.1} parent=39 // pred_fallthru
          _
        %s366 = smul.u32 %s332, 42
        %s367 = smul.addr %s366, 4
        %s368 = scalar_lea.vmem [#allocation2], %s367
        %v369 = vld [vmem:[%s368] sm:$0x8]
        %v370 = vld [vmem:[%s368 + $0x4] sm:$0xf]
        %v371 = vld [vmem:[%s368 + $0xc] sm:$0x8]
        %v372 = vld [vmem:[%s368 + $0x10] sm:$0xf]
        %v373 = vld [vmem:[%s368 + $0x18] sm:$0x8]
        %v374 = vld [vmem:[%s368 + $0x1c] sm:$0xf]
        %v375 = vld [vmem:[%s368 + $0x24] sm:$0x8]
        %v376 = vld [vmem:[%s368 + $0x28] sm:$0xf]
        %v377 = vld [vmem:[%s368 + $0x30] sm:$0x8]
        %v378 = vld [vmem:[%s368 + $0x34] sm:$0xf]
        %v379 = vld [vmem:[%s368 + $0x3c] sm:$0x8]
        %v380 = vld [vmem:[%s368 + $0x40] sm:$0xf]
        %v381 = vld [vmem:[%s368 + $0x48] sm:$0x8]
        %v382 = vld [vmem:[%s368 + $0x4c] sm:$0xf]
        %v383 = vld [vmem:[%s368 + $0x54] sm:$0x8]
        %v384 = vld [vmem:[%s368 + $0x58] sm:$0xf]
        %v385 = vld [vmem:[%s368 + $0x60] sm:$0x8]
        %v386 = vld [vmem:[%s368 + $0x64] sm:$0xf]
        %v387 = vld [vmem:[%s368 + $0x6c] sm:$0x8]
        %v388 = vld [vmem:[%s368 + $0x70] sm:$0xf]
        %v389 = vld [vmem:[%s368 + $0x78] sm:$0x8]
        %v390 = vld [vmem:[%s368 + $0x7c] sm:$0xf]
        %v391 = vld [vmem:[%s368 + $0x84] sm:$0x8]
        %v392 = vld [vmem:[%s368 + $0x88] sm:$0xf]
        %vm393 = vsmask.f32 256
        %vm394 = vsmask.f32 4368
        %vm395 = vmor %vm393, %vm394
        %v397 = vshrl.u32 %v369, 16
        %v399 = vrot.slane %v397, 7
        %v400 = vrot.slane %v399, 4
        %v402 = vshrl.u32 %v370, 16
        %v404 = vrot.slane %v402, 7
        %v405 = vshll.u32 %v370, 16
        %v407 = vor.u32 %v404, %v405
        %v408 = vsel %vm395, %v400, %v407
        %v410 = vshrl.u32 %v371, 16
        %v412 = vrot.slane %v410, 7
        %v413 = vrot.slane %v412, 4
        %v415 = vshrl.u32 %v372, 16
        %v417 = vrot.slane %v415, 7
        %v418 = vshll.u32 %v372, 16
        %v420 = vor.u32 %v417, %v418
        %v421 = vsel %vm395, %v413, %v420
        %v423 = vshrl.u32 %v373, 16
        %v425 = vrot.slane %v423, 7
        %v426 = vrot.slane %v425, 4
        %v428 = vshrl.u32 %v374, 16
        %v430 = vrot.slane %v428, 7
        %v431 = vshll.u32 %v374, 16
        %v433 = vor.u32 %v430, %v431
        %v434 = vsel %vm395, %v426, %v433
        %v436 = vshrl.u32 %v375, 16
        %v438 = vrot.slane %v436, 7
        %v439 = vrot.slane %v438, 4
        %v441 = vshrl.u32 %v376, 16
        %v443 = vrot.slane %v441, 7
        %v444 = vshll.u32 %v376, 16
        %v446 = vor.u32 %v443, %v444
        %v447 = vsel %vm395, %v439, %v446
        %v449 = vshrl.u32 %v377, 16
        %v451 = vrot.slane %v449, 7
        %v452 = vrot.slane %v451, 4
        %v454 = vshrl.u32 %v378, 16
        %v456 = vrot.slane %v454, 7
        %v457 = vshll.u32 %v378, 16
        %v459 = vor.u32 %v456, %v457
        %v460 = vsel %vm395, %v452, %v459
        %v462 = vshrl.u32 %v379, 16
        %v464 = vrot.slane %v462, 7
        %v465 = vrot.slane %v464, 4
        %v467 = vshrl.u32 %v380, 16
        %v469 = vrot.slane %v467, 7
        %v470 = vshll.u32 %v380, 16
        %v472 = vor.u32 %v469, %v470
        %v473 = vsel %vm395, %v465, %v472
        %v475 = vshrl.u32 %v381, 16
        %v477 = vrot.slane %v475, 7
        %v478 = vrot.slane %v477, 4
        %v480 = vshrl.u32 %v382, 16
        %v482 = vrot.slane %v480, 7
        %v483 = vshll.u32 %v382, 16
        %v485 = vor.u32 %v482, %v483
        %v486 = vsel %vm395, %v478, %v485
        %v488 = vshrl.u32 %v383, 16
        %v490 = vrot.slane %v488, 7
        %v491 = vrot.slane %v490, 4
        %v493 = vshrl.u32 %v384, 16
        %v495 = vrot.slane %v493, 7
        %v496 = vshll.u32 %v384, 16
        %v498 = vor.u32 %v495, %v496
        %v499 = vsel %vm395, %v491, %v498
        %v501 = vshrl.u32 %v385, 16
        %v503 = vrot.slane %v501, 7
        %v504 = vrot.slane %v503, 4
        %v506 = vshrl.u32 %v386, 16
        %v508 = vrot.slane %v506, 7
        %v509 = vshll.u32 %v386, 16
        %v511 = vor.u32 %v508, %v509
        %v512 = vsel %vm395, %v504, %v511
        %v514 = vshrl.u32 %v387, 16
        %v516 = vrot.slane %v514, 7
        %v517 = vrot.slane %v516, 4
        %v519 = vshrl.u32 %v388, 16
        %v521 = vrot.slane %v519, 7
        %v522 = vshll.u32 %v388, 16
        %v524 = vor.u32 %v521, %v522
        %v525 = vsel %vm395, %v517, %v524
        %v527 = vshrl.u32 %v389, 16
        %v529 = vrot.slane %v527, 7
        %v530 = vrot.slane %v529, 4
        %v532 = vshrl.u32 %v390, 16
        %v534 = vrot.slane %v532, 7
        %v535 = vshll.u32 %v390, 16
        %v537 = vor.u32 %v534, %v535
        %v538 = vsel %vm395, %v530, %v537
        %v540 = vshrl.u32 %v391, 16
        %v542 = vrot.slane %v540, 7
        %v543 = vrot.slane %v542, 4
        %v545 = vshrl.u32 %v392, 16
        %v547 = vrot.slane %v545, 7
        %v548 = vshll.u32 %v392, 16
        %v550 = vor.u32 %v547, %v548
        %v551 = vsel %vm395, %v543, %v550
        %v552 = vunpack.c.l.b16 %v408
        %v553 = vunpack.c.l.b16 %v421
        %v554 = vunpack.c.l.b16 %v434
        %v555 = vunpack.c.l.b16 %v447
        %v556 = vunpack.c.l.b16 %v460
        %v557 = vunpack.c.l.b16 %v473
        %v558 = vunpack.c.l.b16 %v486
        %v559 = vunpack.c.l.b16 %v499
        %v560 = vunpack.c.l.b16 %v512
        %v561 = vunpack.c.l.b16 %v525
        %v562 = vunpack.c.l.b16 %v538
        %v563 = vunpack.c.l.b16 %v551
        %v564 = vpack.c.b16 %v553, %v552
        %v565 = vpack.c.b16 %v555, %v554
        %v566 = vpack.c.b16 %v557, %v556
        %v567 = vpack.c.b16 %v559, %v558
        %v568 = vpack.c.b16 %v561, %v560
        %v569 = vpack.c.b16 %v563, %v562
        %576 = vst [vmem:[#allocation5] sm:$0xff] %v564
        %577 = vst [vmem:[#allocation5 + $0x48] sm:$0xff] %v565
        %578 = vst [vmem:[#allocation5 + $0x90] sm:$0xff] %v566
        %579 = vst [vmem:[#allocation5 + $0xd8] sm:$0xff] %v567
        %580 = vst [vmem:[#allocation5 + $0x120] sm:$0xff] %v568
        %581 = vst [vmem:[#allocation5 + $0x168] sm:$0xff] %v569
        %v582 = vld [vmem:[%s368 + $0x4] sm:$0xf]
        %v583 = vld [vmem:[%s368 + $0x10] sm:$0xf]
        %v584 = vld [vmem:[%s368 + $0x1c] sm:$0xf]
        %v585 = vld [vmem:[%s368 + $0x28] sm:$0xf]
        %v586 = vld [vmem:[%s368 + $0x34] sm:$0xf]
        %v587 = vld [vmem:[%s368 + $0x40] sm:$0xf]
        %v588 = vld [vmem:[%s368 + $0x4c] sm:$0xf]
        %v589 = vld [vmem:[%s368 + $0x58] sm:$0xf]
        %v590 = vld [vmem:[%s368 + $0x64] sm:$0xf]
        %v591 = vld [vmem:[%s368 + $0x70] sm:$0xf]
        %v592 = vld [vmem:[%s368 + $0x7c] sm:$0xf]
        %v593 = vld [vmem:[%s368 + $0x88] sm:$0xf]
        %v606 = vunpack.c.l.b16 %v582
        %v607 = vunpack.c.l.b16 %v583
        %v608 = vunpack.c.l.b16 %v584
        %v609 = vunpack.c.l.b16 %v585
        %v610 = vunpack.c.l.b16 %v586
        %v611 = vunpack.c.l.b16 %v587
        %v612 = vunpack.c.l.b16 %v588
        %v613 = vunpack.c.l.b16 %v589
        %v614 = vunpack.c.l.b16 %v590
        %v615 = vunpack.c.l.b16 %v591
        %v616 = vunpack.c.l.b16 %v592
        %v617 = vunpack.c.l.b16 %v593
        %v618 = vpack.c.b16 %v607, %v606
        %v619 = vpack.c.b16 %v609, %v608
        %v620 = vpack.c.b16 %v611, %v610
        %v621 = vpack.c.b16 %v613, %v612
        %v622 = vpack.c.b16 %v615, %v614
        %v623 = vpack.c.b16 %v617, %v616
        %630 = vst [vmem:[#allocation5 + $0x8] sm:$0xff] %v618
        %631 = vst [vmem:[#allocation5 + $0x50] sm:$0xff] %v619
        %632 = vst [vmem:[#allocation5 + $0x98] sm:$0xff] %v620
        %633 = vst [vmem:[#allocation5 + $0xe0] sm:$0xff] %v621
        %634 = vst [vmem:[#allocation5 + $0x128] sm:$0xff] %v622
        %635 = vst [vmem:[#allocation5 + $0x170] sm:$0xff] %v623
        %v636 = vld [vmem:[%s368 + $0x4] sm:$0xf]
        %v637 = vld [vmem:[%s368 + $0x8] sm:$0x1]
        %v638 = vld [vmem:[%s368 + $0x10] sm:$0xf]
        %v639 = vld [vmem:[%s368 + $0x14] sm:$0x1]
        %v640 = vld [vmem:[%s368 + $0x1c] sm:$0xf]
        %v641 = vld [vmem:[%s368 + $0x20] sm:$0x1]
        %v642 = vld [vmem:[%s368 + $0x28] sm:$0xf]
        %v643 = vld [vmem:[%s368 + $0x2c] sm:$0x1]
        %v644 = vld [vmem:[%s368 + $0x34] sm:$0xf]
        %v645 = vld [vmem:[%s368 + $0x38] sm:$0x1]
        %v646 = vld [vmem:[%s368 + $0x40] sm:$0xf]
        %v647 = vld [vmem:[%s368 + $0x44] sm:$0x1]
        %v648 = vld [vmem:[%s368 + $0x4c] sm:$0xf]
        %v649 = vld [vmem:[%s368 + $0x50] sm:$0x1]
        %v650 = vld [vmem:[%s368 + $0x58] sm:$0xf]
        %v651 = vld [vmem:[%s368 + $0x5c] sm:$0x1]
        %v652 = vld [vmem:[%s368 + $0x64] sm:$0xf]
        %v653 = vld [vmem:[%s368 + $0x68] sm:$0x1]
        %v654 = vld [vmem:[%s368 + $0x70] sm:$0xf]
        %v655 = vld [vmem:[%s368 + $0x74] sm:$0x1]
        %v656 = vld [vmem:[%s368 + $0x7c] sm:$0xf]
        %v657 = vld [vmem:[%s368 + $0x80] sm:$0x1]
        %v658 = vld [vmem:[%s368 + $0x88] sm:$0xf]
        %v659 = vld [vmem:[%s368 + $0x8c] sm:$0x1]
        %vm660 = vsmask.f32 3328
        %vm661 = vsmask.f32 7440
        %vm662 = vmor %vm660, %vm661
        %v664 = vshrl.u32 %v636, 16
        %v666 = vrot.slane %v664, 4
        %v667 = vshll.u32 %v636, 16
        %v669 = vrot.slane %v667, 5
        %v670 = vor.u32 %v666, %v669
        %v671 = vrot.slane %v670, 4
        %v673 = vshll.u32 %v637, 16
        %v675 = vrot.slane %v673, 5
        %v676 = vsel %vm662, %v671, %v675
        %v678 = vshrl.u32 %v638, 16
        %v680 = vrot.slane %v678, 4
        %v681 = vshll.u32 %v638, 16
        %v683 = vrot.slane %v681, 5
        %v684 = vor.u32 %v680, %v683
        %v685 = vrot.slane %v684, 4
        %v687 = vshll.u32 %v639, 16
        %v689 = vrot.slane %v687, 5
        %v690 = vsel %vm662, %v685, %v689
        %v692 = vshrl.u32 %v640, 16
        %v694 = vrot.slane %v692, 4
        %v695 = vshll.u32 %v640, 16
        %v697 = vrot.slane %v695, 5
        %v698 = vor.u32 %v694, %v697
        %v699 = vrot.slane %v698, 4
        %v701 = vshll.u32 %v641, 16
        %v703 = vrot.slane %v701, 5
        %v704 = vsel %vm662, %v699, %v703
        %v706 = vshrl.u32 %v642, 16
        %v708 = vrot.slane %v706, 4
        %v709 = vshll.u32 %v642, 16
        %v711 = vrot.slane %v709, 5
        %v712 = vor.u32 %v708, %v711
        %v713 = vrot.slane %v712, 4
        %v715 = vshll.u32 %v643, 16
        %v717 = vrot.slane %v715, 5
        %v718 = vsel %vm662, %v713, %v717
        %v720 = vshrl.u32 %v644, 16
        %v722 = vrot.slane %v720, 4
        %v723 = vshll.u32 %v644, 16
        %v725 = vrot.slane %v723, 5
        %v726 = vor.u32 %v722, %v725
        %v727 = vrot.slane %v726, 4
        %v729 = vshll.u32 %v645, 16
        %v731 = vrot.slane %v729, 5
        %v732 = vsel %vm662, %v727, %v731
        %v734 = vshrl.u32 %v646, 16
        %v736 = vrot.slane %v734, 4
        %v737 = vshll.u32 %v646, 16
        %v739 = vrot.slane %v737, 5
        %v740 = vor.u32 %v736, %v739
        %v741 = vrot.slane %v740, 4
        %v743 = vshll.u32 %v647, 16
        %v745 = vrot.slane %v743, 5
        %v746 = vsel %vm662, %v741, %v745
        %v748 = vshrl.u32 %v648, 16
        %v750 = vrot.slane %v748, 4
        %v751 = vshll.u32 %v648, 16
        %v753 = vrot.slane %v751, 5
        %v754 = vor.u32 %v750, %v753
        %v755 = vrot.slane %v754, 4
        %v757 = vshll.u32 %v649, 16
        %v759 = vrot.slane %v757, 5
        %v760 = vsel %vm662, %v755, %v759
        %v762 = vshrl.u32 %v650, 16
        %v764 = vrot.slane %v762, 4
        %v765 = vshll.u32 %v650, 16
        %v767 = vrot.slane %v765, 5
        %v768 = vor.u32 %v764, %v767
        %v769 = vrot.slane %v768, 4
        %v771 = vshll.u32 %v651, 16
        %v773 = vrot.slane %v771, 5
        %v774 = vsel %vm662, %v769, %v773
        %v776 = vshrl.u32 %v652, 16
        %v778 = vrot.slane %v776, 4
        %v779 = vshll.u32 %v652, 16
        %v781 = vrot.slane %v779, 5
        %v782 = vor.u32 %v778, %v781
        %v783 = vrot.slane %v782, 4
        %v785 = vshll.u32 %v653, 16
        %v787 = vrot.slane %v785, 5
        %v788 = vsel %vm662, %v783, %v787
        %v790 = vshrl.u32 %v654, 16
        %v792 = vrot.slane %v790, 4
        %v793 = vshll.u32 %v654, 16
        %v795 = vrot.slane %v793, 5
        %v796 = vor.u32 %v792, %v795
        %v797 = vrot.slane %v796, 4
        %v799 = vshll.u32 %v655, 16
        %v801 = vrot.slane %v799, 5
        %v802 = vsel %vm662, %v797, %v801
        %v804 = vshrl.u32 %v656, 16
        %v806 = vrot.slane %v804, 4
        %v807 = vshll.u32 %v656, 16
        %v809 = vrot.slane %v807, 5
        %v810 = vor.u32 %v806, %v809
        %v811 = vrot.slane %v810, 4
        %v813 = vshll.u32 %v657, 16
        %v815 = vrot.slane %v813, 5
        %v816 = vsel %vm662, %v811, %v815
        %v818 = vshrl.u32 %v658, 16
        %v820 = vrot.slane %v818, 4
        %v821 = vshll.u32 %v658, 16
        %v823 = vrot.slane %v821, 5
        %v824 = vor.u32 %v820, %v823
        %v825 = vrot.slane %v824, 4
        %v827 = vshll.u32 %v659, 16
        %v829 = vrot.slane %v827, 5
        %v830 = vsel %vm662, %v825, %v829
        %v831 = vunpack.c.l.b16 %v676
        %v832 = vunpack.c.l.b16 %v690
        %v833 = vunpack.c.l.b16 %v704
        %v834 = vunpack.c.l.b16 %v718
        %v835 = vunpack.c.l.b16 %v732
        %v836 = vunpack.c.l.b16 %v746
        %v837 = vunpack.c.l.b16 %v760
        %v838 = vunpack.c.l.b16 %v774
        %v839 = vunpack.c.l.b16 %v788
        %v840 = vunpack.c.l.b16 %v802
        %v841 = vunpack.c.l.b16 %v816
        %v842 = vunpack.c.l.b16 %v830
        %v843 = vpack.c.b16 %v832, %v831
        %v844 = vpack.c.b16 %v834, %v833
        %v845 = vpack.c.b16 %v836, %v835
        %v846 = vpack.c.b16 %v838, %v837
        %v847 = vpack.c.b16 %v840, %v839
        %v848 = vpack.c.b16 %v842, %v841
        %855 = vst [vmem:[#allocation5 + $0x10] sm:$0xff] %v843
        %856 = vst [vmem:[#allocation5 + $0x58] sm:$0xff] %v844
        %857 = vst [vmem:[#allocation5 + $0xa0] sm:$0xff] %v845
        %858 = vst [vmem:[#allocation5 + $0xe8] sm:$0xff] %v846
        %859 = vst [vmem:[#allocation5 + $0x130] sm:$0xff] %v847
        %860 = vst [vmem:[#allocation5 + $0x178] sm:$0xff] %v848
        %s861 = sadd.s32 3, %s366
        %s862 = smul.addr %s861, 4
        %s863 = scalar_lea.vmem [#allocation2], %s862
        %v864 = vld [vmem:[%s863] sm:$0x8]
        %v865 = vld [vmem:[%s863 + $0x4] sm:$0xf]
        %v866 = vld [vmem:[%s863 + $0xc] sm:$0x8]
        %v867 = vld [vmem:[%s863 + $0x10] sm:$0xf]
        %v868 = vld [vmem:[%s863 + $0x18] sm:$0x8]
        %v869 = vld [vmem:[%s863 + $0x1c] sm:$0xf]
        %v870 = vld [vmem:[%s863 + $0x24] sm:$0x8]
        %v871 = vld [vmem:[%s863 + $0x28] sm:$0xf]
        %v872 = vld [vmem:[%s863 + $0x30] sm:$0x8]
        %v873 = vld [vmem:[%s863 + $0x34] sm:$0xf]
        %v874 = vld [vmem:[%s863 + $0x3c] sm:$0x8]
        %v875 = vld [vmem:[%s863 + $0x40] sm:$0xf]
        %v876 = vld [vmem:[%s863 + $0x48] sm:$0x8]
        %v877 = vld [vmem:[%s863 + $0x4c] sm:$0xf]
        %v878 = vld [vmem:[%s863 + $0x54] sm:$0x8]
        %v879 = vld [vmem:[%s863 + $0x58] sm:$0xf]
        %v880 = vld [vmem:[%s863 + $0x60] sm:$0x8]
        %v881 = vld [vmem:[%s863 + $0x64] sm:$0xf]
        %v882 = vld [vmem:[%s863 + $0x6c] sm:$0x8]
        %v883 = vld [vmem:[%s863 + $0x70] sm:$0xf]
        %v884 = vld [vmem:[%s863 + $0x78] sm:$0x8]
        %v885 = vld [vmem:[%s863 + $0x7c] sm:$0xf]
        %v886 = vld [vmem:[%s863 + $0x84] sm:$0x8]
        %v887 = vld [vmem:[%s863 + $0x88] sm:$0xf]
        %v889 = vshrl.u32 %v864, 16
        %v891 = vrot.slane %v889, 7
        %v892 = vrot.slane %v891, 4
        %v894 = vshrl.u32 %v865, 16
        %v896 = vrot.slane %v894, 7
        %v897 = vshll.u32 %v865, 16
        %v899 = vor.u32 %v896, %v897
        %v900 = vsel %vm395, %v892, %v899
        %v902 = vshrl.u32 %v866, 16
        %v904 = vrot.slane %v902, 7
        %v905 = vrot.slane %v904, 4
        %v907 = vshrl.u32 %v867, 16
        %v909 = vrot.slane %v907, 7
        %v910 = vshll.u32 %v867, 16
        %v912 = vor.u32 %v909, %v910
        %v913 = vsel %vm395, %v905, %v912
        %v915 = vshrl.u32 %v868, 16
        %v917 = vrot.slane %v915, 7
        %v918 = vrot.slane %v917, 4
        %v920 = vshrl.u32 %v869, 16
        %v922 = vrot.slane %v920, 7
        %v923 = vshll.u32 %v869, 16
        %v925 = vor.u32 %v922, %v923
        %v926 = vsel %vm395, %v918, %v925
        %v928 = vshrl.u32 %v870, 16
        %v930 = vrot.slane %v928, 7
        %v931 = vrot.slane %v930, 4
        %v933 = vshrl.u32 %v871, 16
        %v935 = vrot.slane %v933, 7
        %v936 = vshll.u32 %v871, 16
        %v938 = vor.u32 %v935, %v936
        %v939 = vsel %vm395, %v931, %v938
        %v941 = vshrl.u32 %v872, 16
        %v943 = vrot.slane %v941, 7
        %v944 = vrot.slane %v943, 4
        %v946 = vshrl.u32 %v873, 16
        %v948 = vrot.slane %v946, 7
        %v949 = vshll.u32 %v873, 16
        %v951 = vor.u32 %v948, %v949
        %v952 = vsel %vm395, %v944, %v951
        %v954 = vshrl.u32 %v874, 16
        %v956 = vrot.slane %v954, 7
        %v957 = vrot.slane %v956, 4
        %v959 = vshrl.u32 %v875, 16
        %v961 = vrot.slane %v959, 7
        %v962 = vshll.u32 %v875, 16
        %v964 = vor.u32 %v961, %v962
        %v965 = vsel %vm395, %v957, %v964
        %v967 = vshrl.u32 %v876, 16
        %v969 = vrot.slane %v967, 7
        %v970 = vrot.slane %v969, 4
        %v972 = vshrl.u32 %v877, 16
        %v974 = vrot.slane %v972, 7
        %v975 = vshll.u32 %v877, 16
        %v977 = vor.u32 %v974, %v975
        %v978 = vsel %vm395, %v970, %v977
        %v980 = vshrl.u32 %v878, 16
        %v982 = vrot.slane %v980, 7
        %v983 = vrot.slane %v982, 4
        %v985 = vshrl.u32 %v879, 16
        %v987 = vrot.slane %v985, 7
        %v988 = vshll.u32 %v879, 16
        %v990 = vor.u32 %v987, %v988
        %v991 = vsel %vm395, %v983, %v990
        %v993 = vshrl.u32 %v880, 16
        %v995 = vrot.slane %v993, 7
        %v996 = vrot.slane %v995, 4
        %v998 = vshrl.u32 %v881, 16
        %v1000 = vrot.slane %v998, 7
        %v1001 = vshll.u32 %v881, 16
        %v1003 = vor.u32 %v1000, %v1001
        %v1004 = vsel %vm395, %v996, %v1003
        %v1006 = vshrl.u32 %v882, 16
        %v1008 = vrot.slane %v1006, 7
        %v1009 = vrot.slane %v1008, 4
        %v1011 = vshrl.u32 %v883, 16
        %v1013 = vrot.slane %v1011, 7
        %v1014 = vshll.u32 %v883, 16
        %v1016 = vor.u32 %v1013, %v1014
        %v1017 = vsel %vm395, %v1009, %v1016
        %v1019 = vshrl.u32 %v884, 16
        %v1021 = vrot.slane %v1019, 7
        %v1022 = vrot.slane %v1021, 4
        %v1024 = vshrl.u32 %v885, 16
        %v1026 = vrot.slane %v1024, 7
        %v1027 = vshll.u32 %v885, 16
        %v1029 = vor.u32 %v1026, %v1027
        %v1030 = vsel %vm395, %v1022, %v1029
        %v1032 = vshrl.u32 %v886, 16
        %v1034 = vrot.slane %v1032, 7
        %v1035 = vrot.slane %v1034, 4
        %v1037 = vshrl.u32 %v887, 16
        %v1039 = vrot.slane %v1037, 7
        %v1040 = vshll.u32 %v887, 16
        %v1042 = vor.u32 %v1039, %v1040
        %v1043 = vsel %vm395, %v1035, %v1042
        %v1044 = vunpack.c.l.b16 %v900
        %v1045 = vunpack.c.l.b16 %v913
        %v1046 = vunpack.c.l.b16 %v926
        %v1047 = vunpack.c.l.b16 %v939
        %v1048 = vunpack.c.l.b16 %v952
        %v1049 = vunpack.c.l.b16 %v965
        %v1050 = vunpack.c.l.b16 %v978
        %v1051 = vunpack.c.l.b16 %v991
        %v1052 = vunpack.c.l.b16 %v1004
        %v1053 = vunpack.c.l.b16 %v1017
        %v1054 = vunpack.c.l.b16 %v1030
        %v1055 = vunpack.c.l.b16 %v1043
        %v1056 = vpack.c.b16 %v1045, %v1044
        %v1057 = vpack.c.b16 %v1047, %v1046
        %v1058 = vpack.c.b16 %v1049, %v1048
        %v1059 = vpack.c.b16 %v1051, %v1050
        %v1060 = vpack.c.b16 %v1053, %v1052
        %v1061 = vpack.c.b16 %v1055, %v1054
        %1068 = vst [vmem:[#allocation5 + $0x18] sm:$0xff] %v1056
        %1069 = vst [vmem:[#allocation5 + $0x60] sm:$0xff] %v1057
        %1070 = vst [vmem:[#allocation5 + $0xa8] sm:$0xff] %v1058
        %1071 = vst [vmem:[#allocation5 + $0xf0] sm:$0xff] %v1059
        %1072 = vst [vmem:[#allocation5 + $0x138] sm:$0xff] %v1060
        %1073 = vst [vmem:[#allocation5 + $0x180] sm:$0xff] %v1061
        %v1074 = vld [vmem:[%s863 + $0x4] sm:$0xf]
        %v1075 = vld [vmem:[%s863 + $0x10] sm:$0xf]
        %v1076 = vld [vmem:[%s863 + $0x1c] sm:$0xf]
        %v1077 = vld [vmem:[%s863 + $0x28] sm:$0xf]
        %v1078 = vld [vmem:[%s863 + $0x34] sm:$0xf]
        %v1079 = vld [vmem:[%s863 + $0x40] sm:$0xf]
        %v1080 = vld [vmem:[%s863 + $0x4c] sm:$0xf]
        %v1081 = vld [vmem:[%s863 + $0x58] sm:$0xf]
        %v1082 = vld [vmem:[%s863 + $0x64] sm:$0xf]
        %v1083 = vld [vmem:[%s863 + $0x70] sm:$0xf]
        %v1084 = vld [vmem:[%s863 + $0x7c] sm:$0xf]
        %v1085 = vld [vmem:[%s863 + $0x88] sm:$0xf]
        %v1098 = vunpack.c.l.b16 %v1074
        %v1099 = vunpack.c.l.b16 %v1075
        %v1100 = vunpack.c.l.b16 %v1076
        %v1101 = vunpack.c.l.b16 %v1077
        %v1102 = vunpack.c.l.b16 %v1078
        %v1103 = vunpack.c.l.b16 %v1079
        %v1104 = vunpack.c.l.b16 %v1080
        %v1105 = vunpack.c.l.b16 %v1081
        %v1106 = vunpack.c.l.b16 %v1082
        %v1107 = vunpack.c.l.b16 %v1083
        %v1108 = vunpack.c.l.b16 %v1084
        %v1109 = vunpack.c.l.b16 %v1085
        %v1110 = vpack.c.b16 %v1099, %v1098
        %v1111 = vpack.c.b16 %v1101, %v1100
        %v1112 = vpack.c.b16 %v1103, %v1102
        %v1113 = vpack.c.b16 %v1105, %v1104
        %v1114 = vpack.c.b16 %v1107, %v1106
        %v1115 = vpack.c.b16 %v1109, %v1108
        %1122 = vst [vmem:[#allocation5 + $0x20] sm:$0xff] %v1110
        %1123 = vst [vmem:[#allocation5 + $0x68] sm:$0xff] %v1111
        %1124 = vst [vmem:[#allocation5 + $0xb0] sm:$0xff] %v1112
        %1125 = vst [vmem:[#allocation5 + $0xf8] sm:$0xff] %v1113
        %1126 = vst [vmem:[#allocation5 + $0x140] sm:$0xff] %v1114
        %1127 = vst [vmem:[#allocation5 + $0x188] sm:$0xff] %v1115
        %v1128 = vld [vmem:[%s863 + $0x4] sm:$0xf]
        %v1129 = vld [vmem:[%s863 + $0x8] sm:$0x1]
        %v1130 = vld [vmem:[%s863 + $0x10] sm:$0xf]
        %v1131 = vld [vmem:[%s863 + $0x14] sm:$0x1]
        %v1132 = vld [vmem:[%s863 + $0x1c] sm:$0xf]
        %v1133 = vld [vmem:[%s863 + $0x20] sm:$0x1]
        %v1134 = vld [vmem:[%s863 + $0x28] sm:$0xf]
        %v1135 = vld [vmem:[%s863 + $0x2c] sm:$0x1]
        %v1136 = vld [vmem:[%s863 + $0x34] sm:$0xf]
        %v1137 = vld [vmem:[%s863 + $0x38] sm:$0x1]
        %v1138 = vld [vmem:[%s863 + $0x40] sm:$0xf]
        %v1139 = vld [vmem:[%s863 + $0x44] sm:$0x1]
        %v1140 = vld [vmem:[%s863 + $0x4c] sm:$0xf]
        %v1141 = vld [vmem:[%s863 + $0x50] sm:$0x1]
        %v1142 = vld [vmem:[%s863 + $0x58] sm:$0xf]
        %v1143 = vld [vmem:[%s863 + $0x5c] sm:$0x1]
        %v1144 = vld [vmem:[%s863 + $0x64] sm:$0xf]
        %v1145 = vld [vmem:[%s863 + $0x68] sm:$0x1]
        %v1146 = vld [vmem:[%s863 + $0x70] sm:$0xf]
        %v1147 = vld [vmem:[%s863 + $0x74] sm:$0x1]
        %v1148 = vld [vmem:[%s863 + $0x7c] sm:$0xf]
        %v1149 = vld [vmem:[%s863 + $0x80] sm:$0x1]
        %v1150 = vld [vmem:[%s863 + $0x88] sm:$0xf]
        %v1151 = vld [vmem:[%s863 + $0x8c] sm:$0x1]
        %v1153 = vshrl.u32 %v1128, 16
        %v1155 = vrot.slane %v1153, 4
        %v1156 = vshll.u32 %v1128, 16
        %v1158 = vrot.slane %v1156, 5
        %v1159 = vor.u32 %v1155, %v1158
        %v1160 = vrot.slane %v1159, 4
        %v1162 = vshll.u32 %v1129, 16
        %v1164 = vrot.slane %v1162, 5
        %v1165 = vsel %vm662, %v1160, %v1164
        %v1167 = vshrl.u32 %v1130, 16
        %v1169 = vrot.slane %v1167, 4
        %v1170 = vshll.u32 %v1130, 16
        %v1172 = vrot.slane %v1170, 5
        %v1173 = vor.u32 %v1169, %v1172
        %v1174 = vrot.slane %v1173, 4
        %v1176 = vshll.u32 %v1131, 16
        %v1178 = vrot.slane %v1176, 5
        %v1179 = vsel %vm662, %v1174, %v1178
        %v1181 = vshrl.u32 %v1132, 16
        %v1183 = vrot.slane %v1181, 4
        %v1184 = vshll.u32 %v1132, 16
        %v1186 = vrot.slane %v1184, 5
        %v1187 = vor.u32 %v1183, %v1186
        %v1188 = vrot.slane %v1187, 4
        %v1190 = vshll.u32 %v1133, 16
        %v1192 = vrot.slane %v1190, 5
        %v1193 = vsel %vm662, %v1188, %v1192
        %v1195 = vshrl.u32 %v1134, 16
        %v1197 = vrot.slane %v1195, 4
        %v1198 = vshll.u32 %v1134, 16
        %v1200 = vrot.slane %v1198, 5
        %v1201 = vor.u32 %v1197, %v1200
        %v1202 = vrot.slane %v1201, 4
        %v1204 = vshll.u32 %v1135, 16
        %v1206 = vrot.slane %v1204, 5
        %v1207 = vsel %vm662, %v1202, %v1206
        %v1209 = vshrl.u32 %v1136, 16
        %v1211 = vrot.slane %v1209, 4
        %v1212 = vshll.u32 %v1136, 16
        %v1214 = vrot.slane %v1212, 5
        %v1215 = vor.u32 %v1211, %v1214
        %v1216 = vrot.slane %v1215, 4
        %v1218 = vshll.u32 %v1137, 16
        %v1220 = vrot.slane %v1218, 5
        %v1221 = vsel %vm662, %v1216, %v1220
        %v1223 = vshrl.u32 %v1138, 16
        %v1225 = vrot.slane %v1223, 4
        %v1226 = vshll.u32 %v1138, 16
        %v1228 = vrot.slane %v1226, 5
        %v1229 = vor.u32 %v1225, %v1228
        %v1230 = vrot.slane %v1229, 4
        %v1232 = vshll.u32 %v1139, 16
        %v1234 = vrot.slane %v1232, 5
        %v1235 = vsel %vm662, %v1230, %v1234
        %v1237 = vshrl.u32 %v1140, 16
        %v1239 = vrot.slane %v1237, 4
        %v1240 = vshll.u32 %v1140, 16
        %v1242 = vrot.slane %v1240, 5
        %v1243 = vor.u32 %v1239, %v1242
        %v1244 = vrot.slane %v1243, 4
        %v1246 = vshll.u32 %v1141, 16
        %v1248 = vrot.slane %v1246, 5
        %v1249 = vsel %vm662, %v1244, %v1248
        %v1251 = vshrl.u32 %v1142, 16
        %v1253 = vrot.slane %v1251, 4
        %v1254 = vshll.u32 %v1142, 16
        %v1256 = vrot.slane %v1254, 5
        %v1257 = vor.u32 %v1253, %v1256
        %v1258 = vrot.slane %v1257, 4
        %v1260 = vshll.u32 %v1143, 16
        %v1262 = vrot.slane %v1260, 5
        %v1263 = vsel %vm662, %v1258, %v1262
        %v1265 = vshrl.u32 %v1144, 16
        %v1267 = vrot.slane %v1265, 4
        %v1268 = vshll.u32 %v1144, 16
        %v1270 = vrot.slane %v1268, 5
        %v1271 = vor.u32 %v1267, %v1270
        %v1272 = vrot.slane %v1271, 4
        %v1274 = vshll.u32 %v1145, 16
        %v1276 = vrot.slane %v1274, 5
        %v1277 = vsel %vm662, %v1272, %v1276
        %v1279 = vshrl.u32 %v1146, 16
        %v1281 = vrot.slane %v1279, 4
        %v1282 = vshll.u32 %v1146, 16
        %v1284 = vrot.slane %v1282, 5
        %v1285 = vor.u32 %v1281, %v1284
        %v1286 = vrot.slane %v1285, 4
        %v1288 = vshll.u32 %v1147, 16
        %v1290 = vrot.slane %v1288, 5
        %v1291 = vsel %vm662, %v1286, %v1290
        %v1293 = vshrl.u32 %v1148, 16
        %v1295 = vrot.slane %v1293, 4
        %v1296 = vshll.u32 %v1148, 16
        %v1298 = vrot.slane %v1296, 5
        %v1299 = vor.u32 %v1295, %v1298
        %v1300 = vrot.slane %v1299, 4
        %v1302 = vshll.u32 %v1149, 16
        %v1304 = vrot.slane %v1302, 5
        %v1305 = vsel %vm662, %v1300, %v1304
        %v1307 = vshrl.u32 %v1150, 16
        %v1309 = vrot.slane %v1307, 4
        %v1310 = vshll.u32 %v1150, 16
        %v1312 = vrot.slane %v1310, 5
        %v1313 = vor.u32 %v1309, %v1312
        %v1314 = vrot.slane %v1313, 4
        %v1316 = vshll.u32 %v1151, 16
        %v1318 = vrot.slane %v1316, 5
        %v1319 = vsel %vm662, %v1314, %v1318
        %v1320 = vunpack.c.l.b16 %v1165
        %v1321 = vunpack.c.l.b16 %v1179
        %v1322 = vunpack.c.l.b16 %v1193
        %v1323 = vunpack.c.l.b16 %v1207
        %v1324 = vunpack.c.l.b16 %v1221
        %v1325 = vunpack.c.l.b16 %v1235
        %v1326 = vunpack.c.l.b16 %v1249
        %v1327 = vunpack.c.l.b16 %v1263
        %v1328 = vunpack.c.l.b16 %v1277
        %v1329 = vunpack.c.l.b16 %v1291
        %v1330 = vunpack.c.l.b16 %v1305
        %v1331 = vunpack.c.l.b16 %v1319
        %v1332 = vpack.c.b16 %v1321, %v1320
        %v1333 = vpack.c.b16 %v1323, %v1322
        %v1334 = vpack.c.b16 %v1325, %v1324
        %v1335 = vpack.c.b16 %v1327, %v1326
        %v1336 = vpack.c.b16 %v1329, %v1328
        %v1337 = vpack.c.b16 %v1331, %v1330
        %1344 = vst [vmem:[#allocation5 + $0x28] sm:$0xff] %v1332
        %1345 = vst [vmem:[#allocation5 + $0x70] sm:$0xff] %v1333
        %1346 = vst [vmem:[#allocation5 + $0xb8] sm:$0xff] %v1334
        %1347 = vst [vmem:[#allocation5 + $0x100] sm:$0xff] %v1335
        %1348 = vst [vmem:[#allocation5 + $0x148] sm:$0xff] %v1336
        %1349 = vst [vmem:[#allocation5 + $0x190] sm:$0xff] %v1337
        %s1350 = sadd.s32 6, %s366
        %s1351 = smul.addr %s1350, 4
        %s1352 = scalar_lea.vmem [#allocation2], %s1351
        %v1353 = vld [vmem:[%s1352] sm:$0x8]
        %v1354 = vld [vmem:[%s1352 + $0x4] sm:$0xf]
        %v1355 = vld [vmem:[%s1352 + $0xc] sm:$0x8]
        %v1356 = vld [vmem:[%s1352 + $0x10] sm:$0xf]
        %v1357 = vld [vmem:[%s1352 + $0x18] sm:$0x8]
        %v1358 = vld [vmem:[%s1352 + $0x1c] sm:$0xf]
        %v1359 = vld [vmem:[%s1352 + $0x24] sm:$0x8]
        %v1360 = vld [vmem:[%s1352 + $0x28] sm:$0xf]
        %v1361 = vld [vmem:[%s1352 + $0x30] sm:$0x8]
        %v1362 = vld [vmem:[%s1352 + $0x34] sm:$0xf]
        %v1363 = vld [vmem:[%s1352 + $0x3c] sm:$0x8]
        %v1364 = vld [vmem:[%s1352 + $0x40] sm:$0xf]
        %v1365 = vld [vmem:[%s1352 + $0x48] sm:$0x8]
        %v1366 = vld [vmem:[%s1352 + $0x4c] sm:$0xf]
        %v1367 = vld [vmem:[%s1352 + $0x54] sm:$0x8]
        %v1368 = vld [vmem:[%s1352 + $0x58] sm:$0xf]
        %v1369 = vld [vmem:[%s1352 + $0x60] sm:$0x8]
        %v1370 = vld [vmem:[%s1352 + $0x64] sm:$0xf]
        %v1371 = vld [vmem:[%s1352 + $0x6c] sm:$0x8]
        %v1372 = vld [vmem:[%s1352 + $0x70] sm:$0xf]
        %v1373 = vld [vmem:[%s1352 + $0x78] sm:$0x8]
        %v1374 = vld [vmem:[%s1352 + $0x7c] sm:$0xf]
        %v1375 = vld [vmem:[%s1352 + $0x84] sm:$0x8]
        %v1376 = vld [vmem:[%s1352 + $0x88] sm:$0xf]
        %v1378 = vshrl.u32 %v1353, 16
        %v1380 = vrot.slane %v1378, 7
        %v1381 = vrot.slane %v1380, 4
        %v1383 = vshrl.u32 %v1354, 16
        %v1385 = vrot.slane %v1383, 7
        %v1386 = vshll.u32 %v1354, 16
        %v1388 = vor.u32 %v1385, %v1386
        %v1389 = vsel %vm395, %v1381, %v1388
        %v1391 = vshrl.u32 %v1355, 16
        %v1393 = vrot.slane %v1391, 7
        %v1394 = vrot.slane %v1393, 4
        %v1396 = vshrl.u32 %v1356, 16
        %v1398 = vrot.slane %v1396, 7
        %v1399 = vshll.u32 %v1356, 16
        %v1401 = vor.u32 %v1398, %v1399
        %v1402 = vsel %vm395, %v1394, %v1401
        %v1404 = vshrl.u32 %v1357, 16
        %v1406 = vrot.slane %v1404, 7
        %v1407 = vrot.slane %v1406, 4
        %v1409 = vshrl.u32 %v1358, 16
        %v1411 = vrot.slane %v1409, 7
        %v1412 = vshll.u32 %v1358, 16
        %v1414 = vor.u32 %v1411, %v1412
        %v1415 = vsel %vm395, %v1407, %v1414
        %v1417 = vshrl.u32 %v1359, 16
        %v1419 = vrot.slane %v1417, 7
        %v1420 = vrot.slane %v1419, 4
        %v1422 = vshrl.u32 %v1360, 16
        %v1424 = vrot.slane %v1422, 7
        %v1425 = vshll.u32 %v1360, 16
        %v1427 = vor.u32 %v1424, %v1425
        %v1428 = vsel %vm395, %v1420, %v1427
        %v1430 = vshrl.u32 %v1361, 16
        %v1432 = vrot.slane %v1430, 7
        %v1433 = vrot.slane %v1432, 4
        %v1435 = vshrl.u32 %v1362, 16
        %v1437 = vrot.slane %v1435, 7
        %v1438 = vshll.u32 %v1362, 16
        %v1440 = vor.u32 %v1437, %v1438
        %v1441 = vsel %vm395, %v1433, %v1440
        %v1443 = vshrl.u32 %v1363, 16
        %v1445 = vrot.slane %v1443, 7
        %v1446 = vrot.slane %v1445, 4
        %v1448 = vshrl.u32 %v1364, 16
        %v1450 = vrot.slane %v1448, 7
        %v1451 = vshll.u32 %v1364, 16
        %v1453 = vor.u32 %v1450, %v1451
        %v1454 = vsel %vm395, %v1446, %v1453
        %v1456 = vshrl.u32 %v1365, 16
        %v1458 = vrot.slane %v1456, 7
        %v1459 = vrot.slane %v1458, 4
        %v1461 = vshrl.u32 %v1366, 16
        %v1463 = vrot.slane %v1461, 7
        %v1464 = vshll.u32 %v1366, 16
        %v1466 = vor.u32 %v1463, %v1464
        %v1467 = vsel %vm395, %v1459, %v1466
        %v1469 = vshrl.u32 %v1367, 16
        %v1471 = vrot.slane %v1469, 7
        %v1472 = vrot.slane %v1471, 4
        %v1474 = vshrl.u32 %v1368, 16
        %v1476 = vrot.slane %v1474, 7
        %v1477 = vshll.u32 %v1368, 16
        %v1479 = vor.u32 %v1476, %v1477
        %v1480 = vsel %vm395, %v1472, %v1479
        %v1482 = vshrl.u32 %v1369, 16
        %v1484 = vrot.slane %v1482, 7
        %v1485 = vrot.slane %v1484, 4
        %v1487 = vshrl.u32 %v1370, 16
        %v1489 = vrot.slane %v1487, 7
        %v1490 = vshll.u32 %v1370, 16
        %v1492 = vor.u32 %v1489, %v1490
        %v1493 = vsel %vm395, %v1485, %v1492
        %v1495 = vshrl.u32 %v1371, 16
        %v1497 = vrot.slane %v1495, 7
        %v1498 = vrot.slane %v1497, 4
        %v1500 = vshrl.u32 %v1372, 16
        %v1502 = vrot.slane %v1500, 7
        %v1503 = vshll.u32 %v1372, 16
        %v1505 = vor.u32 %v1502, %v1503
        %v1506 = vsel %vm395, %v1498, %v1505
        %v1508 = vshrl.u32 %v1373, 16
        %v1510 = vrot.slane %v1508, 7
        %v1511 = vrot.slane %v1510, 4
        %v1513 = vshrl.u32 %v1374, 16
        %v1515 = vrot.slane %v1513, 7
        %v1516 = vshll.u32 %v1374, 16
        %v1518 = vor.u32 %v1515, %v1516
        %v1519 = vsel %vm395, %v1511, %v1518
        %v1521 = vshrl.u32 %v1375, 16
        %v1523 = vrot.slane %v1521, 7
        %v1524 = vrot.slane %v1523, 4
        %v1526 = vshrl.u32 %v1376, 16
        %v1528 = vrot.slane %v1526, 7
        %v1529 = vshll.u32 %v1376, 16
        %v1531 = vor.u32 %v1528, %v1529
        %v1532 = vsel %vm395, %v1524, %v1531
        %v1533 = vunpack.c.l.b16 %v1389
        %v1534 = vunpack.c.l.b16 %v1402
        %v1535 = vunpack.c.l.b16 %v1415
        %v1536 = vunpack.c.l.b16 %v1428
        %v1537 = vunpack.c.l.b16 %v1441
        %v1538 = vunpack.c.l.b16 %v1454
        %v1539 = vunpack.c.l.b16 %v1467
        %v1540 = vunpack.c.l.b16 %v1480
        %v1541 = vunpack.c.l.b16 %v1493
        %v1542 = vunpack.c.l.b16 %v1506
        %v1543 = vunpack.c.l.b16 %v1519
        %v1544 = vunpack.c.l.b16 %v1532
        %v1545 = vpack.c.b16 %v1534, %v1533
        %v1546 = vpack.c.b16 %v1536, %v1535
        %v1547 = vpack.c.b16 %v1538, %v1537
        %v1548 = vpack.c.b16 %v1540, %v1539
        %v1549 = vpack.c.b16 %v1542, %v1541
        %v1550 = vpack.c.b16 %v1544, %v1543
        %1557 = vst [vmem:[#allocation5 + $0x30] sm:$0xff] %v1545
        %1558 = vst [vmem:[#allocation5 + $0x78] sm:$0xff] %v1546
        %1559 = vst [vmem:[#allocation5 + $0xc0] sm:$0xff] %v1547
        %1560 = vst [vmem:[#allocation5 + $0x108] sm:$0xff] %v1548
        %1561 = vst [vmem:[#allocation5 + $0x150] sm:$0xff] %v1549
        %1562 = vst [vmem:[#allocation5 + $0x198] sm:$0xff] %v1550
        %v1563 = vld [vmem:[%s1352 + $0x4] sm:$0xf]
        %v1564 = vld [vmem:[%s1352 + $0x10] sm:$0xf]
        %v1565 = vld [vmem:[%s1352 + $0x1c] sm:$0xf]
        %v1566 = vld [vmem:[%s1352 + $0x28] sm:$0xf]
        %v1567 = vld [vmem:[%s1352 + $0x34] sm:$0xf]
        %v1568 = vld [vmem:[%s1352 + $0x40] sm:$0xf]
        %v1569 = vld [vmem:[%s1352 + $0x4c] sm:$0xf]
        %v1570 = vld [vmem:[%s1352 + $0x58] sm:$0xf]
        %v1571 = vld [vmem:[%s1352 + $0x64] sm:$0xf]
        %v1572 = vld [vmem:[%s1352 + $0x70] sm:$0xf]
        %v1573 = vld [vmem:[%s1352 + $0x7c] sm:$0xf]
        %v1574 = vld [vmem:[%s1352 + $0x88] sm:$0xf]
        %v1587 = vunpack.c.l.b16 %v1563
        %v1588 = vunpack.c.l.b16 %v1564
        %v1589 = vunpack.c.l.b16 %v1565
        %v1590 = vunpack.c.l.b16 %v1566
        %v1591 = vunpack.c.l.b16 %v1567
        %v1592 = vunpack.c.l.b16 %v1568
        %v1593 = vunpack.c.l.b16 %v1569
        %v1594 = vunpack.c.l.b16 %v1570
        %v1595 = vunpack.c.l.b16 %v1571
        %v1596 = vunpack.c.l.b16 %v1572
        %v1597 = vunpack.c.l.b16 %v1573
        %v1598 = vunpack.c.l.b16 %v1574
        %v1599 = vpack.c.b16 %v1588, %v1587
        %v1600 = vpack.c.b16 %v1590, %v1589
        %v1601 = vpack.c.b16 %v1592, %v1591
        %v1602 = vpack.c.b16 %v1594, %v1593
        %v1603 = vpack.c.b16 %v1596, %v1595
        %v1604 = vpack.c.b16 %v1598, %v1597
        %1611 = vst [vmem:[#allocation5 + $0x38] sm:$0xff] %v1599
        %1612 = vst [vmem:[#allocation5 + $0x80] sm:$0xff] %v1600
        %1613 = vst [vmem:[#allocation5 + $0xc8] sm:$0xff] %v1601
        %1614 = vst [vmem:[#allocation5 + $0x110] sm:$0xff] %v1602
        %1615 = vst [vmem:[#allocation5 + $0x158] sm:$0xff] %v1603
        %1616 = vst [vmem:[#allocation5 + $0x1a0] sm:$0xff] %v1604
        %v1617 = vld [vmem:[%s1352 + $0x4] sm:$0xf]
        %v1618 = vld [vmem:[%s1352 + $0x8] sm:$0x1]
        %v1619 = vld [vmem:[%s1352 + $0x10] sm:$0xf]
        %v1620 = vld [vmem:[%s1352 + $0x14] sm:$0x1]
        %v1621 = vld [vmem:[%s1352 + $0x1c] sm:$0xf]
        %v1622 = vld [vmem:[%s1352 + $0x20] sm:$0x1]
        %v1623 = vld [vmem:[%s1352 + $0x28] sm:$0xf]
        %v1624 = vld [vmem:[%s1352 + $0x2c] sm:$0x1]
        %v1625 = vld [vmem:[%s1352 + $0x34] sm:$0xf]
        %v1626 = vld [vmem:[%s1352 + $0x38] sm:$0x1]
        %v1627 = vld [vmem:[%s1352 + $0x40] sm:$0xf]
        %v1628 = vld [vmem:[%s1352 + $0x44] sm:$0x1]
        %v1629 = vld [vmem:[%s1352 + $0x4c] sm:$0xf]
        %v1630 = vld [vmem:[%s1352 + $0x50] sm:$0x1]
        %v1631 = vld [vmem:[%s1352 + $0x58] sm:$0xf]
        %v1632 = vld [vmem:[%s1352 + $0x5c] sm:$0x1]
        %v1633 = vld [vmem:[%s1352 + $0x64] sm:$0xf]
        %v1634 = vld [vmem:[%s1352 + $0x68] sm:$0x1]
        %v1635 = vld [vmem:[%s1352 + $0x70] sm:$0xf]
        %v1636 = vld [vmem:[%s1352 + $0x74] sm:$0x1]
        %v1637 = vld [vmem:[%s1352 + $0x7c] sm:$0xf]
        %v1638 = vld [vmem:[%s1352 + $0x80] sm:$0x1]
        %v1639 = vld [vmem:[%s1352 + $0x88] sm:$0xf]
        %v1640 = vld [vmem:[%s1352 + $0x8c] sm:$0x1]
        %v1642 = vshrl.u32 %v1617, 16
        %v1644 = vrot.slane %v1642, 4
        %v1645 = vshll.u32 %v1617, 16
        %v1647 = vrot.slane %v1645, 5
        %v1648 = vor.u32 %v1644, %v1647
        %v1649 = vrot.slane %v1648, 4
        %v1651 = vshll.u32 %v1618, 16
        %v1653 = vrot.slane %v1651, 5
        %v1654 = vsel %vm662, %v1649, %v1653
        %v1656 = vshrl.u32 %v1619, 16
        %v1658 = vrot.slane %v1656, 4
        %v1659 = vshll.u32 %v1619, 16
        %v1661 = vrot.slane %v1659, 5
        %v1662 = vor.u32 %v1658, %v1661
        %v1663 = vrot.slane %v1662, 4
        %v1665 = vshll.u32 %v1620, 16
        %v1667 = vrot.slane %v1665, 5
        %v1668 = vsel %vm662, %v1663, %v1667
        %v1670 = vshrl.u32 %v1621, 16
        %v1672 = vrot.slane %v1670, 4
        %v1673 = vshll.u32 %v1621, 16
        %v1675 = vrot.slane %v1673, 5
        %v1676 = vor.u32 %v1672, %v1675
        %v1677 = vrot.slane %v1676, 4
        %v1679 = vshll.u32 %v1622, 16
        %v1681 = vrot.slane %v1679, 5
        %v1682 = vsel %vm662, %v1677, %v1681
        %v1684 = vshrl.u32 %v1623, 16
        %v1686 = vrot.slane %v1684, 4
        %v1687 = vshll.u32 %v1623, 16
        %v1689 = vrot.slane %v1687, 5
        %v1690 = vor.u32 %v1686, %v1689
        %v1691 = vrot.slane %v1690, 4
        %v1693 = vshll.u32 %v1624, 16
        %v1695 = vrot.slane %v1693, 5
        %v1696 = vsel %vm662, %v1691, %v1695
        %v1698 = vshrl.u32 %v1625, 16
        %v1700 = vrot.slane %v1698, 4
        %v1701 = vshll.u32 %v1625, 16
        %v1703 = vrot.slane %v1701, 5
        %v1704 = vor.u32 %v1700, %v1703
        %v1705 = vrot.slane %v1704, 4
        %v1707 = vshll.u32 %v1626, 16
        %v1709 = vrot.slane %v1707, 5
        %v1710 = vsel %vm662, %v1705, %v1709
        %v1712 = vshrl.u32 %v1627, 16
        %v1714 = vrot.slane %v1712, 4
        %v1715 = vshll.u32 %v1627, 16
        %v1717 = vrot.slane %v1715, 5
        %v1718 = vor.u32 %v1714, %v1717
        %v1719 = vrot.slane %v1718, 4
        %v1721 = vshll.u32 %v1628, 16
        %v1723 = vrot.slane %v1721, 5
        %v1724 = vsel %vm662, %v1719, %v1723
        %v1726 = vshrl.u32 %v1629, 16
        %v1728 = vrot.slane %v1726, 4
        %v1729 = vshll.u32 %v1629, 16
        %v1731 = vrot.slane %v1729, 5
        %v1732 = vor.u32 %v1728, %v1731
        %v1733 = vrot.slane %v1732, 4
        %v1735 = vshll.u32 %v1630, 16
        %v1737 = vrot.slane %v1735, 5
        %v1738 = vsel %vm662, %v1733, %v1737
        %v1740 = vshrl.u32 %v1631, 16
        %v1742 = vrot.slane %v1740, 4
        %v1743 = vshll.u32 %v1631, 16
        %v1745 = vrot.slane %v1743, 5
        %v1746 = vor.u32 %v1742, %v1745
        %v1747 = vrot.slane %v1746, 4
        %v1749 = vshll.u32 %v1632, 16
        %v1751 = vrot.slane %v1749, 5
        %v1752 = vsel %vm662, %v1747, %v1751
        %v1754 = vshrl.u32 %v1633, 16
        %v1756 = vrot.slane %v1754, 4
        %v1757 = vshll.u32 %v1633, 16
        %v1759 = vrot.slane %v1757, 5
        %v1760 = vor.u32 %v1756, %v1759
        %v1761 = vrot.slane %v1760, 4
        %v1763 = vshll.u32 %v1634, 16
        %v1765 = vrot.slane %v1763, 5
        %v1766 = vsel %vm662, %v1761, %v1765
        %v1768 = vshrl.u32 %v1635, 16
        %v1770 = vrot.slane %v1768, 4
        %v1771 = vshll.u32 %v1635, 16
        %v1773 = vrot.slane %v1771, 5
        %v1774 = vor.u32 %v1770, %v1773
        %v1775 = vrot.slane %v1774, 4
        %v1777 = vshll.u32 %v1636, 16
        %v1779 = vrot.slane %v1777, 5
        %v1780 = vsel %vm662, %v1775, %v1779
        %v1782 = vshrl.u32 %v1637, 16
        %v1784 = vrot.slane %v1782, 4
        %v1785 = vshll.u32 %v1637, 16
        %v1787 = vrot.slane %v1785, 5
        %v1788 = vor.u32 %v1784, %v1787
        %v1789 = vrot.slane %v1788, 4
        %v1791 = vshll.u32 %v1638, 16
        %v1793 = vrot.slane %v1791, 5
        %v1794 = vsel %vm662, %v1789, %v1793
        %v1796 = vshrl.u32 %v1639, 16
        %v1798 = vrot.slane %v1796, 4
        %v1799 = vshll.u32 %v1639, 16
        %v1801 = vrot.slane %v1799, 5
        %v1802 = vor.u32 %v1798, %v1801
        %v1803 = vrot.slane %v1802, 4
        %v1805 = vshll.u32 %v1640, 16
        %v1807 = vrot.slane %v1805, 5
        %v1808 = vsel %vm662, %v1803, %v1807
        %v1809 = vunpack.c.l.b16 %v1654
        %v1810 = vunpack.c.l.b16 %v1668
        %v1811 = vunpack.c.l.b16 %v1682
        %v1812 = vunpack.c.l.b16 %v1696
        %v1813 = vunpack.c.l.b16 %v1710
        %v1814 = vunpack.c.l.b16 %v1724
        %v1815 = vunpack.c.l.b16 %v1738
        %v1816 = vunpack.c.l.b16 %v1752
        %v1817 = vunpack.c.l.b16 %v1766
        %v1818 = vunpack.c.l.b16 %v1780
        %v1819 = vunpack.c.l.b16 %v1794
        %v1820 = vunpack.c.l.b16 %v1808
        %v1821 = vpack.c.b16 %v1810, %v1809
        %v1822 = vpack.c.b16 %v1812, %v1811
        %v1823 = vpack.c.b16 %v1814, %v1813
        %v1824 = vpack.c.b16 %v1816, %v1815
        %v1825 = vpack.c.b16 %v1818, %v1817
        %v1826 = vpack.c.b16 %v1820, %v1819
        %1833 = vst [vmem:[#allocation5 + $0x40] sm:$0xff] %v1821
        %1834 = vst [vmem:[#allocation5 + $0x88] sm:$0xff] %v1822
        %1835 = vst [vmem:[#allocation5 + $0xd0] sm:$0xff] %v1823
        %1836 = vst [vmem:[#allocation5 + $0x118] sm:$0xff] %v1824
        %1837 = vst [vmem:[#allocation5 + $0x160] sm:$0xff] %v1825
        %1838 = vst [vmem:[#allocation5 + $0x1a8] sm:$0xff] %v1826
        %v1839 = vld [vmem:[#allocation5] sm:$0xff]
        %v1840 = vld [vmem:[#allocation5 + $0x8] sm:$0xff]
        %v1841 = vld [vmem:[#allocation5 + $0x10] sm:$0xff]
        %v1842 = vld [vmem:[#allocation5 + $0x18] sm:$0xff]
        %v1843 = vld [vmem:[#allocation5 + $0x20] sm:$0xff]
        %v1844 = vld [vmem:[#allocation5 + $0x28] sm:$0xff]
        %v1845 = vld [vmem:[#allocation5 + $0x30] sm:$0xff]
        %v1846 = vld [vmem:[#allocation5 + $0x38] sm:$0xff]
        %v1847 = vld [vmem:[#allocation5 + $0x40] sm:$0xff]
        %v1848 = vld [vmem:[#allocation5 + $0x48] sm:$0xff]
        %v1849 = vld [vmem:[#allocation5 + $0x50] sm:$0xff]
        %v1850 = vld [vmem:[#allocation5 + $0x58] sm:$0xff]
        %v1851 = vld [vmem:[#allocation5 + $0x60] sm:$0xff]
        %v1852 = vld [vmem:[#allocation5 + $0x68] sm:$0xff]
        %v1853 = vld [vmem:[#allocation5 + $0x70] sm:$0xff]
        %v1854 = vld [vmem:[#allocation5 + $0x78] sm:$0xff]
        %v1855 = vld [vmem:[#allocation5 + $0x80] sm:$0xff]
        %v1856 = vld [vmem:[#allocation5 + $0x88] sm:$0xff]
        %v1857 = vld [vmem:[#allocation5 + $0x90] sm:$0xff]
        %v1858 = vld [vmem:[#allocation5 + $0x98] sm:$0xff]
        %v1859 = vld [vmem:[#allocation5 + $0xa0] sm:$0xff]
        %v1860 = vld [vmem:[#allocation5 + $0xa8] sm:$0xff]
        %v1861 = vld [vmem:[#allocation5 + $0xb0] sm:$0xff]
        %v1862 = vld [vmem:[#allocation5 + $0xb8] sm:$0xff]
        %v1863 = vld [vmem:[#allocation5 + $0xc0] sm:$0xff]
        %v1864 = vld [vmem:[#allocation5 + $0xc8] sm:$0xff]
        %v1865 = vld [vmem:[#allocation5 + $0xd0] sm:$0xff]
        %v1866 = vld [vmem:[#allocation5 + $0xd8] sm:$0xff]
        %v1867 = vld [vmem:[#allocation5 + $0xe0] sm:$0xff]
        %v1868 = vld [vmem:[#allocation5 + $0xe8] sm:$0xff]
        %v1869 = vld [vmem:[#allocation5 + $0xf0] sm:$0xff]
        %v1870 = vld [vmem:[#allocation5 + $0xf8] sm:$0xff]
        %v1871 = vld [vmem:[#allocation5 + $0x100] sm:$0xff]
        %v1872 = vld [vmem:[#allocation5 + $0x108] sm:$0xff]
        %v1873 = vld [vmem:[#allocation5 + $0x110] sm:$0xff]
        %v1874 = vld [vmem:[#allocation5 + $0x118] sm:$0xff]
        %v1875 = vld [vmem:[#allocation5 + $0x120] sm:$0xff]
        %v1876 = vld [vmem:[#allocation5 + $0x128] sm:$0xff]
        %v1877 = vld [vmem:[#allocation5 + $0x130] sm:$0xff]
        %v1878 = vld [vmem:[#allocation5 + $0x138] sm:$0xff]
        %v1879 = vld [vmem:[#allocation5 + $0x140] sm:$0xff]
        %v1880 = vld [vmem:[#allocation5 + $0x148] sm:$0xff]
        %v1881 = vld [vmem:[#allocation5 + $0x150] sm:$0xff]
        %v1882 = vld [vmem:[#allocation5 + $0x158] sm:$0xff]
        %v1883 = vld [vmem:[#allocation5 + $0x160] sm:$0xff]
        %v1884 = vld [vmem:[#allocation5 + $0x168] sm:$0xff]
        %v1885 = vld [vmem:[#allocation5 + $0x170] sm:$0xff]
        %v1886 = vld [vmem:[#allocation5 + $0x178] sm:$0xff]
        %v1887 = vld [vmem:[#allocation5 + $0x180] sm:$0xff]
        %v1888 = vld [vmem:[#allocation5 + $0x188] sm:$0xff]
        %v1889 = vld [vmem:[#allocation5 + $0x190] sm:$0xff]
        %v1890 = vld [vmem:[#allocation5 + $0x198] sm:$0xff]
        %v1891 = vld [vmem:[#allocation5 + $0x1a0] sm:$0xff]
        %v1892 = vld [vmem:[#allocation5 + $0x1a8] sm:$0xff]
        %v1893 = vld [vmem:[#allocation7] sm:$0xf]
        %v1894 = vld [vmem:[#allocation7 + $0x4] sm:$0xf]
        %v1895 = vld [vmem:[#allocation7 + $0x8] sm:$0xf]
        %v1896 = vld [vmem:[#allocation7 + $0xc] sm:$0xf]
        %v1897 = vld [vmem:[#allocation7 + $0x10] sm:$0xf]
        %v1898 = vld [vmem:[#allocation7 + $0x14] sm:$0xf]
        %v1899 = vld [vmem:[#allocation7 + $0x18] sm:$0xf]
        %v1900 = vld [vmem:[#allocation7 + $0x1c] sm:$0xf]
        %v1901 = vld [vmem:[#allocation7 + $0x20] sm:$0xf]
        %v1902 = vld [vmem:[#allocation7 + $0x24] sm:$0xf]
        %v1903 = vld [vmem:[#allocation7 + $0x28] sm:$0xf]
        %v1904 = vld [vmem:[#allocation7 + $0x2c] sm:$0xf]
        %v1905 = vld [vmem:[#allocation7 + $0x30] sm:$0xf]
        %v1906 = vld [vmem:[#allocation7 + $0x34] sm:$0xf]
        %v1907 = vld [vmem:[#allocation7 + $0x38] sm:$0xf]
        %v1908 = vld [vmem:[#allocation7 + $0x3c] sm:$0xf]
        %v1909 = vld [vmem:[#allocation7 + $0x40] sm:$0xf]
        %v1910 = vld [vmem:[#allocation7 + $0x44] sm:$0xf]
        %v1911 = vld [vmem:[#allocation7 + $0x48] sm:$0xf]
        %v1912 = vld [vmem:[#allocation7 + $0x4c] sm:$0xf]
        %v1913 = vld [vmem:[#allocation7 + $0x50] sm:$0xf]
        %v1914 = vld [vmem:[#allocation7 + $0x54] sm:$0xf]
        %v1915 = vld [vmem:[#allocation7 + $0x58] sm:$0xf]
        %v1916 = vld [vmem:[#allocation7 + $0x5c] sm:$0xf]
        %v1917 = vld [vmem:[#allocation7 + $0x60] sm:$0xf]
        %v1918 = vld [vmem:[#allocation7 + $0x64] sm:$0xf]
        %v1919 = vld [vmem:[#allocation7 + $0x68] sm:$0xf]
        %v1920 = vld [vmem:[#allocation7 + $0x6c] sm:$0xf]
        %v1921 = vld [vmem:[#allocation7 + $0x70] sm:$0xf]
        %v1922 = vld [vmem:[#allocation7 + $0x74] sm:$0xf]
        %v1923 = vld [vmem:[#allocation7 + $0x78] sm:$0xf]
        %v1924 = vld [vmem:[#allocation7 + $0x7c] sm:$0xf]
        %v1925 = vld [vmem:[#allocation7 + $0x80] sm:$0xf]
        %v1926 = vld [vmem:[#allocation7 + $0x84] sm:$0xf]
        %v1927 = vld [vmem:[#allocation7 + $0x88] sm:$0xf]
        %v1928 = vld [vmem:[#allocation7 + $0x8c] sm:$0xf]
        %v1929 = vld [vmem:[#allocation7 + $0x90] sm:$0xf]
        %v1930 = vld [vmem:[#allocation7 + $0x94] sm:$0xf]
        %v1931 = vld [vmem:[#allocation7 + $0x98] sm:$0xf]
        %v1932 = vld [vmem:[#allocation7 + $0x9c] sm:$0xf]
        %v1933 = vld [vmem:[#allocation7 + $0xa0] sm:$0xf]
        %v1934 = vld [vmem:[#allocation7 + $0xa4] sm:$0xf]
        %v1935 = vld [vmem:[#allocation7 + $0xa8] sm:$0xf]
        %v1936 = vld [vmem:[#allocation7 + $0xac] sm:$0xf]
        %v1937 = vld [vmem:[#allocation7 + $0xb0] sm:$0xf]
        %v1938 = vld [vmem:[#allocation7 + $0xb4] sm:$0xf]
        %v1939 = vld [vmem:[#allocation7 + $0xb8] sm:$0xf]
        %v1940 = vld [vmem:[#allocation7 + $0xbc] sm:$0xf]
        %v1941 = vld [vmem:[#allocation7 + $0xc0] sm:$0xf]
        %v1942 = vld [vmem:[#allocation7 + $0xc4] sm:$0xf]
        %v1943 = vld [vmem:[#allocation7 + $0xc8] sm:$0xf]
        %v1944 = vld [vmem:[#allocation7 + $0xcc] sm:$0xf]
        %v1945 = vld [vmem:[#allocation7 + $0xd0] sm:$0xf]
        %v1946 = vld [vmem:[#allocation7 + $0xd4] sm:$0xf]
        %v1947 = vld [vmem:[#allocation7 + $0xd8] sm:$0xf]
        %v1948 = vld [vmem:[#allocation7 + $0xdc] sm:$0xf]
        %v1949 = vld [vmem:[#allocation7 + $0xe0] sm:$0xf]
        %v1950 = vld [vmem:[#allocation7 + $0xe4] sm:$0xf]
        %v1951 = vld [vmem:[#allocation7 + $0xe8] sm:$0xf]
        %v1952 = vld [vmem:[#allocation7 + $0xec] sm:$0xf]
        %v1953 = vld [vmem:[#allocation7 + $0xf0] sm:$0xf]
        %v1954 = vld [vmem:[#allocation7 + $0xf4] sm:$0xf]
        %v1955 = vld [vmem:[#allocation7 + $0xf8] sm:$0xf]
        %v1956 = vld [vmem:[#allocation7 + $0xfc] sm:$0xf]
        %v1957 = vld [vmem:[#allocation7 + $0x100] sm:$0xf]
        %v1958 = vld [vmem:[#allocation7 + $0x104] sm:$0xf]
        %v1959 = vld [vmem:[#allocation7 + $0x108] sm:$0xf]
        %v1960 = vld [vmem:[#allocation7 + $0x10c] sm:$0xf]
        %v1961 = vld [vmem:[#allocation7 + $0x110] sm:$0xf]
        %v1962 = vld [vmem:[#allocation7 + $0x114] sm:$0xf]
        %v1963 = vld [vmem:[#allocation7 + $0x118] sm:$0xf]
        %v1964 = vld [vmem:[#allocation7 + $0x11c] sm:$0xf]
        %v1965 = vld [vmem:[#allocation7 + $0x120] sm:$0xf]
        %v1966 = vld [vmem:[#allocation7 + $0x124] sm:$0xf]
        %v1967 = vld [vmem:[#allocation7 + $0x128] sm:$0xf]
        %v1968 = vld [vmem:[#allocation7 + $0x12c] sm:$0xf]
        %v1969 = vld [vmem:[#allocation7 + $0x130] sm:$0xf]
        %v1970 = vld [vmem:[#allocation7 + $0x134] sm:$0xf]
        %v1971 = vld [vmem:[#allocation7 + $0x138] sm:$0xf]
        %v1972 = vld [vmem:[#allocation7 + $0x13c] sm:$0xf]
        %v1973 = vld [vmem:[#allocation7 + $0x140] sm:$0xf]
        %v1974 = vld [vmem:[#allocation7 + $0x144] sm:$0xf]
        %v1975 = vld [vmem:[#allocation7 + $0x148] sm:$0xf]
        %v1976 = vld [vmem:[#allocation7 + $0x14c] sm:$0xf]
        %v1977 = vld [vmem:[#allocation7 + $0x150] sm:$0xf]
        %v1978 = vld [vmem:[#allocation7 + $0x154] sm:$0xf]
        %v1979 = vld [vmem:[#allocation7 + $0x158] sm:$0xf]
        %v1980 = vld [vmem:[#allocation7 + $0x15c] sm:$0xf]
        %v1981 = vld [vmem:[#allocation7 + $0x160] sm:$0xf]
        %v1982 = vld [vmem:[#allocation7 + $0x164] sm:$0xf]
        %v1983 = vld [vmem:[#allocation7 + $0x168] sm:$0xf]
        %v1984 = vld [vmem:[#allocation7 + $0x16c] sm:$0xf]
        %v1985 = vld [vmem:[#allocation7 + $0x170] sm:$0xf]
        %v1986 = vld [vmem:[#allocation7 + $0x174] sm:$0xf]
        %v1987 = vld [vmem:[#allocation7 + $0x178] sm:$0xf]
        %v1988 = vld [vmem:[#allocation7 + $0x17c] sm:$0xf]
        %v1989 = vld [vmem:[#allocation7 + $0x180] sm:$0xf]
        %v1990 = vld [vmem:[#allocation7 + $0x184] sm:$0xf]
        %v1991 = vld [vmem:[#allocation7 + $0x188] sm:$0xf]
        %v1992 = vld [vmem:[#allocation7 + $0x18c] sm:$0xf]
        %v1993 = vld [vmem:[#allocation7 + $0x190] sm:$0xf]
        %v1994 = vld [vmem:[#allocation7 + $0x194] sm:$0xf]
        %v1995 = vld [vmem:[#allocation7 + $0x198] sm:$0xf]
        %v1996 = vld [vmem:[#allocation7 + $0x19c] sm:$0xf]
        %v1997 = vld [vmem:[#allocation7 + $0x1a0] sm:$0xf]
        %v1998 = vld [vmem:[#allocation7 + $0x1a4] sm:$0xf]
        %v1999 = vld [vmem:[#allocation7 + $0x1a8] sm:$0xf]
        %v2000 = vld [vmem:[#allocation7 + $0x1ac] sm:$0xf]
        %v2001 = vld [vmem:[#allocation7 + $0x1b0] sm:$0xf]
        %v2002 = vld [vmem:[#allocation7 + $0x1b4] sm:$0xf]
        %v2003 = vld [vmem:[#allocation7 + $0x1b8] sm:$0xf]
        %v2004 = vld [vmem:[#allocation7 + $0x1bc] sm:$0xf]
        %v2005 = vld [vmem:[#allocation7 + $0x1c0] sm:$0xf]
        %v2006 = vld [vmem:[#allocation7 + $0x1c4] sm:$0xf]
        %v2007 = vld [vmem:[#allocation7 + $0x1c8] sm:$0xf]
        %v2008 = vld [vmem:[#allocation7 + $0x1cc] sm:$0xf]
        %v2009 = vld [vmem:[#allocation7 + $0x1d0] sm:$0xf]
        %v2010 = vld [vmem:[#allocation7 + $0x1d4] sm:$0xf]
        %v2011 = vld [vmem:[#allocation7 + $0x1d8] sm:$0xf]
        %v2012 = vld [vmem:[#allocation7 + $0x1dc] sm:$0xf]
        %v2013 = vld [vmem:[#allocation7 + $0x1e0] sm:$0xf]
        %v2014 = vld [vmem:[#allocation7 + $0x1e4] sm:$0xf]
        %v2015 = vld [vmem:[#allocation7 + $0x1e8] sm:$0xf]
        %v2016 = vld [vmem:[#allocation7 + $0x1ec] sm:$0xf]
        %v2017 = vld [vmem:[#allocation7 + $0x1f0] sm:$0xf]
        %v2018 = vld [vmem:[#allocation7 + $0x1f4] sm:$0xf]
        %v2019 = vld [vmem:[#allocation7 + $0x1f8] sm:$0xf]
        %v2020 = vld [vmem:[#allocation7 + $0x1fc] sm:$0xf]
        %v2021 = vld [vmem:[#allocation7 + $0x200] sm:$0xf]
        %v2022 = vld [vmem:[#allocation7 + $0x204] sm:$0xf]
        %v2023 = vld [vmem:[#allocation7 + $0x208] sm:$0xf]
        %v2024 = vld [vmem:[#allocation7 + $0x20c] sm:$0xf]
        %v2025 = vld [vmem:[#allocation7 + $0x210] sm:$0xf]
        %v2026 = vld [vmem:[#allocation7 + $0x214] sm:$0xf]
        %v2027 = vld [vmem:[#allocation7 + $0x218] sm:$0xf]
        %v2028 = vld [vmem:[#allocation7 + $0x21c] sm:$0xf]
        %v2029 = vld [vmem:[#allocation7 + $0x220] sm:$0xf]
        %v2030 = vld [vmem:[#allocation7 + $0x224] sm:$0xf]
        %v2031 = vld [vmem:[#allocation7 + $0x228] sm:$0xf]
        %v2032 = vld [vmem:[#allocation7 + $0x22c] sm:$0xf]
        %v2033 = vld [vmem:[#allocation7 + $0x230] sm:$0xf]
        %v2034 = vld [vmem:[#allocation7 + $0x234] sm:$0xf]
        %v2035 = vld [vmem:[#allocation7 + $0x238] sm:$0xf]
        %v2036 = vld [vmem:[#allocation7 + $0x23c] sm:$0xf]
        %v2181 = vunpack.c.l.b16 %v1893
        %v2182 = vunpack.c.l.b16 %v1894
        %v2183 = vunpack.c.l.b16 %v1895
        %v2184 = vunpack.c.l.b16 %v1896
        %v2185 = vunpack.c.l.b16 %v1897
        %v2186 = vunpack.c.l.b16 %v1898
        %v2187 = vunpack.c.l.b16 %v1899
        %v2188 = vunpack.c.l.b16 %v1900
        %v2189 = vunpack.c.l.b16 %v1901
        %v2190 = vunpack.c.l.b16 %v1902
        %v2191 = vunpack.c.l.b16 %v1903
        %v2192 = vunpack.c.l.b16 %v1904
        %v2193 = vunpack.c.l.b16 %v1905
        %v2194 = vunpack.c.l.b16 %v1906
        %v2195 = vunpack.c.l.b16 %v1907
        %v2196 = vunpack.c.l.b16 %v1908
        %v2197 = vunpack.c.l.b16 %v1909
        %v2198 = vunpack.c.l.b16 %v1910
        %v2199 = vunpack.c.l.b16 %v1911
        %v2200 = vunpack.c.l.b16 %v1912
        %v2201 = vunpack.c.l.b16 %v1913
        %v2202 = vunpack.c.l.b16 %v1914
        %v2203 = vunpack.c.l.b16 %v1915
        %v2204 = vunpack.c.l.b16 %v1916
        %v2205 = vunpack.c.l.b16 %v1917
        %v2206 = vunpack.c.l.b16 %v1918
        %v2207 = vunpack.c.l.b16 %v1919
        %v2208 = vunpack.c.l.b16 %v1920
        %v2209 = vunpack.c.l.b16 %v1921
        %v2210 = vunpack.c.l.b16 %v1922
        %v2211 = vunpack.c.l.b16 %v1923
        %v2212 = vunpack.c.l.b16 %v1924
        %v2213 = vunpack.c.l.b16 %v1925
        %v2214 = vunpack.c.l.b16 %v1926
        %v2215 = vunpack.c.l.b16 %v1927
        %v2216 = vunpack.c.l.b16 %v1928
        %v2217 = vunpack.c.l.b16 %v1929
        %v2218 = vunpack.c.l.b16 %v1930
        %v2219 = vunpack.c.l.b16 %v1931
        %v2220 = vunpack.c.l.b16 %v1932
        %v2221 = vunpack.c.l.b16 %v1933
        %v2222 = vunpack.c.l.b16 %v1934
        %v2223 = vunpack.c.l.b16 %v1935
        %v2224 = vunpack.c.l.b16 %v1936
        %v2225 = vunpack.c.l.b16 %v1937
        %v2226 = vunpack.c.l.b16 %v1938
        %v2227 = vunpack.c.l.b16 %v1939
        %v2228 = vunpack.c.l.b16 %v1940
        %v2229 = vunpack.c.l.b16 %v1941
        %v2230 = vunpack.c.l.b16 %v1942
        %v2231 = vunpack.c.l.b16 %v1943
        %v2232 = vunpack.c.l.b16 %v1944
        %v2233 = vunpack.c.l.b16 %v1945
        %v2234 = vunpack.c.l.b16 %v1946
        %v2235 = vunpack.c.l.b16 %v1947
        %v2236 = vunpack.c.l.b16 %v1948
        %v2237 = vunpack.c.l.b16 %v1949
        %v2238 = vunpack.c.l.b16 %v1950
        %v2239 = vunpack.c.l.b16 %v1951
        %v2240 = vunpack.c.l.b16 %v1952
        %v2241 = vunpack.c.l.b16 %v1953
        %v2242 = vunpack.c.l.b16 %v1954
        %v2243 = vunpack.c.l.b16 %v1955
        %v2244 = vunpack.c.l.b16 %v1956
        %v2245 = vunpack.c.l.b16 %v1957
        %v2246 = vunpack.c.l.b16 %v1958
        %v2247 = vunpack.c.l.b16 %v1959
        %v2248 = vunpack.c.l.b16 %v1960
        %v2249 = vunpack.c.l.b16 %v1961
        %v2250 = vunpack.c.l.b16 %v1962
        %v2251 = vunpack.c.l.b16 %v1963
        %v2252 = vunpack.c.l.b16 %v1964
        %v2253 = vunpack.c.l.b16 %v1965
        %v2254 = vunpack.c.l.b16 %v1966
        %v2255 = vunpack.c.l.b16 %v1967
        %v2256 = vunpack.c.l.b16 %v1968
        %v2257 = vunpack.c.l.b16 %v1969
        %v2258 = vunpack.c.l.b16 %v1970
        %v2259 = vunpack.c.l.b16 %v1971
        %v2260 = vunpack.c.l.b16 %v1972
        %v2261 = vunpack.c.l.b16 %v1973
        %v2262 = vunpack.c.l.b16 %v1974
        %v2263 = vunpack.c.l.b16 %v1975
        %v2264 = vunpack.c.l.b16 %v1976
        %v2265 = vunpack.c.l.b16 %v1977
        %v2266 = vunpack.c.l.b16 %v1978
        %v2267 = vunpack.c.l.b16 %v1979
        %v2268 = vunpack.c.l.b16 %v1980
        %v2269 = vunpack.c.l.b16 %v1981
        %v2270 = vunpack.c.l.b16 %v1982
        %v2271 = vunpack.c.l.b16 %v1983
        %v2272 = vunpack.c.l.b16 %v1984
        %v2273 = vunpack.c.l.b16 %v1985
        %v2274 = vunpack.c.l.b16 %v1986
        %v2275 = vunpack.c.l.b16 %v1987
        %v2276 = vunpack.c.l.b16 %v1988
        %v2277 = vunpack.c.l.b16 %v1989
        %v2278 = vunpack.c.l.b16 %v1990
        %v2279 = vunpack.c.l.b16 %v1991
        %v2280 = vunpack.c.l.b16 %v1992
        %v2281 = vunpack.c.l.b16 %v1993
        %v2282 = vunpack.c.l.b16 %v1994
        %v2283 = vunpack.c.l.b16 %v1995
        %v2284 = vunpack.c.l.b16 %v1996
        %v2285 = vunpack.c.l.b16 %v1997
        %v2286 = vunpack.c.l.b16 %v1998
        %v2287 = vunpack.c.l.b16 %v1999
        %v2288 = vunpack.c.l.b16 %v2000
        %v2289 = vunpack.c.l.b16 %v2001
        %v2290 = vunpack.c.l.b16 %v2002
        %v2291 = vunpack.c.l.b16 %v2003
        %v2292 = vunpack.c.l.b16 %v2004
        %v2293 = vunpack.c.l.b16 %v2005
        %v2294 = vunpack.c.l.b16 %v2006
        %v2295 = vunpack.c.l.b16 %v2007
        %v2296 = vunpack.c.l.b16 %v2008
        %v2297 = vunpack.c.l.b16 %v2009
        %v2298 = vunpack.c.l.b16 %v2010
        %v2299 = vunpack.c.l.b16 %v2011
        %v2300 = vunpack.c.l.b16 %v2012
        %v2301 = vunpack.c.l.b16 %v2013
        %v2302 = vunpack.c.l.b16 %v2014
        %v2303 = vunpack.c.l.b16 %v2015
        %v2304 = vunpack.c.l.b16 %v2016
        %v2305 = vunpack.c.l.b16 %v2017
        %v2306 = vunpack.c.l.b16 %v2018
        %v2307 = vunpack.c.l.b16 %v2019
        %v2308 = vunpack.c.l.b16 %v2020
        %v2309 = vunpack.c.l.b16 %v2021
        %v2310 = vunpack.c.l.b16 %v2022
        %v2311 = vunpack.c.l.b16 %v2023
        %v2312 = vunpack.c.l.b16 %v2024
        %v2313 = vunpack.c.l.b16 %v2025
        %v2314 = vunpack.c.l.b16 %v2026
        %v2315 = vunpack.c.l.b16 %v2027
        %v2316 = vunpack.c.l.b16 %v2028
        %v2317 = vunpack.c.l.b16 %v2029
        %v2318 = vunpack.c.l.b16 %v2030
        %v2319 = vunpack.c.l.b16 %v2031
        %v2320 = vunpack.c.l.b16 %v2032
        %v2321 = vunpack.c.l.b16 %v2033
        %v2322 = vunpack.c.l.b16 %v2034
        %v2323 = vunpack.c.l.b16 %v2035
        %v2324 = vunpack.c.l.b16 %v2036
        %v2325 = vpack.c.b16 %v2182, %v2181
        %v2326 = vpack.c.b16 %v2184, %v2183
        %v2327 = vpack.c.b16 %v2186, %v2185
        %v2328 = vpack.c.b16 %v2188, %v2187
        %v2329 = vpack.c.b16 %v2190, %v2189
        %v2330 = vpack.c.b16 %v2192, %v2191
        %v2331 = vpack.c.b16 %v2194, %v2193
        %v2332 = vpack.c.b16 %v2196, %v2195
        %v2333 = vpack.c.b16 %v2198, %v2197
        %v2334 = vpack.c.b16 %v2200, %v2199
        %v2335 = vpack.c.b16 %v2202, %v2201
        %v2336 = vpack.c.b16 %v2204, %v2203
        %v2337 = vpack.c.b16 %v2206, %v2205
        %v2338 = vpack.c.b16 %v2208, %v2207
        %v2339 = vpack.c.b16 %v2210, %v2209
        %v2340 = vpack.c.b16 %v2212, %v2211
        %v2341 = vpack.c.b16 %v2214, %v2213
        %v2342 = vpack.c.b16 %v2216, %v2215
        %v2343 = vpack.c.b16 %v2218, %v2217
        %v2344 = vpack.c.b16 %v2220, %v2219
        %v2345 = vpack.c.b16 %v2222, %v2221
        %v2346 = vpack.c.b16 %v2224, %v2223
        %v2347 = vpack.c.b16 %v2226, %v2225
        %v2348 = vpack.c.b16 %v2228, %v2227
        %v2349 = vpack.c.b16 %v2230, %v2229
        %v2350 = vpack.c.b16 %v2232, %v2231
        %v2351 = vpack.c.b16 %v2234, %v2233
        %v2352 = vpack.c.b16 %v2236, %v2235
        %v2353 = vpack.c.b16 %v2238, %v2237
        %v2354 = vpack.c.b16 %v2240, %v2239
        %v2355 = vpack.c.b16 %v2242, %v2241
        %v2356 = vpack.c.b16 %v2244, %v2243
        %v2357 = vpack.c.b16 %v2246, %v2245
        %v2358 = vpack.c.b16 %v2248, %v2247
        %v2359 = vpack.c.b16 %v2250, %v2249
        %v2360 = vpack.c.b16 %v2252, %v2251
        %v2361 = vpack.c.b16 %v2254, %v2253
        %v2362 = vpack.c.b16 %v2256, %v2255
        %v2363 = vpack.c.b16 %v2258, %v2257
        %v2364 = vpack.c.b16 %v2260, %v2259
        %v2365 = vpack.c.b16 %v2262, %v2261
        %v2366 = vpack.c.b16 %v2264, %v2263
        %v2367 = vpack.c.b16 %v2266, %v2265
        %v2368 = vpack.c.b16 %v2268, %v2267
        %v2369 = vpack.c.b16 %v2270, %v2269
        %v2370 = vpack.c.b16 %v2272, %v2271
        %v2371 = vpack.c.b16 %v2274, %v2273
        %v2372 = vpack.c.b16 %v2276, %v2275
        %v2373 = vpack.c.b16 %v2278, %v2277
        %v2374 = vpack.c.b16 %v2280, %v2279
        %v2375 = vpack.c.b16 %v2282, %v2281
        %v2376 = vpack.c.b16 %v2284, %v2283
        %v2377 = vpack.c.b16 %v2286, %v2285
        %v2378 = vpack.c.b16 %v2288, %v2287
        %v2379 = vpack.c.b16 %v2290, %v2289
        %v2380 = vpack.c.b16 %v2292, %v2291
        %v2381 = vpack.c.b16 %v2294, %v2293
        %v2382 = vpack.c.b16 %v2296, %v2295
        %v2383 = vpack.c.b16 %v2298, %v2297
        %v2384 = vpack.c.b16 %v2300, %v2299
        %v2385 = vpack.c.b16 %v2302, %v2301
        %v2386 = vpack.c.b16 %v2304, %v2303
        %v2387 = vpack.c.b16 %v2306, %v2305
        %v2388 = vpack.c.b16 %v2308, %v2307
        %v2389 = vpack.c.b16 %v2310, %v2309
        %v2390 = vpack.c.b16 %v2312, %v2311
        %v2391 = vpack.c.b16 %v2314, %v2313
        %v2392 = vpack.c.b16 %v2316, %v2315
        %v2393 = vpack.c.b16 %v2318, %v2317
        %v2394 = vpack.c.b16 %v2320, %v2319
        %v2395 = vpack.c.b16 %v2322, %v2321
        %v2396 = vpack.c.b16 %v2324, %v2323
        %2469 = vmatprep.subr.bf16.mxu0 0
        %2470 = vmatpush1.bf16.msra.mxu0 %v2325
        %2471 = vmatprep.subr.bf16.mxu0 0
        %2472 = vmatpush1.bf16.msra.mxu0 %v2326
        %2473 = vmatprep.subr.bf16.mxu0 0
        %2474 = vmatpush1.bf16.msra.mxu0 %v2327
        %2475 = vmatprep.subr.bf16.mxu0 0
        %2476 = vmatpush1.bf16.msra.mxu0 %v2328
        %2477 = vmatprep.subr.bf16.mxu0 0
        %2478 = vmatpush1.bf16.msra.mxu0 %v2329
        %2479 = vmatprep.subr.bf16.mxu0 0
        %2480 = vmatpush1.bf16.msra.mxu0 %v2330
        %2481 = vmatprep.subr.bf16.mxu0 0
        %2482 = vmatpush1.bf16.msra.mxu0 %v2331
        %2483 = vmatprep.subr.bf16.mxu0 0
        %2484 = vmatpush1.bf16.msra.mxu0 %v2332
        %2485 = vmatprep.subr.bf16.mxu0 0
        %2486 = vmatpush1.bf16.msra.mxu0 %v2333
        %2487 = vmatprep.subr.bf16.mxu0 0
        %2488 = vmatpush1.bf16.msra.mxu0 %v2334
        %2489 = vmatprep.subr.bf16.mxu0 0
        %2490 = vmatpush1.bf16.msra.mxu0 %v2335
        %2491 = vmatprep.subr.bf16.mxu0 0
        %2492 = vmatpush1.bf16.msra.mxu0 %v2336
        %2493 = vmatprep.subr.bf16.mxu0 0
        %2494 = vmatpush1.bf16.msra.mxu0 %v2337
        %2495 = vmatprep.subr.bf16.mxu0 0
        %2496 = vmatpush1.bf16.msra.mxu0 %v2338
        %2497 = vmatprep.subr.bf16.mxu0 0
        %2498 = vmatpush1.bf16.msra.mxu0 %v2339
        %2499 = vmatprep.subr.bf16.mxu0 0
        %2500 = vmatpush1.bf16.msra.mxu0 %v2340
        %2501 = vmatprep.mubr.bf16.mxu0 %v1840
        %2502 = vmatmul.mubr.bf16.gmra.mrb[0].mxu0 %v1839
        %v2503 = vpop.f32.mrb[0].mxu0
        %v2504 = vadd.f32 0.0, %v2503
        %v2505 = vpop.f32.mrb[0].mxu0
        %v2506 = vpop.f32.mrb[0].mxu0
        %v2507 = vadd.f32 0.0, %v2506
        %v2508 = vpop.f32.mrb[0].mxu0
        %2509 = vmatprep.mubr.bf16.mxu0 %v1849
        %2510 = vmatmul.mubr.bf16.gmra.mrb[0].mxu0 %v1848
        %v2511 = vpop.f32.mrb[0].mxu0
        %v2512 = vadd.f32 0.0, %v2511
        %v2513 = vpop.f32.mrb[0].mxu0
        %v2514 = vpop.f32.mrb[0].mxu0
        %v2515 = vadd.f32 0.0, %v2514
        %v2516 = vpop.f32.mrb[0].mxu0
        %2517 = vmatprep.mubr.bf16.mxu0 %v1858
        %2518 = vmatmul.mubr.bf16.gmra.mrb[0].mxu0 %v1857
        %v2519 = vpop.f32.mrb[0].mxu0
        %v2520 = vadd.f32 0.0, %v2519
        %v2521 = vpop.f32.mrb[0].mxu0
        %v2522 = vpop.f32.mrb[0].mxu0
        %v2523 = vadd.f32 0.0, %v2522
        %v2524 = vpop.f32.mrb[0].mxu0
        %2525 = vmatprep.mubr.bf16.mxu0 %v1867
        %2526 = vmatmul.mubr.bf16.gmra.mrb[0].mxu0 %v1866
        %v2527 = vpop.f32.mrb[0].mxu0
        %v2528 = vadd.f32 0.0, %v2527
        %v2529 = vpop.f32.mrb[0].mxu0
        %v2530 = vpop.f32.mrb[0].mxu0
        %v2531 = vadd.f32 0.0, %v2530
        %v2532 = vpop.f32.mrb[0].mxu0
        %2533 = vmatprep.mubr.bf16.mxu0 %v1876
        %2534 = vmatmul.mubr.bf16.gmra.mrb[0].mxu0 %v1875
        %v2535 = vpop.f32.mrb[0].mxu0
        %v2536 = vadd.f32 0.0, %v2535
        %v2537 = vpop.f32.mrb[0].mxu0
        %v2538 = vpop.f32.mrb[0].mxu0
        %v2539 = vadd.f32 0.0, %v2538
        %v2540 = vpop.f32.mrb[0].mxu0
        %2541 = vmatprep.mubr.bf16.mxu0 %v1885
        %2542 = vmatmul.mubr.bf16.gmra.mrb[0].mxu0 %v1884
        %v2543 = vpop.f32.mrb[0].mxu0
        %v2544 = vadd.f32 0.0, %v2543
        %v2545 = vpop.f32.mrb[0].mxu0
        %v2546 = vpop.f32.mrb[0].mxu0
        %v2547 = vadd.f32 0.0, %v2546
        %v2548 = vpop.f32.mrb[0].mxu0
        %2549 = vdwg.mxu0
        %2550 = vmatprep.subr.bf16.mxu0 0
        %2551 = vmatpush1.bf16.msra.mxu0 %v2341
        %2552 = vmatprep.subr.bf16.mxu0 0
        %2553 = vmatpush1.bf16.msra.mxu0 %v2342
        %2554 = vmatprep.subr.bf16.mxu0 0
        %2555 = vmatpush1.bf16.msra.mxu0 %v2343
        %2556 = vmatprep.subr.bf16.mxu0 0
        %2557 = vmatpush1.bf16.msra.mxu0 %v2344
        %2558 = vmatprep.subr.bf16.mxu0 0
        %2559 = vmatpush1.bf16.msra.mxu0 %v2345
        %2560 = vmatprep.subr.bf16.mxu0 0
        %2561 = vmatpush1.bf16.msra.mxu0 %v2346
        %2562 = vmatprep.subr.bf16.mxu0 0
        %2563 = vmatpush1.bf16.msra.mxu0 %v2347
        %2564 = vmatprep.subr.bf16.mxu0 0
        %2565 = vmatpush1.bf16.msra.mxu0 %v2348
        %2566 = vmatprep.subr.bf16.mxu0 0
        %2567 = vmatpush1.bf16.msra.mxu0 %v2349
        %2568 = vmatprep.subr.bf16.mxu0 0
        %2569 = vmatpush1.bf16.msra.mxu0 %v2350
        %2570 = vmatprep.subr.bf16.mxu0 0
        %2571 = vmatpush1.bf16.msra.mxu0 %v2351
        %2572 = vmatprep.subr.bf16.mxu0 0
        %2573 = vmatpush1.bf16.msra.mxu0 %v2352
        %2574 = vmatprep.subr.bf16.mxu0 0
        %2575 = vmatpush1.bf16.msra.mxu0 %v2353
        %2576 = vmatprep.subr.bf16.mxu0 0
        %2577 = vmatpush1.bf16.msra.mxu0 %v2354
        %2578 = vmatprep.subr.bf16.mxu0 0
        %2579 = vmatpush1.bf16.msra.mxu0 %v2355
        %2580 = vmatprep.subr.bf16.mxu0 0
        %2581 = vmatpush1.bf16.msra.mxu0 %v2356
        %2582 = vmatprep.mubr.bf16.mxu0 %v1842
        %2583 = vmatmul.mubr.bf16.gmra.mrb[0].mxu0 %v1841
        %v2584 = vpop.f32.mrb[0].mxu0
        %v2585 = vadd.f32 %v2504, %v2584
        %v2586 = vpop.f32.mrb[0].mxu0
        %v2587 = vpop.f32.mrb[0].mxu0
        %v2588 = vadd.f32 %v2507, %v2587
        %v2589 = vpop.f32.mrb[0].mxu0
        %2590 = vmatprep.mubr.bf16.mxu0 %v1851
        %2591 = vmatmul.mubr.bf16.gmra.mrb[0].mxu0 %v1850
        %v2592 = vpop.f32.mrb[0].mxu0
        %v2593 = vadd.f32 %v2512, %v2592
        %v2594 = vpop.f32.mrb[0].mxu0
        %v2595 = vpop.f32.mrb[0].mxu0
        %v2596 = vadd.f32 %v2515, %v2595
        %v2597 = vpop.f32.mrb[0].mxu0
        %2598 = vmatprep.mubr.bf16.mxu0 %v1860
        %2599 = vmatmul.mubr.bf16.gmra.mrb[0].mxu0 %v1859
        %v2600 = vpop.f32.mrb[0].mxu0
        %v2601 = vadd.f32 %v2520, %v2600
        %v2602 = vpop.f32.mrb[0].mxu0
        %v2603 = vpop.f32.mrb[0].mxu0
        %v2604 = vadd.f32 %v2523, %v2603
        %v2605 = vpop.f32.mrb[0].mxu0
        %2606 = vmatprep.mubr.bf16.mxu0 %v1869
        %2607 = vmatmul.mubr.bf16.gmra.mrb[0].mxu0 %v1868
        %v2608 = vpop.f32.mrb[0].mxu0
        %v2609 = vadd.f32 %v2528, %v2608
        %v2610 = vpop.f32.mrb[0].mxu0
        %v2611 = vpop.f32.mrb[0].mxu0
        %v2612 = vadd.f32 %v2531, %v2611
        %v2613 = vpop.f32.mrb[0].mxu0
        %2614 = vmatprep.mubr.bf16.mxu0 %v1878
        %2615 = vmatmul.mubr.bf16.gmra.mrb[0].mxu0 %v1877
        %v2616 = vpop.f32.mrb[0].mxu0
        %v2617 = vadd.f32 %v2536, %v2616
        %v2618 = vpop.f32.mrb[0].mxu0
        %v2619 = vpop.f32.mrb[0].mxu0
        %v2620 = vadd.f32 %v2539, %v2619
        %v2621 = vpop.f32.mrb[0].mxu0
        %2622 = vmatprep.mubr.bf16.mxu0 %v1887
        %2623 = vmatmul.mubr.bf16.gmra.mrb[0].mxu0 %v1886
        %v2624 = vpop.f32.mrb[0].mxu0
        %v2625 = vadd.f32 %v2544, %v2624
        %v2626 = vpop.f32.mrb[0].mxu0
        %v2627 = vpop.f32.mrb[0].mxu0
        %v2628 = vadd.f32 %v2547, %v2627
        %v2629 = vpop.f32.mrb[0].mxu0
        %2630 = vdwg.mxu0
        %2631 = vmatprep.subr.bf16.mxu0 0
        %2632 = vmatpush1.bf16.msra.mxu0 %v2357
        %2633 = vmatprep.subr.bf16.mxu0 0
        %2634 = vmatpush1.bf16.msra.mxu0 %v2358
        %2635 = vmatprep.subr.bf16.mxu0 0
        %2636 = vmatpush1.bf16.msra.mxu0 %v2359
        %2637 = vmatprep.subr.bf16.mxu0 0
        %2638 = vmatpush1.bf16.msra.mxu0 %v2360
        %2639 = vmatprep.subr.bf16.mxu0 0
        %2640 = vmatpush1.bf16.msra.mxu0 %v2361
        %2641 = vmatprep.subr.bf16.mxu0 0
        %2642 = vmatpush1.bf16.msra.mxu0 %v2362
        %2643 = vmatprep.subr.bf16.mxu0 0
        %2644 = vmatpush1.bf16.msra.mxu0 %v2363
        %2645 = vmatprep.subr.bf16.mxu0 0
        %2646 = vmatpush1.bf16.msra.mxu0 %v2364
        %2647 = vmatprep.subr.bf16.mxu0 0
        %2648 = vmatpush1.bf16.msra.mxu0 %v2365
        %2649 = vmatprep.subr.bf16.mxu0 0
        %2650 = vmatpush1.bf16.msra.mxu0 %v2366
        %2651 = vmatprep.subr.bf16.mxu0 0
        %2652 = vmatpush1.bf16.msra.mxu0 %v2367
        %2653 = vmatprep.subr.bf16.mxu0 0
        %2654 = vmatpush1.bf16.msra.mxu0 %v2368
        %2655 = vmatprep.subr.bf16.mxu0 0
        %2656 = vmatpush1.bf16.msra.mxu0 %v2369
        %2657 = vmatprep.subr.bf16.mxu0 0
        %2658 = vmatpush1.bf16.msra.mxu0 %v2370
        %2659 = vmatprep.subr.bf16.mxu0 0
        %2660 = vmatpush1.bf16.msra.mxu0 %v2371
        %2661 = vmatprep.subr.bf16.mxu0 0
        %2662 = vmatpush1.bf16.msra.mxu0 %v2372
        %2663 = vmatprep.mubr.bf16.mxu0 %v1844
        %2664 = vmatmul.mubr.bf16.gmra.mrb[0].mxu0 %v1843
        %v2665 = vpop.f32.mrb[0].mxu0
        %v2666 = vadd.f32 %v2585, %v2665
        %v2667 = vpop.f32.mrb[0].mxu0
        %v2668 = vpop.f32.mrb[0].mxu0
        %v2669 = vadd.f32 %v2588, %v2668
        %v2670 = vpop.f32.mrb[0].mxu0
        %2671 = vmatprep.mubr.bf16.mxu0 %v1853
        %2672 = vmatmul.mubr.bf16.gmra.mrb[0].mxu0 %v1852
        %v2673 = vpop.f32.mrb[0].mxu0
        %v2674 = vadd.f32 %v2593, %v2673
        %v2675 = vpop.f32.mrb[0].mxu0
        %v2676 = vpop.f32.mrb[0].mxu0
        %v2677 = vadd.f32 %v2596, %v2676
        %v2678 = vpop.f32.mrb[0].mxu0
        %2679 = vmatprep.mubr.bf16.mxu0 %v1862
        %2680 = vmatmul.mubr.bf16.gmra.mrb[0].mxu0 %v1861
        %v2681 = vpop.f32.mrb[0].mxu0
        %v2682 = vadd.f32 %v2601, %v2681
        %v2683 = vpop.f32.mrb[0].mxu0
        %v2684 = vpop.f32.mrb[0].mxu0
        %v2685 = vadd.f32 %v2604, %v2684
        %v2686 = vpop.f32.mrb[0].mxu0
        %2687 = vmatprep.mubr.bf16.mxu0 %v1871
        %2688 = vmatmul.mubr.bf16.gmra.mrb[0].mxu0 %v1870
        %v2689 = vpop.f32.mrb[0].mxu0
        %v2690 = vadd.f32 %v2609, %v2689
        %v2691 = vpop.f32.mrb[0].mxu0
        %v2692 = vpop.f32.mrb[0].mxu0
        %v2693 = vadd.f32 %v2612, %v2692
        %v2694 = vpop.f32.mrb[0].mxu0
        %2695 = vmatprep.mubr.bf16.mxu0 %v1880
        %2696 = vmatmul.mubr.bf16.gmra.mrb[0].mxu0 %v1879
        %v2697 = vpop.f32.mrb[0].mxu0
        %v2698 = vadd.f32 %v2617, %v2697
        %v2699 = vpop.f32.mrb[0].mxu0
        %v2700 = vpop.f32.mrb[0].mxu0
        %v2701 = vadd.f32 %v2620, %v2700
        %v2702 = vpop.f32.mrb[0].mxu0
        %2703 = vmatprep.mubr.bf16.mxu0 %v1889
        %2704 = vmatmul.mubr.bf16.gmra.mrb[0].mxu0 %v1888
        %v2705 = vpop.f32.mrb[0].mxu0
        %v2706 = vadd.f32 %v2625, %v2705
        %v2707 = vpop.f32.mrb[0].mxu0
        %v2708 = vpop.f32.mrb[0].mxu0
        %v2709 = vadd.f32 %v2628, %v2708
        %v2710 = vpop.f32.mrb[0].mxu0
        %2711 = vdwg.mxu0
        %2712 = vmatprep.subr.bf16.mxu0 0
        %2713 = vmatpush1.bf16.msra.mxu0 %v2373
        %2714 = vmatprep.subr.bf16.mxu0 0
        %2715 = vmatpush1.bf16.msra.mxu0 %v2374
        %2716 = vmatprep.subr.bf16.mxu0 0
        %2717 = vmatpush1.bf16.msra.mxu0 %v2375
        %2718 = vmatprep.subr.bf16.mxu0 0
        %2719 = vmatpush1.bf16.msra.mxu0 %v2376
        %2720 = vmatprep.subr.bf16.mxu0 0
        %2721 = vmatpush1.bf16.msra.mxu0 %v2377
        %2722 = vmatprep.subr.bf16.mxu0 0
        %2723 = vmatpush1.bf16.msra.mxu0 %v2378
        %2724 = vmatprep.subr.bf16.mxu0 0
        %2725 = vmatpush1.bf16.msra.mxu0 %v2379
        %2726 = vmatprep.subr.bf16.mxu0 0
        %2727 = vmatpush1.bf16.msra.mxu0 %v2380
        %2728 = vmatprep.subr.bf16.mxu0 0
        %2729 = vmatpush1.bf16.msra.mxu0 %v2381
        %2730 = vmatprep.subr.bf16.mxu0 0
        %2731 = vmatpush1.bf16.msra.mxu0 %v2382
        %2732 = vmatprep.subr.bf16.mxu0 0
        %2733 = vmatpush1.bf16.msra.mxu0 %v2383
        %2734 = vmatprep.subr.bf16.mxu0 0
        %2735 = vmatpush1.bf16.msra.mxu0 %v2384
        %2736 = vmatprep.subr.bf16.mxu0 0
        %2737 = vmatpush1.bf16.msra.mxu0 %v2385
        %2738 = vmatprep.subr.bf16.mxu0 0
        %2739 = vmatpush1.bf16.msra.mxu0 %v2386
        %2740 = vmatprep.subr.bf16.mxu0 0
        %2741 = vmatpush1.bf16.msra.mxu0 %v2387
        %2742 = vmatprep.subr.bf16.mxu0 0
        %2743 = vmatpush1.bf16.msra.mxu0 %v2388
        %2744 = vmatprep.mubr.bf16.mxu0 %v1846
        %2745 = vmatmul.mubr.bf16.gmra.mrb[0].mxu0 %v1845
        %v2746 = vpop.f32.mrb[0].mxu0
        %v2747 = vadd.f32 %v2666, %v2746
        %v2748 = vpop.f32.mrb[0].mxu0
        %v2749 = vpop.f32.mrb[0].mxu0
        %v2750 = vadd.f32 %v2669, %v2749
        %v2751 = vpop.f32.mrb[0].mxu0
        %2752 = vmatprep.mubr.bf16.mxu0 %v1855
        %2753 = vmatmul.mubr.bf16.gmra.mrb[0].mxu0 %v1854
        %v2754 = vpop.f32.mrb[0].mxu0
        %v2755 = vadd.f32 %v2674, %v2754
        %v2756 = vpop.f32.mrb[0].mxu0
        %v2757 = vpop.f32.mrb[0].mxu0
        %v2758 = vadd.f32 %v2677, %v2757
        %v2759 = vpop.f32.mrb[0].mxu0
        %2760 = vmatprep.mubr.bf16.mxu0 %v1864
        %2761 = vmatmul.mubr.bf16.gmra.mrb[0].mxu0 %v1863
        %v2762 = vpop.f32.mrb[0].mxu0
        %v2763 = vadd.f32 %v2682, %v2762
        %v2764 = vpop.f32.mrb[0].mxu0
        %v2765 = vpop.f32.mrb[0].mxu0
        %v2766 = vadd.f32 %v2685, %v2765
        %v2767 = vpop.f32.mrb[0].mxu0
        %2768 = vmatprep.mubr.bf16.mxu0 %v1873
        %2769 = vmatmul.mubr.bf16.gmra.mrb[0].mxu0 %v1872
        %v2770 = vpop.f32.mrb[0].mxu0
        %v2771 = vadd.f32 %v2690, %v2770
        %v2772 = vpop.f32.mrb[0].mxu0
        %v2773 = vpop.f32.mrb[0].mxu0
        %v2774 = vadd.f32 %v2693, %v2773
        %v2775 = vpop.f32.mrb[0].mxu0
        %2776 = vmatprep.mubr.bf16.mxu0 %v1882
        %2777 = vmatmul.mubr.bf16.gmra.mrb[0].mxu0 %v1881
        %v2778 = vpop.f32.mrb[0].mxu0
        %v2779 = vadd.f32 %v2698, %v2778
        %v2780 = vpop.f32.mrb[0].mxu0
        %v2781 = vpop.f32.mrb[0].mxu0
        %v2782 = vadd.f32 %v2701, %v2781
        %v2783 = vpop.f32.mrb[0].mxu0
        %2784 = vmatprep.mubr.bf16.mxu0 %v1891
        %2785 = vmatmul.mubr.bf16.gmra.mrb[0].mxu0 %v1890
        %v2786 = vpop.f32.mrb[0].mxu0
        %v2787 = vadd.f32 %v2706, %v2786
        %v2788 = vpop.f32.mrb[0].mxu0
        %v2789 = vpop.f32.mrb[0].mxu0
        %v2790 = vadd.f32 %v2709, %v2789
        %v2791 = vpop.f32.mrb[0].mxu0
        %2792 = vdwg.mxu0
        %2793 = vmatprep.subr.bf16.mxu0 0
        %2794 = vmatpush1.bf16.msra.mxu0 %v2389
        %2795 = vmatprep.subr.bf16.mxu0 0
        %2796 = vmatpush1.bf16.msra.mxu0 %v2390
        %2797 = vmatprep.subr.bf16.mxu0 0
        %2798 = vmatpush1.bf16.msra.mxu0 %v2391
        %2799 = vmatprep.subr.bf16.mxu0 0
        %2800 = vmatpush1.bf16.msra.mxu0 %v2392
        %2801 = vmatprep.subr.bf16.mxu0 0
        %2802 = vmatpush1.bf16.msra.mxu0 %v2393
        %2803 = vmatprep.subr.bf16.mxu0 0
        %2804 = vmatpush1.bf16.msra.mxu0 %v2394
        %2805 = vmatprep.subr.bf16.mxu0 0
        %2806 = vmatpush1.bf16.msra.mxu0 %v2395
        %2807 = vmatprep.subr.bf16.mxu0 0
        %2808 = vmatpush1.bf16.msra.mxu0 %v2396
        %2809 = vmatprep.subr.bf16.mxu0 0
        %2810 = vmatpush1.bf16.msra.mxu0 0
        %2811 = vmatprep.subr.bf16.mxu0 0
        %2812 = vmatpush1.bf16.msra.mxu0 0
        %2813 = vmatprep.subr.bf16.mxu0 0
        %2814 = vmatpush1.bf16.msra.mxu0 0
        %2815 = vmatprep.subr.bf16.mxu0 0
        %2816 = vmatpush1.bf16.msra.mxu0 0
        %2817 = vmatprep.subr.bf16.mxu0 0
        %2818 = vmatpush1.bf16.msra.mxu0 0
        %2819 = vmatprep.subr.bf16.mxu0 0
        %2820 = vmatpush1.bf16.msra.mxu0 0
        %2821 = vmatprep.subr.bf16.mxu0 0
        %2822 = vmatpush1.bf16.msra.mxu0 0
        %2823 = vmatprep.subr.bf16.mxu0 0
        %2824 = vmatpush1.bf16.msra.mxu0 0
        %2825 = vmatprep.mubr.bf16.mxu0 0
        %2826 = vmatmul.mubr.bf16.gmra.mrb[0].mxu0 %v1847
        %v2827 = vpop.f32.mrb[0].mxu0
        %v2828 = vadd.f32 %v2747, %v2827
        %v2829 = vpop.f32.mrb[0].mxu0
        %v2830 = vpop.f32.mrb[0].mxu0
        %v2831 = vadd.f32 %v2750, %v2830
        %v2832 = vpop.f32.mrb[0].mxu0
        %2833 = vmatprep.mubr.bf16.mxu0 0
        %2834 = vmatmul.mubr.bf16.gmra.mrb[0].mxu0 %v1856
        %v2835 = vpop.f32.mrb[0].mxu0
        %v2836 = vadd.f32 %v2755, %v2835
        %v2837 = vpop.f32.mrb[0].mxu0
        %v2838 = vpop.f32.mrb[0].mxu0
        %v2839 = vadd.f32 %v2758, %v2838
        %v2840 = vpop.f32.mrb[0].mxu0
        %2841 = vmatprep.mubr.bf16.mxu0 0
        %2842 = vmatmul.mubr.bf16.gmra.mrb[0].mxu0 %v1865
        %v2843 = vpop.f32.mrb[0].mxu0
        %v2844 = vadd.f32 %v2763, %v2843
        %v2845 = vpop.f32.mrb[0].mxu0
        %v2846 = vpop.f32.mrb[0].mxu0
        %v2847 = vadd.f32 %v2766, %v2846
        %v2848 = vpop.f32.mrb[0].mxu0
        %2849 = vmatprep.mubr.bf16.mxu0 0
        %2850 = vmatmul.mubr.bf16.gmra.mrb[0].mxu0 %v1874
        %v2851 = vpop.f32.mrb[0].mxu0
        %v2852 = vadd.f32 %v2771, %v2851
        %v2853 = vpop.f32.mrb[0].mxu0
        %v2854 = vpop.f32.mrb[0].mxu0
        %v2855 = vadd.f32 %v2774, %v2854
        %v2856 = vpop.f32.mrb[0].mxu0
        %2857 = vmatprep.mubr.bf16.mxu0 0
        %2858 = vmatmul.mubr.bf16.gmra.mrb[0].mxu0 %v1883
        %v2859 = vpop.f32.mrb[0].mxu0
        %v2860 = vadd.f32 %v2779, %v2859
        %v2861 = vpop.f32.mrb[0].mxu0
        %v2862 = vpop.f32.mrb[0].mxu0
        %v2863 = vadd.f32 %v2782, %v2862
        %v2864 = vpop.f32.mrb[0].mxu0
        %2865 = vmatprep.mubr.bf16.mxu0 0
        %2866 = vmatmul.mubr.bf16.gmra.mrb[0].mxu0 %v1892
        %v2867 = vpop.f32.mrb[0].mxu0
        %v2868 = vadd.f32 %v2787, %v2867
        %v2869 = vpop.f32.mrb[0].mxu0
        %v2870 = vpop.f32.mrb[0].mxu0
        %v2871 = vadd.f32 %v2790, %v2870
        %v2872 = vpop.f32.mrb[0].mxu0
        %2873 = vdwg.mxu0
        %v2874 = vld [vmem:[%s4] sm:$0x1]
        %v2875 = vlaneseq
        %v2876 = vshrl.u32 %v2875, 7
        %v2877 = vsub.s32 0, %v2876
        %v2878 = vrot.slane %v2874, %v2877
        %v2879 = vmul.f32 %v2828, %v2878
        %v2880 = vmul.f32 %v2831, %v2878
        %v2881 = vmul.f32 %v2836, %v2878
        %v2882 = vmul.f32 %v2839, %v2878
        %v2883 = vmul.f32 %v2844, %v2878
        %v2884 = vmul.f32 %v2847, %v2878
        %v2885 = vmul.f32 %v2852, %v2878
        %v2886 = vmul.f32 %v2855, %v2878
        %v2887 = vmul.f32 %v2860, %v2878
        %v2888 = vmul.f32 %v2863, %v2878
        %v2889 = vmul.f32 %v2868, %v2878
        %v2890 = vmul.f32 %v2871, %v2878
        %v2891 = vld [vmem:[%s5] sm:$0x1]
        %v2892 = vlaneseq
        %v2893 = vshrl.u32 %v2892, 7
        %v2894 = vsub.s32 0, %v2893
        %v2895 = vrot.slane %v2891, %v2894
        %v2896 = vadd.f32 %v2879, %v2895
        %v2897 = vadd.f32 %v2880, %v2895
        %v2898 = vadd.f32 %v2881, %v2895
        %v2899 = vadd.f32 %v2882, %v2895
        %v2900 = vadd.f32 %v2883, %v2895
        %v2901 = vadd.f32 %v2884, %v2895
        %v2902 = vadd.f32 %v2885, %v2895
        %v2903 = vadd.f32 %v2886, %v2895
        %v2904 = vadd.f32 %v2887, %v2895
        %v2905 = vadd.f32 %v2888, %v2895
        %v2906 = vadd.f32 %v2889, %v2895
        %v2907 = vadd.f32 %v2890, %v2895
        %s2908 = sadd.s32 %s264, 4294967294
        %v2909 = vstv %s2908
        %v2910 = vadd.s32 %v2909, 1
        %v2911 = vadd.s32 %v2909, 2
        %v2912 = vadd.s32 %v2909, 3
        %v2913 = vadd.s32 %v2909, 4
        %v2914 = vadd.s32 %v2909, 5
        %v2915 = vadd.s32 %v2909, 6
        %v2916 = vadd.s32 %v2909, 7
        %v2917 = vadd.s32 %v2909, 8
        %v2918 = vadd.s32 %v2909, 9
        %v2919 = vadd.s32 %v2909, 10
        %v2920 = vadd.s32 %v2909, 11
        %vm2921 = vcmp.ge.s32.totalorder %v2909, 0
        %vm2922 = vcmp.ge.s32.totalorder %v2910, 0
        %vm2923 = vcmp.ge.s32.totalorder %v2911, 0
        %vm2924 = vcmp.ge.s32.totalorder %v2912, 0
        %vm2925 = vcmp.ge.s32.totalorder %v2913, 0
        %vm2926 = vcmp.ge.s32.totalorder %v2914, 0
        %vm2927 = vcmp.ge.s32.totalorder %v2915, 0
        %vm2928 = vcmp.ge.s32.totalorder %v2916, 0
        %vm2929 = vcmp.ge.s32.totalorder %v2917, 0
        %vm2930 = vcmp.ge.s32.totalorder %v2918, 0
        %vm2931 = vcmp.ge.s32.totalorder %v2919, 0
        %vm2932 = vcmp.ge.s32.totalorder %v2920, 0
        %vm2933 = vcmp.lt.s32.totalorder %v2909, 8
        %vm2934 = vcmp.lt.s32.totalorder %v2910, 8
        %vm2935 = vcmp.lt.s32.totalorder %v2911, 8
        %vm2936 = vcmp.lt.s32.totalorder %v2912, 8
        %vm2937 = vcmp.lt.s32.totalorder %v2913, 8
        %vm2938 = vcmp.lt.s32.totalorder %v2914, 8
        %vm2939 = vcmp.lt.s32.totalorder %v2915, 8
        %vm2940 = vcmp.lt.s32.totalorder %v2916, 8
        %vm2941 = vcmp.lt.s32.totalorder %v2917, 8
        %vm2942 = vcmp.lt.s32.totalorder %v2918, 8
        %vm2943 = vcmp.lt.s32.totalorder %v2919, 8
        %vm2944 = vcmp.lt.s32.totalorder %v2920, 8
        %vm2945 = vmand %vm2921, %vm2933
        %vm2946 = vmand %vm2922, %vm2934
        %vm2947 = vmand %vm2923, %vm2935
        %vm2948 = vmand %vm2924, %vm2936
        %vm2949 = vmand %vm2925, %vm2937
        %vm2950 = vmand %vm2926, %vm2938
        %vm2951 = vmand %vm2927, %vm2939
        %vm2952 = vmand %vm2928, %vm2940
        %vm2953 = vmand %vm2929, %vm2941
        %vm2954 = vmand %vm2930, %vm2942
        %vm2955 = vmand %vm2931, %vm2943
        %vm2956 = vmand %vm2932, %vm2944
        %v2957 = vsel %vm2945, 1, 0
        %v2958 = vsel %vm2946, 1, 0
        %v2959 = vsel %vm2947, 1, 0
        %v2960 = vsel %vm2948, 1, 0
        %v2961 = vsel %vm2949, 1, 0
        %v2962 = vsel %vm2950, 1, 0
        %v2963 = vsel %vm2951, 1, 0
        %v2964 = vsel %vm2952, 1, 0
        %v2965 = vsel %vm2953, 1, 0
        %v2966 = vsel %vm2954, 1, 0
        %v2967 = vsel %vm2955, 1, 0
        %v2968 = vsel %vm2956, 1, 0
        %vm2969 = vcmp.eq.s32.totalorder %v2957, 1
        %vm2970 = vcmp.eq.s32.totalorder %v2958, 1
        %vm2971 = vcmp.eq.s32.totalorder %v2959, 1
        %vm2972 = vcmp.eq.s32.totalorder %v2960, 1
        %vm2973 = vcmp.eq.s32.totalorder %v2961, 1
        %vm2974 = vcmp.eq.s32.totalorder %v2962, 1
        %vm2975 = vcmp.eq.s32.totalorder %v2963, 1
        %vm2976 = vcmp.eq.s32.totalorder %v2964, 1
        %vm2977 = vcmp.eq.s32.totalorder %v2965, 1
        %vm2978 = vcmp.eq.s32.totalorder %v2966, 1
        %vm2979 = vcmp.eq.s32.totalorder %v2967, 1
        %vm2980 = vcmp.eq.s32.totalorder %v2968, 1
        %v2981 = vsel %vm2969, %v2896, 0.0
        %v2982 = vsel %vm2970, %v2897, 0.0
        %v2983 = vsel %vm2971, %v2898, 0.0
        %v2984 = vsel %vm2972, %v2899, 0.0
        %v2985 = vsel %vm2973, %v2900, 0.0
        %v2986 = vsel %vm2974, %v2901, 0.0
        %v2987 = vsel %vm2975, %v2902, 0.0
        %v2988 = vsel %vm2976, %v2903, 0.0
        %v2989 = vsel %vm2977, %v2904, 0.0
        %v2990 = vsel %vm2978, %v2905, 0.0
        %v2991 = vsel %vm2979, %v2906, 0.0
        %v2992 = vsel %vm2980, %v2907, 0.0
        %v2993 = vpack.c.bf16 %v2981, %v2981
        %v2994 = vpack.c.bf16 %v2982, %v2982
        %v2995 = vpack.c.bf16 %v2983, %v2983
        %v2996 = vpack.c.bf16 %v2984, %v2984
        %v2997 = vpack.c.bf16 %v2985, %v2985
        %v2998 = vpack.c.bf16 %v2986, %v2986
        %v2999 = vpack.c.bf16 %v2987, %v2987
        %v3000 = vpack.c.bf16 %v2988, %v2988
        %v3001 = vpack.c.bf16 %v2989, %v2989
        %v3002 = vpack.c.bf16 %v2990, %v2990
        %v3003 = vpack.c.bf16 %v2991, %v2991
        %v3004 = vpack.c.bf16 %v2992, %v2992
        %3005 = vst [vmem:[#allocation3 + $0x4] sm:$0xf] %v2993
        %3006 = vst [vmem:[#allocation3 + $0x10] sm:$0xf] %v2994
        %3007 = vst [vmem:[#allocation3 + $0x1c] sm:$0xf] %v2995
        %3008 = vst [vmem:[#allocation3 + $0x28] sm:$0xf] %v2996
        %3009 = vst [vmem:[#allocation3 + $0x34] sm:$0xf] %v2997
        %3010 = vst [vmem:[#allocation3 + $0x40] sm:$0xf] %v2998
        %3011 = vst [vmem:[#allocation3 + $0x4c] sm:$0xf] %v2999
        %3012 = vst [vmem:[#allocation3 + $0x58] sm:$0xf] %v3000
        %3013 = vst [vmem:[#allocation3 + $0x64] sm:$0xf] %v3001
        %3014 = vst [vmem:[#allocation3 + $0x70] sm:$0xf] %v3002
        %3015 = vst [vmem:[#allocation3 + $0x7c] sm:$0xf] %v3003
        %3016 = vst [vmem:[#allocation3 + $0x88] sm:$0xf] %v3004
        %v3017 = vld [vmem:[#allocation3] sm:$0x8]
        %v3018 = vld [vmem:[#allocation3 + $0x4] sm:$0xf]
        %v3019 = vld [vmem:[#allocation3 + $0xc] sm:$0x8]
        %v3020 = vld [vmem:[#allocation3 + $0x10] sm:$0xf]
        %v3021 = vld [vmem:[#allocation3 + $0x18] sm:$0x8]
        %v3022 = vld [vmem:[#allocation3 + $0x1c] sm:$0xf]
        %v3023 = vld [vmem:[#allocation3 + $0x24] sm:$0x8]
        %v3024 = vld [vmem:[#allocation3 + $0x28] sm:$0xf]
        %v3025 = vld [vmem:[#allocation3 + $0x30] sm:$0x8]
        %v3026 = vld [vmem:[#allocation3 + $0x34] sm:$0xf]
        %v3027 = vld [vmem:[#allocation3 + $0x3c] sm:$0x8]
        %v3028 = vld [vmem:[#allocation3 + $0x40] sm:$0xf]
        %v3029 = vld [vmem:[#allocation3 + $0x48] sm:$0x8]
        %v3030 = vld [vmem:[#allocation3 + $0x4c] sm:$0xf]
        %v3031 = vld [vmem:[#allocation3 + $0x54] sm:$0x8]
        %v3032 = vld [vmem:[#allocation3 + $0x58] sm:$0xf]
        %v3033 = vld [vmem:[#allocation3 + $0x60] sm:$0x8]
        %v3034 = vld [vmem:[#allocation3 + $0x64] sm:$0xf]
        %v3035 = vld [vmem:[#allocation3 + $0x6c] sm:$0x8]
        %v3036 = vld [vmem:[#allocation3 + $0x70] sm:$0xf]
        %v3038 = vshrl.u32 %v3017, 16
        %v3040 = vrot.slane %v3038, 7
        %v3041 = vrot.slane %v3040, 4
        %v3043 = vshrl.u32 %v3018, 16
        %v3045 = vrot.slane %v3043, 7
        %v3046 = vshll.u32 %v3018, 16
        %v3048 = vor.u32 %v3045, %v3046
        %v3049 = vsel %vm395, %v3041, %v3048
        %v3051 = vshrl.u32 %v3019, 16
        %v3053 = vrot.slane %v3051, 7
        %v3054 = vrot.slane %v3053, 4
        %v3056 = vshrl.u32 %v3020, 16
        %v3058 = vrot.slane %v3056, 7
        %v3059 = vshll.u32 %v3020, 16
        %v3061 = vor.u32 %v3058, %v3059
        %v3062 = vsel %vm395, %v3054, %v3061
        %v3064 = vshrl.u32 %v3021, 16
        %v3066 = vrot.slane %v3064, 7
        %v3067 = vrot.slane %v3066, 4
        %v3069 = vshrl.u32 %v3022, 16
        %v3071 = vrot.slane %v3069, 7
        %v3072 = vshll.u32 %v3022, 16
        %v3074 = vor.u32 %v3071, %v3072
        %v3075 = vsel %vm395, %v3067, %v3074
        %v3077 = vshrl.u32 %v3023, 16
        %v3079 = vrot.slane %v3077, 7
        %v3080 = vrot.slane %v3079, 4
        %v3082 = vshrl.u32 %v3024, 16
        %v3084 = vrot.slane %v3082, 7
        %v3085 = vshll.u32 %v3024, 16
        %v3087 = vor.u32 %v3084, %v3085
        %v3088 = vsel %vm395, %v3080, %v3087
        %v3090 = vshrl.u32 %v3025, 16
        %v3092 = vrot.slane %v3090, 7
        %v3093 = vrot.slane %v3092, 4
        %v3095 = vshrl.u32 %v3026, 16
        %v3097 = vrot.slane %v3095, 7
        %v3098 = vshll.u32 %v3026, 16
        %v3100 = vor.u32 %v3097, %v3098
        %v3101 = vsel %vm395, %v3093, %v3100
        %v3103 = vshrl.u32 %v3027, 16
        %v3105 = vrot.slane %v3103, 7
        %v3106 = vrot.slane %v3105, 4
        %v3108 = vshrl.u32 %v3028, 16
        %v3110 = vrot.slane %v3108, 7
        %v3111 = vshll.u32 %v3028, 16
        %v3113 = vor.u32 %v3110, %v3111
        %v3114 = vsel %vm395, %v3106, %v3113
        %v3116 = vshrl.u32 %v3029, 16
        %v3118 = vrot.slane %v3116, 7
        %v3119 = vrot.slane %v3118, 4
        %v3121 = vshrl.u32 %v3030, 16
        %v3123 = vrot.slane %v3121, 7
        %v3124 = vshll.u32 %v3030, 16
        %v3126 = vor.u32 %v3123, %v3124
        %v3127 = vsel %vm395, %v3119, %v3126
        %v3129 = vshrl.u32 %v3031, 16
        %v3131 = vrot.slane %v3129, 7
        %v3132 = vrot.slane %v3131, 4
        %v3134 = vshrl.u32 %v3032, 16
        %v3136 = vrot.slane %v3134, 7
        %v3137 = vshll.u32 %v3032, 16
        %v3139 = vor.u32 %v3136, %v3137
        %v3140 = vsel %vm395, %v3132, %v3139
        %v3142 = vshrl.u32 %v3033, 16
        %v3144 = vrot.slane %v3142, 7
        %v3145 = vrot.slane %v3144, 4
        %v3147 = vshrl.u32 %v3034, 16
        %v3149 = vrot.slane %v3147, 7
        %v3150 = vshll.u32 %v3034, 16
        %v3152 = vor.u32 %v3149, %v3150
        %v3153 = vsel %vm395, %v3145, %v3152
        %v3155 = vshrl.u32 %v3035, 16
        %v3157 = vrot.slane %v3155, 7
        %v3158 = vrot.slane %v3157, 4
        %v3160 = vshrl.u32 %v3036, 16
        %v3162 = vrot.slane %v3160, 7
        %v3163 = vshll.u32 %v3036, 16
        %v3165 = vor.u32 %v3162, %v3163
        %v3166 = vsel %vm395, %v3158, %v3165
        %v3167 = vunpack.c.l.b16 %v3049
        %v3168 = vunpack.c.l.b16 %v3062
        %v3169 = vunpack.c.l.b16 %v3075
        %v3170 = vunpack.c.l.b16 %v3088
        %v3171 = vunpack.c.l.b16 %v3101
        %v3172 = vunpack.c.l.b16 %v3114
        %v3173 = vunpack.c.l.b16 %v3127
        %v3174 = vunpack.c.l.b16 %v3140
        %v3175 = vunpack.c.l.b16 %v3153
        %v3176 = vunpack.c.l.b16 %v3166
        %v3177 = vpack.c.b16 %v3168, %v3167
        %v3178 = vpack.c.b16 %v3170, %v3169
        %v3179 = vpack.c.b16 %v3172, %v3171
        %v3180 = vpack.c.b16 %v3174, %v3173
        %v3181 = vpack.c.b16 %v3176, %v3175
        %3187 = vst [vmem:[#allocation5] sm:$0xff] %v3177
        %3188 = vst [vmem:[#allocation5 + $0x48] sm:$0xff] %v3178
        %3189 = vst [vmem:[#allocation5 + $0x90] sm:$0xff] %v3179
        %3190 = vst [vmem:[#allocation5 + $0xd8] sm:$0xff] %v3180
        %3191 = vst [vmem:[#allocation5 + $0x120] sm:$0xff] %v3181
        %v3192 = vld [vmem:[#allocation3 + $0x4] sm:$0xf]
        %v3193 = vld [vmem:[#allocation3 + $0x10] sm:$0xf]
        %v3194 = vld [vmem:[#allocation3 + $0x1c] sm:$0xf]
        %v3195 = vld [vmem:[#allocation3 + $0x28] sm:$0xf]
        %v3196 = vld [vmem:[#allocation3 + $0x34] sm:$0xf]
        %v3197 = vld [vmem:[#allocation3 + $0x40] sm:$0xf]
        %v3198 = vld [vmem:[#allocation3 + $0x4c] sm:$0xf]
        %v3199 = vld [vmem:[#allocation3 + $0x58] sm:$0xf]
        %v3200 = vld [vmem:[#allocation3 + $0x64] sm:$0xf]
        %v3201 = vld [vmem:[#allocation3 + $0x70] sm:$0xf]
        %v3212 = vunpack.c.l.b16 %v3192
        %v3213 = vunpack.c.l.b16 %v3193
        %v3214 = vunpack.c.l.b16 %v3194
        %v3215 = vunpack.c.l.b16 %v3195
        %v3216 = vunpack.c.l.b16 %v3196
        %v3217 = vunpack.c.l.b16 %v3197
        %v3218 = vunpack.c.l.b16 %v3198
        %v3219 = vunpack.c.l.b16 %v3199
        %v3220 = vunpack.c.l.b16 %v3200
        %v3221 = vunpack.c.l.b16 %v3201
        %v3222 = vpack.c.b16 %v3213, %v3212
        %v3223 = vpack.c.b16 %v3215, %v3214
        %v3224 = vpack.c.b16 %v3217, %v3216
        %v3225 = vpack.c.b16 %v3219, %v3218
        %v3226 = vpack.c.b16 %v3221, %v3220
        %3232 = vst [vmem:[#allocation5 + $0x8] sm:$0xff] %v3222
        %3233 = vst [vmem:[#allocation5 + $0x50] sm:$0xff] %v3223
        %3234 = vst [vmem:[#allocation5 + $0x98] sm:$0xff] %v3224
        %3235 = vst [vmem:[#allocation5 + $0xe0] sm:$0xff] %v3225
        %3236 = vst [vmem:[#allocation5 + $0x128] sm:$0xff] %v3226
        %v3237 = vld [vmem:[#allocation3 + $0x4] sm:$0xf]
        %v3238 = vld [vmem:[#allocation3 + $0x8] sm:$0x1]
        %v3239 = vld [vmem:[#allocation3 + $0x10] sm:$0xf]
        %v3240 = vld [vmem:[#allocation3 + $0x14] sm:$0x1]
        %v3241 = vld [vmem:[#allocation3 + $0x1c] sm:$0xf]
        %v3242 = vld [vmem:[#allocation3 + $0x20] sm:$0x1]
        %v3243 = vld [vmem:[#allocation3 + $0x28] sm:$0xf]
        %v3244 = vld [vmem:[#allocation3 + $0x2c] sm:$0x1]
        %v3245 = vld [vmem:[#allocation3 + $0x34] sm:$0xf]
        %v3246 = vld [vmem:[#allocation3 + $0x38] sm:$0x1]
        %v3247 = vld [vmem:[#allocation3 + $0x40] sm:$0xf]
        %v3248 = vld [vmem:[#allocation3 + $0x44] sm:$0x1]
        %v3249 = vld [vmem:[#allocation3 + $0x4c] sm:$0xf]
        %v3250 = vld [vmem:[#allocation3 + $0x50] sm:$0x1]
        %v3251 = vld [vmem:[#allocation3 + $0x58] sm:$0xf]
        %v3252 = vld [vmem:[#allocation3 + $0x5c] sm:$0x1]
        %v3253 = vld [vmem:[#allocation3 + $0x64] sm:$0xf]
        %v3254 = vld [vmem:[#allocation3 + $0x68] sm:$0x1]
        %v3255 = vld [vmem:[#allocation3 + $0x70] sm:$0xf]
        %v3256 = vld [vmem:[#allocation3 + $0x74] sm:$0x1]
        %v3258 = vshrl.u32 %v3237, 16
        %v3260 = vrot.slane %v3258, 4
        %v3261 = vshll.u32 %v3237, 16
        %v3263 = vrot.slane %v3261, 5
        %v3264 = vor.u32 %v3260, %v3263
        %v3265 = vrot.slane %v3264, 4
        %v3267 = vshll.u32 %v3238, 16
        %v3269 = vrot.slane %v3267, 5
        %v3270 = vsel %vm662, %v3265, %v3269
        %v3272 = vshrl.u32 %v3239, 16
        %v3274 = vrot.slane %v3272, 4
        %v3275 = vshll.u32 %v3239, 16
        %v3277 = vrot.slane %v3275, 5
        %v3278 = vor.u32 %v3274, %v3277
        %v3279 = vrot.slane %v3278, 4
        %v3281 = vshll.u32 %v3240, 16
        %v3283 = vrot.slane %v3281, 5
        %v3284 = vsel %vm662, %v3279, %v3283
        %v3286 = vshrl.u32 %v3241, 16
        %v3288 = vrot.slane %v3286, 4
        %v3289 = vshll.u32 %v3241, 16
        %v3291 = vrot.slane %v3289, 5
        %v3292 = vor.u32 %v3288, %v3291
        %v3293 = vrot.slane %v3292, 4
        %v3295 = vshll.u32 %v3242, 16
        %v3297 = vrot.slane %v3295, 5
        %v3298 = vsel %vm662, %v3293, %v3297
        %v3300 = vshrl.u32 %v3243, 16
        %v3302 = vrot.slane %v3300, 4
        %v3303 = vshll.u32 %v3243, 16
        %v3305 = vrot.slane %v3303, 5
        %v3306 = vor.u32 %v3302, %v3305
        %v3307 = vrot.slane %v3306, 4
        %v3309 = vshll.u32 %v3244, 16
        %v3311 = vrot.slane %v3309, 5
        %v3312 = vsel %vm662, %v3307, %v3311
        %v3314 = vshrl.u32 %v3245, 16
        %v3316 = vrot.slane %v3314, 4
        %v3317 = vshll.u32 %v3245, 16
        %v3319 = vrot.slane %v3317, 5
        %v3320 = vor.u32 %v3316, %v3319
        %v3321 = vrot.slane %v3320, 4
        %v3323 = vshll.u32 %v3246, 16
        %v3325 = vrot.slane %v3323, 5
        %v3326 = vsel %vm662, %v3321, %v3325
        %v3328 = vshrl.u32 %v3247, 16
        %v3330 = vrot.slane %v3328, 4
        %v3331 = vshll.u32 %v3247, 16
        %v3333 = vrot.slane %v3331, 5
        %v3334 = vor.u32 %v3330, %v3333
        %v3335 = vrot.slane %v3334, 4
        %v3337 = vshll.u32 %v3248, 16
        %v3339 = vrot.slane %v3337, 5
        %v3340 = vsel %vm662, %v3335, %v3339
        %v3342 = vshrl.u32 %v3249, 16
        %v3344 = vrot.slane %v3342, 4
        %v3345 = vshll.u32 %v3249, 16
        %v3347 = vrot.slane %v3345, 5
        %v3348 = vor.u32 %v3344, %v3347
        %v3349 = vrot.slane %v3348, 4
        %v3351 = vshll.u32 %v3250, 16
        %v3353 = vrot.slane %v3351, 5
        %v3354 = vsel %vm662, %v3349, %v3353
        %v3356 = vshrl.u32 %v3251, 16
        %v3358 = vrot.slane %v3356, 4
        %v3359 = vshll.u32 %v3251, 16
        %v3361 = vrot.slane %v3359, 5
        %v3362 = vor.u32 %v3358, %v3361
        %v3363 = vrot.slane %v3362, 4
        %v3365 = vshll.u32 %v3252, 16
        %v3367 = vrot.slane %v3365, 5
        %v3368 = vsel %vm662, %v3363, %v3367
        %v3370 = vshrl.u32 %v3253, 16
        %v3372 = vrot.slane %v3370, 4
        %v3373 = vshll.u32 %v3253, 16
        %v3375 = vrot.slane %v3373, 5
        %v3376 = vor.u32 %v3372, %v3375
        %v3377 = vrot.slane %v3376, 4
        %v3379 = vshll.u32 %v3254, 16
        %v3381 = vrot.slane %v3379, 5
        %v3382 = vsel %vm662, %v3377, %v3381
        %v3384 = vshrl.u32 %v3255, 16
        %v3386 = vrot.slane %v3384, 4
        %v3387 = vshll.u32 %v3255, 16
        %v3389 = vrot.slane %v3387, 5
        %v3390 = vor.u32 %v3386, %v3389
        %v3391 = vrot.slane %v3390, 4
        %v3393 = vshll.u32 %v3256, 16
        %v3395 = vrot.slane %v3393, 5
        %v3396 = vsel %vm662, %v3391, %v3395
        %v3397 = vunpack.c.l.b16 %v3270
        %v3398 = vunpack.c.l.b16 %v3284
        %v3399 = vunpack.c.l.b16 %v3298
        %v3400 = vunpack.c.l.b16 %v3312
        %v3401 = vunpack.c.l.b16 %v3326
        %v3402 = vunpack.c.l.b16 %v3340
        %v3403 = vunpack.c.l.b16 %v3354
        %v3404 = vunpack.c.l.b16 %v3368
        %v3405 = vunpack.c.l.b16 %v3382
        %v3406 = vunpack.c.l.b16 %v3396
        %v3407 = vpack.c.b16 %v3398, %v3397
        %v3408 = vpack.c.b16 %v3400, %v3399
        %v3409 = vpack.c.b16 %v3402, %v3401
        %v3410 = vpack.c.b16 %v3404, %v3403
        %v3411 = vpack.c.b16 %v3406, %v3405
        %3417 = vst [vmem:[#allocation5 + $0x10] sm:$0xff] %v3407
        %3418 = vst [vmem:[#allocation5 + $0x58] sm:$0xff] %v3408
        %3419 = vst [vmem:[#allocation5 + $0xa0] sm:$0xff] %v3409
        %3420 = vst [vmem:[#allocation5 + $0xe8] sm:$0xff] %v3410
        %3421 = vst [vmem:[#allocation5 + $0x130] sm:$0xff] %v3411
        %s3422 = scalar_lea.vmem [#allocation3], 12
        %v3423 = vld [vmem:[%s3422] sm:$0x8]
        %v3424 = vld [vmem:[%s3422 + $0x4] sm:$0xf]
        %v3425 = vld [vmem:[%s3422 + $0xc] sm:$0x8]
        %v3426 = vld [vmem:[%s3422 + $0x10] sm:$0xf]
        %v3427 = vld [vmem:[%s3422 + $0x18] sm:$0x8]
        %v3428 = vld [vmem:[%s3422 + $0x1c] sm:$0xf]
        %v3429 = vld [vmem:[%s3422 + $0x24] sm:$0x8]
        %v3430 = vld [vmem:[%s3422 + $0x28] sm:$0xf]
        %v3431 = vld [vmem:[%s3422 + $0x30] sm:$0x8]
        %v3432 = vld [vmem:[%s3422 + $0x34] sm:$0xf]
        %v3433 = vld [vmem:[%s3422 + $0x3c] sm:$0x8]
        %v3434 = vld [vmem:[%s3422 + $0x40] sm:$0xf]
        %v3435 = vld [vmem:[%s3422 + $0x48] sm:$0x8]
        %v3436 = vld [vmem:[%s3422 + $0x4c] sm:$0xf]
        %v3437 = vld [vmem:[%s3422 + $0x54] sm:$0x8]
        %v3438 = vld [vmem:[%s3422 + $0x58] sm:$0xf]
        %v3439 = vld [vmem:[%s3422 + $0x60] sm:$0x8]
        %v3440 = vld [vmem:[%s3422 + $0x64] sm:$0xf]
        %v3441 = vld [vmem:[%s3422 + $0x6c] sm:$0x8]
        %v3442 = vld [vmem:[%s3422 + $0x70] sm:$0xf]
        %v3444 = vshrl.u32 %v3423, 16
        %v3446 = vrot.slane %v3444, 7
        %v3447 = vrot.slane %v3446, 4
        %v3449 = vshrl.u32 %v3424, 16
        %v3451 = vrot.slane %v3449, 7
        %v3452 = vshll.u32 %v3424, 16
        %v3454 = vor.u32 %v3451, %v3452
        %v3455 = vsel %vm395, %v3447, %v3454
        %v3457 = vshrl.u32 %v3425, 16
        %v3459 = vrot.slane %v3457, 7
        %v3460 = vrot.slane %v3459, 4
        %v3462 = vshrl.u32 %v3426, 16
        %v3464 = vrot.slane %v3462, 7
        %v3465 = vshll.u32 %v3426, 16
        %v3467 = vor.u32 %v3464, %v3465
        %v3468 = vsel %vm395, %v3460, %v3467
        %v3470 = vshrl.u32 %v3427, 16
        %v3472 = vrot.slane %v3470, 7
        %v3473 = vrot.slane %v3472, 4
        %v3475 = vshrl.u32 %v3428, 16
        %v3477 = vrot.slane %v3475, 7
        %v3478 = vshll.u32 %v3428, 16
        %v3480 = vor.u32 %v3477, %v3478
        %v3481 = vsel %vm395, %v3473, %v3480
        %v3483 = vshrl.u32 %v3429, 16
        %v3485 = vrot.slane %v3483, 7
        %v3486 = vrot.slane %v3485, 4
        %v3488 = vshrl.u32 %v3430, 16
        %v3490 = vrot.slane %v3488, 7
        %v3491 = vshll.u32 %v3430, 16
        %v3493 = vor.u32 %v3490, %v3491
        %v3494 = vsel %vm395, %v3486, %v3493
        %v3496 = vshrl.u32 %v3431, 16
        %v3498 = vrot.slane %v3496, 7
        %v3499 = vrot.slane %v3498, 4
        %v3501 = vshrl.u32 %v3432, 16
        %v3503 = vrot.slane %v3501, 7
        %v3504 = vshll.u32 %v3432, 16
        %v3506 = vor.u32 %v3503, %v3504
        %v3507 = vsel %vm395, %v3499, %v3506
        %v3509 = vshrl.u32 %v3433, 16
        %v3511 = vrot.slane %v3509, 7
        %v3512 = vrot.slane %v3511, 4
        %v3514 = vshrl.u32 %v3434, 16
        %v3516 = vrot.slane %v3514, 7
        %v3517 = vshll.u32 %v3434, 16
        %v3519 = vor.u32 %v3516, %v3517
        %v3520 = vsel %vm395, %v3512, %v3519
        %v3522 = vshrl.u32 %v3435, 16
        %v3524 = vrot.slane %v3522, 7
        %v3525 = vrot.slane %v3524, 4
        %v3527 = vshrl.u32 %v3436, 16
        %v3529 = vrot.slane %v3527, 7
        %v3530 = vshll.u32 %v3436, 16
        %v3532 = vor.u32 %v3529, %v3530
        %v3533 = vsel %vm395, %v3525, %v3532
        %v3535 = vshrl.u32 %v3437, 16
        %v3537 = vrot.slane %v3535, 7
        %v3538 = vrot.slane %v3537, 4
        %v3540 = vshrl.u32 %v3438, 16
        %v3542 = vrot.slane %v3540, 7
        %v3543 = vshll.u32 %v3438, 16
        %v3545 = vor.u32 %v3542, %v3543
        %v3546 = vsel %vm395, %v3538, %v3545
        %v3548 = vshrl.u32 %v3439, 16
        %v3550 = vrot.slane %v3548, 7
        %v3551 = vrot.slane %v3550, 4
        %v3553 = vshrl.u32 %v3440, 16
        %v3555 = vrot.slane %v3553, 7
        %v3556 = vshll.u32 %v3440, 16
        %v3558 = vor.u32 %v3555, %v3556
        %v3559 = vsel %vm395, %v3551, %v3558
        %v3561 = vshrl.u32 %v3441, 16
        %v3563 = vrot.slane %v3561, 7
        %v3564 = vrot.slane %v3563, 4
        %v3566 = vshrl.u32 %v3442, 16
        %v3568 = vrot.slane %v3566, 7
        %v3569 = vshll.u32 %v3442, 16
        %v3571 = vor.u32 %v3568, %v3569
        %v3572 = vsel %vm395, %v3564, %v3571
        %v3573 = vunpack.c.l.b16 %v3455
        %v3574 = vunpack.c.l.b16 %v3468
        %v3575 = vunpack.c.l.b16 %v3481
        %v3576 = vunpack.c.l.b16 %v3494
        %v3577 = vunpack.c.l.b16 %v3507
        %v3578 = vunpack.c.l.b16 %v3520
        %v3579 = vunpack.c.l.b16 %v3533
        %v3580 = vunpack.c.l.b16 %v3546
        %v3581 = vunpack.c.l.b16 %v3559
        %v3582 = vunpack.c.l.b16 %v3572
        %v3583 = vpack.c.b16 %v3574, %v3573
        %v3584 = vpack.c.b16 %v3576, %v3575
        %v3585 = vpack.c.b16 %v3578, %v3577
        %v3586 = vpack.c.b16 %v3580, %v3579
        %v3587 = vpack.c.b16 %v3582, %v3581
        %3593 = vst [vmem:[#allocation5 + $0x18] sm:$0xff] %v3583
        %3594 = vst [vmem:[#allocation5 + $0x60] sm:$0xff] %v3584
        %3595 = vst [vmem:[#allocation5 + $0xa8] sm:$0xff] %v3585
        %3596 = vst [vmem:[#allocation5 + $0xf0] sm:$0xff] %v3586
        %3597 = vst [vmem:[#allocation5 + $0x138] sm:$0xff] %v3587
        %v3598 = vld [vmem:[%s3422 + $0x4] sm:$0xf]
        %v3599 = vld [vmem:[%s3422 + $0x10] sm:$0xf]
        %v3600 = vld [vmem:[%s3422 + $0x1c] sm:$0xf]
        %v3601 = vld [vmem:[%s3422 + $0x28] sm:$0xf]
        %v3602 = vld [vmem:[%s3422 + $0x34] sm:$0xf]
        %v3603 = vld [vmem:[%s3422 + $0x40] sm:$0xf]
        %v3604 = vld [vmem:[%s3422 + $0x4c] sm:$0xf]
        %v3605 = vld [vmem:[%s3422 + $0x58] sm:$0xf]
        %v3606 = vld [vmem:[%s3422 + $0x64] sm:$0xf]
        %v3607 = vld [vmem:[%s3422 + $0x70] sm:$0xf]
        %v3618 = vunpack.c.l.b16 %v3598
        %v3619 = vunpack.c.l.b16 %v3599
        %v3620 = vunpack.c.l.b16 %v3600
        %v3621 = vunpack.c.l.b16 %v3601
        %v3622 = vunpack.c.l.b16 %v3602
        %v3623 = vunpack.c.l.b16 %v3603
        %v3624 = vunpack.c.l.b16 %v3604
        %v3625 = vunpack.c.l.b16 %v3605
        %v3626 = vunpack.c.l.b16 %v3606
        %v3627 = vunpack.c.l.b16 %v3607
        %v3628 = vpack.c.b16 %v3619, %v3618
        %v3629 = vpack.c.b16 %v3621, %v3620
        %v3630 = vpack.c.b16 %v3623, %v3622
        %v3631 = vpack.c.b16 %v3625, %v3624
        %v3632 = vpack.c.b16 %v3627, %v3626
        %3638 = vst [vmem:[#allocation5 + $0x20] sm:$0xff] %v3628
        %3639 = vst [vmem:[#allocation5 + $0x68] sm:$0xff] %v3629
        %3640 = vst [vmem:[#allocation5 + $0xb0] sm:$0xff] %v3630
        %3641 = vst [vmem:[#allocation5 + $0xf8] sm:$0xff] %v3631
        %3642 = vst [vmem:[#allocation5 + $0x140] sm:$0xff] %v3632
        %v3643 = vld [vmem:[%s3422 + $0x4] sm:$0xf]
        %v3644 = vld [vmem:[%s3422 + $0x8] sm:$0x1]
        %v3645 = vld [vmem:[%s3422 + $0x10] sm:$0xf]
        %v3646 = vld [vmem:[%s3422 + $0x14] sm:$0x1]
        %v3647 = vld [vmem:[%s3422 + $0x1c] sm:$0xf]
        %v3648 = vld [vmem:[%s3422 + $0x20] sm:$0x1]
        %v3649 = vld [vmem:[%s3422 + $0x28] sm:$0xf]
        %v3650 = vld [vmem:[%s3422 + $0x2c] sm:$0x1]
        %v3651 = vld [vmem:[%s3422 + $0x34] sm:$0xf]
        %v3652 = vld [vmem:[%s3422 + $0x38] sm:$0x1]
        %v3653 = vld [vmem:[%s3422 + $0x40] sm:$0xf]
        %v3654 = vld [vmem:[%s3422 + $0x44] sm:$0x1]
        %v3655 = vld [vmem:[%s3422 + $0x4c] sm:$0xf]
        %v3656 = vld [vmem:[%s3422 + $0x50] sm:$0x1]
        %v3657 = vld [vmem:[%s3422 + $0x58] sm:$0xf]
        %v3658 = vld [vmem:[%s3422 + $0x5c] sm:$0x1]
        %v3659 = vld [vmem:[%s3422 + $0x64] sm:$0xf]
        %v3660 = vld [vmem:[%s3422 + $0x68] sm:$0x1]
        %v3661 = vld [vmem:[%s3422 + $0x70] sm:$0xf]
        %v3662 = vld [vmem:[%s3422 + $0x74] sm:$0x1]
        %v3664 = vshrl.u32 %v3643, 16
        %v3666 = vrot.slane %v3664, 4
        %v3667 = vshll.u32 %v3643, 16
        %v3669 = vrot.slane %v3667, 5
        %v3670 = vor.u32 %v3666, %v3669
        %v3671 = vrot.slane %v3670, 4
        %v3673 = vshll.u32 %v3644, 16
        %v3675 = vrot.slane %v3673, 5
        %v3676 = vsel %vm662, %v3671, %v3675
        %v3678 = vshrl.u32 %v3645, 16
        %v3680 = vrot.slane %v3678, 4
        %v3681 = vshll.u32 %v3645, 16
        %v3683 = vrot.slane %v3681, 5
        %v3684 = vor.u32 %v3680, %v3683
        %v3685 = vrot.slane %v3684, 4
        %v3687 = vshll.u32 %v3646, 16
        %v3689 = vrot.slane %v3687, 5
        %v3690 = vsel %vm662, %v3685, %v3689
        %v3692 = vshrl.u32 %v3647, 16
        %v3694 = vrot.slane %v3692, 4
        %v3695 = vshll.u32 %v3647, 16
        %v3697 = vrot.slane %v3695, 5
        %v3698 = vor.u32 %v3694, %v3697
        %v3699 = vrot.slane %v3698, 4
        %v3701 = vshll.u32 %v3648, 16
        %v3703 = vrot.slane %v3701, 5
        %v3704 = vsel %vm662, %v3699, %v3703
        %v3706 = vshrl.u32 %v3649, 16
        %v3708 = vrot.slane %v3706, 4
        %v3709 = vshll.u32 %v3649, 16
        %v3711 = vrot.slane %v3709, 5
        %v3712 = vor.u32 %v3708, %v3711
        %v3713 = vrot.slane %v3712, 4
        %v3715 = vshll.u32 %v3650, 16
        %v3717 = vrot.slane %v3715, 5
        %v3718 = vsel %vm662, %v3713, %v3717
        %v3720 = vshrl.u32 %v3651, 16
        %v3722 = vrot.slane %v3720, 4
        %v3723 = vshll.u32 %v3651, 16
        %v3725 = vrot.slane %v3723, 5
        %v3726 = vor.u32 %v3722, %v3725
        %v3727 = vrot.slane %v3726, 4
        %v3729 = vshll.u32 %v3652, 16
        %v3731 = vrot.slane %v3729, 5
        %v3732 = vsel %vm662, %v3727, %v3731
        %v3734 = vshrl.u32 %v3653, 16
        %v3736 = vrot.slane %v3734, 4
        %v3737 = vshll.u32 %v3653, 16
        %v3739 = vrot.slane %v3737, 5
        %v3740 = vor.u32 %v3736, %v3739
        %v3741 = vrot.slane %v3740, 4
        %v3743 = vshll.u32 %v3654, 16
        %v3745 = vrot.slane %v3743, 5
        %v3746 = vsel %vm662, %v3741, %v3745
        %v3748 = vshrl.u32 %v3655, 16
        %v3750 = vrot.slane %v3748, 4
        %v3751 = vshll.u32 %v3655, 16
        %v3753 = vrot.slane %v3751, 5
        %v3754 = vor.u32 %v3750, %v3753
        %v3755 = vrot.slane %v3754, 4
        %v3757 = vshll.u32 %v3656, 16
        %v3759 = vrot.slane %v3757, 5
        %v3760 = vsel %vm662, %v3755, %v3759
        %v3762 = vshrl.u32 %v3657, 16
        %v3764 = vrot.slane %v3762, 4
        %v3765 = vshll.u32 %v3657, 16
        %v3767 = vrot.slane %v3765, 5
        %v3768 = vor.u32 %v3764, %v3767
        %v3769 = vrot.slane %v3768, 4
        %v3771 = vshll.u32 %v3658, 16
        %v3773 = vrot.slane %v3771, 5
        %v3774 = vsel %vm662, %v3769, %v3773
        %v3776 = vshrl.u32 %v3659, 16
        %v3778 = vrot.slane %v3776, 4
        %v3779 = vshll.u32 %v3659, 16
        %v3781 = vrot.slane %v3779, 5
        %v3782 = vor.u32 %v3778, %v3781
        %v3783 = vrot.slane %v3782, 4
        %v3785 = vshll.u32 %v3660, 16
        %v3787 = vrot.slane %v3785, 5
        %v3788 = vsel %vm662, %v3783, %v3787
        %v3790 = vshrl.u32 %v3661, 16
        %v3792 = vrot.slane %v3790, 4
        %v3793 = vshll.u32 %v3661, 16
        %v3795 = vrot.slane %v3793, 5
        %v3796 = vor.u32 %v3792, %v3795
        %v3797 = vrot.slane %v3796, 4
        %v3799 = vshll.u32 %v3662, 16
        %v3801 = vrot.slane %v3799, 5
        %v3802 = vsel %vm662, %v3797, %v3801
        %v3803 = vunpack.c.l.b16 %v3676
        %v3804 = vunpack.c.l.b16 %v3690
        %v3805 = vunpack.c.l.b16 %v3704
        %v3806 = vunpack.c.l.b16 %v3718
        %v3807 = vunpack.c.l.b16 %v3732
        %v3808 = vunpack.c.l.b16 %v3746
        %v3809 = vunpack.c.l.b16 %v3760
        %v3810 = vunpack.c.l.b16 %v3774
        %v3811 = vunpack.c.l.b16 %v3788
        %v3812 = vunpack.c.l.b16 %v3802
        %v3813 = vpack.c.b16 %v3804, %v3803
        %v3814 = vpack.c.b16 %v3806, %v3805
        %v3815 = vpack.c.b16 %v3808, %v3807
        %v3816 = vpack.c.b16 %v3810, %v3809
        %v3817 = vpack.c.b16 %v3812, %v3811
        %3823 = vst [vmem:[#allocation5 + $0x28] sm:$0xff] %v3813
        %3824 = vst [vmem:[#allocation5 + $0x70] sm:$0xff] %v3814
        %3825 = vst [vmem:[#allocation5 + $0xb8] sm:$0xff] %v3815
        %3826 = vst [vmem:[#allocation5 + $0x100] sm:$0xff] %v3816
        %3827 = vst [vmem:[#allocation5 + $0x148] sm:$0xff] %v3817
        %s3828 = scalar_lea.vmem [#allocation3], 24
        %v3829 = vld [vmem:[%s3828] sm:$0x8]
        %v3830 = vld [vmem:[%s3828 + $0x4] sm:$0xf]
        %v3831 = vld [vmem:[%s3828 + $0xc] sm:$0x8]
        %v3832 = vld [vmem:[%s3828 + $0x10] sm:$0xf]
        %v3833 = vld [vmem:[%s3828 + $0x18] sm:$0x8]
        %v3834 = vld [vmem:[%s3828 + $0x1c] sm:$0xf]
        %v3835 = vld [vmem:[%s3828 + $0x24] sm:$0x8]
        %v3836 = vld [vmem:[%s3828 + $0x28] sm:$0xf]
        %v3837 = vld [vmem:[%s3828 + $0x30] sm:$0x8]
        %v3838 = vld [vmem:[%s3828 + $0x34] sm:$0xf]
        %v3839 = vld [vmem:[%s3828 + $0x3c] sm:$0x8]
        %v3840 = vld [vmem:[%s3828 + $0x40] sm:$0xf]
        %v3841 = vld [vmem:[%s3828 + $0x48] sm:$0x8]
        %v3842 = vld [vmem:[%s3828 + $0x4c] sm:$0xf]
        %v3843 = vld [vmem:[%s3828 + $0x54] sm:$0x8]
        %v3844 = vld [vmem:[%s3828 + $0x58] sm:$0xf]
        %v3845 = vld [vmem:[%s3828 + $0x60] sm:$0x8]
        %v3846 = vld [vmem:[%s3828 + $0x64] sm:$0xf]
        %v3847 = vld [vmem:[%s3828 + $0x6c] sm:$0x8]
        %v3848 = vld [vmem:[%s3828 + $0x70] sm:$0xf]
        %v3850 = vshrl.u32 %v3829, 16
        %v3852 = vrot.slane %v3850, 7
        %v3853 = vrot.slane %v3852, 4
        %v3855 = vshrl.u32 %v3830, 16
        %v3857 = vrot.slane %v3855, 7
        %v3858 = vshll.u32 %v3830, 16
        %v3860 = vor.u32 %v3857, %v3858
        %v3861 = vsel %vm395, %v3853, %v3860
        %v3863 = vshrl.u32 %v3831, 16
        %v3865 = vrot.slane %v3863, 7
        %v3866 = vrot.slane %v3865, 4
        %v3868 = vshrl.u32 %v3832, 16
        %v3870 = vrot.slane %v3868, 7
        %v3871 = vshll.u32 %v3832, 16
        %v3873 = vor.u32 %v3870, %v3871
        %v3874 = vsel %vm395, %v3866, %v3873
        %v3876 = vshrl.u32 %v3833, 16
        %v3878 = vrot.slane %v3876, 7
        %v3879 = vrot.slane %v3878, 4
        %v3881 = vshrl.u32 %v3834, 16
        %v3883 = vrot.slane %v3881, 7
        %v3884 = vshll.u32 %v3834, 16
        %v3886 = vor.u32 %v3883, %v3884
        %v3887 = vsel %vm395, %v3879, %v3886
        %v3889 = vshrl.u32 %v3835, 16
        %v3891 = vrot.slane %v3889, 7
        %v3892 = vrot.slane %v3891, 4
        %v3894 = vshrl.u32 %v3836, 16
        %v3896 = vrot.slane %v3894, 7
        %v3897 = vshll.u32 %v3836, 16
        %v3899 = vor.u32 %v3896, %v3897
        %v3900 = vsel %vm395, %v3892, %v3899
        %v3902 = vshrl.u32 %v3837, 16
        %v3904 = vrot.slane %v3902, 7
        %v3905 = vrot.slane %v3904, 4
        %v3907 = vshrl.u32 %v3838, 16
        %v3909 = vrot.slane %v3907, 7
        %v3910 = vshll.u32 %v3838, 16
        %v3912 = vor.u32 %v3909, %v3910
        %v3913 = vsel %vm395, %v3905, %v3912
        %v3915 = vshrl.u32 %v3839, 16
        %v3917 = vrot.slane %v3915, 7
        %v3918 = vrot.slane %v3917, 4
        %v3920 = vshrl.u32 %v3840, 16
        %v3922 = vrot.slane %v3920, 7
        %v3923 = vshll.u32 %v3840, 16
        %v3925 = vor.u32 %v3922, %v3923
        %v3926 = vsel %vm395, %v3918, %v3925
        %v3928 = vshrl.u32 %v3841, 16
        %v3930 = vrot.slane %v3928, 7
        %v3931 = vrot.slane %v3930, 4
        %v3933 = vshrl.u32 %v3842, 16
        %v3935 = vrot.slane %v3933, 7
        %v3936 = vshll.u32 %v3842, 16
        %v3938 = vor.u32 %v3935, %v3936
        %v3939 = vsel %vm395, %v3931, %v3938
        %v3941 = vshrl.u32 %v3843, 16
        %v3943 = vrot.slane %v3941, 7
        %v3944 = vrot.slane %v3943, 4
        %v3946 = vshrl.u32 %v3844, 16
        %v3948 = vrot.slane %v3946, 7
        %v3949 = vshll.u32 %v3844, 16
        %v3951 = vor.u32 %v3948, %v3949
        %v3952 = vsel %vm395, %v3944, %v3951
        %v3954 = vshrl.u32 %v3845, 16
        %v3956 = vrot.slane %v3954, 7
        %v3957 = vrot.slane %v3956, 4
        %v3959 = vshrl.u32 %v3846, 16
        %v3961 = vrot.slane %v3959, 7
        %v3962 = vshll.u32 %v3846, 16
        %v3964 = vor.u32 %v3961, %v3962
        %v3965 = vsel %vm395, %v3957, %v3964
        %v3967 = vshrl.u32 %v3847, 16
        %v3969 = vrot.slane %v3967, 7
        %v3970 = vrot.slane %v3969, 4
        %v3972 = vshrl.u32 %v3848, 16
        %v3974 = vrot.slane %v3972, 7
        %v3975 = vshll.u32 %v3848, 16
        %v3977 = vor.u32 %v3974, %v3975
        %v3978 = vsel %vm395, %v3970, %v3977
        %v3979 = vunpack.c.l.b16 %v3861
        %v3980 = vunpack.c.l.b16 %v3874
        %v3981 = vunpack.c.l.b16 %v3887
        %v3982 = vunpack.c.l.b16 %v3900
        %v3983 = vunpack.c.l.b16 %v3913
        %v3984 = vunpack.c.l.b16 %v3926
        %v3985 = vunpack.c.l.b16 %v3939
        %v3986 = vunpack.c.l.b16 %v3952
        %v3987 = vunpack.c.l.b16 %v3965
        %v3988 = vunpack.c.l.b16 %v3978
        %v3989 = vpack.c.b16 %v3980, %v3979
        %v3990 = vpack.c.b16 %v3982, %v3981
        %v3991 = vpack.c.b16 %v3984, %v3983
        %v3992 = vpack.c.b16 %v3986, %v3985
        %v3993 = vpack.c.b16 %v3988, %v3987
        %3999 = vst [vmem:[#allocation5 + $0x30] sm:$0xff] %v3989
        %4000 = vst [vmem:[#allocation5 + $0x78] sm:$0xff] %v3990
        %4001 = vst [vmem:[#allocation5 + $0xc0] sm:$0xff] %v3991
        %4002 = vst [vmem:[#allocation5 + $0x108] sm:$0xff] %v3992
        %4003 = vst [vmem:[#allocation5 + $0x150] sm:$0xff] %v3993
        %v4004 = vld [vmem:[%s3828 + $0x4] sm:$0xf]
        %v4005 = vld [vmem:[%s3828 + $0x10] sm:$0xf]
        %v4006 = vld [vmem:[%s3828 + $0x1c] sm:$0xf]
        %v4007 = vld [vmem:[%s3828 + $0x28] sm:$0xf]
        %v4008 = vld [vmem:[%s3828 + $0x34] sm:$0xf]
        %v4009 = vld [vmem:[%s3828 + $0x40] sm:$0xf]
        %v4010 = vld [vmem:[%s3828 + $0x4c] sm:$0xf]
        %v4011 = vld [vmem:[%s3828 + $0x58] sm:$0xf]
        %v4012 = vld [vmem:[%s3828 + $0x64] sm:$0xf]
        %v4013 = vld [vmem:[%s3828 + $0x70] sm:$0xf]
        %v4024 = vunpack.c.l.b16 %v4004
        %v4025 = vunpack.c.l.b16 %v4005
        %v4026 = vunpack.c.l.b16 %v4006
        %v4027 = vunpack.c.l.b16 %v4007
        %v4028 = vunpack.c.l.b16 %v4008
        %v4029 = vunpack.c.l.b16 %v4009
        %v4030 = vunpack.c.l.b16 %v4010
        %v4031 = vunpack.c.l.b16 %v4011
        %v4032 = vunpack.c.l.b16 %v4012
        %v4033 = vunpack.c.l.b16 %v4013
        %v4034 = vpack.c.b16 %v4025, %v4024
        %v4035 = vpack.c.b16 %v4027, %v4026
        %v4036 = vpack.c.b16 %v4029, %v4028
        %v4037 = vpack.c.b16 %v4031, %v4030
        %v4038 = vpack.c.b16 %v4033, %v4032
        %4044 = vst [vmem:[#allocation5 + $0x38] sm:$0xff] %v4034
        %4045 = vst [vmem:[#allocation5 + $0x80] sm:$0xff] %v4035
        %4046 = vst [vmem:[#allocation5 + $0xc8] sm:$0xff] %v4036
        %4047 = vst [vmem:[#allocation5 + $0x110] sm:$0xff] %v4037
        %4048 = vst [vmem:[#allocation5 + $0x158] sm:$0xff] %v4038
        %v4049 = vld [vmem:[%s3828 + $0x4] sm:$0xf]
        %v4050 = vld [vmem:[%s3828 + $0x8] sm:$0x1]
        %v4051 = vld [vmem:[%s3828 + $0x10] sm:$0xf]
        %v4052 = vld [vmem:[%s3828 + $0x14] sm:$0x1]
        %v4053 = vld [vmem:[%s3828 + $0x1c] sm:$0xf]
        %v4054 = vld [vmem:[%s3828 + $0x20] sm:$0x1]
        %v4055 = vld [vmem:[%s3828 + $0x28] sm:$0xf]
        %v4056 = vld [vmem:[%s3828 + $0x2c] sm:$0x1]
        %v4057 = vld [vmem:[%s3828 + $0x34] sm:$0xf]
        %v4058 = vld [vmem:[%s3828 + $0x38] sm:$0x1]
        %v4059 = vld [vmem:[%s3828 + $0x40] sm:$0xf]
        %v4060 = vld [vmem:[%s3828 + $0x44] sm:$0x1]
        %v4061 = vld [vmem:[%s3828 + $0x4c] sm:$0xf]
        %v4062 = vld [vmem:[%s3828 + $0x50] sm:$0x1]
        %v4063 = vld [vmem:[%s3828 + $0x58] sm:$0xf]
        %v4064 = vld [vmem:[%s3828 + $0x5c] sm:$0x1]
        %v4065 = vld [vmem:[%s3828 + $0x64] sm:$0xf]
        %v4066 = vld [vmem:[%s3828 + $0x68] sm:$0x1]
        %v4067 = vld [vmem:[%s3828 + $0x70] sm:$0xf]
        %v4068 = vld [vmem:[%s3828 + $0x74] sm:$0x1]
        %v4070 = vshrl.u32 %v4049, 16
        %v4072 = vrot.slane %v4070, 4
        %v4073 = vshll.u32 %v4049, 16
        %v4075 = vrot.slane %v4073, 5
        %v4076 = vor.u32 %v4072, %v4075
        %v4077 = vrot.slane %v4076, 4
        %v4079 = vshll.u32 %v4050, 16
        %v4081 = vrot.slane %v4079, 5
        %v4082 = vsel %vm662, %v4077, %v4081
        %v4084 = vshrl.u32 %v4051, 16
        %v4086 = vrot.slane %v4084, 4
        %v4087 = vshll.u32 %v4051, 16
        %v4089 = vrot.slane %v4087, 5
        %v4090 = vor.u32 %v4086, %v4089
        %v4091 = vrot.slane %v4090, 4
        %v4093 = vshll.u32 %v4052, 16
        %v4095 = vrot.slane %v4093, 5
        %v4096 = vsel %vm662, %v4091, %v4095
        %v4098 = vshrl.u32 %v4053, 16
        %v4100 = vrot.slane %v4098, 4
        %v4101 = vshll.u32 %v4053, 16
        %v4103 = vrot.slane %v4101, 5
        %v4104 = vor.u32 %v4100, %v4103
        %v4105 = vrot.slane %v4104, 4
        %v4107 = vshll.u32 %v4054, 16
        %v4109 = vrot.slane %v4107, 5
        %v4110 = vsel %vm662, %v4105, %v4109
        %v4112 = vshrl.u32 %v4055, 16
        %v4114 = vrot.slane %v4112, 4
        %v4115 = vshll.u32 %v4055, 16
        %v4117 = vrot.slane %v4115, 5
        %v4118 = vor.u32 %v4114, %v4117
        %v4119 = vrot.slane %v4118, 4
        %v4121 = vshll.u32 %v4056, 16
        %v4123 = vrot.slane %v4121, 5
        %v4124 = vsel %vm662, %v4119, %v4123
        %v4126 = vshrl.u32 %v4057, 16
        %v4128 = vrot.slane %v4126, 4
        %v4129 = vshll.u32 %v4057, 16
        %v4131 = vrot.slane %v4129, 5
        %v4132 = vor.u32 %v4128, %v4131
        %v4133 = vrot.slane %v4132, 4
        %v4135 = vshll.u32 %v4058, 16
        %v4137 = vrot.slane %v4135, 5
        %v4138 = vsel %vm662, %v4133, %v4137
        %v4140 = vshrl.u32 %v4059, 16
        %v4142 = vrot.slane %v4140, 4
        %v4143 = vshll.u32 %v4059, 16
        %v4145 = vrot.slane %v4143, 5
        %v4146 = vor.u32 %v4142, %v4145
        %v4147 = vrot.slane %v4146, 4
        %v4149 = vshll.u32 %v4060, 16
        %v4151 = vrot.slane %v4149, 5
        %v4152 = vsel %vm662, %v4147, %v4151
        %v4154 = vshrl.u32 %v4061, 16
        %v4156 = vrot.slane %v4154, 4
        %v4157 = vshll.u32 %v4061, 16
        %v4159 = vrot.slane %v4157, 5
        %v4160 = vor.u32 %v4156, %v4159
        %v4161 = vrot.slane %v4160, 4
        %v4163 = vshll.u32 %v4062, 16
        %v4165 = vrot.slane %v4163, 5
        %v4166 = vsel %vm662, %v4161, %v4165
        %v4168 = vshrl.u32 %v4063, 16
        %v4170 = vrot.slane %v4168, 4
        %v4171 = vshll.u32 %v4063, 16
        %v4173 = vrot.slane %v4171, 5
        %v4174 = vor.u32 %v4170, %v4173
        %v4175 = vrot.slane %v4174, 4
        %v4177 = vshll.u32 %v4064, 16
        %v4179 = vrot.slane %v4177, 5
        %v4180 = vsel %vm662, %v4175, %v4179
        %v4182 = vshrl.u32 %v4065, 16
        %v4184 = vrot.slane %v4182, 4
        %v4185 = vshll.u32 %v4065, 16
        %v4187 = vrot.slane %v4185, 5
        %v4188 = vor.u32 %v4184, %v4187
        %v4189 = vrot.slane %v4188, 4
        %v4191 = vshll.u32 %v4066, 16
        %v4193 = vrot.slane %v4191, 5
        %v4194 = vsel %vm662, %v4189, %v4193
        %v4196 = vshrl.u32 %v4067, 16
        %v4198 = vrot.slane %v4196, 4
        %v4199 = vshll.u32 %v4067, 16
        %v4201 = vrot.slane %v4199, 5
        %v4202 = vor.u32 %v4198, %v4201
        %v4203 = vrot.slane %v4202, 4
        %v4205 = vshll.u32 %v4068, 16
        %v4207 = vrot.slane %v4205, 5
        %v4208 = vsel %vm662, %v4203, %v4207
        %v4209 = vunpack.c.l.b16 %v4082
        %v4210 = vunpack.c.l.b16 %v4096
        %v4211 = vunpack.c.l.b16 %v4110
        %v4212 = vunpack.c.l.b16 %v4124
        %v4213 = vunpack.c.l.b16 %v4138
        %v4214 = vunpack.c.l.b16 %v4152
        %v4215 = vunpack.c.l.b16 %v4166
        %v4216 = vunpack.c.l.b16 %v4180
        %v4217 = vunpack.c.l.b16 %v4194
        %v4218 = vunpack.c.l.b16 %v4208
        %v4219 = vpack.c.b16 %v4210, %v4209
        %v4220 = vpack.c.b16 %v4212, %v4211
        %v4221 = vpack.c.b16 %v4214, %v4213
        %v4222 = vpack.c.b16 %v4216, %v4215
        %v4223 = vpack.c.b16 %v4218, %v4217
        %4229 = vst [vmem:[#allocation5 + $0x40] sm:$0xff] %v4219
        %4230 = vst [vmem:[#allocation5 + $0x88] sm:$0xff] %v4220
        %4231 = vst [vmem:[#allocation5 + $0xd0] sm:$0xff] %v4221
        %4232 = vst [vmem:[#allocation5 + $0x118] sm:$0xff] %v4222
        %4233 = vst [vmem:[#allocation5 + $0x160] sm:$0xff] %v4223
        %v4234 = vld [vmem:[#allocation5] sm:$0xff]
        %v4235 = vld [vmem:[#allocation5 + $0x8] sm:$0xff]
        %v4236 = vld [vmem:[#allocation5 + $0x10] sm:$0xff]
        %v4237 = vld [vmem:[#allocation5 + $0x18] sm:$0xff]
        %v4238 = vld [vmem:[#allocation5 + $0x20] sm:$0xff]
        %v4239 = vld [vmem:[#allocation5 + $0x28] sm:$0xff]
        %v4240 = vld [vmem:[#allocation5 + $0x30] sm:$0xff]
        %v4241 = vld [vmem:[#allocation5 + $0x38] sm:$0xff]
        %v4242 = vld [vmem:[#allocation5 + $0x40] sm:$0xff]
        %v4243 = vld [vmem:[#allocation5 + $0x48] sm:$0xff]
        %v4244 = vld [vmem:[#allocation5 + $0x50] sm:$0xff]
        %v4245 = vld [vmem:[#allocation5 + $0x58] sm:$0xff]
        %v4246 = vld [vmem:[#allocation5 + $0x60] sm:$0xff]
        %v4247 = vld [vmem:[#allocation5 + $0x68] sm:$0xff]
        %v4248 = vld [vmem:[#allocation5 + $0x70] sm:$0xff]
        %v4249 = vld [vmem:[#allocation5 + $0x78] sm:$0xff]
        %v4250 = vld [vmem:[#allocation5 + $0x80] sm:$0xff]
        %v4251 = vld [vmem:[#allocation5 + $0x88] sm:$0xff]
        %v4252 = vld [vmem:[#allocation5 + $0x90] sm:$0xff]
        %v4253 = vld [vmem:[#allocation5 + $0x98] sm:$0xff]
        %v4254 = vld [vmem:[#allocation5 + $0xa0] sm:$0xff]
        %v4255 = vld [vmem:[#allocation5 + $0xa8] sm:$0xff]
        %v4256 = vld [vmem:[#allocation5 + $0xb0] sm:$0xff]
        %v4257 = vld [vmem:[#allocation5 + $0xb8] sm:$0xff]
        %v4258 = vld [vmem:[#allocation5 + $0xc0] sm:$0xff]
        %v4259 = vld [vmem:[#allocation5 + $0xc8] sm:$0xff]
        %v4260 = vld [vmem:[#allocation5 + $0xd0] sm:$0xff]
        %v4261 = vld [vmem:[#allocation5 + $0xd8] sm:$0xff]
        %v4262 = vld [vmem:[#allocation5 + $0xe0] sm:$0xff]
        %v4263 = vld [vmem:[#allocation5 + $0xe8] sm:$0xff]
        %v4264 = vld [vmem:[#allocation5 + $0xf0] sm:$0xff]
        %v4265 = vld [vmem:[#allocation5 + $0xf8] sm:$0xff]
        %v4266 = vld [vmem:[#allocation5 + $0x100] sm:$0xff]
        %v4267 = vld [vmem:[#allocation5 + $0x108] sm:$0xff]
        %v4268 = vld [vmem:[#allocation5 + $0x110] sm:$0xff]
        %v4269 = vld [vmem:[#allocation5 + $0x118] sm:$0xff]
        %v4270 = vld [vmem:[#allocation5 + $0x120] sm:$0xff]
        %v4271 = vld [vmem:[#allocation5 + $0x128] sm:$0xff]
        %v4272 = vld [vmem:[#allocation5 + $0x130] sm:$0xff]
        %v4273 = vld [vmem:[#allocation5 + $0x138] sm:$0xff]
        %v4274 = vld [vmem:[#allocation5 + $0x140] sm:$0xff]
        %v4275 = vld [vmem:[#allocation5 + $0x148] sm:$0xff]
        %v4276 = vld [vmem:[#allocation5 + $0x150] sm:$0xff]
        %v4277 = vld [vmem:[#allocation5 + $0x158] sm:$0xff]
        %v4278 = vld [vmem:[#allocation5 + $0x160] sm:$0xff]
        %v4279 = vld [vmem:[#allocation10] sm:$0xf]
        %v4280 = vld [vmem:[#allocation10 + $0x4] sm:$0xf]
        %v4281 = vld [vmem:[#allocation10 + $0x8] sm:$0xf]
        %v4282 = vld [vmem:[#allocation10 + $0xc] sm:$0xf]
        %v4283 = vld [vmem:[#allocation10 + $0x10] sm:$0xf]
        %v4284 = vld [vmem:[#allocation10 + $0x14] sm:$0xf]
        %v4285 = vld [vmem:[#allocation10 + $0x18] sm:$0xf]
        %v4286 = vld [vmem:[#allocation10 + $0x1c] sm:$0xf]
        %v4287 = vld [vmem:[#allocation10 + $0x20] sm:$0xf]
        %v4288 = vld [vmem:[#allocation10 + $0x24] sm:$0xf]
        %v4289 = vld [vmem:[#allocation10 + $0x28] sm:$0xf]
        %v4290 = vld [vmem:[#allocation10 + $0x2c] sm:$0xf]
        %v4291 = vld [vmem:[#allocation10 + $0x30] sm:$0xf]
        %v4292 = vld [vmem:[#allocation10 + $0x34] sm:$0xf]
        %v4293 = vld [vmem:[#allocation10 + $0x38] sm:$0xf]
        %v4294 = vld [vmem:[#allocation10 + $0x3c] sm:$0xf]
        %v4295 = vld [vmem:[#allocation10 + $0x40] sm:$0xf]
        %v4296 = vld [vmem:[#allocation10 + $0x44] sm:$0xf]
        %v4297 = vld [vmem:[#allocation10 + $0x48] sm:$0xf]
        %v4298 = vld [vmem:[#allocation10 + $0x4c] sm:$0xf]
        %v4299 = vld [vmem:[#allocation10 + $0x50] sm:$0xf]
        %v4300 = vld [vmem:[#allocation10 + $0x54] sm:$0xf]
        %v4301 = vld [vmem:[#allocation10 + $0x58] sm:$0xf]
        %v4302 = vld [vmem:[#allocation10 + $0x5c] sm:$0xf]
        %v4303 = vld [vmem:[#allocation10 + $0x60] sm:$0xf]
        %v4304 = vld [vmem:[#allocation10 + $0x64] sm:$0xf]
        %v4305 = vld [vmem:[#allocation10 + $0x68] sm:$0xf]
        %v4306 = vld [vmem:[#allocation10 + $0x6c] sm:$0xf]
        %v4307 = vld [vmem:[#allocation10 + $0x70] sm:$0xf]
        %v4308 = vld [vmem:[#allocation10 + $0x74] sm:$0xf]
        %v4309 = vld [vmem:[#allocation10 + $0x78] sm:$0xf]
        %v4310 = vld [vmem:[#allocation10 + $0x7c] sm:$0xf]
        %v4311 = vld [vmem:[#allocation10 + $0x80] sm:$0xf]
        %v4312 = vld [vmem:[#allocation10 + $0x84] sm:$0xf]
        %v4313 = vld [vmem:[#allocation10 + $0x88] sm:$0xf]
        %v4314 = vld [vmem:[#allocation10 + $0x8c] sm:$0xf]
        %v4315 = vld [vmem:[#allocation10 + $0x90] sm:$0xf]
        %v4316 = vld [vmem:[#allocation10 + $0x94] sm:$0xf]
        %v4317 = vld [vmem:[#allocation10 + $0x98] sm:$0xf]
        %v4318 = vld [vmem:[#allocation10 + $0x9c] sm:$0xf]
        %v4319 = vld [vmem:[#allocation10 + $0xa0] sm:$0xf]
        %v4320 = vld [vmem:[#allocation10 + $0xa4] sm:$0xf]
        %v4321 = vld [vmem:[#allocation10 + $0xa8] sm:$0xf]
        %v4322 = vld [vmem:[#allocation10 + $0xac] sm:$0xf]
        %v4323 = vld [vmem:[#allocation10 + $0xb0] sm:$0xf]
        %v4324 = vld [vmem:[#allocation10 + $0xb4] sm:$0xf]
        %v4325 = vld [vmem:[#allocation10 + $0xb8] sm:$0xf]
        %v4326 = vld [vmem:[#allocation10 + $0xbc] sm:$0xf]
        %v4327 = vld [vmem:[#allocation10 + $0xc0] sm:$0xf]
        %v4328 = vld [vmem:[#allocation10 + $0xc4] sm:$0xf]
        %v4329 = vld [vmem:[#allocation10 + $0xc8] sm:$0xf]
        %v4330 = vld [vmem:[#allocation10 + $0xcc] sm:$0xf]
        %v4331 = vld [vmem:[#allocation10 + $0xd0] sm:$0xf]
        %v4332 = vld [vmem:[#allocation10 + $0xd4] sm:$0xf]
        %v4333 = vld [vmem:[#allocation10 + $0xd8] sm:$0xf]
        %v4334 = vld [vmem:[#allocation10 + $0xdc] sm:$0xf]
        %v4335 = vld [vmem:[#allocation10 + $0xe0] sm:$0xf]
        %v4336 = vld [vmem:[#allocation10 + $0xe4] sm:$0xf]
        %v4337 = vld [vmem:[#allocation10 + $0xe8] sm:$0xf]
        %v4338 = vld [vmem:[#allocation10 + $0xec] sm:$0xf]
        %v4339 = vld [vmem:[#allocation10 + $0xf0] sm:$0xf]
        %v4340 = vld [vmem:[#allocation10 + $0xf4] sm:$0xf]
        %v4341 = vld [vmem:[#allocation10 + $0xf8] sm:$0xf]
        %v4342 = vld [vmem:[#allocation10 + $0xfc] sm:$0xf]
        %v4343 = vld [vmem:[#allocation10 + $0x100] sm:$0xf]
        %v4344 = vld [vmem:[#allocation10 + $0x104] sm:$0xf]
        %v4345 = vld [vmem:[#allocation10 + $0x108] sm:$0xf]
        %v4346 = vld [vmem:[#allocation10 + $0x10c] sm:$0xf]
        %v4347 = vld [vmem:[#allocation10 + $0x110] sm:$0xf]
        %v4348 = vld [vmem:[#allocation10 + $0x114] sm:$0xf]
        %v4349 = vld [vmem:[#allocation10 + $0x118] sm:$0xf]
        %v4350 = vld [vmem:[#allocation10 + $0x11c] sm:$0xf]
        %v4351 = vld [vmem:[#allocation10 + $0x120] sm:$0xf]
        %v4352 = vld [vmem:[#allocation10 + $0x124] sm:$0xf]
        %v4353 = vld [vmem:[#allocation10 + $0x128] sm:$0xf]
        %v4354 = vld [vmem:[#allocation10 + $0x12c] sm:$0xf]
        %v4355 = vld [vmem:[#allocation10 + $0x130] sm:$0xf]
        %v4356 = vld [vmem:[#allocation10 + $0x134] sm:$0xf]
        %v4357 = vld [vmem:[#allocation10 + $0x138] sm:$0xf]
        %v4358 = vld [vmem:[#allocation10 + $0x13c] sm:$0xf]
        %v4359 = vld [vmem:[#allocation10 + $0x140] sm:$0xf]
        %v4360 = vld [vmem:[#allocation10 + $0x144] sm:$0xf]
        %v4361 = vld [vmem:[#allocation10 + $0x148] sm:$0xf]
        %v4362 = vld [vmem:[#allocation10 + $0x14c] sm:$0xf]
        %v4363 = vld [vmem:[#allocation10 + $0x150] sm:$0xf]
        %v4364 = vld [vmem:[#allocation10 + $0x154] sm:$0xf]
        %v4365 = vld [vmem:[#allocation10 + $0x158] sm:$0xf]
        %v4366 = vld [vmem:[#allocation10 + $0x15c] sm:$0xf]
        %v4367 = vld [vmem:[#allocation10 + $0x160] sm:$0xf]
        %v4368 = vld [vmem:[#allocation10 + $0x164] sm:$0xf]
        %v4369 = vld [vmem:[#allocation10 + $0x168] sm:$0xf]
        %v4370 = vld [vmem:[#allocation10 + $0x16c] sm:$0xf]
        %v4371 = vld [vmem:[#allocation10 + $0x170] sm:$0xf]
        %v4372 = vld [vmem:[#allocation10 + $0x174] sm:$0xf]
        %v4373 = vld [vmem:[#allocation10 + $0x178] sm:$0xf]
        %v4374 = vld [vmem:[#allocation10 + $0x17c] sm:$0xf]
        %v4375 = vld [vmem:[#allocation10 + $0x180] sm:$0xf]
        %v4376 = vld [vmem:[#allocation10 + $0x184] sm:$0xf]
        %v4377 = vld [vmem:[#allocation10 + $0x188] sm:$0xf]
        %v4378 = vld [vmem:[#allocation10 + $0x18c] sm:$0xf]
        %v4379 = vld [vmem:[#allocation10 + $0x190] sm:$0xf]
        %v4380 = vld [vmem:[#allocation10 + $0x194] sm:$0xf]
        %v4381 = vld [vmem:[#allocation10 + $0x198] sm:$0xf]
        %v4382 = vld [vmem:[#allocation10 + $0x19c] sm:$0xf]
        %v4383 = vld [vmem:[#allocation10 + $0x1a0] sm:$0xf]
        %v4384 = vld [vmem:[#allocation10 + $0x1a4] sm:$0xf]
        %v4385 = vld [vmem:[#allocation10 + $0x1a8] sm:$0xf]
        %v4386 = vld [vmem:[#allocation10 + $0x1ac] sm:$0xf]
        %v4387 = vld [vmem:[#allocation10 + $0x1b0] sm:$0xf]
        %v4388 = vld [vmem:[#allocation10 + $0x1b4] sm:$0xf]
        %v4389 = vld [vmem:[#allocation10 + $0x1b8] sm:$0xf]
        %v4390 = vld [vmem:[#allocation10 + $0x1bc] sm:$0xf]
        %v4391 = vld [vmem:[#allocation10 + $0x1c0] sm:$0xf]
        %v4392 = vld [vmem:[#allocation10 + $0x1c4] sm:$0xf]
        %v4393 = vld [vmem:[#allocation10 + $0x1c8] sm:$0xf]
        %v4394 = vld [vmem:[#allocation10 + $0x1cc] sm:$0xf]
        %v4395 = vld [vmem:[#allocation10 + $0x1d0] sm:$0xf]
        %v4396 = vld [vmem:[#allocation10 + $0x1d4] sm:$0xf]
        %v4397 = vld [vmem:[#allocation10 + $0x1d8] sm:$0xf]
        %v4398 = vld [vmem:[#allocation10 + $0x1dc] sm:$0xf]
        %v4399 = vld [vmem:[#allocation10 + $0x1e0] sm:$0xf]
        %v4400 = vld [vmem:[#allocation10 + $0x1e4] sm:$0xf]
        %v4401 = vld [vmem:[#allocation10 + $0x1e8] sm:$0xf]
        %v4402 = vld [vmem:[#allocation10 + $0x1ec] sm:$0xf]
        %v4403 = vld [vmem:[#allocation10 + $0x1f0] sm:$0xf]
        %v4404 = vld [vmem:[#allocation10 + $0x1f4] sm:$0xf]
        %v4405 = vld [vmem:[#allocation10 + $0x1f8] sm:$0xf]
        %v4406 = vld [vmem:[#allocation10 + $0x1fc] sm:$0xf]
        %v4407 = vld [vmem:[#allocation10 + $0x200] sm:$0xf]
        %v4408 = vld [vmem:[#allocation10 + $0x204] sm:$0xf]
        %v4409 = vld [vmem:[#allocation10 + $0x208] sm:$0xf]
        %v4410 = vld [vmem:[#allocation10 + $0x20c] sm:$0xf]
        %v4411 = vld [vmem:[#allocation10 + $0x210] sm:$0xf]
        %v4412 = vld [vmem:[#allocation10 + $0x214] sm:$0xf]
        %v4413 = vld [vmem:[#allocation10 + $0x218] sm:$0xf]
        %v4414 = vld [vmem:[#allocation10 + $0x21c] sm:$0xf]
        %v4415 = vld [vmem:[#allocation10 + $0x220] sm:$0xf]
        %v4416 = vld [vmem:[#allocation10 + $0x224] sm:$0xf]
        %v4417 = vld [vmem:[#allocation10 + $0x228] sm:$0xf]
        %v4418 = vld [vmem:[#allocation10 + $0x22c] sm:$0xf]
        %v4419 = vld [vmem:[#allocation10 + $0x230] sm:$0xf]
        %v4420 = vld [vmem:[#allocation10 + $0x234] sm:$0xf]
        %v4421 = vld [vmem:[#allocation10 + $0x238] sm:$0xf]
        %v4422 = vld [vmem:[#allocation10 + $0x23c] sm:$0xf]
        %v4567 = vunpack.c.l.b16 %v4279
        %v4568 = vunpack.c.l.b16 %v4280
        %v4569 = vunpack.c.l.b16 %v4281
        %v4570 = vunpack.c.l.b16 %v4282
        %v4571 = vunpack.c.l.b16 %v4283
        %v4572 = vunpack.c.l.b16 %v4284
        %v4573 = vunpack.c.l.b16 %v4285
        %v4574 = vunpack.c.l.b16 %v4286
        %v4575 = vunpack.c.l.b16 %v4287
        %v4576 = vunpack.c.l.b16 %v4288
        %v4577 = vunpack.c.l.b16 %v4289
        %v4578 = vunpack.c.l.b16 %v4290
        %v4579 = vunpack.c.l.b16 %v4291
        %v4580 = vunpack.c.l.b16 %v4292
        %v4581 = vunpack.c.l.b16 %v4293
        %v4582 = vunpack.c.l.b16 %v4294
        %v4583 = vunpack.c.l.b16 %v4295
        %v4584 = vunpack.c.l.b16 %v4296
        %v4585 = vunpack.c.l.b16 %v4297
        %v4586 = vunpack.c.l.b16 %v4298
        %v4587 = vunpack.c.l.b16 %v4299
        %v4588 = vunpack.c.l.b16 %v4300
        %v4589 = vunpack.c.l.b16 %v4301
        %v4590 = vunpack.c.l.b16 %v4302
        %v4591 = vunpack.c.l.b16 %v4303
        %v4592 = vunpack.c.l.b16 %v4304
        %v4593 = vunpack.c.l.b16 %v4305
        %v4594 = vunpack.c.l.b16 %v4306
        %v4595 = vunpack.c.l.b16 %v4307
        %v4596 = vunpack.c.l.b16 %v4308
        %v4597 = vunpack.c.l.b16 %v4309
        %v4598 = vunpack.c.l.b16 %v4310
        %v4599 = vunpack.c.l.b16 %v4311
        %v4600 = vunpack.c.l.b16 %v4312
        %v4601 = vunpack.c.l.b16 %v4313
        %v4602 = vunpack.c.l.b16 %v4314
        %v4603 = vunpack.c.l.b16 %v4315
        %v4604 = vunpack.c.l.b16 %v4316
        %v4605 = vunpack.c.l.b16 %v4317
        %v4606 = vunpack.c.l.b16 %v4318
        %v4607 = vunpack.c.l.b16 %v4319
        %v4608 = vunpack.c.l.b16 %v4320
        %v4609 = vunpack.c.l.b16 %v4321
        %v4610 = vunpack.c.l.b16 %v4322
        %v4611 = vunpack.c.l.b16 %v4323
        %v4612 = vunpack.c.l.b16 %v4324
        %v4613 = vunpack.c.l.b16 %v4325
        %v4614 = vunpack.c.l.b16 %v4326
        %v4615 = vunpack.c.l.b16 %v4327
        %v4616 = vunpack.c.l.b16 %v4328
        %v4617 = vunpack.c.l.b16 %v4329
        %v4618 = vunpack.c.l.b16 %v4330
        %v4619 = vunpack.c.l.b16 %v4331
        %v4620 = vunpack.c.l.b16 %v4332
        %v4621 = vunpack.c.l.b16 %v4333
        %v4622 = vunpack.c.l.b16 %v4334
        %v4623 = vunpack.c.l.b16 %v4335
        %v4624 = vunpack.c.l.b16 %v4336
        %v4625 = vunpack.c.l.b16 %v4337
        %v4626 = vunpack.c.l.b16 %v4338
        %v4627 = vunpack.c.l.b16 %v4339
        %v4628 = vunpack.c.l.b16 %v4340
        %v4629 = vunpack.c.l.b16 %v4341
        %v4630 = vunpack.c.l.b16 %v4342
        %v4631 = vunpack.c.l.b16 %v4343
        %v4632 = vunpack.c.l.b16 %v4344
        %v4633 = vunpack.c.l.b16 %v4345
        %v4634 = vunpack.c.l.b16 %v4346
        %v4635 = vunpack.c.l.b16 %v4347
        %v4636 = vunpack.c.l.b16 %v4348
        %v4637 = vunpack.c.l.b16 %v4349
        %v4638 = vunpack.c.l.b16 %v4350
        %v4639 = vunpack.c.l.b16 %v4351
        %v4640 = vunpack.c.l.b16 %v4352
        %v4641 = vunpack.c.l.b16 %v4353
        %v4642 = vunpack.c.l.b16 %v4354
        %v4643 = vunpack.c.l.b16 %v4355
        %v4644 = vunpack.c.l.b16 %v4356
        %v4645 = vunpack.c.l.b16 %v4357
        %v4646 = vunpack.c.l.b16 %v4358
        %v4647 = vunpack.c.l.b16 %v4359
        %v4648 = vunpack.c.l.b16 %v4360
        %v4649 = vunpack.c.l.b16 %v4361
        %v4650 = vunpack.c.l.b16 %v4362
        %v4651 = vunpack.c.l.b16 %v4363
        %v4652 = vunpack.c.l.b16 %v4364
        %v4653 = vunpack.c.l.b16 %v4365
        %v4654 = vunpack.c.l.b16 %v4366
        %v4655 = vunpack.c.l.b16 %v4367
        %v4656 = vunpack.c.l.b16 %v4368
        %v4657 = vunpack.c.l.b16 %v4369
        %v4658 = vunpack.c.l.b16 %v4370
        %v4659 = vunpack.c.l.b16 %v4371
        %v4660 = vunpack.c.l.b16 %v4372
        %v4661 = vunpack.c.l.b16 %v4373
        %v4662 = vunpack.c.l.b16 %v4374
        %v4663 = vunpack.c.l.b16 %v4375
        %v4664 = vunpack.c.l.b16 %v4376
        %v4665 = vunpack.c.l.b16 %v4377
        %v4666 = vunpack.c.l.b16 %v4378
        %v4667 = vunpack.c.l.b16 %v4379
        %v4668 = vunpack.c.l.b16 %v4380
        %v4669 = vunpack.c.l.b16 %v4381
        %v4670 = vunpack.c.l.b16 %v4382
        %v4671 = vunpack.c.l.b16 %v4383
        %v4672 = vunpack.c.l.b16 %v4384
        %v4673 = vunpack.c.l.b16 %v4385
        %v4674 = vunpack.c.l.b16 %v4386
        %v4675 = vunpack.c.l.b16 %v4387
        %v4676 = vunpack.c.l.b16 %v4388
        %v4677 = vunpack.c.l.b16 %v4389
        %v4678 = vunpack.c.l.b16 %v4390
        %v4679 = vunpack.c.l.b16 %v4391
        %v4680 = vunpack.c.l.b16 %v4392
        %v4681 = vunpack.c.l.b16 %v4393
        %v4682 = vunpack.c.l.b16 %v4394
        %v4683 = vunpack.c.l.b16 %v4395
        %v4684 = vunpack.c.l.b16 %v4396
        %v4685 = vunpack.c.l.b16 %v4397
        %v4686 = vunpack.c.l.b16 %v4398
        %v4687 = vunpack.c.l.b16 %v4399
        %v4688 = vunpack.c.l.b16 %v4400
        %v4689 = vunpack.c.l.b16 %v4401
        %v4690 = vunpack.c.l.b16 %v4402
        %v4691 = vunpack.c.l.b16 %v4403
        %v4692 = vunpack.c.l.b16 %v4404
        %v4693 = vunpack.c.l.b16 %v4405
        %v4694 = vunpack.c.l.b16 %v4406
        %v4695 = vunpack.c.l.b16 %v4407
        %v4696 = vunpack.c.l.b16 %v4408
        %v4697 = vunpack.c.l.b16 %v4409
        %v4698 = vunpack.c.l.b16 %v4410
        %v4699 = vunpack.c.l.b16 %v4411
        %v4700 = vunpack.c.l.b16 %v4412
        %v4701 = vunpack.c.l.b16 %v4413
        %v4702 = vunpack.c.l.b16 %v4414
        %v4703 = vunpack.c.l.b16 %v4415
        %v4704 = vunpack.c.l.b16 %v4416
        %v4705 = vunpack.c.l.b16 %v4417
        %v4706 = vunpack.c.l.b16 %v4418
        %v4707 = vunpack.c.l.b16 %v4419
        %v4708 = vunpack.c.l.b16 %v4420
        %v4709 = vunpack.c.l.b16 %v4421
        %v4710 = vunpack.c.l.b16 %v4422
        %v4711 = vpack.c.b16 %v4568, %v4567
        %v4712 = vpack.c.b16 %v4570, %v4569
        %v4713 = vpack.c.b16 %v4572, %v4571
        %v4714 = vpack.c.b16 %v4574, %v4573
        %v4715 = vpack.c.b16 %v4576, %v4575
        %v4716 = vpack.c.b16 %v4578, %v4577
        %v4717 = vpack.c.b16 %v4580, %v4579
        %v4718 = vpack.c.b16 %v4582, %v4581
        %v4719 = vpack.c.b16 %v4584, %v4583
        %v4720 = vpack.c.b16 %v4586, %v4585
        %v4721 = vpack.c.b16 %v4588, %v4587
        %v4722 = vpack.c.b16 %v4590, %v4589
        %v4723 = vpack.c.b16 %v4592, %v4591
        %v4724 = vpack.c.b16 %v4594, %v4593
        %v4725 = vpack.c.b16 %v4596, %v4595
        %v4726 = vpack.c.b16 %v4598, %v4597
        %v4727 = vpack.c.b16 %v4600, %v4599
        %v4728 = vpack.c.b16 %v4602, %v4601
        %v4729 = vpack.c.b16 %v4604, %v4603
        %v4730 = vpack.c.b16 %v4606, %v4605
        %v4731 = vpack.c.b16 %v4608, %v4607
        %v4732 = vpack.c.b16 %v4610, %v4609
        %v4733 = vpack.c.b16 %v4612, %v4611
        %v4734 = vpack.c.b16 %v4614, %v4613
        %v4735 = vpack.c.b16 %v4616, %v4615
        %v4736 = vpack.c.b16 %v4618, %v4617
        %v4737 = vpack.c.b16 %v4620, %v4619
        %v4738 = vpack.c.b16 %v4622, %v4621
        %v4739 = vpack.c.b16 %v4624, %v4623
        %v4740 = vpack.c.b16 %v4626, %v4625
        %v4741 = vpack.c.b16 %v4628, %v4627
        %v4742 = vpack.c.b16 %v4630, %v4629
        %v4743 = vpack.c.b16 %v4632, %v4631
        %v4744 = vpack.c.b16 %v4634, %v4633
        %v4745 = vpack.c.b16 %v4636, %v4635
        %v4746 = vpack.c.b16 %v4638, %v4637
        %v4747 = vpack.c.b16 %v4640, %v4639
        %v4748 = vpack.c.b16 %v4642, %v4641
        %v4749 = vpack.c.b16 %v4644, %v4643
        %v4750 = vpack.c.b16 %v4646, %v4645
        %v4751 = vpack.c.b16 %v4648, %v4647
        %v4752 = vpack.c.b16 %v4650, %v4649
        %v4753 = vpack.c.b16 %v4652, %v4651
        %v4754 = vpack.c.b16 %v4654, %v4653
        %v4755 = vpack.c.b16 %v4656, %v4655
        %v4756 = vpack.c.b16 %v4658, %v4657
        %v4757 = vpack.c.b16 %v4660, %v4659
        %v4758 = vpack.c.b16 %v4662, %v4661
        %v4759 = vpack.c.b16 %v4664, %v4663
        %v4760 = vpack.c.b16 %v4666, %v4665
        %v4761 = vpack.c.b16 %v4668, %v4667
        %v4762 = vpack.c.b16 %v4670, %v4669
        %v4763 = vpack.c.b16 %v4672, %v4671
        %v4764 = vpack.c.b16 %v4674, %v4673
        %v4765 = vpack.c.b16 %v4676, %v4675
        %v4766 = vpack.c.b16 %v4678, %v4677
        %v4767 = vpack.c.b16 %v4680, %v4679
        %v4768 = vpack.c.b16 %v4682, %v4681
        %v4769 = vpack.c.b16 %v4684, %v4683
        %v4770 = vpack.c.b16 %v4686, %v4685
        %v4771 = vpack.c.b16 %v4688, %v4687
        %v4772 = vpack.c.b16 %v4690, %v4689
        %v4773 = vpack.c.b16 %v4692, %v4691
        %v4774 = vpack.c.b16 %v4694, %v4693
        %v4775 = vpack.c.b16 %v4696, %v4695
        %v4776 = vpack.c.b16 %v4698, %v4697
        %v4777 = vpack.c.b16 %v4700, %v4699
        %v4778 = vpack.c.b16 %v4702, %v4701
        %v4779 = vpack.c.b16 %v4704, %v4703
        %v4780 = vpack.c.b16 %v4706, %v4705
        %v4781 = vpack.c.b16 %v4708, %v4707
        %v4782 = vpack.c.b16 %v4710, %v4709
        %4855 = vmatprep.subr.bf16.mxu0 0
        %4856 = vmatpush1.bf16.msra.mxu0 %v4711
        %4857 = vmatprep.subr.bf16.mxu0 0
        %4858 = vmatpush1.bf16.msra.mxu0 %v4712
        %4859 = vmatprep.subr.bf16.mxu0 0
        %4860 = vmatpush1.bf16.msra.mxu0 %v4713
        %4861 = vmatprep.subr.bf16.mxu0 0
        %4862 = vmatpush1.bf16.msra.mxu0 %v4714
        %4863 = vmatprep.subr.bf16.mxu0 0
        %4864 = vmatpush1.bf16.msra.mxu0 %v4715
        %4865 = vmatprep.subr.bf16.mxu0 0
        %4866 = vmatpush1.bf16.msra.mxu0 %v4716
        %4867 = vmatprep.subr.bf16.mxu0 0
        %4868 = vmatpush1.bf16.msra.mxu0 %v4717
        %4869 = vmatprep.subr.bf16.mxu0 0
        %4870 = vmatpush1.bf16.msra.mxu0 %v4718
        %4871 = vmatprep.subr.bf16.mxu0 0
        %4872 = vmatpush1.bf16.msra.mxu0 %v4719
        %4873 = vmatprep.subr.bf16.mxu0 0
        %4874 = vmatpush1.bf16.msra.mxu0 %v4720
        %4875 = vmatprep.subr.bf16.mxu0 0
        %4876 = vmatpush1.bf16.msra.mxu0 %v4721
        %4877 = vmatprep.subr.bf16.mxu0 0
        %4878 = vmatpush1.bf16.msra.mxu0 %v4722
        %4879 = vmatprep.subr.bf16.mxu0 0
        %4880 = vmatpush1.bf16.msra.mxu0 %v4723
        %4881 = vmatprep.subr.bf16.mxu0 0
        %4882 = vmatpush1.bf16.msra.mxu0 %v4724
        %4883 = vmatprep.subr.bf16.mxu0 0
        %4884 = vmatpush1.bf16.msra.mxu0 %v4725
        %4885 = vmatprep.subr.bf16.mxu0 0
        %4886 = vmatpush1.bf16.msra.mxu0 %v4726
        %4887 = vmatprep.mubr.bf16.mxu0 %v4235
        %4888 = vmatmul.mubr.bf16.gmra.mrb[0].mxu0 %v4234
        %v4889 = vpop.f32.mrb[0].mxu0
        %v4890 = vadd.f32 0.0, %v4889
        %v4891 = vpop.f32.mrb[0].mxu0
        %v4892 = vpop.f32.mrb[0].mxu0
        %v4893 = vadd.f32 0.0, %v4892
        %v4894 = vpop.f32.mrb[0].mxu0
        %4895 = vmatprep.mubr.bf16.mxu0 %v4244
        %4896 = vmatmul.mubr.bf16.gmra.mrb[0].mxu0 %v4243
        %v4897 = vpop.f32.mrb[0].mxu0
        %v4898 = vadd.f32 0.0, %v4897
        %v4899 = vpop.f32.mrb[0].mxu0
        %v4900 = vpop.f32.mrb[0].mxu0
        %v4901 = vadd.f32 0.0, %v4900
        %v4902 = vpop.f32.mrb[0].mxu0
        %4903 = vmatprep.mubr.bf16.mxu0 %v4253
        %4904 = vmatmul.mubr.bf16.gmra.mrb[0].mxu0 %v4252
        %v4905 = vpop.f32.mrb[0].mxu0
        %v4906 = vadd.f32 0.0, %v4905
        %v4907 = vpop.f32.mrb[0].mxu0
        %v4908 = vpop.f32.mrb[0].mxu0
        %v4909 = vadd.f32 0.0, %v4908
        %v4910 = vpop.f32.mrb[0].mxu0
        %4911 = vmatprep.mubr.bf16.mxu0 %v4262
        %4912 = vmatmul.mubr.bf16.gmra.mrb[0].mxu0 %v4261
        %v4913 = vpop.f32.mrb[0].mxu0
        %v4914 = vadd.f32 0.0, %v4913
        %v4915 = vpop.f32.mrb[0].mxu0
        %v4916 = vpop.f32.mrb[0].mxu0
        %v4917 = vadd.f32 0.0, %v4916
        %v4918 = vpop.f32.mrb[0].mxu0
        %4919 = vmatprep.mubr.bf16.mxu0 %v4271
        %4920 = vmatmul.mubr.bf16.gmra.mrb[0].mxu0 %v4270
        %v4921 = vpop.f32.mrb[0].mxu0
        %v4922 = vadd.f32 0.0, %v4921
        %v4923 = vpop.f32.mrb[0].mxu0
        %v4924 = vpop.f32.mrb[0].mxu0
        %v4925 = vadd.f32 0.0, %v4924
        %v4926 = vpop.f32.mrb[0].mxu0
        %4927 = vdwg.mxu0
        %4928 = vmatprep.subr.bf16.mxu0 0
        %4929 = vmatpush1.bf16.msra.mxu0 %v4727
        %4930 = vmatprep.subr.bf16.mxu0 0
        %4931 = vmatpush1.bf16.msra.mxu0 %v4728
        %4932 = vmatprep.subr.bf16.mxu0 0
        %4933 = vmatpush1.bf16.msra.mxu0 %v4729
        %4934 = vmatprep.subr.bf16.mxu0 0
        %4935 = vmatpush1.bf16.msra.mxu0 %v4730
        %4936 = vmatprep.subr.bf16.mxu0 0
        %4937 = vmatpush1.bf16.msra.mxu0 %v4731
        %4938 = vmatprep.subr.bf16.mxu0 0
        %4939 = vmatpush1.bf16.msra.mxu0 %v4732
        %4940 = vmatprep.subr.bf16.mxu0 0
        %4941 = vmatpush1.bf16.msra.mxu0 %v4733
        %4942 = vmatprep.subr.bf16.mxu0 0
        %4943 = vmatpush1.bf16.msra.mxu0 %v4734
        %4944 = vmatprep.subr.bf16.mxu0 0
        %4945 = vmatpush1.bf16.msra.mxu0 %v4735
        %4946 = vmatprep.subr.bf16.mxu0 0
        %4947 = vmatpush1.bf16.msra.mxu0 %v4736
        %4948 = vmatprep.subr.bf16.mxu0 0
        %4949 = vmatpush1.bf16.msra.mxu0 %v4737
        %4950 = vmatprep.subr.bf16.mxu0 0
        %4951 = vmatpush1.bf16.msra.mxu0 %v4738
        %4952 = vmatprep.subr.bf16.mxu0 0
        %4953 = vmatpush1.bf16.msra.mxu0 %v4739
        %4954 = vmatprep.subr.bf16.mxu0 0
        %4955 = vmatpush1.bf16.msra.mxu0 %v4740
        %4956 = vmatprep.subr.bf16.mxu0 0
        %4957 = vmatpush1.bf16.msra.mxu0 %v4741
        %4958 = vmatprep.subr.bf16.mxu0 0
        %4959 = vmatpush1.bf16.msra.mxu0 %v4742
        %4960 = vmatprep.mubr.bf16.mxu0 %v4237
        %4961 = vmatmul.mubr.bf16.gmra.mrb[0].mxu0 %v4236
        %v4962 = vpop.f32.mrb[0].mxu0
        %v4963 = vadd.f32 %v4890, %v4962
        %v4964 = vpop.f32.mrb[0].mxu0
        %v4965 = vpop.f32.mrb[0].mxu0
        %v4966 = vadd.f32 %v4893, %v4965
        %v4967 = vpop.f32.mrb[0].mxu0
        %4968 = vmatprep.mubr.bf16.mxu0 %v4246
        %4969 = vmatmul.mubr.bf16.gmra.mrb[0].mxu0 %v4245
        %v4970 = vpop.f32.mrb[0].mxu0
        %v4971 = vadd.f32 %v4898, %v4970
        %v4972 = vpop.f32.mrb[0].mxu0
        %v4973 = vpop.f32.mrb[0].mxu0
        %v4974 = vadd.f32 %v4901, %v4973
        %v4975 = vpop.f32.mrb[0].mxu0
        %4976 = vmatprep.mubr.bf16.mxu0 %v4255
        %4977 = vmatmul.mubr.bf16.gmra.mrb[0].mxu0 %v4254
        %v4978 = vpop.f32.mrb[0].mxu0
        %v4979 = vadd.f32 %v4906, %v4978
        %v4980 = vpop.f32.mrb[0].mxu0
        %v4981 = vpop.f32.mrb[0].mxu0
        %v4982 = vadd.f32 %v4909, %v4981
        %v4983 = vpop.f32.mrb[0].mxu0
        %4984 = vmatprep.mubr.bf16.mxu0 %v4264
        %4985 = vmatmul.mubr.bf16.gmra.mrb[0].mxu0 %v4263
        %v4986 = vpop.f32.mrb[0].mxu0
        %v4987 = vadd.f32 %v4914, %v4986
        %v4988 = vpop.f32.mrb[0].mxu0
        %v4989 = vpop.f32.mrb[0].mxu0
        %v4990 = vadd.f32 %v4917, %v4989
        %v4991 = vpop.f32.mrb[0].mxu0
        %4992 = vmatprep.mubr.bf16.mxu0 %v4273
        %4993 = vmatmul.mubr.bf16.gmra.mrb[0].mxu0 %v4272
        %v4994 = vpop.f32.mrb[0].mxu0
        %v4995 = vadd.f32 %v4922, %v4994
        %v4996 = vpop.f32.mrb[0].mxu0
        %v4997 = vpop.f32.mrb[0].mxu0
        %v4998 = vadd.f32 %v4925, %v4997
        %v4999 = vpop.f32.mrb[0].mxu0
        %5000 = vdwg.mxu0
        %5001 = vmatprep.subr.bf16.mxu0 0
        %5002 = vmatpush1.bf16.msra.mxu0 %v4743
        %5003 = vmatprep.subr.bf16.mxu0 0
        %5004 = vmatpush1.bf16.msra.mxu0 %v4744
        %5005 = vmatprep.subr.bf16.mxu0 0
        %5006 = vmatpush1.bf16.msra.mxu0 %v4745
        %5007 = vmatprep.subr.bf16.mxu0 0
        %5008 = vmatpush1.bf16.msra.mxu0 %v4746
        %5009 = vmatprep.subr.bf16.mxu0 0
        %5010 = vmatpush1.bf16.msra.mxu0 %v4747
        %5011 = vmatprep.subr.bf16.mxu0 0
        %5012 = vmatpush1.bf16.msra.mxu0 %v4748
        %5013 = vmatprep.subr.bf16.mxu0 0
        %5014 = vmatpush1.bf16.msra.mxu0 %v4749
        %5015 = vmatprep.subr.bf16.mxu0 0
        %5016 = vmatpush1.bf16.msra.mxu0 %v4750
        %5017 = vmatprep.subr.bf16.mxu0 0
        %5018 = vmatpush1.bf16.msra.mxu0 %v4751
        %5019 = vmatprep.subr.bf16.mxu0 0
        %5020 = vmatpush1.bf16.msra.mxu0 %v4752
        %5021 = vmatprep.subr.bf16.mxu0 0
        %5022 = vmatpush1.bf16.msra.mxu0 %v4753
        %5023 = vmatprep.subr.bf16.mxu0 0
        %5024 = vmatpush1.bf16.msra.mxu0 %v4754
        %5025 = vmatprep.subr.bf16.mxu0 0
        %5026 = vmatpush1.bf16.msra.mxu0 %v4755
        %5027 = vmatprep.subr.bf16.mxu0 0
        %5028 = vmatpush1.bf16.msra.mxu0 %v4756
        %5029 = vmatprep.subr.bf16.mxu0 0
        %5030 = vmatpush1.bf16.msra.mxu0 %v4757
        %5031 = vmatprep.subr.bf16.mxu0 0
        %5032 = vmatpush1.bf16.msra.mxu0 %v4758
        %5033 = vmatprep.mubr.bf16.mxu0 %v4239
        %5034 = vmatmul.mubr.bf16.gmra.mrb[0].mxu0 %v4238
        %v5035 = vpop.f32.mrb[0].mxu0
        %v5036 = vadd.f32 %v4963, %v5035
        %v5037 = vpop.f32.mrb[0].mxu0
        %v5038 = vpop.f32.mrb[0].mxu0
        %v5039 = vadd.f32 %v4966, %v5038
        %v5040 = vpop.f32.mrb[0].mxu0
        %5041 = vmatprep.mubr.bf16.mxu0 %v4248
        %5042 = vmatmul.mubr.bf16.gmra.mrb[0].mxu0 %v4247
        %v5043 = vpop.f32.mrb[0].mxu0
        %v5044 = vadd.f32 %v4971, %v5043
        %v5045 = vpop.f32.mrb[0].mxu0
        %v5046 = vpop.f32.mrb[0].mxu0
        %v5047 = vadd.f32 %v4974, %v5046
        %v5048 = vpop.f32.mrb[0].mxu0
        %5049 = vmatprep.mubr.bf16.mxu0 %v4257
        %5050 = vmatmul.mubr.bf16.gmra.mrb[0].mxu0 %v4256
        %v5051 = vpop.f32.mrb[0].mxu0
        %v5052 = vadd.f32 %v4979, %v5051
        %v5053 = vpop.f32.mrb[0].mxu0
        %v5054 = vpop.f32.mrb[0].mxu0
        %v5055 = vadd.f32 %v4982, %v5054
        %v5056 = vpop.f32.mrb[0].mxu0
        %5057 = vmatprep.mubr.bf16.mxu0 %v4266
        %5058 = vmatmul.mubr.bf16.gmra.mrb[0].mxu0 %v4265
        %v5059 = vpop.f32.mrb[0].mxu0
        %v5060 = vadd.f32 %v4987, %v5059
        %v5061 = vpop.f32.mrb[0].mxu0
        %v5062 = vpop.f32.mrb[0].mxu0
        %v5063 = vadd.f32 %v4990, %v5062
        %v5064 = vpop.f32.mrb[0].mxu0
        %5065 = vmatprep.mubr.bf16.mxu0 %v4275
        %5066 = vmatmul.mubr.bf16.gmra.mrb[0].mxu0 %v4274
        %v5067 = vpop.f32.mrb[0].mxu0
        %v5068 = vadd.f32 %v4995, %v5067
        %v5069 = vpop.f32.mrb[0].mxu0
        %v5070 = vpop.f32.mrb[0].mxu0
        %v5071 = vadd.f32 %v4998, %v5070
        %v5072 = vpop.f32.mrb[0].mxu0
        %5073 = vdwg.mxu0
        %5074 = vmatprep.subr.bf16.mxu0 0
        %5075 = vmatpush1.bf16.msra.mxu0 %v4759
        %5076 = vmatprep.subr.bf16.mxu0 0
        %5077 = vmatpush1.bf16.msra.mxu0 %v4760
        %5078 = vmatprep.subr.bf16.mxu0 0
        %5079 = vmatpush1.bf16.msra.mxu0 %v4761
        %5080 = vmatprep.subr.bf16.mxu0 0
        %5081 = vmatpush1.bf16.msra.mxu0 %v4762
        %5082 = vmatprep.subr.bf16.mxu0 0
        %5083 = vmatpush1.bf16.msra.mxu0 %v4763
        %5084 = vmatprep.subr.bf16.mxu0 0
        %5085 = vmatpush1.bf16.msra.mxu0 %v4764
        %5086 = vmatprep.subr.bf16.mxu0 0
        %5087 = vmatpush1.bf16.msra.mxu0 %v4765
        %5088 = vmatprep.subr.bf16.mxu0 0
        %5089 = vmatpush1.bf16.msra.mxu0 %v4766
        %5090 = vmatprep.subr.bf16.mxu0 0
        %5091 = vmatpush1.bf16.msra.mxu0 %v4767
        %5092 = vmatprep.subr.bf16.mxu0 0
        %5093 = vmatpush1.bf16.msra.mxu0 %v4768
        %5094 = vmatprep.subr.bf16.mxu0 0
        %5095 = vmatpush1.bf16.msra.mxu0 %v4769
        %5096 = vmatprep.subr.bf16.mxu0 0
        %5097 = vmatpush1.bf16.msra.mxu0 %v4770
        %5098 = vmatprep.subr.bf16.mxu0 0
        %5099 = vmatpush1.bf16.msra.mxu0 %v4771
        %5100 = vmatprep.subr.bf16.mxu0 0
        %5101 = vmatpush1.bf16.msra.mxu0 %v4772
        %5102 = vmatprep.subr.bf16.mxu0 0
        %5103 = vmatpush1.bf16.msra.mxu0 %v4773
        %5104 = vmatprep.subr.bf16.mxu0 0
        %5105 = vmatpush1.bf16.msra.mxu0 %v4774
        %5106 = vmatprep.mubr.bf16.mxu0 %v4241
        %5107 = vmatmul.mubr.bf16.gmra.mrb[0].mxu0 %v4240
        %v5108 = vpop.f32.mrb[0].mxu0
        %v5109 = vadd.f32 %v5036, %v5108
        %v5110 = vpop.f32.mrb[0].mxu0
        %v5111 = vpop.f32.mrb[0].mxu0
        %v5112 = vadd.f32 %v5039, %v5111
        %v5113 = vpop.f32.mrb[0].mxu0
        %5114 = vmatprep.mubr.bf16.mxu0 %v4250
        %5115 = vmatmul.mubr.bf16.gmra.mrb[0].mxu0 %v4249
        %v5116 = vpop.f32.mrb[0].mxu0
        %v5117 = vadd.f32 %v5044, %v5116
        %v5118 = vpop.f32.mrb[0].mxu0
        %v5119 = vpop.f32.mrb[0].mxu0
        %v5120 = vadd.f32 %v5047, %v5119
        %v5121 = vpop.f32.mrb[0].mxu0
        %5122 = vmatprep.mubr.bf16.mxu0 %v4259
        %5123 = vmatmul.mubr.bf16.gmra.mrb[0].mxu0 %v4258
        %v5124 = vpop.f32.mrb[0].mxu0
        %v5125 = vadd.f32 %v5052, %v5124
        %v5126 = vpop.f32.mrb[0].mxu0
        %v5127 = vpop.f32.mrb[0].mxu0
        %v5128 = vadd.f32 %v5055, %v5127
        %v5129 = vpop.f32.mrb[0].mxu0
        %5130 = vmatprep.mubr.bf16.mxu0 %v4268
        %5131 = vmatmul.mubr.bf16.gmra.mrb[0].mxu0 %v4267
        %v5132 = vpop.f32.mrb[0].mxu0
        %v5133 = vadd.f32 %v5060, %v5132
        %v5134 = vpop.f32.mrb[0].mxu0
        %v5135 = vpop.f32.mrb[0].mxu0
        %v5136 = vadd.f32 %v5063, %v5135
        %v5137 = vpop.f32.mrb[0].mxu0
        %5138 = vmatprep.mubr.bf16.mxu0 %v4277
        %5139 = vmatmul.mubr.bf16.gmra.mrb[0].mxu0 %v4276
        %v5140 = vpop.f32.mrb[0].mxu0
        %v5141 = vadd.f32 %v5068, %v5140
        %v5142 = vpop.f32.mrb[0].mxu0
        %v5143 = vpop.f32.mrb[0].mxu0
        %v5144 = vadd.f32 %v5071, %v5143
        %v5145 = vpop.f32.mrb[0].mxu0
        %5146 = vdwg.mxu0
        %5147 = vmatprep.subr.bf16.mxu0 0
        %5148 = vmatpush1.bf16.msra.mxu0 %v4775
        %5149 = vmatprep.subr.bf16.mxu0 0
        %5150 = vmatpush1.bf16.msra.mxu0 %v4776
        %5151 = vmatprep.subr.bf16.mxu0 0
        %5152 = vmatpush1.bf16.msra.mxu0 %v4777
        %5153 = vmatprep.subr.bf16.mxu0 0
        %5154 = vmatpush1.bf16.msra.mxu0 %v4778
        %5155 = vmatprep.subr.bf16.mxu0 0
        %5156 = vmatpush1.bf16.msra.mxu0 %v4779
        %5157 = vmatprep.subr.bf16.mxu0 0
        %5158 = vmatpush1.bf16.msra.mxu0 %v4780
        %5159 = vmatprep.subr.bf16.mxu0 0
        %5160 = vmatpush1.bf16.msra.mxu0 %v4781
        %5161 = vmatprep.subr.bf16.mxu0 0
        %5162 = vmatpush1.bf16.msra.mxu0 %v4782
        %5163 = vmatprep.subr.bf16.mxu0 0
        %5164 = vmatpush1.bf16.msra.mxu0 0
        %5165 = vmatprep.subr.bf16.mxu0 0
        %5166 = vmatpush1.bf16.msra.mxu0 0
        %5167 = vmatprep.subr.bf16.mxu0 0
        %5168 = vmatpush1.bf16.msra.mxu0 0
        %5169 = vmatprep.subr.bf16.mxu0 0
        %5170 = vmatpush1.bf16.msra.mxu0 0
        %5171 = vmatprep.subr.bf16.mxu0 0
        %5172 = vmatpush1.bf16.msra.mxu0 0
        %5173 = vmatprep.subr.bf16.mxu0 0
        %5174 = vmatpush1.bf16.msra.mxu0 0
        %5175 = vmatprep.subr.bf16.mxu0 0
        %5176 = vmatpush1.bf16.msra.mxu0 0
        %5177 = vmatprep.subr.bf16.mxu0 0
        %5178 = vmatpush1.bf16.msra.mxu0 0
        %5179 = vmatprep.mubr.bf16.mxu0 0
        %5180 = vmatmul.mubr.bf16.gmra.mrb[0].mxu0 %v4242
        %v5181 = vpop.f32.mrb[0].mxu0
        %v5182 = vadd.f32 %v5109, %v5181
        %v5183 = vpop.f32.mrb[0].mxu0
        %v5184 = vpop.f32.mrb[0].mxu0
        %v5185 = vadd.f32 %v5112, %v5184
        %v5186 = vpop.f32.mrb[0].mxu0
        %5187 = vmatprep.mubr.bf16.mxu0 0
        %5188 = vmatmul.mubr.bf16.gmra.mrb[0].mxu0 %v4251
        %v5189 = vpop.f32.mrb[0].mxu0
        %v5190 = vadd.f32 %v5117, %v5189
        %v5191 = vpop.f32.mrb[0].mxu0
        %v5192 = vpop.f32.mrb[0].mxu0
        %v5193 = vadd.f32 %v5120, %v5192
        %v5194 = vpop.f32.mrb[0].mxu0
        %5195 = vmatprep.mubr.bf16.mxu0 0
        %5196 = vmatmul.mubr.bf16.gmra.mrb[0].mxu0 %v4260
        %v5197 = vpop.f32.mrb[0].mxu0
        %v5198 = vadd.f32 %v5125, %v5197
        %v5199 = vpop.f32.mrb[0].mxu0
        %v5200 = vpop.f32.mrb[0].mxu0
        %v5201 = vadd.f32 %v5128, %v5200
        %v5202 = vpop.f32.mrb[0].mxu0
        %5203 = vmatprep.mubr.bf16.mxu0 0
        %5204 = vmatmul.mubr.bf16.gmra.mrb[0].mxu0 %v4269
        %v5205 = vpop.f32.mrb[0].mxu0
        %v5206 = vadd.f32 %v5133, %v5205
        %v5207 = vpop.f32.mrb[0].mxu0
        %v5208 = vpop.f32.mrb[0].mxu0
        %v5209 = vadd.f32 %v5136, %v5208
        %v5210 = vpop.f32.mrb[0].mxu0
        %5211 = vmatprep.mubr.bf16.mxu0 0
        %5212 = vmatmul.mubr.bf16.gmra.mrb[0].mxu0 %v4278
        %v5213 = vpop.f32.mrb[0].mxu0
        %v5214 = vadd.f32 %v5141, %v5213
        %v5215 = vpop.f32.mrb[0].mxu0
        %v5216 = vpop.f32.mrb[0].mxu0
        %v5217 = vadd.f32 %v5144, %v5216
        %v5218 = vpop.f32.mrb[0].mxu0
        %5219 = vdwg.mxu0
        %v5220 = vld [vmem:[%s4 + $0x1] sm:$0x1]
        %v5221 = vlaneseq
        %v5222 = vshrl.u32 %v5221, 7
        %v5223 = vsub.s32 0, %v5222
        %v5224 = vrot.slane %v5220, %v5223
        %v5225 = vmul.f32 %v5182, %v5224
        %v5226 = vmul.f32 %v5185, %v5224
        %v5227 = vmul.f32 %v5190, %v5224
        %v5228 = vmul.f32 %v5193, %v5224
        %v5229 = vmul.f32 %v5198, %v5224
        %v5230 = vmul.f32 %v5201, %v5224
        %v5231 = vmul.f32 %v5206, %v5224
        %v5232 = vmul.f32 %v5209, %v5224
        %v5233 = vmul.f32 %v5214, %v5224
        %v5234 = vmul.f32 %v5217, %v5224
        %v5235 = vld [vmem:[%s5 + $0x1] sm:$0x1]
        %v5236 = vlaneseq
        %v5237 = vshrl.u32 %v5236, 7
        %v5238 = vsub.s32 0, %v5237
        %v5239 = vrot.slane %v5235, %v5238
        %v5240 = vadd.f32 %v5225, %v5239
        %v5241 = vadd.f32 %v5226, %v5239
        %v5242 = vadd.f32 %v5227, %v5239
        %v5243 = vadd.f32 %v5228, %v5239
        %v5244 = vadd.f32 %v5229, %v5239
        %v5245 = vadd.f32 %v5230, %v5239
        %v5246 = vadd.f32 %v5231, %v5239
        %v5247 = vadd.f32 %v5232, %v5239
        %v5248 = vadd.f32 %v5233, %v5239
        %v5249 = vadd.f32 %v5234, %v5239
        %v5250 = vmax.f32 %v5240, 0.0
        %v5251 = vmax.f32 %v5241, 0.0
        %v5252 = vmax.f32 %v5242, 0.0
        %v5253 = vmax.f32 %v5243, 0.0
        %v5254 = vmax.f32 %v5244, 0.0
        %v5255 = vmax.f32 %v5245, 0.0
        %v5256 = vmax.f32 %v5246, 0.0
        %v5257 = vmax.f32 %v5247, 0.0
        %v5258 = vmax.f32 %v5248, 0.0
        %v5259 = vmax.f32 %v5249, 0.0
        %s5260 = sadd.s32 %s264, 4294967295
        %v5261 = vstv %s5260
        %v5262 = vadd.s32 %v5261, 1
        %v5263 = vadd.s32 %v5261, 2
        %v5264 = vadd.s32 %v5261, 3
        %v5265 = vadd.s32 %v5261, 4
        %v5266 = vadd.s32 %v5261, 5
        %v5267 = vadd.s32 %v5261, 6
        %v5268 = vadd.s32 %v5261, 7
        %v5269 = vadd.s32 %v5261, 8
        %v5270 = vadd.s32 %v5261, 9
        %vm5271 = vcmp.ge.s32.totalorder %v5261, 0
        %vm5272 = vcmp.ge.s32.totalorder %v5262, 0
        %vm5273 = vcmp.ge.s32.totalorder %v5263, 0
        %vm5274 = vcmp.ge.s32.totalorder %v5264, 0
        %vm5275 = vcmp.ge.s32.totalorder %v5265, 0
        %vm5276 = vcmp.ge.s32.totalorder %v5266, 0
        %vm5277 = vcmp.ge.s32.totalorder %v5267, 0
        %vm5278 = vcmp.ge.s32.totalorder %v5268, 0
        %vm5279 = vcmp.ge.s32.totalorder %v5269, 0
        %vm5280 = vcmp.ge.s32.totalorder %v5270, 0
        %vm5281 = vcmp.lt.s32.totalorder %v5261, 8
        %vm5282 = vcmp.lt.s32.totalorder %v5262, 8
        %vm5283 = vcmp.lt.s32.totalorder %v5263, 8
        %vm5284 = vcmp.lt.s32.totalorder %v5264, 8
        %vm5285 = vcmp.lt.s32.totalorder %v5265, 8
        %vm5286 = vcmp.lt.s32.totalorder %v5266, 8
        %vm5287 = vcmp.lt.s32.totalorder %v5267, 8
        %vm5288 = vcmp.lt.s32.totalorder %v5268, 8
        %vm5289 = vcmp.lt.s32.totalorder %v5269, 8
        %vm5290 = vcmp.lt.s32.totalorder %v5270, 8
        %vm5291 = vmand %vm5271, %vm5281
        %vm5292 = vmand %vm5272, %vm5282
        %vm5293 = vmand %vm5273, %vm5283
        %vm5294 = vmand %vm5274, %vm5284
        %vm5295 = vmand %vm5275, %vm5285
        %vm5296 = vmand %vm5276, %vm5286
        %vm5297 = vmand %vm5277, %vm5287
        %vm5298 = vmand %vm5278, %vm5288
        %vm5299 = vmand %vm5279, %vm5289
        %vm5300 = vmand %vm5280, %vm5290
        %v5301 = vsel %vm5291, 1, 0
        %v5302 = vsel %vm5292, 1, 0
        %v5303 = vsel %vm5293, 1, 0
        %v5304 = vsel %vm5294, 1, 0
        %v5305 = vsel %vm5295, 1, 0
        %v5306 = vsel %vm5296, 1, 0
        %v5307 = vsel %vm5297, 1, 0
        %v5308 = vsel %vm5298, 1, 0
        %v5309 = vsel %vm5299, 1, 0
        %v5310 = vsel %vm5300, 1, 0
        %vm5311 = vcmp.eq.s32.totalorder %v5301, 1
        %vm5312 = vcmp.eq.s32.totalorder %v5302, 1
        %vm5313 = vcmp.eq.s32.totalorder %v5303, 1
        %vm5314 = vcmp.eq.s32.totalorder %v5304, 1
        %vm5315 = vcmp.eq.s32.totalorder %v5305, 1
        %vm5316 = vcmp.eq.s32.totalorder %v5306, 1
        %vm5317 = vcmp.eq.s32.totalorder %v5307, 1
        %vm5318 = vcmp.eq.s32.totalorder %v5308, 1
        %vm5319 = vcmp.eq.s32.totalorder %v5309, 1
        %vm5320 = vcmp.eq.s32.totalorder %v5310, 1
        %v5321 = vsel %vm5311, %v5250, 0.0
        %v5322 = vsel %vm5312, %v5251, 0.0
        %v5323 = vsel %vm5313, %v5252, 0.0
        %v5324 = vsel %vm5314, %v5253, 0.0
        %v5325 = vsel %vm5315, %v5254, 0.0
        %v5326 = vsel %vm5316, %v5255, 0.0
        %v5327 = vsel %vm5317, %v5256, 0.0
        %v5328 = vsel %vm5318, %v5257, 0.0
        %v5329 = vsel %vm5319, %v5258, 0.0
        %v5330 = vsel %vm5320, %v5259, 0.0
        %v5331 = vpack.c.bf16 %v5321, %v5321
        %v5332 = vpack.c.bf16 %v5322, %v5322
        %v5333 = vpack.c.bf16 %v5323, %v5323
        %v5334 = vpack.c.bf16 %v5324, %v5324
        %v5335 = vpack.c.bf16 %v5325, %v5325
        %v5336 = vpack.c.bf16 %v5326, %v5326
        %v5337 = vpack.c.bf16 %v5327, %v5327
        %v5338 = vpack.c.bf16 %v5328, %v5328
        %v5339 = vpack.c.bf16 %v5329, %v5329
        %v5340 = vpack.c.bf16 %v5330, %v5330
        %5341 = vst [vmem:[#allocation4 + $0x4] sm:$0xf] %v5331
        %5342 = vst [vmem:[#allocation4 + $0x10] sm:$0xf] %v5332
        %5343 = vst [vmem:[#allocation4 + $0x1c] sm:$0xf] %v5333
        %5344 = vst [vmem:[#allocation4 + $0x28] sm:$0xf] %v5334
        %5345 = vst [vmem:[#allocation4 + $0x34] sm:$0xf] %v5335
        %5346 = vst [vmem:[#allocation4 + $0x40] sm:$0xf] %v5336
        %5347 = vst [vmem:[#allocation4 + $0x4c] sm:$0xf] %v5337
        %5348 = vst [vmem:[#allocation4 + $0x58] sm:$0xf] %v5338
        %5349 = vst [vmem:[#allocation4 + $0x64] sm:$0xf] %v5339
        %5350 = vst [vmem:[#allocation4 + $0x70] sm:$0xf] %v5340
        %v5351 = vld [vmem:[#allocation4] sm:$0x8]
        %v5352 = vld [vmem:[#allocation4 + $0x4] sm:$0xf]
        %v5353 = vld [vmem:[#allocation4 + $0xc] sm:$0x8]
        %v5354 = vld [vmem:[#allocation4 + $0x10] sm:$0xf]
        %v5355 = vld [vmem:[#allocation4 + $0x18] sm:$0x8]
        %v5356 = vld [vmem:[#allocation4 + $0x1c] sm:$0xf]
        %v5357 = vld [vmem:[#allocation4 + $0x24] sm:$0x8]
        %v5358 = vld [vmem:[#allocation4 + $0x28] sm:$0xf]
        %v5359 = vld [vmem:[#allocation4 + $0x30] sm:$0x8]
        %v5360 = vld [vmem:[#allocation4 + $0x34] sm:$0xf]
        %v5361 = vld [vmem:[#allocation4 + $0x3c] sm:$0x8]
        %v5362 = vld [vmem:[#allocation4 + $0x40] sm:$0xf]
        %v5363 = vld [vmem:[#allocation4 + $0x48] sm:$0x8]
        %v5364 = vld [vmem:[#allocation4 + $0x4c] sm:$0xf]
        %v5365 = vld [vmem:[#allocation4 + $0x54] sm:$0x8]
        %v5366 = vld [vmem:[#allocation4 + $0x58] sm:$0xf]
        %v5368 = vshrl.u32 %v5351, 16
        %v5370 = vrot.slane %v5368, 7
        %v5371 = vrot.slane %v5370, 4
        %v5373 = vshrl.u32 %v5352, 16
        %v5375 = vrot.slane %v5373, 7
        %v5376 = vshll.u32 %v5352, 16
        %v5378 = vor.u32 %v5375, %v5376
        %v5379 = vsel %vm395, %v5371, %v5378
        %v5381 = vshrl.u32 %v5353, 16
        %v5383 = vrot.slane %v5381, 7
        %v5384 = vrot.slane %v5383, 4
        %v5386 = vshrl.u32 %v5354, 16
        %v5388 = vrot.slane %v5386, 7
        %v5389 = vshll.u32 %v5354, 16
        %v5391 = vor.u32 %v5388, %v5389
        %v5392 = vsel %vm395, %v5384, %v5391
        %v5394 = vshrl.u32 %v5355, 16
        %v5396 = vrot.slane %v5394, 7
        %v5397 = vrot.slane %v5396, 4
        %v5399 = vshrl.u32 %v5356, 16
        %v5401 = vrot.slane %v5399, 7
        %v5402 = vshll.u32 %v5356, 16
        %v5404 = vor.u32 %v5401, %v5402
        %v5405 = vsel %vm395, %v5397, %v5404
        %v5407 = vshrl.u32 %v5357, 16
        %v5409 = vrot.slane %v5407, 7
        %v5410 = vrot.slane %v5409, 4
        %v5412 = vshrl.u32 %v5358, 16
        %v5414 = vrot.slane %v5412, 7
        %v5415 = vshll.u32 %v5358, 16
        %v5417 = vor.u32 %v5414, %v5415
        %v5418 = vsel %vm395, %v5410, %v5417
        %v5420 = vshrl.u32 %v5359, 16
        %v5422 = vrot.slane %v5420, 7
        %v5423 = vrot.slane %v5422, 4
        %v5425 = vshrl.u32 %v5360, 16
        %v5427 = vrot.slane %v5425, 7
        %v5428 = vshll.u32 %v5360, 16
        %v5430 = vor.u32 %v5427, %v5428
        %v5431 = vsel %vm395, %v5423, %v5430
        %v5433 = vshrl.u32 %v5361, 16
        %v5435 = vrot.slane %v5433, 7
        %v5436 = vrot.slane %v5435, 4
        %v5438 = vshrl.u32 %v5362, 16
        %v5440 = vrot.slane %v5438, 7
        %v5441 = vshll.u32 %v5362, 16
        %v5443 = vor.u32 %v5440, %v5441
        %v5444 = vsel %vm395, %v5436, %v5443
        %v5446 = vshrl.u32 %v5363, 16
        %v5448 = vrot.slane %v5446, 7
        %v5449 = vrot.slane %v5448, 4
        %v5451 = vshrl.u32 %v5364, 16
        %v5453 = vrot.slane %v5451, 7
        %v5454 = vshll.u32 %v5364, 16
        %v5456 = vor.u32 %v5453, %v5454
        %v5457 = vsel %vm395, %v5449, %v5456
        %v5459 = vshrl.u32 %v5365, 16
        %v5461 = vrot.slane %v5459, 7
        %v5462 = vrot.slane %v5461, 4
        %v5464 = vshrl.u32 %v5366, 16
        %v5466 = vrot.slane %v5464, 7
        %v5467 = vshll.u32 %v5366, 16
        %v5469 = vor.u32 %v5466, %v5467
        %v5470 = vsel %vm395, %v5462, %v5469
        %v5471 = vunpack.c.l.b16 %v5379
        %v5472 = vunpack.c.l.b16 %v5392
        %v5473 = vunpack.c.l.b16 %v5405
        %v5474 = vunpack.c.l.b16 %v5418
        %v5475 = vunpack.c.l.b16 %v5431
        %v5476 = vunpack.c.l.b16 %v5444
        %v5477 = vunpack.c.l.b16 %v5457
        %v5478 = vunpack.c.l.b16 %v5470
        %v5479 = vpack.c.b16 %v5472, %v5471
        %v5480 = vpack.c.b16 %v5474, %v5473
        %v5481 = vpack.c.b16 %v5476, %v5475
        %v5482 = vpack.c.b16 %v5478, %v5477
        %5487 = vst [vmem:[#allocation5] sm:$0xff] %v5479
        %5488 = vst [vmem:[#allocation5 + $0x48] sm:$0xff] %v5480
        %5489 = vst [vmem:[#allocation5 + $0x90] sm:$0xff] %v5481
        %5490 = vst [vmem:[#allocation5 + $0xd8] sm:$0xff] %v5482
        %v5491 = vld [vmem:[#allocation4 + $0x4] sm:$0xf]
        %v5492 = vld [vmem:[#allocation4 + $0x10] sm:$0xf]
        %v5493 = vld [vmem:[#allocation4 + $0x1c] sm:$0xf]
        %v5494 = vld [vmem:[#allocation4 + $0x28] sm:$0xf]
        %v5495 = vld [vmem:[#allocation4 + $0x34] sm:$0xf]
        %v5496 = vld [vmem:[#allocation4 + $0x40] sm:$0xf]
        %v5497 = vld [vmem:[#allocation4 + $0x4c] sm:$0xf]
        %v5498 = vld [vmem:[#allocation4 + $0x58] sm:$0xf]
        %v5507 = vunpack.c.l.b16 %v5491
        %v5508 = vunpack.c.l.b16 %v5492
        %v5509 = vunpack.c.l.b16 %v5493
        %v5510 = vunpack.c.l.b16 %v5494
        %v5511 = vunpack.c.l.b16 %v5495
        %v5512 = vunpack.c.l.b16 %v5496
        %v5513 = vunpack.c.l.b16 %v5497
        %v5514 = vunpack.c.l.b16 %v5498
        %v5515 = vpack.c.b16 %v5508, %v5507
        %v5516 = vpack.c.b16 %v5510, %v5509
        %v5517 = vpack.c.b16 %v5512, %v5511
        %v5518 = vpack.c.b16 %v5514, %v5513
        %5523 = vst [vmem:[#allocation5 + $0x8] sm:$0xff] %v5515
        %5524 = vst [vmem:[#allocation5 + $0x50] sm:$0xff] %v5516
        %5525 = vst [vmem:[#allocation5 + $0x98] sm:$0xff] %v5517
        %5526 = vst [vmem:[#allocation5 + $0xe0] sm:$0xff] %v5518
        %v5527 = vld [vmem:[#allocation4 + $0x4] sm:$0xf]
        %v5528 = vld [vmem:[#allocation4 + $0x8] sm:$0x1]
        %v5529 = vld [vmem:[#allocation4 + $0x10] sm:$0xf]
        %v5530 = vld [vmem:[#allocation4 + $0x14] sm:$0x1]
        %v5531 = vld [vmem:[#allocation4 + $0x1c] sm:$0xf]
        %v5532 = vld [vmem:[#allocation4 + $0x20] sm:$0x1]
        %v5533 = vld [vmem:[#allocation4 + $0x28] sm:$0xf]
        %v5534 = vld [vmem:[#allocation4 + $0x2c] sm:$0x1]
        %v5535 = vld [vmem:[#allocation4 + $0x34] sm:$0xf]
        %v5536 = vld [vmem:[#allocation4 + $0x38] sm:$0x1]
        %v5537 = vld [vmem:[#allocation4 + $0x40] sm:$0xf]
        %v5538 = vld [vmem:[#allocation4 + $0x44] sm:$0x1]
        %v5539 = vld [vmem:[#allocation4 + $0x4c] sm:$0xf]
        %v5540 = vld [vmem:[#allocation4 + $0x50] sm:$0x1]
        %v5541 = vld [vmem:[#allocation4 + $0x58] sm:$0xf]
        %v5542 = vld [vmem:[#allocation4 + $0x5c] sm:$0x1]
        %v5544 = vshrl.u32 %v5527, 16
        %v5546 = vrot.slane %v5544, 4
        %v5547 = vshll.u32 %v5527, 16
        %v5549 = vrot.slane %v5547, 5
        %v5550 = vor.u32 %v5546, %v5549
        %v5551 = vrot.slane %v5550, 4
        %v5553 = vshll.u32 %v5528, 16
        %v5555 = vrot.slane %v5553, 5
        %v5556 = vsel %vm662, %v5551, %v5555
        %v5558 = vshrl.u32 %v5529, 16
        %v5560 = vrot.slane %v5558, 4
        %v5561 = vshll.u32 %v5529, 16
        %v5563 = vrot.slane %v5561, 5
        %v5564 = vor.u32 %v5560, %v5563
        %v5565 = vrot.slane %v5564, 4
        %v5567 = vshll.u32 %v5530, 16
        %v5569 = vrot.slane %v5567, 5
        %v5570 = vsel %vm662, %v5565, %v5569
        %v5572 = vshrl.u32 %v5531, 16
        %v5574 = vrot.slane %v5572, 4
        %v5575 = vshll.u32 %v5531, 16
        %v5577 = vrot.slane %v5575, 5
        %v5578 = vor.u32 %v5574, %v5577
        %v5579 = vrot.slane %v5578, 4
        %v5581 = vshll.u32 %v5532, 16
        %v5583 = vrot.slane %v5581, 5
        %v5584 = vsel %vm662, %v5579, %v5583
        %v5586 = vshrl.u32 %v5533, 16
        %v5588 = vrot.slane %v5586, 4
        %v5589 = vshll.u32 %v5533, 16
        %v5591 = vrot.slane %v5589, 5
        %v5592 = vor.u32 %v5588, %v5591
        %v5593 = vrot.slane %v5592, 4
        %v5595 = vshll.u32 %v5534, 16
        %v5597 = vrot.slane %v5595, 5
        %v5598 = vsel %vm662, %v5593, %v5597
        %v5600 = vshrl.u32 %v5535, 16
        %v5602 = vrot.slane %v5600, 4
        %v5603 = vshll.u32 %v5535, 16
        %v5605 = vrot.slane %v5603, 5
        %v5606 = vor.u32 %v5602, %v5605
        %v5607 = vrot.slane %v5606, 4
        %v5609 = vshll.u32 %v5536, 16
        %v5611 = vrot.slane %v5609, 5
        %v5612 = vsel %vm662, %v5607, %v5611
        %v5614 = vshrl.u32 %v5537, 16
        %v5616 = vrot.slane %v5614, 4
        %v5617 = vshll.u32 %v5537, 16
        %v5619 = vrot.slane %v5617, 5
        %v5620 = vor.u32 %v5616, %v5619
        %v5621 = vrot.slane %v5620, 4
        %v5623 = vshll.u32 %v5538, 16
        %v5625 = vrot.slane %v5623, 5
        %v5626 = vsel %vm662, %v5621, %v5625
        %v5628 = vshrl.u32 %v5539, 16
        %v5630 = vrot.slane %v5628, 4
        %v5631 = vshll.u32 %v5539, 16
        %v5633 = vrot.slane %v5631, 5
        %v5634 = vor.u32 %v5630, %v5633
        %v5635 = vrot.slane %v5634, 4
        %v5637 = vshll.u32 %v5540, 16
        %v5639 = vrot.slane %v5637, 5
        %v5640 = vsel %vm662, %v5635, %v5639
        %v5642 = vshrl.u32 %v5541, 16
        %v5644 = vrot.slane %v5642, 4
        %v5645 = vshll.u32 %v5541, 16
        %v5647 = vrot.slane %v5645, 5
        %v5648 = vor.u32 %v5644, %v5647
        %v5649 = vrot.slane %v5648, 4
        %v5651 = vshll.u32 %v5542, 16
        %v5653 = vrot.slane %v5651, 5
        %v5654 = vsel %vm662, %v5649, %v5653
        %v5655 = vunpack.c.l.b16 %v5556
        %v5656 = vunpack.c.l.b16 %v5570
        %v5657 = vunpack.c.l.b16 %v5584
        %v5658 = vunpack.c.l.b16 %v5598
        %v5659 = vunpack.c.l.b16 %v5612
        %v5660 = vunpack.c.l.b16 %v5626
        %v5661 = vunpack.c.l.b16 %v5640
        %v5662 = vunpack.c.l.b16 %v5654
        %v5663 = vpack.c.b16 %v5656, %v5655
        %v5664 = vpack.c.b16 %v5658, %v5657
        %v5665 = vpack.c.b16 %v5660, %v5659
        %v5666 = vpack.c.b16 %v5662, %v5661
        %5671 = vst [vmem:[#allocation5 + $0x10] sm:$0xff] %v5663
        %5672 = vst [vmem:[#allocation5 + $0x58] sm:$0xff] %v5664
        %5673 = vst [vmem:[#allocation5 + $0xa0] sm:$0xff] %v5665
        %5674 = vst [vmem:[#allocation5 + $0xe8] sm:$0xff] %v5666
        %s5675 = scalar_lea.vmem [#allocation4], 12
        %v5676 = vld [vmem:[%s5675] sm:$0x8]
        %v5677 = vld [vmem:[%s5675 + $0x4] sm:$0xf]
        %v5678 = vld [vmem:[%s5675 + $0xc] sm:$0x8]
        %v5679 = vld [vmem:[%s5675 + $0x10] sm:$0xf]
        %v5680 = vld [vmem:[%s5675 + $0x18] sm:$0x8]
        %v5681 = vld [vmem:[%s5675 + $0x1c] sm:$0xf]
        %v5682 = vld [vmem:[%s5675 + $0x24] sm:$0x8]
        %v5683 = vld [vmem:[%s5675 + $0x28] sm:$0xf]
        %v5684 = vld [vmem:[%s5675 + $0x30] sm:$0x8]
        %v5685 = vld [vmem:[%s5675 + $0x34] sm:$0xf]
        %v5686 = vld [vmem:[%s5675 + $0x3c] sm:$0x8]
        %v5687 = vld [vmem:[%s5675 + $0x40] sm:$0xf]
        %v5688 = vld [vmem:[%s5675 + $0x48] sm:$0x8]
        %v5689 = vld [vmem:[%s5675 + $0x4c] sm:$0xf]
        %v5690 = vld [vmem:[%s5675 + $0x54] sm:$0x8]
        %v5691 = vld [vmem:[%s5675 + $0x58] sm:$0xf]
        %v5693 = vshrl.u32 %v5676, 16
        %v5695 = vrot.slane %v5693, 7
        %v5696 = vrot.slane %v5695, 4
        %v5698 = vshrl.u32 %v5677, 16
        %v5700 = vrot.slane %v5698, 7
        %v5701 = vshll.u32 %v5677, 16
        %v5703 = vor.u32 %v5700, %v5701
        %v5704 = vsel %vm395, %v5696, %v5703
        %v5706 = vshrl.u32 %v5678, 16
        %v5708 = vrot.slane %v5706, 7
        %v5709 = vrot.slane %v5708, 4
        %v5711 = vshrl.u32 %v5679, 16
        %v5713 = vrot.slane %v5711, 7
        %v5714 = vshll.u32 %v5679, 16
        %v5716 = vor.u32 %v5713, %v5714
        %v5717 = vsel %vm395, %v5709, %v5716
        %v5719 = vshrl.u32 %v5680, 16
        %v5721 = vrot.slane %v5719, 7
        %v5722 = vrot.slane %v5721, 4
        %v5724 = vshrl.u32 %v5681, 16
        %v5726 = vrot.slane %v5724, 7
        %v5727 = vshll.u32 %v5681, 16
        %v5729 = vor.u32 %v5726, %v5727
        %v5730 = vsel %vm395, %v5722, %v5729
        %v5732 = vshrl.u32 %v5682, 16
        %v5734 = vrot.slane %v5732, 7
        %v5735 = vrot.slane %v5734, 4
        %v5737 = vshrl.u32 %v5683, 16
        %v5739 = vrot.slane %v5737, 7
        %v5740 = vshll.u32 %v5683, 16
        %v5742 = vor.u32 %v5739, %v5740
        %v5743 = vsel %vm395, %v5735, %v5742
        %v5745 = vshrl.u32 %v5684, 16
        %v5747 = vrot.slane %v5745, 7
        %v5748 = vrot.slane %v5747, 4
        %v5750 = vshrl.u32 %v5685, 16
        %v5752 = vrot.slane %v5750, 7
        %v5753 = vshll.u32 %v5685, 16
        %v5755 = vor.u32 %v5752, %v5753
        %v5756 = vsel %vm395, %v5748, %v5755
        %v5758 = vshrl.u32 %v5686, 16
        %v5760 = vrot.slane %v5758, 7
        %v5761 = vrot.slane %v5760, 4
        %v5763 = vshrl.u32 %v5687, 16
        %v5765 = vrot.slane %v5763, 7
        %v5766 = vshll.u32 %v5687, 16
        %v5768 = vor.u32 %v5765, %v5766
        %v5769 = vsel %vm395, %v5761, %v5768
        %v5771 = vshrl.u32 %v5688, 16
        %v5773 = vrot.slane %v5771, 7
        %v5774 = vrot.slane %v5773, 4
        %v5776 = vshrl.u32 %v5689, 16
        %v5778 = vrot.slane %v5776, 7
        %v5779 = vshll.u32 %v5689, 16
        %v5781 = vor.u32 %v5778, %v5779
        %v5782 = vsel %vm395, %v5774, %v5781
        %v5784 = vshrl.u32 %v5690, 16
        %v5786 = vrot.slane %v5784, 7
        %v5787 = vrot.slane %v5786, 4
        %v5789 = vshrl.u32 %v5691, 16
        %v5791 = vrot.slane %v5789, 7
        %v5792 = vshll.u32 %v5691, 16
        %v5794 = vor.u32 %v5791, %v5792
        %v5795 = vsel %vm395, %v5787, %v5794
        %v5796 = vunpack.c.l.b16 %v5704
        %v5797 = vunpack.c.l.b16 %v5717
        %v5798 = vunpack.c.l.b16 %v5730
        %v5799 = vunpack.c.l.b16 %v5743
        %v5800 = vunpack.c.l.b16 %v5756
        %v5801 = vunpack.c.l.b16 %v5769
        %v5802 = vunpack.c.l.b16 %v5782
        %v5803 = vunpack.c.l.b16 %v5795
        %v5804 = vpack.c.b16 %v5797, %v5796
        %v5805 = vpack.c.b16 %v5799, %v5798
        %v5806 = vpack.c.b16 %v5801, %v5800
        %v5807 = vpack.c.b16 %v5803, %v5802
        %5812 = vst [vmem:[#allocation5 + $0x18] sm:$0xff] %v5804
        %5813 = vst [vmem:[#allocation5 + $0x60] sm:$0xff] %v5805
        %5814 = vst [vmem:[#allocation5 + $0xa8] sm:$0xff] %v5806
        %5815 = vst [vmem:[#allocation5 + $0xf0] sm:$0xff] %v5807
        %v5816 = vld [vmem:[%s5675 + $0x4] sm:$0xf]
        %v5817 = vld [vmem:[%s5675 + $0x10] sm:$0xf]
        %v5818 = vld [vmem:[%s5675 + $0x1c] sm:$0xf]
        %v5819 = vld [vmem:[%s5675 + $0x28] sm:$0xf]
        %v5820 = vld [vmem:[%s5675 + $0x34] sm:$0xf]
        %v5821 = vld [vmem:[%s5675 + $0x40] sm:$0xf]
        %v5822 = vld [vmem:[%s5675 + $0x4c] sm:$0xf]
        %v5823 = vld [vmem:[%s5675 + $0x58] sm:$0xf]
        %v5832 = vunpack.c.l.b16 %v5816
        %v5833 = vunpack.c.l.b16 %v5817
        %v5834 = vunpack.c.l.b16 %v5818
        %v5835 = vunpack.c.l.b16 %v5819
        %v5836 = vunpack.c.l.b16 %v5820
        %v5837 = vunpack.c.l.b16 %v5821
        %v5838 = vunpack.c.l.b16 %v5822
        %v5839 = vunpack.c.l.b16 %v5823
        %v5840 = vpack.c.b16 %v5833, %v5832
        %v5841 = vpack.c.b16 %v5835, %v5834
        %v5842 = vpack.c.b16 %v5837, %v5836
        %v5843 = vpack.c.b16 %v5839, %v5838
        %5848 = vst [vmem:[#allocation5 + $0x20] sm:$0xff] %v5840
        %5849 = vst [vmem:[#allocation5 + $0x68] sm:$0xff] %v5841
        %5850 = vst [vmem:[#allocation5 + $0xb0] sm:$0xff] %v5842
        %5851 = vst [vmem:[#allocation5 + $0xf8] sm:$0xff] %v5843
        %v5852 = vld [vmem:[%s5675 + $0x4] sm:$0xf]
        %v5853 = vld [vmem:[%s5675 + $0x8] sm:$0x1]
        %v5854 = vld [vmem:[%s5675 + $0x10] sm:$0xf]
        %v5855 = vld [vmem:[%s5675 + $0x14] sm:$0x1]
        %v5856 = vld [vmem:[%s5675 + $0x1c] sm:$0xf]
        %v5857 = vld [vmem:[%s5675 + $0x20] sm:$0x1]
        %v5858 = vld [vmem:[%s5675 + $0x28] sm:$0xf]
        %v5859 = vld [vmem:[%s5675 + $0x2c] sm:$0x1]
        %v5860 = vld [vmem:[%s5675 + $0x34] sm:$0xf]
        %v5861 = vld [vmem:[%s5675 + $0x38] sm:$0x1]
        %v5862 = vld [vmem:[%s5675 + $0x40] sm:$0xf]
        %v5863 = vld [vmem:[%s5675 + $0x44] sm:$0x1]
        %v5864 = vld [vmem:[%s5675 + $0x4c] sm:$0xf]
        %v5865 = vld [vmem:[%s5675 + $0x50] sm:$0x1]
        %v5866 = vld [vmem:[%s5675 + $0x58] sm:$0xf]
        %v5867 = vld [vmem:[%s5675 + $0x5c] sm:$0x1]
        %v5869 = vshrl.u32 %v5852, 16
        %v5871 = vrot.slane %v5869, 4
        %v5872 = vshll.u32 %v5852, 16
        %v5874 = vrot.slane %v5872, 5
        %v5875 = vor.u32 %v5871, %v5874
        %v5876 = vrot.slane %v5875, 4
        %v5878 = vshll.u32 %v5853, 16
        %v5880 = vrot.slane %v5878, 5
        %v5881 = vsel %vm662, %v5876, %v5880
        %v5883 = vshrl.u32 %v5854, 16
        %v5885 = vrot.slane %v5883, 4
        %v5886 = vshll.u32 %v5854, 16
        %v5888 = vrot.slane %v5886, 5
        %v5889 = vor.u32 %v5885, %v5888
        %v5890 = vrot.slane %v5889, 4
        %v5892 = vshll.u32 %v5855, 16
        %v5894 = vrot.slane %v5892, 5
        %v5895 = vsel %vm662, %v5890, %v5894
        %v5897 = vshrl.u32 %v5856, 16
        %v5899 = vrot.slane %v5897, 4
        %v5900 = vshll.u32 %v5856, 16
        %v5902 = vrot.slane %v5900, 5
        %v5903 = vor.u32 %v5899, %v5902
        %v5904 = vrot.slane %v5903, 4
        %v5906 = vshll.u32 %v5857, 16
        %v5908 = vrot.slane %v5906, 5
        %v5909 = vsel %vm662, %v5904, %v5908
        %v5911 = vshrl.u32 %v5858, 16
        %v5913 = vrot.slane %v5911, 4
        %v5914 = vshll.u32 %v5858, 16
        %v5916 = vrot.slane %v5914, 5
        %v5917 = vor.u32 %v5913, %v5916
        %v5918 = vrot.slane %v5917, 4
        %v5920 = vshll.u32 %v5859, 16
        %v5922 = vrot.slane %v5920, 5
        %v5923 = vsel %vm662, %v5918, %v5922
        %v5925 = vshrl.u32 %v5860, 16
        %v5927 = vrot.slane %v5925, 4
        %v5928 = vshll.u32 %v5860, 16
        %v5930 = vrot.slane %v5928, 5
        %v5931 = vor.u32 %v5927, %v5930
        %v5932 = vrot.slane %v5931, 4
        %v5934 = vshll.u32 %v5861, 16
        %v5936 = vrot.slane %v5934, 5
        %v5937 = vsel %vm662, %v5932, %v5936
        %v5939 = vshrl.u32 %v5862, 16
        %v5941 = vrot.slane %v5939, 4
        %v5942 = vshll.u32 %v5862, 16
        %v5944 = vrot.slane %v5942, 5
        %v5945 = vor.u32 %v5941, %v5944
        %v5946 = vrot.slane %v5945, 4
        %v5948 = vshll.u32 %v5863, 16
        %v5950 = vrot.slane %v5948, 5
        %v5951 = vsel %vm662, %v5946, %v5950
        %v5953 = vshrl.u32 %v5864, 16
        %v5955 = vrot.slane %v5953, 4
        %v5956 = vshll.u32 %v5864, 16
        %v5958 = vrot.slane %v5956, 5
        %v5959 = vor.u32 %v5955, %v5958
        %v5960 = vrot.slane %v5959, 4
        %v5962 = vshll.u32 %v5865, 16
        %v5964 = vrot.slane %v5962, 5
        %v5965 = vsel %vm662, %v5960, %v5964
        %v5967 = vshrl.u32 %v5866, 16
        %v5969 = vrot.slane %v5967, 4
        %v5970 = vshll.u32 %v5866, 16
        %v5972 = vrot.slane %v5970, 5
        %v5973 = vor.u32 %v5969, %v5972
        %v5974 = vrot.slane %v5973, 4
        %v5976 = vshll.u32 %v5867, 16
        %v5978 = vrot.slane %v5976, 5
        %v5979 = vsel %vm662, %v5974, %v5978
        %v5980 = vunpack.c.l.b16 %v5881
        %v5981 = vunpack.c.l.b16 %v5895
        %v5982 = vunpack.c.l.b16 %v5909
        %v5983 = vunpack.c.l.b16 %v5923
        %v5984 = vunpack.c.l.b16 %v5937
        %v5985 = vunpack.c.l.b16 %v5951
        %v5986 = vunpack.c.l.b16 %v5965
        %v5987 = vunpack.c.l.b16 %v5979
        %v5988 = vpack.c.b16 %v5981, %v5980
        %v5989 = vpack.c.b16 %v5983, %v5982
        %v5990 = vpack.c.b16 %v5985, %v5984
        %v5991 = vpack.c.b16 %v5987, %v5986
        %5996 = vst [vmem:[#allocation5 + $0x28] sm:$0xff] %v5988
        %5997 = vst [vmem:[#allocation5 + $0x70] sm:$0xff] %v5989
        %5998 = vst [vmem:[#allocation5 + $0xb8] sm:$0xff] %v5990
        %5999 = vst [vmem:[#allocation5 + $0x100] sm:$0xff] %v5991
        %s6000 = scalar_lea.vmem [#allocation4], 24
        %v6001 = vld [vmem:[%s6000] sm:$0x8]
        %v6002 = vld [vmem:[%s6000 + $0x4] sm:$0xf]
        %v6003 = vld [vmem:[%s6000 + $0xc] sm:$0x8]
        %v6004 = vld [vmem:[%s6000 + $0x10] sm:$0xf]
        %v6005 = vld [vmem:[%s6000 + $0x18] sm:$0x8]
        %v6006 = vld [vmem:[%s6000 + $0x1c] sm:$0xf]
        %v6007 = vld [vmem:[%s6000 + $0x24] sm:$0x8]
        %v6008 = vld [vmem:[%s6000 + $0x28] sm:$0xf]
        %v6009 = vld [vmem:[%s6000 + $0x30] sm:$0x8]
        %v6010 = vld [vmem:[%s6000 + $0x34] sm:$0xf]
        %v6011 = vld [vmem:[%s6000 + $0x3c] sm:$0x8]
        %v6012 = vld [vmem:[%s6000 + $0x40] sm:$0xf]
        %v6013 = vld [vmem:[%s6000 + $0x48] sm:$0x8]
        %v6014 = vld [vmem:[%s6000 + $0x4c] sm:$0xf]
        %v6015 = vld [vmem:[%s6000 + $0x54] sm:$0x8]
        %v6016 = vld [vmem:[%s6000 + $0x58] sm:$0xf]
        %v6018 = vshrl.u32 %v6001, 16
        %v6020 = vrot.slane %v6018, 7
        %v6021 = vrot.slane %v6020, 4
        %v6023 = vshrl.u32 %v6002, 16
        %v6025 = vrot.slane %v6023, 7
        %v6026 = vshll.u32 %v6002, 16
        %v6028 = vor.u32 %v6025, %v6026
        %v6029 = vsel %vm395, %v6021, %v6028
        %v6031 = vshrl.u32 %v6003, 16
        %v6033 = vrot.slane %v6031, 7
        %v6034 = vrot.slane %v6033, 4
        %v6036 = vshrl.u32 %v6004, 16
        %v6038 = vrot.slane %v6036, 7
        %v6039 = vshll.u32 %v6004, 16
        %v6041 = vor.u32 %v6038, %v6039
        %v6042 = vsel %vm395, %v6034, %v6041
        %v6044 = vshrl.u32 %v6005, 16
        %v6046 = vrot.slane %v6044, 7
        %v6047 = vrot.slane %v6046, 4
        %v6049 = vshrl.u32 %v6006, 16
        %v6051 = vrot.slane %v6049, 7
        %v6052 = vshll.u32 %v6006, 16
        %v6054 = vor.u32 %v6051, %v6052
        %v6055 = vsel %vm395, %v6047, %v6054
        %v6057 = vshrl.u32 %v6007, 16
        %v6059 = vrot.slane %v6057, 7
        %v6060 = vrot.slane %v6059, 4
        %v6062 = vshrl.u32 %v6008, 16
        %v6064 = vrot.slane %v6062, 7
        %v6065 = vshll.u32 %v6008, 16
        %v6067 = vor.u32 %v6064, %v6065
        %v6068 = vsel %vm395, %v6060, %v6067
        %v6070 = vshrl.u32 %v6009, 16
        %v6072 = vrot.slane %v6070, 7
        %v6073 = vrot.slane %v6072, 4
        %v6075 = vshrl.u32 %v6010, 16
        %v6077 = vrot.slane %v6075, 7
        %v6078 = vshll.u32 %v6010, 16
        %v6080 = vor.u32 %v6077, %v6078
        %v6081 = vsel %vm395, %v6073, %v6080
        %v6083 = vshrl.u32 %v6011, 16
        %v6085 = vrot.slane %v6083, 7
        %v6086 = vrot.slane %v6085, 4
        %v6088 = vshrl.u32 %v6012, 16
        %v6090 = vrot.slane %v6088, 7
        %v6091 = vshll.u32 %v6012, 16
        %v6093 = vor.u32 %v6090, %v6091
        %v6094 = vsel %vm395, %v6086, %v6093
        %v6096 = vshrl.u32 %v6013, 16
        %v6098 = vrot.slane %v6096, 7
        %v6099 = vrot.slane %v6098, 4
        %v6101 = vshrl.u32 %v6014, 16
        %v6103 = vrot.slane %v6101, 7
        %v6104 = vshll.u32 %v6014, 16
        %v6106 = vor.u32 %v6103, %v6104
        %v6107 = vsel %vm395, %v6099, %v6106
        %v6109 = vshrl.u32 %v6015, 16
        %v6111 = vrot.slane %v6109, 7
        %v6112 = vrot.slane %v6111, 4
        %v6114 = vshrl.u32 %v6016, 16
        %v6116 = vrot.slane %v6114, 7
        %v6117 = vshll.u32 %v6016, 16
        %v6119 = vor.u32 %v6116, %v6117
        %v6120 = vsel %vm395, %v6112, %v6119
        %v6121 = vunpack.c.l.b16 %v6029
        %v6122 = vunpack.c.l.b16 %v6042
        %v6123 = vunpack.c.l.b16 %v6055
        %v6124 = vunpack.c.l.b16 %v6068
        %v6125 = vunpack.c.l.b16 %v6081
        %v6126 = vunpack.c.l.b16 %v6094
        %v6127 = vunpack.c.l.b16 %v6107
        %v6128 = vunpack.c.l.b16 %v6120
        %v6129 = vpack.c.b16 %v6122, %v6121
        %v6130 = vpack.c.b16 %v6124, %v6123
        %v6131 = vpack.c.b16 %v6126, %v6125
        %v6132 = vpack.c.b16 %v6128, %v6127
        %6137 = vst [vmem:[#allocation5 + $0x30] sm:$0xff] %v6129
        %6138 = vst [vmem:[#allocation5 + $0x78] sm:$0xff] %v6130
        %6139 = vst [vmem:[#allocation5 + $0xc0] sm:$0xff] %v6131
        %6140 = vst [vmem:[#allocation5 + $0x108] sm:$0xff] %v6132
        %v6141 = vld [vmem:[%s6000 + $0x4] sm:$0xf]
        %v6142 = vld [vmem:[%s6000 + $0x10] sm:$0xf]
        %v6143 = vld [vmem:[%s6000 + $0x1c] sm:$0xf]
        %v6144 = vld [vmem:[%s6000 + $0x28] sm:$0xf]
        %v6145 = vld [vmem:[%s6000 + $0x34] sm:$0xf]
        %v6146 = vld [vmem:[%s6000 + $0x40] sm:$0xf]
        %v6147 = vld [vmem:[%s6000 + $0x4c] sm:$0xf]
        %v6148 = vld [vmem:[%s6000 + $0x58] sm:$0xf]
        %v6157 = vunpack.c.l.b16 %v6141
        %v6158 = vunpack.c.l.b16 %v6142
        %v6159 = vunpack.c.l.b16 %v6143
        %v6160 = vunpack.c.l.b16 %v6144
        %v6161 = vunpack.c.l.b16 %v6145
        %v6162 = vunpack.c.l.b16 %v6146
        %v6163 = vunpack.c.l.b16 %v6147
        %v6164 = vunpack.c.l.b16 %v6148
        %v6165 = vpack.c.b16 %v6158, %v6157
        %v6166 = vpack.c.b16 %v6160, %v6159
        %v6167 = vpack.c.b16 %v6162, %v6161
        %v6168 = vpack.c.b16 %v6164, %v6163
        %6173 = vst [vmem:[#allocation5 + $0x38] sm:$0xff] %v6165
        %6174 = vst [vmem:[#allocation5 + $0x80] sm:$0xff] %v6166
        %6175 = vst [vmem:[#allocation5 + $0xc8] sm:$0xff] %v6167
        %6176 = vst [vmem:[#allocation5 + $0x110] sm:$0xff] %v6168
        %v6177 = vld [vmem:[%s6000 + $0x4] sm:$0xf]
        %v6178 = vld [vmem:[%s6000 + $0x8] sm:$0x1]
        %v6179 = vld [vmem:[%s6000 + $0x10] sm:$0xf]
        %v6180 = vld [vmem:[%s6000 + $0x14] sm:$0x1]
        %v6181 = vld [vmem:[%s6000 + $0x1c] sm:$0xf]
        %v6182 = vld [vmem:[%s6000 + $0x20] sm:$0x1]
        %v6183 = vld [vmem:[%s6000 + $0x28] sm:$0xf]
        %v6184 = vld [vmem:[%s6000 + $0x2c] sm:$0x1]
        %v6185 = vld [vmem:[%s6000 + $0x34] sm:$0xf]
        %v6186 = vld [vmem:[%s6000 + $0x38] sm:$0x1]
        %v6187 = vld [vmem:[%s6000 + $0x40] sm:$0xf]
        %v6188 = vld [vmem:[%s6000 + $0x44] sm:$0x1]
        %v6189 = vld [vmem:[%s6000 + $0x4c] sm:$0xf]
        %v6190 = vld [vmem:[%s6000 + $0x50] sm:$0x1]
        %v6191 = vld [vmem:[%s6000 + $0x58] sm:$0xf]
        %v6192 = vld [vmem:[%s6000 + $0x5c] sm:$0x1]
        %v6194 = vshrl.u32 %v6177, 16
        %v6196 = vrot.slane %v6194, 4
        %v6197 = vshll.u32 %v6177, 16
        %v6199 = vrot.slane %v6197, 5
        %v6200 = vor.u32 %v6196, %v6199
        %v6201 = vrot.slane %v6200, 4
        %v6203 = vshll.u32 %v6178, 16
        %v6205 = vrot.slane %v6203, 5
        %v6206 = vsel %vm662, %v6201, %v6205
        %v6208 = vshrl.u32 %v6179, 16
        %v6210 = vrot.slane %v6208, 4
        %v6211 = vshll.u32 %v6179, 16
        %v6213 = vrot.slane %v6211, 5
        %v6214 = vor.u32 %v6210, %v6213
        %v6215 = vrot.slane %v6214, 4
        %v6217 = vshll.u32 %v6180, 16
        %v6219 = vrot.slane %v6217, 5
        %v6220 = vsel %vm662, %v6215, %v6219
        %v6222 = vshrl.u32 %v6181, 16
        %v6224 = vrot.slane %v6222, 4
        %v6225 = vshll.u32 %v6181, 16
        %v6227 = vrot.slane %v6225, 5
        %v6228 = vor.u32 %v6224, %v6227
        %v6229 = vrot.slane %v6228, 4
        %v6231 = vshll.u32 %v6182, 16
        %v6233 = vrot.slane %v6231, 5
        %v6234 = vsel %vm662, %v6229, %v6233
        %v6236 = vshrl.u32 %v6183, 16
        %v6238 = vrot.slane %v6236, 4
        %v6239 = vshll.u32 %v6183, 16
        %v6241 = vrot.slane %v6239, 5
        %v6242 = vor.u32 %v6238, %v6241
        %v6243 = vrot.slane %v6242, 4
        %v6245 = vshll.u32 %v6184, 16
        %v6247 = vrot.slane %v6245, 5
        %v6248 = vsel %vm662, %v6243, %v6247
        %v6250 = vshrl.u32 %v6185, 16
        %v6252 = vrot.slane %v6250, 4
        %v6253 = vshll.u32 %v6185, 16
        %v6255 = vrot.slane %v6253, 5
        %v6256 = vor.u32 %v6252, %v6255
        %v6257 = vrot.slane %v6256, 4
        %v6259 = vshll.u32 %v6186, 16
        %v6261 = vrot.slane %v6259, 5
        %v6262 = vsel %vm662, %v6257, %v6261
        %v6264 = vshrl.u32 %v6187, 16
        %v6266 = vrot.slane %v6264, 4
        %v6267 = vshll.u32 %v6187, 16
        %v6269 = vrot.slane %v6267, 5
        %v6270 = vor.u32 %v6266, %v6269
        %v6271 = vrot.slane %v6270, 4
        %v6273 = vshll.u32 %v6188, 16
        %v6275 = vrot.slane %v6273, 5
        %v6276 = vsel %vm662, %v6271, %v6275
        %v6278 = vshrl.u32 %v6189, 16
        %v6280 = vrot.slane %v6278, 4
        %v6281 = vshll.u32 %v6189, 16
        %v6283 = vrot.slane %v6281, 5
        %v6284 = vor.u32 %v6280, %v6283
        %v6285 = vrot.slane %v6284, 4
        %v6287 = vshll.u32 %v6190, 16
        %v6289 = vrot.slane %v6287, 5
        %v6290 = vsel %vm662, %v6285, %v6289
        %v6292 = vshrl.u32 %v6191, 16
        %v6294 = vrot.slane %v6292, 4
        %v6295 = vshll.u32 %v6191, 16
        %v6297 = vrot.slane %v6295, 5
        %v6298 = vor.u32 %v6294, %v6297
        %v6299 = vrot.slane %v6298, 4
        %v6301 = vshll.u32 %v6192, 16
        %v6303 = vrot.slane %v6301, 5
        %v6304 = vsel %vm662, %v6299, %v6303
        %v6305 = vunpack.c.l.b16 %v6206
        %v6306 = vunpack.c.l.b16 %v6220
        %v6307 = vunpack.c.l.b16 %v6234
        %v6308 = vunpack.c.l.b16 %v6248
        %v6309 = vunpack.c.l.b16 %v6262
        %v6310 = vunpack.c.l.b16 %v6276
        %v6311 = vunpack.c.l.b16 %v6290
        %v6312 = vunpack.c.l.b16 %v6304
        %v6313 = vpack.c.b16 %v6306, %v6305
        %v6314 = vpack.c.b16 %v6308, %v6307
        %v6315 = vpack.c.b16 %v6310, %v6309
        %v6316 = vpack.c.b16 %v6312, %v6311
        %6321 = vst [vmem:[#allocation5 + $0x40] sm:$0xff] %v6313
        %6322 = vst [vmem:[#allocation5 + $0x88] sm:$0xff] %v6314
        %6323 = vst [vmem:[#allocation5 + $0xd0] sm:$0xff] %v6315
        %6324 = vst [vmem:[#allocation5 + $0x118] sm:$0xff] %v6316
        %v6325 = vld [vmem:[#allocation5] sm:$0xff]
        %v6326 = vld [vmem:[#allocation5 + $0x8] sm:$0xff]
        %v6327 = vld [vmem:[#allocation5 + $0x10] sm:$0xff]
        %v6328 = vld [vmem:[#allocation5 + $0x18] sm:$0xff]
        %v6329 = vld [vmem:[#allocation5 + $0x20] sm:$0xff]
        %v6330 = vld [vmem:[#allocation5 + $0x28] sm:$0xff]
        %v6331 = vld [vmem:[#allocation5 + $0x30] sm:$0xff]
        %v6332 = vld [vmem:[#allocation5 + $0x38] sm:$0xff]
        %v6333 = vld [vmem:[#allocation5 + $0x40] sm:$0xff]
        %v6334 = vld [vmem:[#allocation5 + $0x48] sm:$0xff]
        %v6335 = vld [vmem:[#allocation5 + $0x50] sm:$0xff]
        %v6336 = vld [vmem:[#allocation5 + $0x58] sm:$0xff]
        %v6337 = vld [vmem:[#allocation5 + $0x60] sm:$0xff]
        %v6338 = vld [vmem:[#allocation5 + $0x68] sm:$0xff]
        %v6339 = vld [vmem:[#allocation5 + $0x70] sm:$0xff]
        %v6340 = vld [vmem:[#allocation5 + $0x78] sm:$0xff]
        %v6341 = vld [vmem:[#allocation5 + $0x80] sm:$0xff]
        %v6342 = vld [vmem:[#allocation5 + $0x88] sm:$0xff]
        %v6343 = vld [vmem:[#allocation5 + $0x90] sm:$0xff]
        %v6344 = vld [vmem:[#allocation5 + $0x98] sm:$0xff]
        %v6345 = vld [vmem:[#allocation5 + $0xa0] sm:$0xff]
        %v6346 = vld [vmem:[#allocation5 + $0xa8] sm:$0xff]
        %v6347 = vld [vmem:[#allocation5 + $0xb0] sm:$0xff]
        %v6348 = vld [vmem:[#allocation5 + $0xb8] sm:$0xff]
        %v6349 = vld [vmem:[#allocation5 + $0xc0] sm:$0xff]
        %v6350 = vld [vmem:[#allocation5 + $0xc8] sm:$0xff]
        %v6351 = vld [vmem:[#allocation5 + $0xd0] sm:$0xff]
        %v6352 = vld [vmem:[#allocation5 + $0xd8] sm:$0xff]
        %v6353 = vld [vmem:[#allocation5 + $0xe0] sm:$0xff]
        %v6354 = vld [vmem:[#allocation5 + $0xe8] sm:$0xff]
        %v6355 = vld [vmem:[#allocation5 + $0xf0] sm:$0xff]
        %v6356 = vld [vmem:[#allocation5 + $0xf8] sm:$0xff]
        %v6357 = vld [vmem:[#allocation5 + $0x100] sm:$0xff]
        %v6358 = vld [vmem:[#allocation5 + $0x108] sm:$0xff]
        %v6359 = vld [vmem:[#allocation5 + $0x110] sm:$0xff]
        %v6360 = vld [vmem:[#allocation5 + $0x118] sm:$0xff]
        %v6361 = vld [vmem:[#allocation12] sm:$0xf]
        %v6362 = vld [vmem:[#allocation12 + $0x4] sm:$0xf]
        %v6363 = vld [vmem:[#allocation12 + $0x8] sm:$0xf]
        %v6364 = vld [vmem:[#allocation12 + $0xc] sm:$0xf]
        %v6365 = vld [vmem:[#allocation12 + $0x10] sm:$0xf]
        %v6366 = vld [vmem:[#allocation12 + $0x14] sm:$0xf]
        %v6367 = vld [vmem:[#allocation12 + $0x18] sm:$0xf]
        %v6368 = vld [vmem:[#allocation12 + $0x1c] sm:$0xf]
        %v6369 = vld [vmem:[#allocation12 + $0x20] sm:$0xf]
        %v6370 = vld [vmem:[#allocation12 + $0x24] sm:$0xf]
        %v6371 = vld [vmem:[#allocation12 + $0x28] sm:$0xf]
        %v6372 = vld [vmem:[#allocation12 + $0x2c] sm:$0xf]
        %v6373 = vld [vmem:[#allocation12 + $0x30] sm:$0xf]
        %v6374 = vld [vmem:[#allocation12 + $0x34] sm:$0xf]
        %v6375 = vld [vmem:[#allocation12 + $0x38] sm:$0xf]
        %v6376 = vld [vmem:[#allocation12 + $0x3c] sm:$0xf]
        %v6377 = vld [vmem:[#allocation12 + $0x40] sm:$0xf]
        %v6378 = vld [vmem:[#allocation12 + $0x44] sm:$0xf]
        %v6379 = vld [vmem:[#allocation12 + $0x48] sm:$0xf]
        %v6380 = vld [vmem:[#allocation12 + $0x4c] sm:$0xf]
        %v6381 = vld [vmem:[#allocation12 + $0x50] sm:$0xf]
        %v6382 = vld [vmem:[#allocation12 + $0x54] sm:$0xf]
        %v6383 = vld [vmem:[#allocation12 + $0x58] sm:$0xf]
        %v6384 = vld [vmem:[#allocation12 + $0x5c] sm:$0xf]
        %v6385 = vld [vmem:[#allocation12 + $0x60] sm:$0xf]
        %v6386 = vld [vmem:[#allocation12 + $0x64] sm:$0xf]
        %v6387 = vld [vmem:[#allocation12 + $0x68] sm:$0xf]
        %v6388 = vld [vmem:[#allocation12 + $0x6c] sm:$0xf]
        %v6389 = vld [vmem:[#allocation12 + $0x70] sm:$0xf]
        %v6390 = vld [vmem:[#allocation12 + $0x74] sm:$0xf]
        %v6391 = vld [vmem:[#allocation12 + $0x78] sm:$0xf]
        %v6392 = vld [vmem:[#allocation12 + $0x7c] sm:$0xf]
        %v6393 = vld [vmem:[#allocation12 + $0x80] sm:$0xf]
        %v6394 = vld [vmem:[#allocation12 + $0x84] sm:$0xf]
        %v6395 = vld [vmem:[#allocation12 + $0x88] sm:$0xf]
        %v6396 = vld [vmem:[#allocation12 + $0x8c] sm:$0xf]
        %v6397 = vld [vmem:[#allocation12 + $0x90] sm:$0xf]
        %v6398 = vld [vmem:[#allocation12 + $0x94] sm:$0xf]
        %v6399 = vld [vmem:[#allocation12 + $0x98] sm:$0xf]
        %v6400 = vld [vmem:[#allocation12 + $0x9c] sm:$0xf]
        %v6401 = vld [vmem:[#allocation12 + $0xa0] sm:$0xf]
        %v6402 = vld [vmem:[#allocation12 + $0xa4] sm:$0xf]
        %v6403 = vld [vmem:[#allocation12 + $0xa8] sm:$0xf]
        %v6404 = vld [vmem:[#allocation12 + $0xac] sm:$0xf]
        %v6405 = vld [vmem:[#allocation12 + $0xb0] sm:$0xf]
        %v6406 = vld [vmem:[#allocation12 + $0xb4] sm:$0xf]
        %v6407 = vld [vmem:[#allocation12 + $0xb8] sm:$0xf]
        %v6408 = vld [vmem:[#allocation12 + $0xbc] sm:$0xf]
        %v6409 = vld [vmem:[#allocation12 + $0xc0] sm:$0xf]
        %v6410 = vld [vmem:[#allocation12 + $0xc4] sm:$0xf]
        %v6411 = vld [vmem:[#allocation12 + $0xc8] sm:$0xf]
        %v6412 = vld [vmem:[#allocation12 + $0xcc] sm:$0xf]
        %v6413 = vld [vmem:[#allocation12 + $0xd0] sm:$0xf]
        %v6414 = vld [vmem:[#allocation12 + $0xd4] sm:$0xf]
        %v6415 = vld [vmem:[#allocation12 + $0xd8] sm:$0xf]
        %v6416 = vld [vmem:[#allocation12 + $0xdc] sm:$0xf]
        %v6417 = vld [vmem:[#allocation12 + $0xe0] sm:$0xf]
        %v6418 = vld [vmem:[#allocation12 + $0xe4] sm:$0xf]
        %v6419 = vld [vmem:[#allocation12 + $0xe8] sm:$0xf]
        %v6420 = vld [vmem:[#allocation12 + $0xec] sm:$0xf]
        %v6421 = vld [vmem:[#allocation12 + $0xf0] sm:$0xf]
        %v6422 = vld [vmem:[#allocation12 + $0xf4] sm:$0xf]
        %v6423 = vld [vmem:[#allocation12 + $0xf8] sm:$0xf]
        %v6424 = vld [vmem:[#allocation12 + $0xfc] sm:$0xf]
        %v6425 = vld [vmem:[#allocation12 + $0x100] sm:$0xf]
        %v6426 = vld [vmem:[#allocation12 + $0x104] sm:$0xf]
        %v6427 = vld [vmem:[#allocation12 + $0x108] sm:$0xf]
        %v6428 = vld [vmem:[#allocation12 + $0x10c] sm:$0xf]
        %v6429 = vld [vmem:[#allocation12 + $0x110] sm:$0xf]
        %v6430 = vld [vmem:[#allocation12 + $0x114] sm:$0xf]
        %v6431 = vld [vmem:[#allocation12 + $0x118] sm:$0xf]
        %v6432 = vld [vmem:[#allocation12 + $0x11c] sm:$0xf]
        %v6433 = vld [vmem:[#allocation12 + $0x120] sm:$0xf]
        %v6434 = vld [vmem:[#allocation12 + $0x124] sm:$0xf]
        %v6435 = vld [vmem:[#allocation12 + $0x128] sm:$0xf]
        %v6436 = vld [vmem:[#allocation12 + $0x12c] sm:$0xf]
        %v6437 = vld [vmem:[#allocation12 + $0x130] sm:$0xf]
        %v6438 = vld [vmem:[#allocation12 + $0x134] sm:$0xf]
        %v6439 = vld [vmem:[#allocation12 + $0x138] sm:$0xf]
        %v6440 = vld [vmem:[#allocation12 + $0x13c] sm:$0xf]
        %v6441 = vld [vmem:[#allocation12 + $0x140] sm:$0xf]
        %v6442 = vld [vmem:[#allocation12 + $0x144] sm:$0xf]
        %v6443 = vld [vmem:[#allocation12 + $0x148] sm:$0xf]
        %v6444 = vld [vmem:[#allocation12 + $0x14c] sm:$0xf]
        %v6445 = vld [vmem:[#allocation12 + $0x150] sm:$0xf]
        %v6446 = vld [vmem:[#allocation12 + $0x154] sm:$0xf]
        %v6447 = vld [vmem:[#allocation12 + $0x158] sm:$0xf]
        %v6448 = vld [vmem:[#allocation12 + $0x15c] sm:$0xf]
        %v6449 = vld [vmem:[#allocation12 + $0x160] sm:$0xf]
        %v6450 = vld [vmem:[#allocation12 + $0x164] sm:$0xf]
        %v6451 = vld [vmem:[#allocation12 + $0x168] sm:$0xf]
        %v6452 = vld [vmem:[#allocation12 + $0x16c] sm:$0xf]
        %v6453 = vld [vmem:[#allocation12 + $0x170] sm:$0xf]
        %v6454 = vld [vmem:[#allocation12 + $0x174] sm:$0xf]
        %v6455 = vld [vmem:[#allocation12 + $0x178] sm:$0xf]
        %v6456 = vld [vmem:[#allocation12 + $0x17c] sm:$0xf]
        %v6457 = vld [vmem:[#allocation12 + $0x180] sm:$0xf]
        %v6458 = vld [vmem:[#allocation12 + $0x184] sm:$0xf]
        %v6459 = vld [vmem:[#allocation12 + $0x188] sm:$0xf]
        %v6460 = vld [vmem:[#allocation12 + $0x18c] sm:$0xf]
        %v6461 = vld [vmem:[#allocation12 + $0x190] sm:$0xf]
        %v6462 = vld [vmem:[#allocation12 + $0x194] sm:$0xf]
        %v6463 = vld [vmem:[#allocation12 + $0x198] sm:$0xf]
        %v6464 = vld [vmem:[#allocation12 + $0x19c] sm:$0xf]
        %v6465 = vld [vmem:[#allocation12 + $0x1a0] sm:$0xf]
        %v6466 = vld [vmem:[#allocation12 + $0x1a4] sm:$0xf]
        %v6467 = vld [vmem:[#allocation12 + $0x1a8] sm:$0xf]
        %v6468 = vld [vmem:[#allocation12 + $0x1ac] sm:$0xf]
        %v6469 = vld [vmem:[#allocation12 + $0x1b0] sm:$0xf]
        %v6470 = vld [vmem:[#allocation12 + $0x1b4] sm:$0xf]
        %v6471 = vld [vmem:[#allocation12 + $0x1b8] sm:$0xf]
        %v6472 = vld [vmem:[#allocation12 + $0x1bc] sm:$0xf]
        %v6473 = vld [vmem:[#allocation12 + $0x1c0] sm:$0xf]
        %v6474 = vld [vmem:[#allocation12 + $0x1c4] sm:$0xf]
        %v6475 = vld [vmem:[#allocation12 + $0x1c8] sm:$0xf]
        %v6476 = vld [vmem:[#allocation12 + $0x1cc] sm:$0xf]
        %v6477 = vld [vmem:[#allocation12 + $0x1d0] sm:$0xf]
        %v6478 = vld [vmem:[#allocation12 + $0x1d4] sm:$0xf]
        %v6479 = vld [vmem:[#allocation12 + $0x1d8] sm:$0xf]
        %v6480 = vld [vmem:[#allocation12 + $0x1dc] sm:$0xf]
        %v6481 = vld [vmem:[#allocation12 + $0x1e0] sm:$0xf]
        %v6482 = vld [vmem:[#allocation12 + $0x1e4] sm:$0xf]
        %v6483 = vld [vmem:[#allocation12 + $0x1e8] sm:$0xf]
        %v6484 = vld [vmem:[#allocation12 + $0x1ec] sm:$0xf]
        %v6485 = vld [vmem:[#allocation12 + $0x1f0] sm:$0xf]
        %v6486 = vld [vmem:[#allocation12 + $0x1f4] sm:$0xf]
        %v6487 = vld [vmem:[#allocation12 + $0x1f8] sm:$0xf]
        %v6488 = vld [vmem:[#allocation12 + $0x1fc] sm:$0xf]
        %v6489 = vld [vmem:[#allocation12 + $0x200] sm:$0xf]
        %v6490 = vld [vmem:[#allocation12 + $0x204] sm:$0xf]
        %v6491 = vld [vmem:[#allocation12 + $0x208] sm:$0xf]
        %v6492 = vld [vmem:[#allocation12 + $0x20c] sm:$0xf]
        %v6493 = vld [vmem:[#allocation12 + $0x210] sm:$0xf]
        %v6494 = vld [vmem:[#allocation12 + $0x214] sm:$0xf]
        %v6495 = vld [vmem:[#allocation12 + $0x218] sm:$0xf]
        %v6496 = vld [vmem:[#allocation12 + $0x21c] sm:$0xf]
        %v6497 = vld [vmem:[#allocation12 + $0x220] sm:$0xf]
        %v6498 = vld [vmem:[#allocation12 + $0x224] sm:$0xf]
        %v6499 = vld [vmem:[#allocation12 + $0x228] sm:$0xf]
        %v6500 = vld [vmem:[#allocation12 + $0x22c] sm:$0xf]
        %v6501 = vld [vmem:[#allocation12 + $0x230] sm:$0xf]
        %v6502 = vld [vmem:[#allocation12 + $0x234] sm:$0xf]
        %v6503 = vld [vmem:[#allocation12 + $0x238] sm:$0xf]
        %v6504 = vld [vmem:[#allocation12 + $0x23c] sm:$0xf]
        %v6649 = vunpack.c.l.b16 %v6361
        %v6650 = vunpack.c.l.b16 %v6362
        %v6651 = vunpack.c.l.b16 %v6363
        %v6652 = vunpack.c.l.b16 %v6364
        %v6653 = vunpack.c.l.b16 %v6365
        %v6654 = vunpack.c.l.b16 %v6366
        %v6655 = vunpack.c.l.b16 %v6367
        %v6656 = vunpack.c.l.b16 %v6368
        %v6657 = vunpack.c.l.b16 %v6369
        %v6658 = vunpack.c.l.b16 %v6370
        %v6659 = vunpack.c.l.b16 %v6371
        %v6660 = vunpack.c.l.b16 %v6372
        %v6661 = vunpack.c.l.b16 %v6373
        %v6662 = vunpack.c.l.b16 %v6374
        %v6663 = vunpack.c.l.b16 %v6375
        %v6664 = vunpack.c.l.b16 %v6376
        %v6665 = vunpack.c.l.b16 %v6377
        %v6666 = vunpack.c.l.b16 %v6378
        %v6667 = vunpack.c.l.b16 %v6379
        %v6668 = vunpack.c.l.b16 %v6380
        %v6669 = vunpack.c.l.b16 %v6381
        %v6670 = vunpack.c.l.b16 %v6382
        %v6671 = vunpack.c.l.b16 %v6383
        %v6672 = vunpack.c.l.b16 %v6384
        %v6673 = vunpack.c.l.b16 %v6385
        %v6674 = vunpack.c.l.b16 %v6386
        %v6675 = vunpack.c.l.b16 %v6387
        %v6676 = vunpack.c.l.b16 %v6388
        %v6677 = vunpack.c.l.b16 %v6389
        %v6678 = vunpack.c.l.b16 %v6390
        %v6679 = vunpack.c.l.b16 %v6391
        %v6680 = vunpack.c.l.b16 %v6392
        %v6681 = vunpack.c.l.b16 %v6393
        %v6682 = vunpack.c.l.b16 %v6394
        %v6683 = vunpack.c.l.b16 %v6395
        %v6684 = vunpack.c.l.b16 %v6396
        %v6685 = vunpack.c.l.b16 %v6397
        %v6686 = vunpack.c.l.b16 %v6398
        %v6687 = vunpack.c.l.b16 %v6399
        %v6688 = vunpack.c.l.b16 %v6400
        %v6689 = vunpack.c.l.b16 %v6401
        %v6690 = vunpack.c.l.b16 %v6402
        %v6691 = vunpack.c.l.b16 %v6403
        %v6692 = vunpack.c.l.b16 %v6404
        %v6693 = vunpack.c.l.b16 %v6405
        %v6694 = vunpack.c.l.b16 %v6406
        %v6695 = vunpack.c.l.b16 %v6407
        %v6696 = vunpack.c.l.b16 %v6408
        %v6697 = vunpack.c.l.b16 %v6409
        %v6698 = vunpack.c.l.b16 %v6410
        %v6699 = vunpack.c.l.b16 %v6411
        %v6700 = vunpack.c.l.b16 %v6412
        %v6701 = vunpack.c.l.b16 %v6413
        %v6702 = vunpack.c.l.b16 %v6414
        %v6703 = vunpack.c.l.b16 %v6415
        %v6704 = vunpack.c.l.b16 %v6416
        %v6705 = vunpack.c.l.b16 %v6417
        %v6706 = vunpack.c.l.b16 %v6418
        %v6707 = vunpack.c.l.b16 %v6419
        %v6708 = vunpack.c.l.b16 %v6420
        %v6709 = vunpack.c.l.b16 %v6421
        %v6710 = vunpack.c.l.b16 %v6422
        %v6711 = vunpack.c.l.b16 %v6423
        %v6712 = vunpack.c.l.b16 %v6424
        %v6713 = vunpack.c.l.b16 %v6425
        %v6714 = vunpack.c.l.b16 %v6426
        %v6715 = vunpack.c.l.b16 %v6427
        %v6716 = vunpack.c.l.b16 %v6428
        %v6717 = vunpack.c.l.b16 %v6429
        %v6718 = vunpack.c.l.b16 %v6430
        %v6719 = vunpack.c.l.b16 %v6431
        %v6720 = vunpack.c.l.b16 %v6432
        %v6721 = vunpack.c.l.b16 %v6433
        %v6722 = vunpack.c.l.b16 %v6434
        %v6723 = vunpack.c.l.b16 %v6435
        %v6724 = vunpack.c.l.b16 %v6436
        %v6725 = vunpack.c.l.b16 %v6437
        %v6726 = vunpack.c.l.b16 %v6438
        %v6727 = vunpack.c.l.b16 %v6439
        %v6728 = vunpack.c.l.b16 %v6440
        %v6729 = vunpack.c.l.b16 %v6441
        %v6730 = vunpack.c.l.b16 %v6442
        %v6731 = vunpack.c.l.b16 %v6443
        %v6732 = vunpack.c.l.b16 %v6444
        %v6733 = vunpack.c.l.b16 %v6445
        %v6734 = vunpack.c.l.b16 %v6446
        %v6735 = vunpack.c.l.b16 %v6447
        %v6736 = vunpack.c.l.b16 %v6448
        %v6737 = vunpack.c.l.b16 %v6449
        %v6738 = vunpack.c.l.b16 %v6450
        %v6739 = vunpack.c.l.b16 %v6451
        %v6740 = vunpack.c.l.b16 %v6452
        %v6741 = vunpack.c.l.b16 %v6453
        %v6742 = vunpack.c.l.b16 %v6454
        %v6743 = vunpack.c.l.b16 %v6455
        %v6744 = vunpack.c.l.b16 %v6456
        %v6745 = vunpack.c.l.b16 %v6457
        %v6746 = vunpack.c.l.b16 %v6458
        %v6747 = vunpack.c.l.b16 %v6459
        %v6748 = vunpack.c.l.b16 %v6460
        %v6749 = vunpack.c.l.b16 %v6461
        %v6750 = vunpack.c.l.b16 %v6462
        %v6751 = vunpack.c.l.b16 %v6463
        %v6752 = vunpack.c.l.b16 %v6464
        %v6753 = vunpack.c.l.b16 %v6465
        %v6754 = vunpack.c.l.b16 %v6466
        %v6755 = vunpack.c.l.b16 %v6467
        %v6756 = vunpack.c.l.b16 %v6468
        %v6757 = vunpack.c.l.b16 %v6469
        %v6758 = vunpack.c.l.b16 %v6470
        %v6759 = vunpack.c.l.b16 %v6471
        %v6760 = vunpack.c.l.b16 %v6472
        %v6761 = vunpack.c.l.b16 %v6473
        %v6762 = vunpack.c.l.b16 %v6474
        %v6763 = vunpack.c.l.b16 %v6475
        %v6764 = vunpack.c.l.b16 %v6476
        %v6765 = vunpack.c.l.b16 %v6477
        %v6766 = vunpack.c.l.b16 %v6478
        %v6767 = vunpack.c.l.b16 %v6479
        %v6768 = vunpack.c.l.b16 %v6480
        %v6769 = vunpack.c.l.b16 %v6481
        %v6770 = vunpack.c.l.b16 %v6482
        %v6771 = vunpack.c.l.b16 %v6483
        %v6772 = vunpack.c.l.b16 %v6484
        %v6773 = vunpack.c.l.b16 %v6485
        %v6774 = vunpack.c.l.b16 %v6486
        %v6775 = vunpack.c.l.b16 %v6487
        %v6776 = vunpack.c.l.b16 %v6488
        %v6777 = vunpack.c.l.b16 %v6489
        %v6778 = vunpack.c.l.b16 %v6490
        %v6779 = vunpack.c.l.b16 %v6491
        %v6780 = vunpack.c.l.b16 %v6492
        %v6781 = vunpack.c.l.b16 %v6493
        %v6782 = vunpack.c.l.b16 %v6494
        %v6783 = vunpack.c.l.b16 %v6495
        %v6784 = vunpack.c.l.b16 %v6496
        %v6785 = vunpack.c.l.b16 %v6497
        %v6786 = vunpack.c.l.b16 %v6498
        %v6787 = vunpack.c.l.b16 %v6499
        %v6788 = vunpack.c.l.b16 %v6500
        %v6789 = vunpack.c.l.b16 %v6501
        %v6790 = vunpack.c.l.b16 %v6502
        %v6791 = vunpack.c.l.b16 %v6503
        %v6792 = vunpack.c.l.b16 %v6504
        %v6793 = vpack.c.b16 %v6650, %v6649
        %v6794 = vpack.c.b16 %v6652, %v6651
        %v6795 = vpack.c.b16 %v6654, %v6653
        %v6796 = vpack.c.b16 %v6656, %v6655
        %v6797 = vpack.c.b16 %v6658, %v6657
        %v6798 = vpack.c.b16 %v6660, %v6659
        %v6799 = vpack.c.b16 %v6662, %v6661
        %v6800 = vpack.c.b16 %v6664, %v6663
        %v6801 = vpack.c.b16 %v6666, %v6665
        %v6802 = vpack.c.b16 %v6668, %v6667
        %v6803 = vpack.c.b16 %v6670, %v6669
        %v6804 = vpack.c.b16 %v6672, %v6671
        %v6805 = vpack.c.b16 %v6674, %v6673
        %v6806 = vpack.c.b16 %v6676, %v6675
        %v6807 = vpack.c.b16 %v6678, %v6677
        %v6808 = vpack.c.b16 %v6680, %v6679
        %v6809 = vpack.c.b16 %v6682, %v6681
        %v6810 = vpack.c.b16 %v6684, %v6683
        %v6811 = vpack.c.b16 %v6686, %v6685
        %v6812 = vpack.c.b16 %v6688, %v6687
        %v6813 = vpack.c.b16 %v6690, %v6689
        %v6814 = vpack.c.b16 %v6692, %v6691
        %v6815 = vpack.c.b16 %v6694, %v6693
        %v6816 = vpack.c.b16 %v6696, %v6695
        %v6817 = vpack.c.b16 %v6698, %v6697
        %v6818 = vpack.c.b16 %v6700, %v6699
        %v6819 = vpack.c.b16 %v6702, %v6701
        %v6820 = vpack.c.b16 %v6704, %v6703
        %v6821 = vpack.c.b16 %v6706, %v6705
        %v6822 = vpack.c.b16 %v6708, %v6707
        %v6823 = vpack.c.b16 %v6710, %v6709
        %v6824 = vpack.c.b16 %v6712, %v6711
        %v6825 = vpack.c.b16 %v6714, %v6713
        %v6826 = vpack.c.b16 %v6716, %v6715
        %v6827 = vpack.c.b16 %v6718, %v6717
        %v6828 = vpack.c.b16 %v6720, %v6719
        %v6829 = vpack.c.b16 %v6722, %v6721
        %v6830 = vpack.c.b16 %v6724, %v6723
        %v6831 = vpack.c.b16 %v6726, %v6725
        %v6832 = vpack.c.b16 %v6728, %v6727
        %v6833 = vpack.c.b16 %v6730, %v6729
        %v6834 = vpack.c.b16 %v6732, %v6731
        %v6835 = vpack.c.b16 %v6734, %v6733
        %v6836 = vpack.c.b16 %v6736, %v6735
        %v6837 = vpack.c.b16 %v6738, %v6737
        %v6838 = vpack.c.b16 %v6740, %v6739
        %v6839 = vpack.c.b16 %v6742, %v6741
        %v6840 = vpack.c.b16 %v6744, %v6743
        %v6841 = vpack.c.b16 %v6746, %v6745
        %v6842 = vpack.c.b16 %v6748, %v6747
        %v6843 = vpack.c.b16 %v6750, %v6749
        %v6844 = vpack.c.b16 %v6752, %v6751
        %v6845 = vpack.c.b16 %v6754, %v6753
        %v6846 = vpack.c.b16 %v6756, %v6755
        %v6847 = vpack.c.b16 %v6758, %v6757
        %v6848 = vpack.c.b16 %v6760, %v6759
        %v6849 = vpack.c.b16 %v6762, %v6761
        %v6850 = vpack.c.b16 %v6764, %v6763
        %v6851 = vpack.c.b16 %v6766, %v6765
        %v6852 = vpack.c.b16 %v6768, %v6767
        %v6853 = vpack.c.b16 %v6770, %v6769
        %v6854 = vpack.c.b16 %v6772, %v6771
        %v6855 = vpack.c.b16 %v6774, %v6773
        %v6856 = vpack.c.b16 %v6776, %v6775
        %v6857 = vpack.c.b16 %v6778, %v6777
        %v6858 = vpack.c.b16 %v6780, %v6779
        %v6859 = vpack.c.b16 %v6782, %v6781
        %v6860 = vpack.c.b16 %v6784, %v6783
        %v6861 = vpack.c.b16 %v6786, %v6785
        %v6862 = vpack.c.b16 %v6788, %v6787
        %v6863 = vpack.c.b16 %v6790, %v6789
        %v6864 = vpack.c.b16 %v6792, %v6791
        %6937 = vmatprep.subr.bf16.mxu0 0
        %6938 = vmatpush1.bf16.msra.mxu0 %v6793
        %6939 = vmatprep.subr.bf16.mxu0 0
        %6940 = vmatpush1.bf16.msra.mxu0 %v6794
        %6941 = vmatprep.subr.bf16.mxu0 0
        %6942 = vmatpush1.bf16.msra.mxu0 %v6795
        %6943 = vmatprep.subr.bf16.mxu0 0
        %6944 = vmatpush1.bf16.msra.mxu0 %v6796
        %6945 = vmatprep.subr.bf16.mxu0 0
        %6946 = vmatpush1.bf16.msra.mxu0 %v6797
        %6947 = vmatprep.subr.bf16.mxu0 0
        %6948 = vmatpush1.bf16.msra.mxu0 %v6798
        %6949 = vmatprep.subr.bf16.mxu0 0
        %6950 = vmatpush1.bf16.msra.mxu0 %v6799
        %6951 = vmatprep.subr.bf16.mxu0 0
        %6952 = vmatpush1.bf16.msra.mxu0 %v6800
        %6953 = vmatprep.subr.bf16.mxu0 0
        %6954 = vmatpush1.bf16.msra.mxu0 %v6801
        %6955 = vmatprep.subr.bf16.mxu0 0
        %6956 = vmatpush1.bf16.msra.mxu0 %v6802
        %6957 = vmatprep.subr.bf16.mxu0 0
        %6958 = vmatpush1.bf16.msra.mxu0 %v6803
        %6959 = vmatprep.subr.bf16.mxu0 0
        %6960 = vmatpush1.bf16.msra.mxu0 %v6804
        %6961 = vmatprep.subr.bf16.mxu0 0
        %6962 = vmatpush1.bf16.msra.mxu0 %v6805
        %6963 = vmatprep.subr.bf16.mxu0 0
        %6964 = vmatpush1.bf16.msra.mxu0 %v6806
        %6965 = vmatprep.subr.bf16.mxu0 0
        %6966 = vmatpush1.bf16.msra.mxu0 %v6807
        %6967 = vmatprep.subr.bf16.mxu0 0
        %6968 = vmatpush1.bf16.msra.mxu0 %v6808
        %6969 = vmatprep.mubr.bf16.mxu0 %v6326
        %6970 = vmatmul.mubr.bf16.gmra.mrb[0].mxu0 %v6325
        %v6971 = vpop.f32.mrb[0].mxu0
        %v6972 = vadd.f32 0.0, %v6971
        %v6973 = vpop.f32.mrb[0].mxu0
        %v6974 = vpop.f32.mrb[0].mxu0
        %v6975 = vadd.f32 0.0, %v6974
        %v6976 = vpop.f32.mrb[0].mxu0
        %6977 = vmatprep.mubr.bf16.mxu0 %v6335
        %6978 = vmatmul.mubr.bf16.gmra.mrb[0].mxu0 %v6334
        %v6979 = vpop.f32.mrb[0].mxu0
        %v6980 = vadd.f32 0.0, %v6979
        %v6981 = vpop.f32.mrb[0].mxu0
        %v6982 = vpop.f32.mrb[0].mxu0
        %v6983 = vadd.f32 0.0, %v6982
        %v6984 = vpop.f32.mrb[0].mxu0
        %6985 = vmatprep.mubr.bf16.mxu0 %v6344
        %6986 = vmatmul.mubr.bf16.gmra.mrb[0].mxu0 %v6343
        %v6987 = vpop.f32.mrb[0].mxu0
        %v6988 = vadd.f32 0.0, %v6987
        %v6989 = vpop.f32.mrb[0].mxu0
        %v6990 = vpop.f32.mrb[0].mxu0
        %v6991 = vadd.f32 0.0, %v6990
        %v6992 = vpop.f32.mrb[0].mxu0
        %6993 = vmatprep.mubr.bf16.mxu0 %v6353
        %6994 = vmatmul.mubr.bf16.gmra.mrb[0].mxu0 %v6352
        %v6995 = vpop.f32.mrb[0].mxu0
        %v6996 = vadd.f32 0.0, %v6995
        %v6997 = vpop.f32.mrb[0].mxu0
        %v6998 = vpop.f32.mrb[0].mxu0
        %v6999 = vadd.f32 0.0, %v6998
        %v7000 = vpop.f32.mrb[0].mxu0
        %7001 = vdwg.mxu0
        %7002 = vmatprep.subr.bf16.mxu0 0
        %7003 = vmatpush1.bf16.msra.mxu0 %v6809
        %7004 = vmatprep.subr.bf16.mxu0 0
        %7005 = vmatpush1.bf16.msra.mxu0 %v6810
        %7006 = vmatprep.subr.bf16.mxu0 0
        %7007 = vmatpush1.bf16.msra.mxu0 %v6811
        %7008 = vmatprep.subr.bf16.mxu0 0
        %7009 = vmatpush1.bf16.msra.mxu0 %v6812
        %7010 = vmatprep.subr.bf16.mxu0 0
        %7011 = vmatpush1.bf16.msra.mxu0 %v6813
        %7012 = vmatprep.subr.bf16.mxu0 0
        %7013 = vmatpush1.bf16.msra.mxu0 %v6814
        %7014 = vmatprep.subr.bf16.mxu0 0
        %7015 = vmatpush1.bf16.msra.mxu0 %v6815
        %7016 = vmatprep.subr.bf16.mxu0 0
        %7017 = vmatpush1.bf16.msra.mxu0 %v6816
        %7018 = vmatprep.subr.bf16.mxu0 0
        %7019 = vmatpush1.bf16.msra.mxu0 %v6817
        %7020 = vmatprep.subr.bf16.mxu0 0
        %7021 = vmatpush1.bf16.msra.mxu0 %v6818
        %7022 = vmatprep.subr.bf16.mxu0 0
        %7023 = vmatpush1.bf16.msra.mxu0 %v6819
        %7024 = vmatprep.subr.bf16.mxu0 0
        %7025 = vmatpush1.bf16.msra.mxu0 %v6820
        %7026 = vmatprep.subr.bf16.mxu0 0
        %7027 = vmatpush1.bf16.msra.mxu0 %v6821
        %7028 = vmatprep.subr.bf16.mxu0 0
        %7029 = vmatpush1.bf16.msra.mxu0 %v6822
        %7030 = vmatprep.subr.bf16.mxu0 0
        %7031 = vmatpush1.bf16.msra.mxu0 %v6823
        %7032 = vmatprep.subr.bf16.mxu0 0
        %7033 = vmatpush1.bf16.msra.mxu0 %v6824
        %7034 = vmatprep.mubr.bf16.mxu0 %v6328
        %7035 = vmatmul.mubr.bf16.gmra.mrb[0].mxu0 %v6327
        %v7036 = vpop.f32.mrb[0].mxu0
        %v7037 = vadd.f32 %v6972, %v7036
        %v7038 = vpop.f32.mrb[0].mxu0
        %v7039 = vpop.f32.mrb[0].mxu0
        %v7040 = vadd.f32 %v6975, %v7039
        %v7041 = vpop.f32.mrb[0].mxu0
        %7042 = vmatprep.mubr.bf16.mxu0 %v6337
        %7043 = vmatmul.mubr.bf16.gmra.mrb[0].mxu0 %v6336
        %v7044 = vpop.f32.mrb[0].mxu0
        %v7045 = vadd.f32 %v6980, %v7044
        %v7046 = vpop.f32.mrb[0].mxu0
        %v7047 = vpop.f32.mrb[0].mxu0
        %v7048 = vadd.f32 %v6983, %v7047
        %v7049 = vpop.f32.mrb[0].mxu0
        %7050 = vmatprep.mubr.bf16.mxu0 %v6346
        %7051 = vmatmul.mubr.bf16.gmra.mrb[0].mxu0 %v6345
        %v7052 = vpop.f32.mrb[0].mxu0
        %v7053 = vadd.f32 %v6988, %v7052
        %v7054 = vpop.f32.mrb[0].mxu0
        %v7055 = vpop.f32.mrb[0].mxu0
        %v7056 = vadd.f32 %v6991, %v7055
        %v7057 = vpop.f32.mrb[0].mxu0
        %7058 = vmatprep.mubr.bf16.mxu0 %v6355
        %7059 = vmatmul.mubr.bf16.gmra.mrb[0].mxu0 %v6354
        %v7060 = vpop.f32.mrb[0].mxu0
        %v7061 = vadd.f32 %v6996, %v7060
        %v7062 = vpop.f32.mrb[0].mxu0
        %v7063 = vpop.f32.mrb[0].mxu0
        %v7064 = vadd.f32 %v6999, %v7063
        %v7065 = vpop.f32.mrb[0].mxu0
        %7066 = vdwg.mxu0
        %7067 = vmatprep.subr.bf16.mxu0 0
        %7068 = vmatpush1.bf16.msra.mxu0 %v6825
        %7069 = vmatprep.subr.bf16.mxu0 0
        %7070 = vmatpush1.bf16.msra.mxu0 %v6826
        %7071 = vmatprep.subr.bf16.mxu0 0
        %7072 = vmatpush1.bf16.msra.mxu0 %v6827
        %7073 = vmatprep.subr.bf16.mxu0 0
        %7074 = vmatpush1.bf16.msra.mxu0 %v6828
        %7075 = vmatprep.subr.bf16.mxu0 0
        %7076 = vmatpush1.bf16.msra.mxu0 %v6829
        %7077 = vmatprep.subr.bf16.mxu0 0
        %7078 = vmatpush1.bf16.msra.mxu0 %v6830
        %7079 = vmatprep.subr.bf16.mxu0 0
        %7080 = vmatpush1.bf16.msra.mxu0 %v6831
        %7081 = vmatprep.subr.bf16.mxu0 0
        %7082 = vmatpush1.bf16.msra.mxu0 %v6832
        %7083 = vmatprep.subr.bf16.mxu0 0
        %7084 = vmatpush1.bf16.msra.mxu0 %v6833
        %7085 = vmatprep.subr.bf16.mxu0 0
        %7086 = vmatpush1.bf16.msra.mxu0 %v6834
        %7087 = vmatprep.subr.bf16.mxu0 0
        %7088 = vmatpush1.bf16.msra.mxu0 %v6835
        %7089 = vmatprep.subr.bf16.mxu0 0
        %7090 = vmatpush1.bf16.msra.mxu0 %v6836
        %7091 = vmatprep.subr.bf16.mxu0 0
        %7092 = vmatpush1.bf16.msra.mxu0 %v6837
        %7093 = vmatprep.subr.bf16.mxu0 0
        %7094 = vmatpush1.bf16.msra.mxu0 %v6838
        %7095 = vmatprep.subr.bf16.mxu0 0
        %7096 = vmatpush1.bf16.msra.mxu0 %v6839
        %7097 = vmatprep.subr.bf16.mxu0 0
        %7098 = vmatpush1.bf16.msra.mxu0 %v6840
        %7099 = vmatprep.mubr.bf16.mxu0 %v6330
        %7100 = vmatmul.mubr.bf16.gmra.mrb[0].mxu0 %v6329
        %v7101 = vpop.f32.mrb[0].mxu0
        %v7102 = vadd.f32 %v7037, %v7101
        %v7103 = vpop.f32.mrb[0].mxu0
        %v7104 = vpop.f32.mrb[0].mxu0
        %v7105 = vadd.f32 %v7040, %v7104
        %v7106 = vpop.f32.mrb[0].mxu0
        %7107 = vmatprep.mubr.bf16.mxu0 %v6339
        %7108 = vmatmul.mubr.bf16.gmra.mrb[0].mxu0 %v6338
        %v7109 = vpop.f32.mrb[0].mxu0
        %v7110 = vadd.f32 %v7045, %v7109
        %v7111 = vpop.f32.mrb[0].mxu0
        %v7112 = vpop.f32.mrb[0].mxu0
        %v7113 = vadd.f32 %v7048, %v7112
        %v7114 = vpop.f32.mrb[0].mxu0
        %7115 = vmatprep.mubr.bf16.mxu0 %v6348
        %7116 = vmatmul.mubr.bf16.gmra.mrb[0].mxu0 %v6347
        %v7117 = vpop.f32.mrb[0].mxu0
        %v7118 = vadd.f32 %v7053, %v7117
        %v7119 = vpop.f32.mrb[0].mxu0
        %v7120 = vpop.f32.mrb[0].mxu0
        %v7121 = vadd.f32 %v7056, %v7120
        %v7122 = vpop.f32.mrb[0].mxu0
        %7123 = vmatprep.mubr.bf16.mxu0 %v6357
        %7124 = vmatmul.mubr.bf16.gmra.mrb[0].mxu0 %v6356
        %v7125 = vpop.f32.mrb[0].mxu0
        %v7126 = vadd.f32 %v7061, %v7125
        %v7127 = vpop.f32.mrb[0].mxu0
        %v7128 = vpop.f32.mrb[0].mxu0
        %v7129 = vadd.f32 %v7064, %v7128
        %v7130 = vpop.f32.mrb[0].mxu0
        %7131 = vdwg.mxu0
        %7132 = vmatprep.subr.bf16.mxu0 0
        %7133 = vmatpush1.bf16.msra.mxu0 %v6841
        %7134 = vmatprep.subr.bf16.mxu0 0
        %7135 = vmatpush1.bf16.msra.mxu0 %v6842
        %7136 = vmatprep.subr.bf16.mxu0 0
        %7137 = vmatpush1.bf16.msra.mxu0 %v6843
        %7138 = vmatprep.subr.bf16.mxu0 0
        %7139 = vmatpush1.bf16.msra.mxu0 %v6844
        %7140 = vmatprep.subr.bf16.mxu0 0
        %7141 = vmatpush1.bf16.msra.mxu0 %v6845
        %7142 = vmatprep.subr.bf16.mxu0 0
        %7143 = vmatpush1.bf16.msra.mxu0 %v6846
        %7144 = vmatprep.subr.bf16.mxu0 0
        %7145 = vmatpush1.bf16.msra.mxu0 %v6847
        %7146 = vmatprep.subr.bf16.mxu0 0
        %7147 = vmatpush1.bf16.msra.mxu0 %v6848
        %7148 = vmatprep.subr.bf16.mxu0 0
        %7149 = vmatpush1.bf16.msra.mxu0 %v6849
        %7150 = vmatprep.subr.bf16.mxu0 0
        %7151 = vmatpush1.bf16.msra.mxu0 %v6850
        %7152 = vmatprep.subr.bf16.mxu0 0
        %7153 = vmatpush1.bf16.msra.mxu0 %v6851
        %7154 = vmatprep.subr.bf16.mxu0 0
        %7155 = vmatpush1.bf16.msra.mxu0 %v6852
        %7156 = vmatprep.subr.bf16.mxu0 0
        %7157 = vmatpush1.bf16.msra.mxu0 %v6853
        %7158 = vmatprep.subr.bf16.mxu0 0
        %7159 = vmatpush1.bf16.msra.mxu0 %v6854
        %7160 = vmatprep.subr.bf16.mxu0 0
        %7161 = vmatpush1.bf16.msra.mxu0 %v6855
        %7162 = vmatprep.subr.bf16.mxu0 0
        %7163 = vmatpush1.bf16.msra.mxu0 %v6856
        %7164 = vmatprep.mubr.bf16.mxu0 %v6332
        %7165 = vmatmul.mubr.bf16.gmra.mrb[0].mxu0 %v6331
        %v7166 = vpop.f32.mrb[0].mxu0
        %v7167 = vadd.f32 %v7102, %v7166
        %v7168 = vpop.f32.mrb[0].mxu0
        %v7169 = vpop.f32.mrb[0].mxu0
        %v7170 = vadd.f32 %v7105, %v7169
        %v7171 = vpop.f32.mrb[0].mxu0
        %7172 = vmatprep.mubr.bf16.mxu0 %v6341
        %7173 = vmatmul.mubr.bf16.gmra.mrb[0].mxu0 %v6340
        %v7174 = vpop.f32.mrb[0].mxu0
        %v7175 = vadd.f32 %v7110, %v7174
        %v7176 = vpop.f32.mrb[0].mxu0
        %v7177 = vpop.f32.mrb[0].mxu0
        %v7178 = vadd.f32 %v7113, %v7177
        %v7179 = vpop.f32.mrb[0].mxu0
        %7180 = vmatprep.mubr.bf16.mxu0 %v6350
        %7181 = vmatmul.mubr.bf16.gmra.mrb[0].mxu0 %v6349
        %v7182 = vpop.f32.mrb[0].mxu0
        %v7183 = vadd.f32 %v7118, %v7182
        %v7184 = vpop.f32.mrb[0].mxu0
        %v7185 = vpop.f32.mrb[0].mxu0
        %v7186 = vadd.f32 %v7121, %v7185
        %v7187 = vpop.f32.mrb[0].mxu0
        %7188 = vmatprep.mubr.bf16.mxu0 %v6359
        %7189 = vmatmul.mubr.bf16.gmra.mrb[0].mxu0 %v6358
        %v7190 = vpop.f32.mrb[0].mxu0
        %v7191 = vadd.f32 %v7126, %v7190
        %v7192 = vpop.f32.mrb[0].mxu0
        %v7193 = vpop.f32.mrb[0].mxu0
        %v7194 = vadd.f32 %v7129, %v7193
        %v7195 = vpop.f32.mrb[0].mxu0
        %7196 = vdwg.mxu0
        %7197 = vmatprep.subr.bf16.mxu0 0
        %7198 = vmatpush1.bf16.msra.mxu0 %v6857
        %7199 = vmatprep.subr.bf16.mxu0 0
        %7200 = vmatpush1.bf16.msra.mxu0 %v6858
        %7201 = vmatprep.subr.bf16.mxu0 0
        %7202 = vmatpush1.bf16.msra.mxu0 %v6859
        %7203 = vmatprep.subr.bf16.mxu0 0
        %7204 = vmatpush1.bf16.msra.mxu0 %v6860
        %7205 = vmatprep.subr.bf16.mxu0 0
        %7206 = vmatpush1.bf16.msra.mxu0 %v6861
        %7207 = vmatprep.subr.bf16.mxu0 0
        %7208 = vmatpush1.bf16.msra.mxu0 %v6862
        %7209 = vmatprep.subr.bf16.mxu0 0
        %7210 = vmatpush1.bf16.msra.mxu0 %v6863
        %7211 = vmatprep.subr.bf16.mxu0 0
        %7212 = vmatpush1.bf16.msra.mxu0 %v6864
        %7213 = vmatprep.subr.bf16.mxu0 0
        %7214 = vmatpush1.bf16.msra.mxu0 0
        %7215 = vmatprep.subr.bf16.mxu0 0
        %7216 = vmatpush1.bf16.msra.mxu0 0
        %7217 = vmatprep.subr.bf16.mxu0 0
        %7218 = vmatpush1.bf16.msra.mxu0 0
        %7219 = vmatprep.subr.bf16.mxu0 0
        %7220 = vmatpush1.bf16.msra.mxu0 0
        %7221 = vmatprep.subr.bf16.mxu0 0
        %7222 = vmatpush1.bf16.msra.mxu0 0
        %7223 = vmatprep.subr.bf16.mxu0 0
        %7224 = vmatpush1.bf16.msra.mxu0 0
        %7225 = vmatprep.subr.bf16.mxu0 0
        %7226 = vmatpush1.bf16.msra.mxu0 0
        %7227 = vmatprep.subr.bf16.mxu0 0
        %7228 = vmatpush1.bf16.msra.mxu0 0
        %7229 = vmatprep.mubr.bf16.mxu0 0
        %7230 = vmatmul.mubr.bf16.gmra.mrb[0].mxu0 %v6333
        %v7231 = vpop.f32.mrb[0].mxu0
        %v7232 = vadd.f32 %v7167, %v7231
        %v7233 = vpop.f32.mrb[0].mxu0
        %v7234 = vpop.f32.mrb[0].mxu0
        %v7235 = vadd.f32 %v7170, %v7234
        %v7236 = vpop.f32.mrb[0].mxu0
        %7237 = vmatprep.mubr.bf16.mxu0 0
        %7238 = vmatmul.mubr.bf16.gmra.mrb[0].mxu0 %v6342
        %v7239 = vpop.f32.mrb[0].mxu0
        %v7240 = vadd.f32 %v7175, %v7239
        %v7241 = vpop.f32.mrb[0].mxu0
        %v7242 = vpop.f32.mrb[0].mxu0
        %v7243 = vadd.f32 %v7178, %v7242
        %v7244 = vpop.f32.mrb[0].mxu0
        %7245 = vmatprep.mubr.bf16.mxu0 0
        %7246 = vmatmul.mubr.bf16.gmra.mrb[0].mxu0 %v6351
        %v7247 = vpop.f32.mrb[0].mxu0
        %v7248 = vadd.f32 %v7183, %v7247
        %v7249 = vpop.f32.mrb[0].mxu0
        %v7250 = vpop.f32.mrb[0].mxu0
        %v7251 = vadd.f32 %v7186, %v7250
        %v7252 = vpop.f32.mrb[0].mxu0
        %7253 = vmatprep.mubr.bf16.mxu0 0
        %7254 = vmatmul.mubr.bf16.gmra.mrb[0].mxu0 %v6360
        %v7255 = vpop.f32.mrb[0].mxu0
        %v7256 = vadd.f32 %v7191, %v7255
        %v7257 = vpop.f32.mrb[0].mxu0
        %v7258 = vpop.f32.mrb[0].mxu0
        %v7259 = vadd.f32 %v7194, %v7258
        %v7260 = vpop.f32.mrb[0].mxu0
        %7261 = vdwg.mxu0
        %v7262 = vld [vmem:[%s4 + $0x2] sm:$0x1]
        %v7263 = vlaneseq
        %v7264 = vshrl.u32 %v7263, 7
        %v7265 = vsub.s32 0, %v7264
        %v7266 = vrot.slane %v7262, %v7265
        %v7267 = vmul.f32 %v7232, %v7266
        %v7268 = vmul.f32 %v7235, %v7266
        %v7269 = vmul.f32 %v7240, %v7266
        %v7270 = vmul.f32 %v7243, %v7266
        %v7271 = vmul.f32 %v7248, %v7266
        %v7272 = vmul.f32 %v7251, %v7266
        %v7273 = vmul.f32 %v7256, %v7266
        %v7274 = vmul.f32 %v7259, %v7266
        %v7275 = vld [vmem:[%s5 + $0x2] sm:$0x1]
        %v7276 = vlaneseq
        %v7277 = vshrl.u32 %v7276, 7
        %v7278 = vsub.s32 0, %v7277
        %v7279 = vrot.slane %v7275, %v7278
        %v7280 = vadd.f32 %v7267, %v7279
        %v7281 = vadd.f32 %v7268, %v7279
        %v7282 = vadd.f32 %v7269, %v7279
        %v7283 = vadd.f32 %v7270, %v7279
        %v7284 = vadd.f32 %v7271, %v7279
        %v7285 = vadd.f32 %v7272, %v7279
        %v7286 = vadd.f32 %v7273, %v7279
        %v7287 = vadd.f32 %v7274, %v7279
        %v7288 = vmax.f32 %v7280, 0.0
        %v7289 = vmax.f32 %v7281, 0.0
        %v7290 = vmax.f32 %v7282, 0.0
        %v7291 = vmax.f32 %v7283, 0.0
        %v7292 = vmax.f32 %v7284, 0.0
        %v7293 = vmax.f32 %v7285, 0.0
        %v7294 = vmax.f32 %v7286, 0.0
        %v7295 = vmax.f32 %v7287, 0.0
        %7296 = vst [vmem:[%s261] sm:$0xff] %v7288
        %7297 = vst [vmem:[%s261 + $0x8] sm:$0xff] %v7289
        %7298 = vst [vmem:[%s261 + $0x10] sm:$0xff] %v7290
        %7299 = vst [vmem:[%s261 + $0x18] sm:$0xff] %v7291
        %7300 = vst [vmem:[%s261 + $0x20] sm:$0xff] %v7292
        %7301 = vst [vmem:[%s261 + $0x28] sm:$0xff] %v7293
        %7302 = vst [vmem:[%s261 + $0x30] sm:$0xff] %v7294
        %7303 = vst [vmem:[%s261 + $0x38] sm:$0xff] %v7295
        %s7304 = sand.u32 %s149, 1
        %s7305 = scalar_lea.sflag [#allocation9], %s7304
        %s7306 = sand.u32 %s149, 1
        %s7307 = smul.addr %s7306, 64
        %s7308 = scalar_lea.vmem [#allocation13], %s7307
        // Predicated region
        $region69: #{tpu_custom_call.1} parent=39 // pred_check
          %p7309 = pneg %p159
        $region70: #{tpu_custom_call.1} parent=39 // pred_check_branch
          %7311 = sbr.rel (%p7309) target = $region72
        $region71: #{tpu_custom_call.1} parent=39 // pred_region
          %s7312 = smul.u32 8, %s27
          %s7314 = ssub.s32 1024, 1024
          %7315 = vsyncadd %s7305, %s7314
          %s7316 = smul.addr %s26, 8
          %s7317 = sadd.s32 %s7312, %s7316
          %s7318 = smul.addr %s7317, 128
          %s7319 = scalar_lea.hbm %s6, %s7318
          %s7320 = sshll.u32 %s7308, 4
          %s7321 = int_to_ptr.vmem [resolvable:$true] %s7320
          %7326 = dma.vmem_to_hbm [thread:$0]  %s7321, 1024, %s7319, %s7305, 128, 128, 8
        $region72: #{tpu_custom_call.1} parent=39 // pred_fallthru
          _
      $region40: #{tpu_custom_call.1} parent=5 // pred_fallthru
        _
      %p7327 = scmp.le.s32.totalorder 2, %s17
      // Predicated region
      $region73: #{tpu_custom_call.1} parent=5 // pred_check
        %p7328 = pneg %p7327
      $region74: #{tpu_custom_call.1} parent=5 // pred_check_branch
        %7330 = sbr.rel (%p7328) target = $region76
      $region75: #{tpu_custom_call.1} parent=5 // pred_region
        %s7331 = ssub.s32 %s17, 2
        // Predicated region
        $region77: #{tpu_custom_call.1} parent=75 // pred_check
          %p7332 = pneg %p165
        $region78: #{tpu_custom_call.1} parent=75 // pred_check_branch
          %7334 = sbr.rel (%p7332) target = $region80
        $region79: #{tpu_custom_call.1} parent=75 // pred_region
          %s7335 = sand.u32 %s150, 1
          %s7336 = scalar_lea.sflag [#allocation9], %s7335
          %s7337 = sand.u32 %s150, 1
          %s7338 = smul.addr %s7337, 64
          %s7339 = scalar_lea.vmem [#allocation13], %s7338
          %7340 = dma.done %s7336, 1024
        $region80: #{tpu_custom_call.1} parent=75 // pred_fallthru
          _
      $region76: #{tpu_custom_call.1} parent=5 // pred_fallthru
        _
    $region6: #{tpu_custom_call.1} parent=1 // loop_footer
      %s21 = sadd.s32 1, %s17
    $region7: #{tpu_custom_call.1} parent=1 // loop_footer_branch
      %16 = sbr.rel target = $region3
    $region8: #{tpu_custom_call.1} parent=1 // loop_exit
      _
    %7341 = vsyncpa [#allocation8], 1
    %s7342 = scalar_lea.sflag [#allocation8], 1
    %7343 = vsyncpa %s7342, 1
    %7344 = vsyncpa [#allocation11], 1
    %7345 = vsyncpa [#allocation9], 1
    %s7346 = scalar_lea.sflag [#allocation9], 1
    %7347 = vsyncpa %s7346, 1
  %7348 = vsyncmov [#allocation6]
  %s7349 = vpop.sfrf %7348
  %p7350 = scmp.eq.s32.totalorder %s7349, 0
  %p7351 = pneg %p7350
  %7353 = shalt.err (%p7351)
  %s7354 = scalar_lea.sflag [#allocation6], 1
  %7355 = vsyncmov %s7354
  %s7356 = vpop.sfrf %7355
  %p7357 = scmp.eq.s32.totalorder %s7356, 0
  %p7358 = pneg %p7357
  %7360 = shalt.err (%p7358)

</llo_original>
